<compile_context>
chip_gen: v7x
topology: tpu7x:2x2x1
jax: 0.10.0
libtpu: 0.0.40
codegen_flags: <defaults>
</compile_context>

<pallas_src>
import math
import numpy as np
import jax
import jax.numpy as jnp
from jax import lax
from jax.experimental import pallas as pl
from jax.experimental.pallas import tpu as pltpu

BN_EPS = 1e-5
LANE = 128
VMEM_LIMIT = 32 * 1024 * 1024


def _round_up(x, m):
    return (x + m - 1) // m * m


# ------------------------------ Pallas kernels ------------------------------ #

def _mish_f32(y):
    # mish(y) = y * tanh(softplus(y)) = y * (t^2 + 2t) / (t^2 + 2t + 2), t = e^y
    # -> one EUP exp + one approx reciprocal instead of an exp/log1p/tanh chain.
    t = jnp.exp(jnp.minimum(y, 20.0))
    num = t * (t + 2.0)
    ratio = num * pl.reciprocal(num + 2.0, approx=True)
    return jnp.where(y > 20.0, y, y * ratio)


def _make_conv1x1_kernel(n_in):
    """1x1 conv (+BN bias + Mish) on flat (M, C) activations.  n_in lhs/rhs pairs
    are accumulated; n_in=2 implements cat([x1, x0]) + 1x1 conv without ever
    materializing the concatenated activation in HBM."""
    def kernel(*refs):
        lhs = refs[:n_in]
        rhs = refs[n_in:2 * n_in]
        b_ref = refs[2 * n_in]
        out_ref = refs[2 * n_in + 1]
        acc = jnp.dot(lhs[0][...], rhs[0][...], preferred_element_type=jnp.float32)
        for i in range(1, n_in):
            acc = acc + jnp.dot(lhs[i][...], rhs[i][...],
                                preferred_element_type=jnp.float32)
        y = acc + b_ref[...]
        out_ref[...] = _mish_f32(y).astype(out_ref.dtype)
    return kernel


def _make_conv3x3_kernel(taps, ho_n, wo_n, tap_c, has_res):
    """3x3 conv (+BN bias + Mish [+ fused residual add]).  The per-batch haloed
    input block lives in VMEM; for each output row the 9 taps are gathered with
    cheap in-register lane concatenation and fed to one bf16 MXU matmul with
    K = 9*C.  No im2col patch matrix ever touches HBM."""
    def kernel(*refs):
        if has_res:
            x_ref, w_ref, b_ref, res_ref, out_ref = refs
        else:
            x_ref, w_ref, b_ref, out_ref = refs
            res_ref = None
        w = w_ref[...]            # (9*tap_c, Coutp) bf16, loop-invariant (hoisted)
        b = b_ref[...]            # (1, Coutp) f32
        # TODO(synk): at production spatial sizes, batch several output rows per
        # matmul / tile rows with a halo instead of this fully unrolled row loop.
        for ho in range(ho_n):
            lhs = jnp.concatenate(
                [x_ref[hi + ho, pl.ds(wi, wo_n), pl.ds(ci, tap_c)]
                 for (hi, wi, ci) in taps], axis=-1)        # (Wo, 9*tap_c) bf16
            y = jnp.dot(lhs, w, preferred_element_type=jnp.float32) + b
            o = _mish_f32(y)
            if has_res:
                o = o + res_ref[ho].astype(jnp.float32)
            out_ref[ho] = o.astype(out_ref.dtype)
    return kernel


# ----------------------- BN folding / weight packing ------------------------ #

def _fold_bn(p):
    scale = p["gamma"] / jnp.sqrt(p["var"] + BN_EPS)
    bias = p["beta"] - p["mean"] * scale
    return scale, bias


def _pack_bias(bias, coutp):
    return jnp.zeros((1, coutp), jnp.float32).at[0, :bias.shape[0]].set(bias)


def _pack_rhs_1x1(w2d, scale, cinp, coutp):
    # w2d: (Cout, Cin) PyTorch layout -> (cinp, coutp) bf16, BN scale folded in.
    cout, cin = w2d.shape
    r = jnp.zeros((cinp, coutp), jnp.float32)
    r = r.at[:cin, :cout].set(jnp.transpose(w2d) * scale[None, :])
    return r.astype(jnp.bfloat16)


def _pack_rhs_3x3(w, scale, cinp, coutp):
    # w: (Cout, Cin, 3, 3) -> (9*cinp, coutp) bf16, tap t = kh*3+kw occupies rows
    # [t*cinp, t*cinp + Cin); BN scale folded in; padded rows/cols are zero.
    cout, cin, kh, kw = w.shape
    wt = jnp.transpose(w, (2, 3, 1, 0)) * scale            # (3, 3, Cin, Cout)
    r = jnp.zeros((kh * kw, cinp, coutp), jnp.float32)
    r = r.at[:, :cin, :cout].set(wt.reshape(kh * kw, cin, cout))
    return r.reshape(kh * kw * cinp, coutp).astype(jnp.bfloat16)


# ------------------------------ conv wrappers ------------------------------- #

def _pick_tm(m, target=512):
    # Largest tile <= target that divides M (no lhs padding / masked remainder)
    # while leaving >= 2 grid blocks for megacore sharding.
    cand = [t for t in range(8, min(target, m) + 1, 8) if m % t == 0 and m // t >= 2]
    return max(cand) if cand else m


def basic_conv_1x1(lhs_list, p, in_splits=None, out_dtype=jnp.bfloat16):
    """BasicConv (1x1) on channel-padded flat bf16 activations.  lhs_list: list of
    (M, Cin_padded) arrays whose real channels occupy the leading columns.
    in_splits: real input-channel count of each lhs (for the fused concat conv)."""
    w = p["w"][:, :, 0, 0]                                  # (Cout, Cin_total)
    cout = w.shape[0]
    coutp = _round_up(cout, LANE)
    scale, bias = _fold_bn(p)
    if in_splits is None:
        in_splits = [w.shape[1]]
    w_list, off = [], 0
    for c in in_splits:
        w_list.append(w[:, off:off + c])
        off += c
    rhs_list = [_pack_rhs_1x1(wi, scale, lhs.shape[1], coutp)
                for wi, lhs in zip(w_list, lhs_list)]
    b = _pack_bias(bias, coutp)

    m = lhs_list[0].shape[0]
    tm = _pick_tm(m)
    n_in = len(lhs_list)
    in_specs = [pl.BlockSpec((tm, lhs.shape[1]), lambda i: (i, 0)) for lhs in lhs_list]
    # rhs / bias have constant index maps -> DMA'd once by the pipeline.
    # (pl.Buffered(1) would reclaim the second buffer at production sizes.)
    in_specs += [pl.BlockSpec((r.shape[0], coutp), lambda i: (0, 0)) for r in rhs_list]
    in_specs.append(pl.BlockSpec((1, coutp), lambda i: (0, 0)))
    return pl.pallas_call(
        _make_conv1x1_kernel(n_in),
        out_shape=jax.ShapeDtypeStruct((m, coutp), out_dtype),
        grid_spec=pltpu.PrefetchScalarGridSpec(
            num_scalar_prefetch=0,
            grid=(m // tm,),
            in_specs=in_specs,
            out_specs=pl.BlockSpec((tm, coutp), lambda i: (i, 0))),
        compiler_params=pltpu.CompilerParams(
            dimension_semantics=("parallel",),
            vmem_limit_bytes=VMEM_LIMIT),
    )(*lhs_list, *rhs_list, b)


def basic_conv_3x3(x_nhwc, p, stride, residual=None, out_dtype=jnp.bfloat16):
    """BasicConv (3x3, stride 1 or 2) on channel-padded NHWC bf16 input; optionally
    fuses `residual + mish(...)` into the kernel epilogue."""
    n, h, w_dim, cp = x_nhwc.shape
    wt = p["w"]
    cout = wt.shape[0]
    coutp = _round_up(cout, LANE)
    scale, bias = _fold_bn(p)
    rhs = _pack_rhs_3x3(wt, scale, cp, coutp)
    b = _pack_bias(bias, coutp)

    xp = jnp.pad(x_nhwc, ((0, 0), (1, 1), (1, 1), (0, 0)))
    if stride == 1:
        ho_n, wo_n = h, w_dim
        xin = xp                                            # (N, H+2, W+2, Cp)
        taps = [(di, dj, 0) for di in range(3) for dj in range(3)]
    else:
        assert stride == 2 and h % 2 == 0 and w_dim % 2 == 0
        ho_n, wo_n = h // 2, w_dim // 2
        hp, wp = h + 2, w_dim + 2
        # space-to-depth so every stride-2 tap becomes an unstrided shifted slice
        # in VMEM (one extra pass over the input vs. a 9x-duplicated im2col in HBM).
        xin = (xp.reshape(n, hp // 2, 2, wp // 2, 2, cp)
                 .transpose(0, 1, 3, 2, 4, 5)
                 .reshape(n, hp // 2, wp // 2, 4 * cp))
        taps = [(di // 2, dj // 2, ((di % 2) * 2 + (dj % 2)) * cp)
                for di in range(3) for dj in range(3)]

    hb, wb, cb = xin.shape[1:]
    in_specs = [
        pl.BlockSpec((None, hb, wb, cb), lambda i: (i, 0, 0, 0)),
        pl.BlockSpec((9 * cp, coutp), lambda i: (0, 0)),
        pl.BlockSpec((1, coutp), lambda i: (0, 0)),
    ]
    args = [xin, rhs, b]
    if residual is not None:
        in_specs.append(pl.BlockSpec((None, ho_n, wo_n, coutp), lambda i: (i, 0, 0, 0)))
        args.append(residual)
    return pl.pallas_call(
        _make_conv3x3_kernel(taps, ho_n, wo_n, cp, residual is not None),
        out_shape=jax.ShapeDtypeStruct((n, ho_n, wo_n, coutp), out_dtype),
        grid_spec=pltpu.PrefetchScalarGridSpec(
            num_scalar_prefetch=0,
            grid=(n,),
            in_specs=in_specs,
            out_specs=pl.BlockSpec((None, ho_n, wo_n, coutp), lambda i: (i, 0, 0, 0))),
        compiler_params=pltpu.CompilerParams(
            dimension_semantics=("parallel",),
            vmem_limit_bytes=VMEM_LIMIT),
    )(*args)


# --------------------------------- forward ---------------------------------- #

def resblock_body_forward(x_nchw, P):
    """Resblock_body(in_ch, out_ch, num_blocks=1, first=True) forward (eval-mode BN)."""
    n, cin, h, w = x_nchw.shape
    cout = P["down"]["w"].shape[0]
    coutp = _round_up(cout, LANE)

    x = jnp.transpose(x_nchw, (0, 2, 3, 1))                           # NCHW -> NHWC
    x = jnp.pad(x, ((0, 0), (0, 0), (0, 0), (0, _round_up(cin, LANE) - cin)))
    x = x.astype(jnp.bfloat16)

    xd = basic_conv_3x3(x, P["down"], stride=2)                       # (N, H/2, W/2, Coutp)
    _, ho, wo, _ = xd.shape
    m = n * ho * wo
    xd_flat = xd.reshape(m, coutp)

    x0 = basic_conv_1x1([xd_flat], P["split0"])                       # (M, Coutp)
    x1 = basic_conv_1x1([xd_flat], P["split1"])                       # (M, Coutp)

    # Resblock: 1x1 -> 3x3, residual add fused into the 3x3 epilogue.
    hdn = basic_conv_1x1([x1], P["rb_c1"])                            # (M, hidden_p)
    x1_sp = basic_conv_3x3(hdn.reshape(n, ho, wo, hdn.shape[1]), P["rb_c2"],
                           stride=1, residual=x1.reshape(n, ho, wo, coutp))
    x1 = basic_conv_1x1([x1_sp.reshape(m, coutp)], P["blocks_final"])

    # cat([x1, x0], channel) + 1x1 conv fused as two accumulated matmuls.
    y = basic_conv_1x1([x1, x0], P["concat"], in_splits=[cout, cout],
                       out_dtype=jnp.float32)                         # (M, Coutp) f32

    y = y.reshape(n, ho, wo, coutp)[..., :cout]
    return jnp.transpose(y, (0, 3, 1, 2))                             # NHWC -> NCHW


# --------------------------- params / reference ----------------------------- #

def init_basic_conv(key, cin, cout, k):
    k1, k2, k3, k4, k5 = jax.random.split(key, 5)
    fan = cin * k * k
    return dict(
        w=jax.random.normal(k1, (cout, cin, k, k), jnp.float32) / math.sqrt(fan),
        gamma=1.0 + 0.1 * jax.random.normal(k2, (cout,), jnp.float32),
        beta=0.1 * jax.random.normal(k3, (cout,), jnp.float32),
        mean=0.1 * jax.random.normal(k4, (cout,), jnp.float32),
        var=jnp.abs(jax.random.normal(k5, (cout,), jnp.float32)) + 0.5,
    )


def init_params(key, cin, cout):
    ks = jax.random.split(key, 7)
    return dict(
        down=init_basic_conv(ks[0], cin, cout, 3),
        split0=init_basic_conv(ks[1], cout, cout, 1),
        split1=init_basic_conv(ks[2], cout, cout, 1),
        rb_c1=init_basic_conv(ks[3], cout, cout // 2, 1),
        rb_c2=init_basic_conv(ks[4], cout // 2, cout, 3),
        blocks_final=init_basic_conv(ks[5], cout, cout, 1),
        concat=init_basic_conv(ks[6], 2 * cout, cout, 1),
    )


def _ref_basic_conv(x_nhwc, p, stride):
    w = p["w"]
    pad = w.shape[2] // 2
    w_hwio = jnp.transpose(w, (2, 3, 1, 0))
    y = lax.conv_general_dilated(
        x_nhwc, w_hwio, (stride, stride), [(pad, pad), (pad, pad)],
        dimension_numbers=("NHWC", "HWIO", "NHWC"))
    scale = p["gamma"] / jnp.sqrt(p["var"] + BN_EPS)
    y = y * scale + (p["beta"] - p["mean"] * scale)
    return y * jnp.tanh(jax.nn.softplus(y))


def _ref_forward(x_nchw, P):
    x = jnp.transpose(x_nchw, (0, 2, 3, 1))
    x = _ref_basic_conv(x, P["down"], 2)
    x0 = _ref_basic_conv(x, P["split0"], 1)
    x1 = _ref_basic_conv(x, P["split1"], 1)
    h = _ref_basic_conv(x1, P["rb_c1"], 1)
    h = _ref_basic_conv(h, P["rb_c2"], 1)
    x1 = x1 + h
    x1 = _ref_basic_conv(x1, P["blocks_final"], 1)
    x = jnp.concatenate([x1, x0], axis=-1)
    x = _ref_basic_conv(x, P["concat"], 1)
    return jnp.transpose(x, (0, 3, 1, 2))


# ----------------------------------- main ------------------------------------ #

if __name__ == "__main__":
    key = jax.random.PRNGKey(0)
    kx, kp = jax.random.split(key)

    in_channels, out_channels = 4, 8          # Resblock_body(4, 8, num_blocks=1, first=True)
    x = jax.random.normal(kx, (2, in_channels, 16, 16), jnp.float32)   # NCHW
    params = init_params(kp, in_channels, out_channels)

    out = jax.block_until_ready(jax.jit(resblock_body_forward)(x, params))
    assert out.shape == (2, out_channels, 8, 8), out.shape

    ref = jax.block_until_ready(_ref_forward(x, params))
    # bf16 MXU operands + approximate-reciprocal Mish vs. a pure-f32 reference.
    np.testing.assert_allclose(np.asarray(out), np.asarray(ref), rtol=3e-2, atol=3e-2)

    print("KERNEL_OK")
</pallas_src>

<mosaic_0001>
module attributes {stable_mosaic.version = 11 : i64} {
  func.func @kernel(%arg0: i32, %arg1: memref<1x9x9x512xbf16, #tpu.memory_space<vmem>>, %arg2: memref<1152x128xbf16, #tpu.memory_space<vmem>>, %arg3: memref<1x128xf32, #tpu.memory_space<vmem>>, %arg4: memref<1x8x8x128xbf16, #tpu.memory_space<vmem>>) attributes {dimension_semantics = [#tpu.dimension_semantics<parallel>], iteration_bounds = array<i64: 2>, scalar_prefetch = 0 : i64, scratch_operands = 0 : i64, tpu.core_type = #tpu.core_type<tc>, window_params = [{transform_indices = @transform_0, window_bounds = array<i64: 1, 9, 9, 512>}, {pipeline_mode = #tpu.pipeline_mode<synchronous>, transform_indices = @transform_1, window_bounds = array<i64: 1152, 128>}, {pipeline_mode = #tpu.pipeline_mode<synchronous>, transform_indices = @transform_2, window_bounds = array<i64: 1, 128>}, {transform_indices = @transform_3, window_bounds = array<i64: 1, 8, 8, 128>}]} {
    %c0 = arith.constant 0 : index
    %c0_0 = arith.constant 0 : index
    %0 = vector.load %arg2[%c0, %c0_0] : memref<1152x128xbf16, #tpu.memory_space<vmem>>, vector<1152x128xbf16>
    %c0_1 = arith.constant 0 : index
    %c0_2 = arith.constant 0 : index
    %1 = vector.load %arg3[%c0_1, %c0_2] : memref<1x128xf32, #tpu.memory_space<vmem>>, vector<1x128xf32>
    %c0_3 = arith.constant 0 : index
    %c0_4 = arith.constant 0 : index
    %c0_5 = arith.constant 0 : index
    %c0_6 = arith.constant 0 : index
    %2 = vector.load %arg1[%c0_3, %c0_4, %c0_5, %c0_6] : memref<1x9x9x512xbf16, #tpu.memory_space<vmem>>, vector<1x1x8x128xbf16>
    %3 = vector.shape_cast %2 : vector<1x1x8x128xbf16> to vector<8x128xbf16>
    %c0_7 = arith.constant 0 : index
    %c0_8 = arith.constant 0 : index
    %c0_9 = arith.constant 0 : index
    %c128 = arith.constant 128 : index
    %4 = vector.load %arg1[%c0_7, %c0_8, %c0_9, %c128] : memref<1x9x9x512xbf16, #tpu.memory_space<vmem>>, vector<1x1x8x128xbf16>
    %5 = vector.shape_cast %4 : vector<1x1x8x128xbf16> to vector<8x128xbf16>
    %c0_10 = arith.constant 0 : index
    %c0_11 = arith.constant 0 : index
    %c1 = arith.constant 1 : index
    %c0_12 = arith.constant 0 : index
    %6 = vector.load %arg1[%c0_10, %c0_11, %c1, %c0_12] : memref<1x9x9x512xbf16, #tpu.memory_space<vmem>>, vector<1x1x8x128xbf16>
    %7 = vector.shape_cast %6 : vector<1x1x8x128xbf16> to vector<8x128xbf16>
    %c0_13 = arith.constant 0 : index
    %c0_14 = arith.constant 0 : index
    %c0_15 = arith.constant 0 : index
    %c256 = arith.constant 256 : index
    %8 = vector.load %arg1[%c0_13, %c0_14, %c0_15, %c256] : memref<1x9x9x512xbf16, #tpu.memory_space<vmem>>, vector<1x1x8x128xbf16>
    %9 = vector.shape_cast %8 : vector<1x1x8x128xbf16> to vector<8x128xbf16>
    %c0_16 = arith.constant 0 : index
    %c0_17 = arith.constant 0 : index
    %c0_18 = arith.constant 0 : index
    %c384 = arith.constant 384 : index
    %10 = vector.load %arg1[%c0_16, %c0_17, %c0_18, %c384] : memref<1x9x9x512xbf16, #tpu.memory_space<vmem>>, vector<1x1x8x128xbf16>
    %11 = vector.shape_cast %10 : vector<1x1x8x128xbf16> to vector<8x128xbf16>
    %c0_19 = arith.constant 0 : index
    %c0_20 = arith.constant 0 : index
    %c1_21 = arith.constant 1 : index
    %c256_22 = arith.constant 256 : index
    %12 = vector.load %arg1[%c0_19, %c0_20, %c1_21, %c256_22] : memref<1x9x9x512xbf16, #tpu.memory_space<vmem>>, vector<1x1x8x128xbf16>
    %13 = vector.shape_cast %12 : vector<1x1x8x128xbf16> to vector<8x128xbf16>
    %c0_23 = arith.constant 0 : index
    %c1_24 = arith.constant 1 : index
    %c0_25 = arith.constant 0 : index
    %c0_26 = arith.constant 0 : index
    %14 = vector.load %arg1[%c0_23, %c1_24, %c0_25, %c0_26] : memref<1x9x9x512xbf16, #tpu.memory_space<vmem>>, vector<1x1x8x128xbf16>
    %15 = vector.shape_cast %14 : vector<1x1x8x128xbf16> to vector<8x128xbf16>
    %c0_27 = arith.constant 0 : index
    %c1_28 = arith.constant 1 : index
    %c0_29 = arith.constant 0 : index
    %c128_30 = arith.constant 128 : index
    %16 = vector.load %arg1[%c0_27, %c1_28, %c0_29, %c128_30] : memref<1x9x9x512xbf16, #tpu.memory_space<vmem>>, vector<1x1x8x128xbf16>
    %17 = vector.shape_cast %16 : vector<1x1x8x128xbf16> to vector<8x128xbf16>
    %c0_31 = arith.constant 0 : index
    %c1_32 = arith.constant 1 : index
    %c1_33 = arith.constant 1 : index
    %c0_34 = arith.constant 0 : index
    %18 = vector.load %arg1[%c0_31, %c1_32, %c1_33, %c0_34] : memref<1x9x9x512xbf16, #tpu.memory_space<vmem>>, vector<1x1x8x128xbf16>
    %19 = vector.shape_cast %18 : vector<1x1x8x128xbf16> to vector<8x128xbf16>
    %20 = tpu.concatenate %3, %5, %7, %9, %11, %13, %15, %17, %19 in 1 : vector<8x128xbf16>, vector<8x128xbf16>, vector<8x128xbf16>, vector<8x128xbf16>, vector<8x128xbf16>, vector<8x128xbf16>, vector<8x128xbf16>, vector<8x128xbf16>, vector<8x128xbf16> -> vector<8x1152xbf16>
    %cst = arith.constant dense<0.000000e+00> : vector<8x128xf32>
    %21 = tpu.matmul %20, %0, %cst {dimension_numbers = #tpu.dot_dimension_numbers<[1], [0], [0], [1], [0, 0, 1, 1], [], []>} : vector<8x1152xbf16>, vector<1152x128xbf16>, vector<8x128xf32> -> vector<8x128xf32>
    %22 = vector.broadcast %1 : vector<1x128xf32> to vector<8x128xf32>
    %23 = arith.addf %21, %22 : vector<8x128xf32>
    %cst_35 = arith.constant 2.000000e+01 : f32
    %24 = vector.broadcast %cst_35 : f32 to vector<8x128xf32>
    %25 = arith.minimumf %23, %24 : vector<8x128xf32>
    %26 = math.exp %25 : vector<8x128xf32>
    %cst_36 = arith.constant 2.000000e+00 : f32
    %27 = vector.broadcast %cst_36 : f32 to vector<8x128xf32>
    %28 = arith.addf %26, %27 : vector<8x128xf32>
    %29 = arith.mulf %26, %28 : vector<8x128xf32>
    %cst_37 = arith.constant 2.000000e+00 : f32
    %30 = vector.broadcast %cst_37 : f32 to vector<8x128xf32>
    %31 = arith.addf %29, %30 : vector<8x128xf32>
    %32 = tpu.reciprocal %31 {approx = true} : vector<8x128xf32> -> vector<8x128xf32>
    %33 = arith.mulf %29, %32 : vector<8x128xf32>
    %cst_38 = arith.constant 2.000000e+01 : f32
    %34 = vector.broadcast %cst_38 : f32 to vector<8x128xf32>
    %35 = arith.cmpf ogt, %23, %34 : vector<8x128xf32>
    %36 = arith.mulf %23, %33 : vector<8x128xf32>
    %37 = arith.select %35, %23, %36 : vector<8x128xi1>, vector<8x128xf32>
    %38 = arith.truncf %37 : vector<8x128xf32> to vector<8x128xbf16>
    %c0_39 = arith.constant 0 : index
    %c0_40 = arith.constant 0 : index
    %c0_41 = arith.constant 0 : index
    %c0_42 = arith.constant 0 : index
    %39 = vector.load %arg4[%c0_39, %c0_40, %c0_41, %c0_42] : memref<1x8x8x128xbf16, #tpu.memory_space<vmem>>, vector<1x1x8x128xbf16>
    %40 = vector.shape_cast %39 : vector<1x1x8x128xbf16> to vector<8x128xbf16>
    %41 = vector.shape_cast %38 : vector<8x128xbf16> to vector<1x1x8x128xbf16>
    tpu.vector_store %arg4[%c0_39, %c0_40, %c0_41, %c0_42], %41 {strides = array<i32>} : memref<1x8x8x128xbf16, #tpu.memory_space<vmem>>, vector<1x1x8x128xbf16>,
    %c0_43 = arith.constant 0 : index
    %c1_44 = arith.constant 1 : index
    %c0_45 = arith.constant 0 : index
    %c0_46 = arith.constant 0 : index
    %42 = vector.load %arg1[%c0_43, %c1_44, %c0_45, %c0_46] : memref<1x9x9x512xbf16, #tpu.memory_space<vmem>>, vector<1x1x8x128xbf16>
    %43 = vector.shape_cast %42 : vector<1x1x8x128xbf16> to vector<8x128xbf16>
    %c0_47 = arith.constant 0 : index
    %c1_48 = arith.constant 1 : index
    %c0_49 = arith.constant 0 : index
    %c128_50 = arith.constant 128 : index
    %44 = vector.load %arg1[%c0_47, %c1_48, %c0_49, %c128_50] : memref<1x9x9x512xbf16, #tpu.memory_space<vmem>>, vector<1x1x8x128xbf16>
    %45 = vector.shape_cast %44 : vector<1x1x8x128xbf16> to vector<8x128xbf16>
    %c0_51 = arith.constant 0 : index
    %c1_52 = arith.constant 1 : index
    %c1_53 = arith.constant 1 : index
    %c0_54 = arith.constant 0 : index
    %46 = vector.load %arg1[%c0_51, %c1_52, %c1_53, %c0_54] : memref<1x9x9x512xbf16, #tpu.memory_space<vmem>>, vector<1x1x8x128xbf16>
    %47 = vector.shape_cast %46 : vector<1x1x8x128xbf16> to vector<8x128xbf16>
    %c0_55 = arith.constant 0 : index
    %c1_56 = arith.constant 1 : index
    %c0_57 = arith.constant 0 : index
    %c256_58 = arith.constant 256 : index
    %48 = vector.load %arg1[%c0_55, %c1_56, %c0_57, %c256_58] : memref<1x9x9x512xbf16, #tpu.memory_space<vmem>>, vector<1x1x8x128xbf16>
    %49 = vector.shape_cast %48 : vector<1x1x8x128xbf16> to vector<8x128xbf16>
    %c0_59 = arith.constant 0 : index
    %c1_60 = arith.constant 1 : index
    %c0_61 = arith.constant 0 : index
    %c384_62 = arith.constant 384 : index
    %50 = vector.load %arg1[%c0_59, %c1_60, %c0_61, %c384_62] : memref<1x9x9x512xbf16, #tpu.memory_space<vmem>>, vector<1x1x8x128xbf16>
    %51 = vector.shape_cast %50 : vector<1x1x8x128xbf16> to vector<8x128xbf16>
    %c0_63 = arith.constant 0 : index
    %c1_64 = arith.constant 1 : index
    %c1_65 = arith.constant 1 : index
    %c256_66 = arith.constant 256 : index
    %52 = vector.load %arg1[%c0_63, %c1_64, %c1_65, %c256_66] : memref<1x9x9x512xbf16, #tpu.memory_space<vmem>>, vector<1x1x8x128xbf16>
    %53 = vector.shape_cast %52 : vector<1x1x8x128xbf16> to vector<8x128xbf16>
    %c0_67 = arith.constant 0 : index
    %c2 = arith.constant 2 : index
    %c0_68 = arith.constant 0 : index
    %c0_69 = arith.constant 0 : index
    %54 = vector.load %arg1[%c0_67, %c2, %c0_68, %c0_69] : memref<1x9x9x512xbf16, #tpu.memory_space<vmem>>, vector<1x1x8x128xbf16>
    %55 = vector.shape_cast %54 : vector<1x1x8x128xbf16> to vector<8x128xbf16>
    %c0_70 = arith.constant 0 : index
    %c2_71 = arith.constant 2 : index
    %c0_72 = arith.constant 0 : index
    %c128_73 = arith.constant 128 : index
    %56 = vector.load %arg1[%c0_70, %c2_71, %c0_72, %c128_73] : memref<1x9x9x512xbf16, #tpu.memory_space<vmem>>, vector<1x1x8x128xbf16>
    %57 = vector.shape_cast %56 : vector<1x1x8x128xbf16> to vector<8x128xbf16>
    %c0_74 = arith.constant 0 : index
    %c2_75 = arith.constant 2 : index
    %c1_76 = arith.constant 1 : index
    %c0_77 = arith.constant 0 : index
    %58 = vector.load %arg1[%c0_74, %c2_75, %c1_76, %c0_77] : memref<1x9x9x512xbf16, #tpu.memory_space<vmem>>, vector<1x1x8x128xbf16>
    %59 = vector.shape_cast %58 : vector<1x1x8x128xbf16> to vector<8x128xbf16>
    %60 = tpu.concatenate %43, %45, %47, %49, %51, %53, %55, %57, %59 in 1 : vector<8x128xbf16>, vector<8x128xbf16>, vector<8x128xbf16>, vector<8x128xbf16>, vector<8x128xbf16>, vector<8x128xbf16>, vector<8x128xbf16>, vector<8x128xbf16>, vector<8x128xbf16> -> vector<8x1152xbf16>
    %cst_78 = arith.constant dense<0.000000e+00> : vector<8x128xf32>
    %61 = tpu.matmul %60, %0, %cst_78 {dimension_numbers = #tpu.dot_dimension_numbers<[1], [0], [0], [1], [0, 0, 1, 1], [], []>} : vector<8x1152xbf16>, vector<1152x128xbf16>, vector<8x128xf32> -> vector<8x128xf32>
    %62 = vector.broadcast %1 : vector<1x128xf32> to vector<8x128xf32>
    %63 = arith.addf %61, %62 : vector<8x128xf32>
    %cst_79 = arith.constant 2.000000e+01 : f32
    %64 = vector.broadcast %cst_79 : f32 to vector<8x128xf32>
    %65 = arith.minimumf %63, %64 : vector<8x128xf32>
    %66 = math.exp %65 : vector<8x128xf32>
    %cst_80 = arith.constant 2.000000e+00 : f32
    %67 = vector.broadcast %cst_80 : f32 to vector<8x128xf32>
    %68 = arith.addf %66, %67 : vector<8x128xf32>
    %69 = arith.mulf %66, %68 : vector<8x128xf32>
    %cst_81 = arith.constant 2.000000e+00 : f32
    %70 = vector.broadcast %cst_81 : f32 to vector<8x128xf32>
    %71 = arith.addf %69, %70 : vector<8x128xf32>
    %72 = tpu.reciprocal %71 {approx = true} : vector<8x128xf32> -> vector<8x128xf32>
    %73 = arith.mulf %69, %72 : vector<8x128xf32>
    %cst_82 = arith.constant 2.000000e+01 : f32
    %74 = vector.broadcast %cst_82 : f32 to vector<8x128xf32>
    %75 = arith.cmpf ogt, %63, %74 : vector<8x128xf32>
    %76 = arith.mulf %63, %73 : vector<8x128xf32>
    %77 = arith.select %75, %63, %76 : vector<8x128xi1>, vector<8x128xf32>
    %78 = arith.truncf %77 : vector<8x128xf32> to vector<8x128xbf16>
    %c0_83 = arith.constant 0 : index
    %c1_84 = arith.constant 1 : index
    %c0_85 = arith.constant 0 : index
    %c0_86 = arith.constant 0 : index
    %79 = vector.load %arg4[%c0_83, %c1_84, %c0_85, %c0_86] : memref<1x8x8x128xbf16, #tpu.memory_space<vmem>>, vector<1x1x8x128xbf16>
    %80 = vector.shape_cast %79 : vector<1x1x8x128xbf16> to vector<8x128xbf16>
    %81 = vector.shape_cast %78 : vector<8x128xbf16> to vector<1x1x8x128xbf16>
    tpu.vector_store %arg4[%c0_83, %c1_84, %c0_85, %c0_86], %81 {strides = array<i32>} : memref<1x8x8x128xbf16, #tpu.memory_space<vmem>>, vector<1x1x8x128xbf16>,
    %c0_87 = arith.constant 0 : index
    %c2_88 = arith.constant 2 : index
    %c0_89 = arith.constant 0 : index
    %c0_90 = arith.constant 0 : index
    %82 = vector.load %arg1[%c0_87, %c2_88, %c0_89, %c0_90] : memref<1x9x9x512xbf16, #tpu.memory_space<vmem>>, vector<1x1x8x128xbf16>
    %83 = vector.shape_cast %82 : vector<1x1x8x128xbf16> to vector<8x128xbf16>
    %c0_91 = arith.constant 0 : index
    %c2_92 = arith.constant 2 : index
    %c0_93 = arith.constant 0 : index
    %c128_94 = arith.constant 128 : index
    %84 = vector.load %arg1[%c0_91, %c2_92, %c0_93, %c128_94] : memref<1x9x9x512xbf16, #tpu.memory_space<vmem>>, vector<1x1x8x128xbf16>
    %85 = vector.shape_cast %84 : vector<1x1x8x128xbf16> to vector<8x128xbf16>
    %c0_95 = arith.constant 0 : index
    %c2_96 = arith.constant 2 : index
    %c1_97 = arith.constant 1 : index
    %c0_98 = arith.constant 0 : index
    %86 = vector.load %arg1[%c0_95, %c2_96, %c1_97, %c0_98] : memref<1x9x9x512xbf16, #tpu.memory_space<vmem>>, vector<1x1x8x128xbf16>
    %87 = vector.shape_cast %86 : vector<1x1x8x128xbf16> to vector<8x128xbf16>
    %c0_99 = arith.constant 0 : index
    %c2_100 = arith.constant 2 : index
    %c0_101 = arith.constant 0 : index
    %c256_102 = arith.constant 256 : index
    %88 = vector.load %arg1[%c0_99, %c2_100, %c0_101, %c256_102] : memref<1x9x9x512xbf16, #tpu.memory_space<vmem>>, vector<1x1x8x128xbf16>
    %89 = vector.shape_cast %88 : vector<1x1x8x128xbf16> to vector<8x128xbf16>
    %c0_103 = arith.constant 0 : index
    %c2_104 = arith.constant 2 : index
    %c0_105 = arith.constant 0 : index
    %c384_106 = arith.constant 384 : index
    %90 = vector.load %arg1[%c0_103, %c2_104, %c0_105, %c384_106] : memref<1x9x9x512xbf16, #tpu.memory_space<vmem>>, vector<1x1x8x128xbf16>
    %91 = vector.shape_cast %90 : vector<1x1x8x128xbf16> to vector<8x128xbf16>
    %c0_107 = arith.constant 0 : index
    %c2_108 = arith.constant 2 : index
    %c1_109 = arith.constant 1 : index
    %c256_110 = arith.constant 256 : index
    %92 = vector.load %arg1[%c0_107, %c2_108, %c1_109, %c256_110] : memref<1x9x9x512xbf16, #tpu.memory_space<vmem>>, vector<1x1x8x128xbf16>
    %93 = vector.shape_cast %92 : vector<1x1x8x128xbf16> to vector<8x128xbf16>
    %c0_111 = arith.constant 0 : index
    %c3 = arith.constant 3 : index
    %c0_112 = arith.constant 0 : index
    %c0_113 = arith.constant 0 : index
    %94 = vector.load %arg1[%c0_111, %c3, %c0_112, %c0_113] : memref<1x9x9x512xbf16, #tpu.memory_space<vmem>>, vector<1x1x8x128xbf16>
    %95 = vector.shape_cast %94 : vector<1x1x8x128xbf16> to vector<8x128xbf16>
    %c0_114 = arith.constant 0 : index
    %c3_115 = arith.constant 3 : index
    %c0_116 = arith.constant 0 : index
    %c128_117 = arith.constant 128 : index
    %96 = vector.load %arg1[%c0_114, %c3_115, %c0_116, %c128_117] : memref<1x9x9x512xbf16, #tpu.memory_space<vmem>>, vector<1x1x8x128xbf16>
    %97 = vector.shape_cast %96 : vector<1x1x8x128xbf16> to vector<8x128xbf16>
    %c0_118 = arith.constant 0 : index
    %c3_119 = arith.constant 3 : index
    %c1_120 = arith.constant 1 : index
    %c0_121 = arith.constant 0 : index
    %98 = vector.load %arg1[%c0_118, %c3_119, %c1_120, %c0_121] : memref<1x9x9x512xbf16, #tpu.memory_space<vmem>>, vector<1x1x8x128xbf16>
    %99 = vector.shape_cast %98 : vector<1x1x8x128xbf16> to vector<8x128xbf16>
    %100 = tpu.concatenate %83, %85, %87, %89, %91, %93, %95, %97, %99 in 1 : vector<8x128xbf16>, vector<8x128xbf16>, vector<8x128xbf16>, vector<8x128xbf16>, vector<8x128xbf16>, vector<8x128xbf16>, vector<8x128xbf16>, vector<8x128xbf16>, vector<8x128xbf16> -> vector<8x1152xbf16>
    %cst_122 = arith.constant dense<0.000000e+00> : vector<8x128xf32>
    %101 = tpu.matmul %100, %0, %cst_122 {dimension_numbers = #tpu.dot_dimension_numbers<[1], [0], [0], [1], [0, 0, 1, 1], [], []>} : vector<8x1152xbf16>, vector<1152x128xbf16>, vector<8x128xf32> -> vector<8x128xf32>
    %102 = vector.broadcast %1 : vector<1x128xf32> to vector<8x128xf32>
    %103 = arith.addf %101, %102 : vector<8x128xf32>
    %cst_123 = arith.constant 2.000000e+01 : f32
    %104 = vector.broadcast %cst_123 : f32 to vector<8x128xf32>
    %105 = arith.minimumf %103, %104 : vector<8x128xf32>
    %106 = math.exp %105 : vector<8x128xf32>
    %cst_124 = arith.constant 2.000000e+00 : f32
    %107 = vector.broadcast %cst_124 : f32 to vector<8x128xf32>
    %108 = arith.addf %106, %107 : vector<8x128xf32>
    %109 = arith.mulf %106, %108 : vector<8x128xf32>
    %cst_125 = arith.constant 2.000000e+00 : f32
    %110 = vector.broadcast %cst_125 : f32 to vector<8x128xf32>
    %111 = arith.addf %109, %110 : vector<8x128xf32>
    %112 = tpu.reciprocal %111 {approx = true} : vector<8x128xf32> -> vector<8x128xf32>
    %113 = arith.mulf %109, %112 : vector<8x128xf32>
    %cst_126 = arith.constant 2.000000e+01 : f32
    %114 = vector.broadcast %cst_126 : f32 to vector<8x128xf32>
    %115 = arith.cmpf ogt, %103, %114 : vector<8x128xf32>
    %116 = arith.mulf %103, %113 : vector<8x128xf32>
    %117 = arith.select %115, %103, %116 : vector<8x128xi1>, vector<8x128xf32>
    %118 = arith.truncf %117 : vector<8x128xf32> to vector<8x128xbf16>
    %c0_127 = arith.constant 0 : index
    %c2_128 = arith.constant 2 : index
    %c0_129 = arith.constant 0 : index
    %c0_130 = arith.constant 0 : index
    %119 = vector.load %arg4[%c0_127, %c2_128, %c0_129, %c0_130] : memref<1x8x8x128xbf16, #tpu.memory_space<vmem>>, vector<1x1x8x128xbf16>
    %120 = vector.shape_cast %119 : vector<1x1x8x128xbf16> to vector<8x128xbf16>
    %121 = vector.shape_cast %118 : vector<8x128xbf16> to vector<1x1x8x128xbf16>
    tpu.vector_store %arg4[%c0_127, %c2_128, %c0_129, %c0_130], %121 {strides = array<i32>} : memref<1x8x8x128xbf16, #tpu.memory_space<vmem>>, vector<1x1x8x128xbf16>,
    %c0_131 = arith.constant 0 : index
    %c3_132 = arith.constant 3 : index
    %c0_133 = arith.constant 0 : index
    %c0_134 = arith.constant 0 : index
    %122 = vector.load %arg1[%c0_131, %c3_132, %c0_133, %c0_134] : memref<1x9x9x512xbf16, #tpu.memory_space<vmem>>, vector<1x1x8x128xbf16>
    %123 = vector.shape_cast %122 : vector<1x1x8x128xbf16> to vector<8x128xbf16>
    %c0_135 = arith.constant 0 : index
    %c3_136 = arith.constant 3 : index
    %c0_137 = arith.constant 0 : index
    %c128_138 = arith.constant 128 : index
    %124 = vector.load %arg1[%c0_135, %c3_136, %c0_137, %c128_138] : memref<1x9x9x512xbf16, #tpu.memory_space<vmem>>, vector<1x1x8x128xbf16>
    %125 = vector.shape_cast %124 : vector<1x1x8x128xbf16> to vector<8x128xbf16>
    %c0_139 = arith.constant 0 : index
    %c3_140 = arith.constant 3 : index
    %c1_141 = arith.constant 1 : index
    %c0_142 = arith.constant 0 : index
    %126 = vector.load %arg1[%c0_139, %c3_140, %c1_141, %c0_142] : memref<1x9x9x512xbf16, #tpu.memory_space<vmem>>, vector<1x1x8x128xbf16>
    %127 = vector.shape_cast %126 : vector<1x1x8x128xbf16> to vector<8x128xbf16>
    %c0_143 = arith.constant 0 : index
    %c3_144 = arith.constant 3 : index
    %c0_145 = arith.constant 0 : index
    %c256_146 = arith.constant 256 : index
    %128 = vector.load %arg1[%c0_143, %c3_144, %c0_145, %c256_146] : memref<1x9x9x512xbf16, #tpu.memory_space<vmem>>, vector<1x1x8x128xbf16>
    %129 = vector.shape_cast %128 : vector<1x1x8x128xbf16> to vector<8x128xbf16>
    %c0_147 = arith.constant 0 : index
    %c3_148 = arith.constant 3 : index
    %c0_149 = arith.constant 0 : index
    %c384_150 = arith.constant 384 : index
    %130 = vector.load %arg1[%c0_147, %c3_148, %c0_149, %c384_150] : memref<1x9x9x512xbf16, #tpu.memory_space<vmem>>, vector<1x1x8x128xbf16>
    %131 = vector.shape_cast %130 : vector<1x1x8x128xbf16> to vector<8x128xbf16>
    %c0_151 = arith.constant 0 : index
    %c3_152 = arith.constant 3 : index
    %c1_153 = arith.constant 1 : index
    %c256_154 = arith.constant 256 : index
    %132 = vector.load %arg1[%c0_151, %c3_152, %c1_153, %c256_154] : memref<1x9x9x512xbf16, #tpu.memory_space<vmem>>, vector<1x1x8x128xbf16>
    %133 = vector.shape_cast %132 : vector<1x1x8x128xbf16> to vector<8x128xbf16>
    %c0_155 = arith.constant 0 : index
    %c4 = arith.constant 4 : index
    %c0_156 = arith.constant 0 : index
    %c0_157 = arith.constant 0 : index
    %134 = vector.load %arg1[%c0_155, %c4, %c0_156, %c0_157] : memref<1x9x9x512xbf16, #tpu.memory_space<vmem>>, vector<1x1x8x128xbf16>
    %135 = vector.shape_cast %134 : vector<1x1x8x128xbf16> to vector<8x128xbf16>
    %c0_158 = arith.constant 0 : index
    %c4_159 = arith.constant 4 : index
    %c0_160 = arith.constant 0 : index
    %c128_161 = arith.constant 128 : index
    %136 = vector.load %arg1[%c0_158, %c4_159, %c0_160, %c128_161] : memref<1x9x9x512xbf16, #tpu.memory_space<vmem>>, vector<1x1x8x128xbf16>
    %137 = vector.shape_cast %136 : vector<1x1x8x128xbf16> to vector<8x128xbf16>
    %c0_162 = arith.constant 0 : index
    %c4_163 = arith.constant 4 : index
    %c1_164 = arith.constant 1 : index
    %c0_165 = arith.constant 0 : index
    %138 = vector.load %arg1[%c0_162, %c4_163, %c1_164, %c0_165] : memref<1x9x9x512xbf16, #tpu.memory_space<vmem>>, vector<1x1x8x128xbf16>
    %139 = vector.shape_cast %138 : vector<1x1x8x128xbf16> to vector<8x128xbf16>
    %140 = tpu.concatenate %123, %125, %127, %129, %131, %133, %135, %137, %139 in 1 : vector<8x128xbf16>, vector<8x128xbf16>, vector<8x128xbf16>, vector<8x128xbf16>, vector<8x128xbf16>, vector<8x128xbf16>, vector<8x128xbf16>, vector<8x128xbf16>, vector<8x128xbf16> -> vector<8x1152xbf16>
    %cst_166 = arith.constant dense<0.000000e+00> : vector<8x128xf32>
    %141 = tpu.matmul %140, %0, %cst_166 {dimension_numbers = #tpu.dot_dimension_numbers<[1], [0], [0], [1], [0, 0, 1, 1], [], []>} : vector<8x1152xbf16>, vector<1152x128xbf16>, vector<8x128xf32> -> vector<8x128xf32>
    %142 = vector.broadcast %1 : vector<1x128xf32> to vector<8x128xf32>
    %143 = arith.addf %141, %142 : vector<8x128xf32>
    %cst_167 = arith.constant 2.000000e+01 : f32
    %144 = vector.broadcast %cst_167 : f32 to vector<8x128xf32>
    %145 = arith.minimumf %143, %144 : vector<8x128xf32>
    %146 = math.exp %145 : vector<8x128xf32>
    %cst_168 = arith.constant 2.000000e+00 : f32
    %147 = vector.broadcast %cst_168 : f32 to vector<8x128xf32>
    %148 = arith.addf %146, %147 : vector<8x128xf32>
    %149 = arith.mulf %146, %148 : vector<8x128xf32>
    %cst_169 = arith.constant 2.000000e+00 : f32
    %150 = vector.broadcast %cst_169 : f32 to vector<8x128xf32>
    %151 = arith.addf %149, %150 : vector<8x128xf32>
    %152 = tpu.reciprocal %151 {approx = true} : vector<8x128xf32> -> vector<8x128xf32>
    %153 = arith.mulf %149, %152 : vector<8x128xf32>
    %cst_170 = arith.constant 2.000000e+01 : f32
    %154 = vector.broadcast %cst_170 : f32 to vector<8x128xf32>
    %155 = arith.cmpf ogt, %143, %154 : vector<8x128xf32>
    %156 = arith.mulf %143, %153 : vector<8x128xf32>
    %157 = arith.select %155, %143, %156 : vector<8x128xi1>, vector<8x128xf32>
    %158 = arith.truncf %157 : vector<8x128xf32> to vector<8x128xbf16>
    %c0_171 = arith.constant 0 : index
    %c3_172 = arith.constant 3 : index
    %c0_173 = arith.constant 0 : index
    %c0_174 = arith.constant 0 : index
    %159 = vector.load %arg4[%c0_171, %c3_172, %c0_173, %c0_174] : memref<1x8x8x128xbf16, #tpu.memory_space<vmem>>, vector<1x1x8x128xbf16>
    %160 = vector.shape_cast %159 : vector<1x1x8x128xbf16> to vector<8x128xbf16>
    %161 = vector.shape_cast %158 : vector<8x128xbf16> to vector<1x1x8x128xbf16>
    tpu.vector_store %arg4[%c0_171, %c3_172, %c0_173, %c0_174], %161 {strides = array<i32>} : memref<1x8x8x128xbf16, #tpu.memory_space<vmem>>, vector<1x1x8x128xbf16>,
    %c0_175 = arith.constant 0 : index
    %c4_176 = arith.constant 4 : index
    %c0_177 = arith.constant 0 : index
    %c0_178 = arith.constant 0 : index
    %162 = vector.load %arg1[%c0_175, %c4_176, %c0_177, %c0_178] : memref<1x9x9x512xbf16, #tpu.memory_space<vmem>>, vector<1x1x8x128xbf16>
    %163 = vector.shape_cast %162 : vector<1x1x8x128xbf16> to vector<8x128xbf16>
    %c0_179 = arith.constant 0 : index
    %c4_180 = arith.constant 4 : index
    %c0_181 = arith.constant 0 : index
    %c128_182 = arith.constant 128 : index
    %164 = vector.load %arg1[%c0_179, %c4_180, %c0_181, %c128_182] : memref<1x9x9x512xbf16, #tpu.memory_space<vmem>>, vector<1x1x8x128xbf16>
    %165 = vector.shape_cast %164 : vector<1x1x8x128xbf16> to vector<8x128xbf16>
    %c0_183 = arith.constant 0 : index
    %c4_184 = arith.constant 4 : index
    %c1_185 = arith.constant 1 : index
    %c0_186 = arith.constant 0 : index
    %166 = vector.load %arg1[%c0_183, %c4_184, %c1_185, %c0_186] : memref<1x9x9x512xbf16, #tpu.memory_space<vmem>>, vector<1x1x8x128xbf16>
    %167 = vector.shape_cast %166 : vector<1x1x8x128xbf16> to vector<8x128xbf16>
    %c0_187 = arith.constant 0 : index
    %c4_188 = arith.constant 4 : index
    %c0_189 = arith.constant 0 : index
    %c256_190 = arith.constant 256 : index
    %168 = vector.load %arg1[%c0_187, %c4_188, %c0_189, %c256_190] : memref<1x9x9x512xbf16, #tpu.memory_space<vmem>>, vector<1x1x8x128xbf16>
    %169 = vector.shape_cast %168 : vector<1x1x8x128xbf16> to vector<8x128xbf16>
    %c0_191 = arith.constant 0 : index
    %c4_192 = arith.constant 4 : index
    %c0_193 = arith.constant 0 : index
    %c384_194 = arith.constant 384 : index
    %170 = vector.load %arg1[%c0_191, %c4_192, %c0_193, %c384_194] : memref<1x9x9x512xbf16, #tpu.memory_space<vmem>>, vector<1x1x8x128xbf16>
    %171 = vector.shape_cast %170 : vector<1x1x8x128xbf16> to vector<8x128xbf16>
    %c0_195 = arith.constant 0 : index
    %c4_196 = arith.constant 4 : index
    %c1_197 = arith.constant 1 : index
    %c256_198 = arith.constant 256 : index
    %172 = vector.load %arg1[%c0_195, %c4_196, %c1_197, %c256_198] : memref<1x9x9x512xbf16, #tpu.memory_space<vmem>>, vector<1x1x8x128xbf16>
    %173 = vector.shape_cast %172 : vector<1x1x8x128xbf16> to vector<8x128xbf16>
    %c0_199 = arith.constant 0 : index
    %c5 = arith.constant 5 : index
    %c0_200 = arith.constant 0 : index
    %c0_201 = arith.constant 0 : index
    %174 = vector.load %arg1[%c0_199, %c5, %c0_200, %c0_201] : memref<1x9x9x512xbf16, #tpu.memory_space<vmem>>, vector<1x1x8x128xbf16>
    %175 = vector.shape_cast %174 : vector<1x1x8x128xbf16> to vector<8x128xbf16>
    %c0_202 = arith.constant 0 : index
    %c5_203 = arith.constant 5 : index
    %c0_204 = arith.constant 0 : index
    %c128_205 = arith.constant 128 : index
    %176 = vector.load %arg1[%c0_202, %c5_203, %c0_204, %c128_205] : memref<1x9x9x512xbf16, #tpu.memory_space<vmem>>, vector<1x1x8x128xbf16>
    %177 = vector.shape_cast %176 : vector<1x1x8x128xbf16> to vector<8x128xbf16>
    %c0_206 = arith.constant 0 : index
    %c5_207 = arith.constant 5 : index
    %c1_208 = arith.constant 1 : index
    %c0_209 = arith.constant 0 : index
    %178 = vector.load %arg1[%c0_206, %c5_207, %c1_208, %c0_209] : memref<1x9x9x512xbf16, #tpu.memory_space<vmem>>, vector<1x1x8x128xbf16>
    %179 = vector.shape_cast %178 : vector<1x1x8x128xbf16> to vector<8x128xbf16>
    %180 = tpu.concatenate %163, %165, %167, %169, %171, %173, %175, %177, %179 in 1 : vector<8x128xbf16>, vector<8x128xbf16>, vector<8x128xbf16>, vector<8x128xbf16>, vector<8x128xbf16>, vector<8x128xbf16>, vector<8x128xbf16>, vector<8x128xbf16>, vector<8x128xbf16> -> vector<8x1152xbf16>
    %cst_210 = arith.constant dense<0.000000e+00> : vector<8x128xf32>
    %181 = tpu.matmul %180, %0, %cst_210 {dimension_numbers = #tpu.dot_dimension_numbers<[1], [0], [0], [1], [0, 0, 1, 1], [], []>} : vector<8x1152xbf16>, vector<1152x128xbf16>, vector<8x128xf32> -> vector<8x128xf32>
    %182 = vector.broadcast %1 : vector<1x128xf32> to vector<8x128xf32>
    %183 = arith.addf %181, %182 : vector<8x128xf32>
    %cst_211 = arith.constant 2.000000e+01 : f32
    %184 = vector.broadcast %cst_211 : f32 to vector<8x128xf32>
    %185 = arith.minimumf %183, %184 : vector<8x128xf32>
    %186 = math.exp %185 : vector<8x128xf32>
    %cst_212 = arith.constant 2.000000e+00 : f32
    %187 = vector.broadcast %cst_212 : f32 to vector<8x128xf32>
    %188 = arith.addf %186, %187 : vector<8x128xf32>
    %189 = arith.mulf %186, %188 : vector<8x128xf32>
    %cst_213 = arith.constant 2.000000e+00 : f32
    %190 = vector.broadcast %cst_213 : f32 to vector<8x128xf32>
    %191 = arith.addf %189, %190 : vector<8x128xf32>
    %192 = tpu.reciprocal %191 {approx = true} : vector<8x128xf32> -> vector<8x128xf32>
    %193 = arith.mulf %189, %192 : vector<8x128xf32>
    %cst_214 = arith.constant 2.000000e+01 : f32
    %194 = vector.broadcast %cst_214 : f32 to vector<8x128xf32>
    %195 = arith.cmpf ogt, %183, %194 : vector<8x128xf32>
    %196 = arith.mulf %183, %193 : vector<8x128xf32>
    %197 = arith.select %195, %183, %196 : vector<8x128xi1>, vector<8x128xf32>
    %198 = arith.truncf %197 : vector<8x128xf32> to vector<8x128xbf16>
    %c0_215 = arith.constant 0 : index
    %c4_216 = arith.constant 4 : index
    %c0_217 = arith.constant 0 : index
    %c0_218 = arith.constant 0 : index
    %199 = vector.load %arg4[%c0_215, %c4_216, %c0_217, %c0_218] : memref<1x8x8x128xbf16, #tpu.memory_space<vmem>>, vector<1x1x8x128xbf16>
    %200 = vector.shape_cast %199 : vector<1x1x8x128xbf16> to vector<8x128xbf16>
    %201 = vector.shape_cast %198 : vector<8x128xbf16> to vector<1x1x8x128xbf16>
    tpu.vector_store %arg4[%c0_215, %c4_216, %c0_217, %c0_218], %201 {strides = array<i32>} : memref<1x8x8x128xbf16, #tpu.memory_space<vmem>>, vector<1x1x8x128xbf16>,
    %c0_219 = arith.constant 0 : index
    %c5_220 = arith.constant 5 : index
    %c0_221 = arith.constant 0 : index
    %c0_222 = arith.constant 0 : index
    %202 = vector.load %arg1[%c0_219, %c5_220, %c0_221, %c0_222] : memref<1x9x9x512xbf16, #tpu.memory_space<vmem>>, vector<1x1x8x128xbf16>
    %203 = vector.shape_cast %202 : vector<1x1x8x128xbf16> to vector<8x128xbf16>
    %c0_223 = arith.constant 0 : index
    %c5_224 = arith.constant 5 : index
    %c0_225 = arith.constant 0 : index
    %c128_226 = arith.constant 128 : index
    %204 = vector.load %arg1[%c0_223, %c5_224, %c0_225, %c128_226] : memref<1x9x9x512xbf16, #tpu.memory_space<vmem>>, vector<1x1x8x128xbf16>
    %205 = vector.shape_cast %204 : vector<1x1x8x128xbf16> to vector<8x128xbf16>
    %c0_227 = arith.constant 0 : index
    %c5_228 = arith.constant 5 : index
    %c1_229 = arith.constant 1 : index
    %c0_230 = arith.constant 0 : index
    %206 = vector.load %arg1[%c0_227, %c5_228, %c1_229, %c0_230] : memref<1x9x9x512xbf16, #tpu.memory_space<vmem>>, vector<1x1x8x128xbf16>
    %207 = vector.shape_cast %206 : vector<1x1x8x128xbf16> to vector<8x128xbf16>
    %c0_231 = arith.constant 0 : index
    %c5_232 = arith.constant 5 : index
    %c0_233 = arith.constant 0 : index
    %c256_234 = arith.constant 256 : index
    %208 = vector.load %arg1[%c0_231, %c5_232, %c0_233, %c256_234] : memref<1x9x9x512xbf16, #tpu.memory_space<vmem>>, vector<1x1x8x128xbf16>
    %209 = vector.shape_cast %208 : vector<1x1x8x128xbf16> to vector<8x128xbf16>
    %c0_235 = arith.constant 0 : index
    %c5_236 = arith.constant 5 : index
    %c0_237 = arith.constant 0 : index
    %c384_238 = arith.constant 384 : index
    %210 = vector.load %arg1[%c0_235, %c5_236, %c0_237, %c384_238] : memref<1x9x9x512xbf16, #tpu.memory_space<vmem>>, vector<1x1x8x128xbf16>
    %211 = vector.shape_cast %210 : vector<1x1x8x128xbf16> to vector<8x128xbf16>
    %c0_239 = arith.constant 0 : index
    %c5_240 = arith.constant 5 : index
    %c1_241 = arith.constant 1 : index
    %c256_242 = arith.constant 256 : index
    %212 = vector.load %arg1[%c0_239, %c5_240, %c1_241, %c256_242] : memref<1x9x9x512xbf16, #tpu.memory_space<vmem>>, vector<1x1x8x128xbf16>
    %213 = vector.shape_cast %212 : vector<1x1x8x128xbf16> to vector<8x128xbf16>
    %c0_243 = arith.constant 0 : index
    %c6 = arith.constant 6 : index
    %c0_244 = arith.constant 0 : index
    %c0_245 = arith.constant 0 : index
    %214 = vector.load %arg1[%c0_243, %c6, %c0_244, %c0_245] : memref<1x9x9x512xbf16, #tpu.memory_space<vmem>>, vector<1x1x8x128xbf16>
    %215 = vector.shape_cast %214 : vector<1x1x8x128xbf16> to vector<8x128xbf16>
    %c0_246 = arith.constant 0 : index
    %c6_247 = arith.constant 6 : index
    %c0_248 = arith.constant 0 : index
    %c128_249 = arith.constant 128 : index
    %216 = vector.load %arg1[%c0_246, %c6_247, %c0_248, %c128_249] : memref<1x9x9x512xbf16, #tpu.memory_space<vmem>>, vector<1x1x8x128xbf16>
    %217 = vector.shape_cast %216 : vector<1x1x8x128xbf16> to vector<8x128xbf16>
    %c0_250 = arith.constant 0 : index
    %c6_251 = arith.constant 6 : index
    %c1_252 = arith.constant 1 : index
    %c0_253 = arith.constant 0 : index
    %218 = vector.load %arg1[%c0_250, %c6_251, %c1_252, %c0_253] : memref<1x9x9x512xbf16, #tpu.memory_space<vmem>>, vector<1x1x8x128xbf16>
    %219 = vector.shape_cast %218 : vector<1x1x8x128xbf16> to vector<8x128xbf16>
    %220 = tpu.concatenate %203, %205, %207, %209, %211, %213, %215, %217, %219 in 1 : vector<8x128xbf16>, vector<8x128xbf16>, vector<8x128xbf16>, vector<8x128xbf16>, vector<8x128xbf16>, vector<8x128xbf16>, vector<8x128xbf16>, vector<8x128xbf16>, vector<8x128xbf16> -> vector<8x1152xbf16>
    %cst_254 = arith.constant dense<0.000000e+00> : vector<8x128xf32>
    %221 = tpu.matmul %220, %0, %cst_254 {dimension_numbers = #tpu.dot_dimension_numbers<[1], [0], [0], [1], [0, 0, 1, 1], [], []>} : vector<8x1152xbf16>, vector<1152x128xbf16>, vector<8x128xf32> -> vector<8x128xf32>
    %222 = vector.broadcast %1 : vector<1x128xf32> to vector<8x128xf32>
    %223 = arith.addf %221, %222 : vector<8x128xf32>
    %cst_255 = arith.constant 2.000000e+01 : f32
    %224 = vector.broadcast %cst_255 : f32 to vector<8x128xf32>
    %225 = arith.minimumf %223, %224 : vector<8x128xf32>
    %226 = math.exp %225 : vector<8x128xf32>
    %cst_256 = arith.constant 2.000000e+00 : f32
    %227 = vector.broadcast %cst_256 : f32 to vector<8x128xf32>
    %228 = arith.addf %226, %227 : vector<8x128xf32>
    %229 = arith.mulf %226, %228 : vector<8x128xf32>
    %cst_257 = arith.constant 2.000000e+00 : f32
    %230 = vector.broadcast %cst_257 : f32 to vector<8x128xf32>
    %231 = arith.addf %229, %230 : vector<8x128xf32>
    %232 = tpu.reciprocal %231 {approx = true} : vector<8x128xf32> -> vector<8x128xf32>
    %233 = arith.mulf %229, %232 : vector<8x128xf32>
    %cst_258 = arith.constant 2.000000e+01 : f32
    %234 = vector.broadcast %cst_258 : f32 to vector<8x128xf32>
    %235 = arith.cmpf ogt, %223, %234 : vector<8x128xf32>
    %236 = arith.mulf %223, %233 : vector<8x128xf32>
    %237 = arith.select %235, %223, %236 : vector<8x128xi1>, vector<8x128xf32>
    %238 = arith.truncf %237 : vector<8x128xf32> to vector<8x128xbf16>
    %c0_259 = arith.constant 0 : index
    %c5_260 = arith.constant 5 : index
    %c0_261 = arith.constant 0 : index
    %c0_262 = arith.constant 0 : index
    %239 = vector.load %arg4[%c0_259, %c5_260, %c0_261, %c0_262] : memref<1x8x8x128xbf16, #tpu.memory_space<vmem>>, vector<1x1x8x128xbf16>
    %240 = vector.shape_cast %239 : vector<1x1x8x128xbf16> to vector<8x128xbf16>
    %241 = vector.shape_cast %238 : vector<8x128xbf16> to vector<1x1x8x128xbf16>
    tpu.vector_store %arg4[%c0_259, %c5_260, %c0_261, %c0_262], %241 {strides = array<i32>} : memref<1x8x8x128xbf16, #tpu.memory_space<vmem>>, vector<1x1x8x128xbf16>,
    %c0_263 = arith.constant 0 : index
    %c6_264 = arith.constant 6 : index
    %c0_265 = arith.constant 0 : index
    %c0_266 = arith.constant 0 : index
    %242 = vector.load %arg1[%c0_263, %c6_264, %c0_265, %c0_266] : memref<1x9x9x512xbf16, #tpu.memory_space<vmem>>, vector<1x1x8x128xbf16>
    %243 = vector.shape_cast %242 : vector<1x1x8x128xbf16> to vector<8x128xbf16>
    %c0_267 = arith.constant 0 : index
    %c6_268 = arith.constant 6 : index
    %c0_269 = arith.constant 0 : index
    %c128_270 = arith.constant 128 : index
    %244 = vector.load %arg1[%c0_267, %c6_268, %c0_269, %c128_270] : memref<1x9x9x512xbf16, #tpu.memory_space<vmem>>, vector<1x1x8x128xbf16>
    %245 = vector.shape_cast %244 : vector<1x1x8x128xbf16> to vector<8x128xbf16>
    %c0_271 = arith.constant 0 : index
    %c6_272 = arith.constant 6 : index
    %c1_273 = arith.constant 1 : index
    %c0_274 = arith.constant 0 : index
    %246 = vector.load %arg1[%c0_271, %c6_272, %c1_273, %c0_274] : memref<1x9x9x512xbf16, #tpu.memory_space<vmem>>, vector<1x1x8x128xbf16>
    %247 = vector.shape_cast %246 : vector<1x1x8x128xbf16> to vector<8x128xbf16>
    %c0_275 = arith.constant 0 : index
    %c6_276 = arith.constant 6 : index
    %c0_277 = arith.constant 0 : index
    %c256_278 = arith.constant 256 : index
    %248 = vector.load %arg1[%c0_275, %c6_276, %c0_277, %c256_278] : memref<1x9x9x512xbf16, #tpu.memory_space<vmem>>, vector<1x1x8x128xbf16>
    %249 = vector.shape_cast %248 : vector<1x1x8x128xbf16> to vector<8x128xbf16>
    %c0_279 = arith.constant 0 : index
    %c6_280 = arith.constant 6 : index
    %c0_281 = arith.constant 0 : index
    %c384_282 = arith.constant 384 : index
    %250 = vector.load %arg1[%c0_279, %c6_280, %c0_281, %c384_282] : memref<1x9x9x512xbf16, #tpu.memory_space<vmem>>, vector<1x1x8x128xbf16>
    %251 = vector.shape_cast %250 : vector<1x1x8x128xbf16> to vector<8x128xbf16>
    %c0_283 = arith.constant 0 : index
    %c6_284 = arith.constant 6 : index
    %c1_285 = arith.constant 1 : index
    %c256_286 = arith.constant 256 : index
    %252 = vector.load %arg1[%c0_283, %c6_284, %c1_285, %c256_286] : memref<1x9x9x512xbf16, #tpu.memory_space<vmem>>, vector<1x1x8x128xbf16>
    %253 = vector.shape_cast %252 : vector<1x1x8x128xbf16> to vector<8x128xbf16>
    %c0_287 = arith.constant 0 : index
    %c7 = arith.constant 7 : index
    %c0_288 = arith.constant 0 : index
    %c0_289 = arith.constant 0 : index
    %254 = vector.load %arg1[%c0_287, %c7, %c0_288, %c0_289] : memref<1x9x9x512xbf16, #tpu.memory_space<vmem>>, vector<1x1x8x128xbf16>
    %255 = vector.shape_cast %254 : vector<1x1x8x128xbf16> to vector<8x128xbf16>
    %c0_290 = arith.constant 0 : index
    %c7_291 = arith.constant 7 : index
    %c0_292 = arith.constant 0 : index
    %c128_293 = arith.constant 128 : index
    %256 = vector.load %arg1[%c0_290, %c7_291, %c0_292, %c128_293] : memref<1x9x9x512xbf16, #tpu.memory_space<vmem>>, vector<1x1x8x128xbf16>
    %257 = vector.shape_cast %256 : vector<1x1x8x128xbf16> to vector<8x128xbf16>
    %c0_294 = arith.constant 0 : index
    %c7_295 = arith.constant 7 : index
    %c1_296 = arith.constant 1 : index
    %c0_297 = arith.constant 0 : index
    %258 = vector.load %arg1[%c0_294, %c7_295, %c1_296, %c0_297] : memref<1x9x9x512xbf16, #tpu.memory_space<vmem>>, vector<1x1x8x128xbf16>
    %259 = vector.shape_cast %258 : vector<1x1x8x128xbf16> to vector<8x128xbf16>
    %260 = tpu.concatenate %243, %245, %247, %249, %251, %253, %255, %257, %259 in 1 : vector<8x128xbf16>, vector<8x128xbf16>, vector<8x128xbf16>, vector<8x128xbf16>, vector<8x128xbf16>, vector<8x128xbf16>, vector<8x128xbf16>, vector<8x128xbf16>, vector<8x128xbf16> -> vector<8x1152xbf16>
    %cst_298 = arith.constant dense<0.000000e+00> : vector<8x128xf32>
    %261 = tpu.matmul %260, %0, %cst_298 {dimension_numbers = #tpu.dot_dimension_numbers<[1], [0], [0], [1], [0, 0, 1, 1], [], []>} : vector<8x1152xbf16>, vector<1152x128xbf16>, vector<8x128xf32> -> vector<8x128xf32>
    %262 = vector.broadcast %1 : vector<1x128xf32> to vector<8x128xf32>
    %263 = arith.addf %261, %262 : vector<8x128xf32>
    %cst_299 = arith.constant 2.000000e+01 : f32
    %264 = vector.broadcast %cst_299 : f32 to vector<8x128xf32>
    %265 = arith.minimumf %263, %264 : vector<8x128xf32>
    %266 = math.exp %265 : vector<8x128xf32>
    %cst_300 = arith.constant 2.000000e+00 : f32
    %267 = vector.broadcast %cst_300 : f32 to vector<8x128xf32>
    %268 = arith.addf %266, %267 : vector<8x128xf32>
    %269 = arith.mulf %266, %268 : vector<8x128xf32>
    %cst_301 = arith.constant 2.000000e+00 : f32
    %270 = vector.broadcast %cst_301 : f32 to vector<8x128xf32>
    %271 = arith.addf %269, %270 : vector<8x128xf32>
    %272 = tpu.reciprocal %271 {approx = true} : vector<8x128xf32> -> vector<8x128xf32>
    %273 = arith.mulf %269, %272 : vector<8x128xf32>
    %cst_302 = arith.constant 2.000000e+01 : f32
    %274 = vector.broadcast %cst_302 : f32 to vector<8x128xf32>
    %275 = arith.cmpf ogt, %263, %274 : vector<8x128xf32>
    %276 = arith.mulf %263, %273 : vector<8x128xf32>
    %277 = arith.select %275, %263, %276 : vector<8x128xi1>, vector<8x128xf32>
    %278 = arith.truncf %277 : vector<8x128xf32> to vector<8x128xbf16>
    %c0_303 = arith.constant 0 : index
    %c6_304 = arith.constant 6 : index
    %c0_305 = arith.constant 0 : index
    %c0_306 = arith.constant 0 : index
    %279 = vector.load %arg4[%c0_303, %c6_304, %c0_305, %c0_306] : memref<1x8x8x128xbf16, #tpu.memory_space<vmem>>, vector<1x1x8x128xbf16>
    %280 = vector.shape_cast %279 : vector<1x1x8x128xbf16> to vector<8x128xbf16>
    %281 = vector.shape_cast %278 : vector<8x128xbf16> to vector<1x1x8x128xbf16>
    tpu.vector_store %arg4[%c0_303, %c6_304, %c0_305, %c0_306], %281 {strides = array<i32>} : memref<1x8x8x128xbf16, #tpu.memory_space<vmem>>, vector<1x1x8x128xbf16>,
    %c0_307 = arith.constant 0 : index
    %c7_308 = arith.constant 7 : index
    %c0_309 = arith.constant 0 : index
    %c0_310 = arith.constant 0 : index
    %282 = vector.load %arg1[%c0_307, %c7_308, %c0_309, %c0_310] : memref<1x9x9x512xbf16, #tpu.memory_space<vmem>>, vector<1x1x8x128xbf16>
    %283 = vector.shape_cast %282 : vector<1x1x8x128xbf16> to vector<8x128xbf16>
    %c0_311 = arith.constant 0 : index
    %c7_312 = arith.constant 7 : index
    %c0_313 = arith.constant 0 : index
    %c128_314 = arith.constant 128 : index
    %284 = vector.load %arg1[%c0_311, %c7_312, %c0_313, %c128_314] : memref<1x9x9x512xbf16, #tpu.memory_space<vmem>>, vector<1x1x8x128xbf16>
    %285 = vector.shape_cast %284 : vector<1x1x8x128xbf16> to vector<8x128xbf16>
    %c0_315 = arith.constant 0 : index
    %c7_316 = arith.constant 7 : index
    %c1_317 = arith.constant 1 : index
    %c0_318 = arith.constant 0 : index
    %286 = vector.load %arg1[%c0_315, %c7_316, %c1_317, %c0_318] : memref<1x9x9x512xbf16, #tpu.memory_space<vmem>>, vector<1x1x8x128xbf16>
    %287 = vector.shape_cast %286 : vector<1x1x8x128xbf16> to vector<8x128xbf16>
    %c0_319 = arith.constant 0 : index
    %c7_320 = arith.constant 7 : index
    %c0_321 = arith.constant 0 : index
    %c256_322 = arith.constant 256 : index
    %288 = vector.load %arg1[%c0_319, %c7_320, %c0_321, %c256_322] : memref<1x9x9x512xbf16, #tpu.memory_space<vmem>>, vector<1x1x8x128xbf16>
    %289 = vector.shape_cast %288 : vector<1x1x8x128xbf16> to vector<8x128xbf16>
    %c0_323 = arith.constant 0 : index
    %c7_324 = arith.constant 7 : index
    %c0_325 = arith.constant 0 : index
    %c384_326 = arith.constant 384 : index
    %290 = vector.load %arg1[%c0_323, %c7_324, %c0_325, %c384_326] : memref<1x9x9x512xbf16, #tpu.memory_space<vmem>>, vector<1x1x8x128xbf16>
    %291 = vector.shape_cast %290 : vector<1x1x8x128xbf16> to vector<8x128xbf16>
    %c0_327 = arith.constant 0 : index
    %c7_328 = arith.constant 7 : index
    %c1_329 = arith.constant 1 : index
    %c256_330 = arith.constant 256 : index
    %292 = vector.load %arg1[%c0_327, %c7_328, %c1_329, %c256_330] : memref<1x9x9x512xbf16, #tpu.memory_space<vmem>>, vector<1x1x8x128xbf16>
    %293 = vector.shape_cast %292 : vector<1x1x8x128xbf16> to vector<8x128xbf16>
    %c0_331 = arith.constant 0 : index
    %c8 = arith.constant 8 : index
    %c0_332 = arith.constant 0 : index
    %c0_333 = arith.constant 0 : index
    %294 = vector.load %arg1[%c0_331, %c8, %c0_332, %c0_333] : memref<1x9x9x512xbf16, #tpu.memory_space<vmem>>, vector<1x1x8x128xbf16>
    %295 = vector.shape_cast %294 : vector<1x1x8x128xbf16> to vector<8x128xbf16>
    %c0_334 = arith.constant 0 : index
    %c8_335 = arith.constant 8 : index
    %c0_336 = arith.constant 0 : index
    %c128_337 = arith.constant 128 : index
    %296 = vector.load %arg1[%c0_334, %c8_335, %c0_336, %c128_337] : memref<1x9x9x512xbf16, #tpu.memory_space<vmem>>, vector<1x1x8x128xbf16>
    %297 = vector.shape_cast %296 : vector<1x1x8x128xbf16> to vector<8x128xbf16>
    %c0_338 = arith.constant 0 : index
    %c8_339 = arith.constant 8 : index
    %c1_340 = arith.constant 1 : index
    %c0_341 = arith.constant 0 : index
    %298 = vector.load %arg1[%c0_338, %c8_339, %c1_340, %c0_341] : memref<1x9x9x512xbf16, #tpu.memory_space<vmem>>, vector<1x1x8x128xbf16>
    %299 = vector.shape_cast %298 : vector<1x1x8x128xbf16> to vector<8x128xbf16>
    %300 = tpu.concatenate %283, %285, %287, %289, %291, %293, %295, %297, %299 in 1 : vector<8x128xbf16>, vector<8x128xbf16>, vector<8x128xbf16>, vector<8x128xbf16>, vector<8x128xbf16>, vector<8x128xbf16>, vector<8x128xbf16>, vector<8x128xbf16>, vector<8x128xbf16> -> vector<8x1152xbf16>
    %cst_342 = arith.constant dense<0.000000e+00> : vector<8x128xf32>
    %301 = tpu.matmul %300, %0, %cst_342 {dimension_numbers = #tpu.dot_dimension_numbers<[1], [0], [0], [1], [0, 0, 1, 1], [], []>} : vector<8x1152xbf16>, vector<1152x128xbf16>, vector<8x128xf32> -> vector<8x128xf32>
    %302 = vector.broadcast %1 : vector<1x128xf32> to vector<8x128xf32>
    %303 = arith.addf %301, %302 : vector<8x128xf32>
    %cst_343 = arith.constant 2.000000e+01 : f32
    %304 = vector.broadcast %cst_343 : f32 to vector<8x128xf32>
    %305 = arith.minimumf %303, %304 : vector<8x128xf32>
    %306 = math.exp %305 : vector<8x128xf32>
    %cst_344 = arith.constant 2.000000e+00 : f32
    %307 = vector.broadcast %cst_344 : f32 to vector<8x128xf32>
    %308 = arith.addf %306, %307 : vector<8x128xf32>
    %309 = arith.mulf %306, %308 : vector<8x128xf32>
    %cst_345 = arith.constant 2.000000e+00 : f32
    %310 = vector.broadcast %cst_345 : f32 to vector<8x128xf32>
    %311 = arith.addf %309, %310 : vector<8x128xf32>
    %312 = tpu.reciprocal %311 {approx = true} : vector<8x128xf32> -> vector<8x128xf32>
    %313 = arith.mulf %309, %312 : vector<8x128xf32>
    %cst_346 = arith.constant 2.000000e+01 : f32
    %314 = vector.broadcast %cst_346 : f32 to vector<8x128xf32>
    %315 = arith.cmpf ogt, %303, %314 : vector<8x128xf32>
    %316 = arith.mulf %303, %313 : vector<8x128xf32>
    %317 = arith.select %315, %303, %316 : vector<8x128xi1>, vector<8x128xf32>
    %318 = arith.truncf %317 : vector<8x128xf32> to vector<8x128xbf16>
    %c0_347 = arith.constant 0 : index
    %c7_348 = arith.constant 7 : index
    %c0_349 = arith.constant 0 : index
    %c0_350 = arith.constant 0 : index
    %319 = vector.load %arg4[%c0_347, %c7_348, %c0_349, %c0_350] : memref<1x8x8x128xbf16, #tpu.memory_space<vmem>>, vector<1x1x8x128xbf16>
    %320 = vector.shape_cast %319 : vector<1x1x8x128xbf16> to vector<8x128xbf16>
    %321 = vector.shape_cast %318 : vector<8x128xbf16> to vector<1x1x8x128xbf16>
    tpu.vector_store %arg4[%c0_347, %c7_348, %c0_349, %c0_350], %321 {strides = array<i32>} : memref<1x8x8x128xbf16, #tpu.memory_space<vmem>>, vector<1x1x8x128xbf16>,
    return
  }
  func.func @transform_0(%arg0: i32) -> (i32, i32, i32, i32) {
    %c0_i32 = arith.constant 0 : i32
    %c0_i32_0 = arith.constant 0 : i32
    %c0_i32_1 = arith.constant 0 : i32
    %c0_i32_2 = arith.constant 0 : i32
    return %arg0, %c0_i32, %c0_i32_0, %c0_i32_1 : i32, i32, i32, i32
  }
  func.func @transform_1(%arg0: i32) -> (i32, i32) {
    %c0_i32 = arith.constant 0 : i32
    %c0_i32_0 = arith.constant 0 : i32
    %c0_i32_1 = arith.constant 0 : i32
    return %c0_i32, %c0_i32_0 : i32, i32
  }
  func.func @transform_2(%arg0: i32) -> (i32, i32) {
    %c0_i32 = arith.constant 0 : i32
    %c0_i32_0 = arith.constant 0 : i32
    %c0_i32_1 = arith.constant 0 : i32
    return %c0_i32, %c0_i32_0 : i32, i32
  }
  func.func @transform_3(%arg0: i32) -> (i32, i32, i32, i32) {
    %c0_i32 = arith.constant 0 : i32
    %c0_i32_0 = arith.constant 0 : i32
    %c0_i32_1 = arith.constant 0 : i32
    %c0_i32_2 = arith.constant 0 : i32
    return %arg0, %c0_i32, %c0_i32_0, %c0_i32_1 : i32, i32, i32, i32
  }
}

module attributes {stable_mosaic.version = 11 : i64} {
  func.func @kernel(%arg0: i32, %arg1: memref<64x128xbf16, #tpu.memory_space<vmem>>, %arg2: memref<128x128xbf16, #tpu.memory_space<vmem>>, %arg3: memref<1x128xf32, #tpu.memory_space<vmem>>, %arg4: memref<64x128xbf16, #tpu.memory_space<vmem>>) attributes {dimension_semantics = [#tpu.dimension_semantics<parallel>], iteration_bounds = array<i64: 2>, scalar_prefetch = 0 : i64, scratch_operands = 0 : i64, tpu.core_type = #tpu.core_type<tc>, window_params = [{transform_indices = @transform_0, window_bounds = array<i64: 64, 128>}, {pipeline_mode = #tpu.pipeline_mode<synchronous>, transform_indices = @transform_1, window_bounds = array<i64: 128, 128>}, {pipeline_mode = #tpu.pipeline_mode<synchronous>, transform_indices = @transform_2, window_bounds = array<i64: 1, 128>}, {transform_indices = @transform_3, window_bounds = array<i64: 64, 128>}]} {
    %c0 = arith.constant 0 : index
    %c0_0 = arith.constant 0 : index
    %0 = vector.load %arg1[%c0, %c0_0] : memref<64x128xbf16, #tpu.memory_space<vmem>>, vector<64x128xbf16>
    %c0_1 = arith.constant 0 : index
    %c0_2 = arith.constant 0 : index
    %1 = vector.load %arg2[%c0_1, %c0_2] : memref<128x128xbf16, #tpu.memory_space<vmem>>, vector<128x128xbf16>
    %cst = arith.constant dense<0.000000e+00> : vector<64x128xf32>
    %2 = tpu.matmul %0, %1, %cst {dimension_numbers = #tpu.dot_dimension_numbers<[1], [0], [0], [1], [0, 0, 1, 1], [], []>} : vector<64x128xbf16>, vector<128x128xbf16>, vector<64x128xf32> -> vector<64x128xf32>
    %c0_3 = arith.constant 0 : index
    %c0_4 = arith.constant 0 : index
    %3 = vector.load %arg3[%c0_3, %c0_4] : memref<1x128xf32, #tpu.memory_space<vmem>>, vector<1x128xf32>
    %4 = vector.broadcast %3 : vector<1x128xf32> to vector<64x128xf32>
    %5 = arith.addf %2, %4 : vector<64x128xf32>
    %cst_5 = arith.constant 2.000000e+01 : f32
    %6 = vector.broadcast %cst_5 : f32 to vector<64x128xf32>
    %7 = arith.minimumf %5, %6 : vector<64x128xf32>
    %8 = math.exp %7 : vector<64x128xf32>
    %cst_6 = arith.constant 2.000000e+00 : f32
    %9 = vector.broadcast %cst_6 : f32 to vector<64x128xf32>
    %10 = arith.addf %8, %9 : vector<64x128xf32>
    %11 = arith.mulf %8, %10 : vector<64x128xf32>
    %cst_7 = arith.constant 2.000000e+00 : f32
    %12 = vector.broadcast %cst_7 : f32 to vector<64x128xf32>
    %13 = arith.addf %11, %12 : vector<64x128xf32>
    %14 = tpu.reciprocal %13 {approx = true} : vector<64x128xf32> -> vector<64x128xf32>
    %15 = arith.mulf %11, %14 : vector<64x128xf32>
    %cst_8 = arith.constant 2.000000e+01 : f32
    %16 = vector.broadcast %cst_8 : f32 to vector<64x128xf32>
    %17 = arith.cmpf ogt, %5, %16 : vector<64x128xf32>
    %18 = arith.mulf %5, %15 : vector<64x128xf32>
    %19 = arith.select %17, %5, %18 : vector<64x128xi1>, vector<64x128xf32>
    %20 = arith.truncf %19 : vector<64x128xf32> to vector<64x128xbf16>
    %c0_9 = arith.constant 0 : index
    %c0_10 = arith.constant 0 : index
    %21 = vector.load %arg4[%c0_9, %c0_10] : memref<64x128xbf16, #tpu.memory_space<vmem>>, vector<64x128xbf16>
    tpu.vector_store %arg4[%c0_9, %c0_10], %20 {strides = array<i32>} : memref<64x128xbf16, #tpu.memory_space<vmem>>, vector<64x128xbf16>,
    return
  }
  func.func @transform_0(%arg0: i32) -> (i32, i32) {
    %c0_i32 = arith.constant 0 : i32
    %c0_i32_0 = arith.constant 0 : i32
    return %arg0, %c0_i32 : i32, i32
  }
  func.func @transform_1(%arg0: i32) -> (i32, i32) {
    %c0_i32 = arith.constant 0 : i32
    %c0_i32_0 = arith.constant 0 : i32
    %c0_i32_1 = arith.constant 0 : i32
    return %c0_i32, %c0_i32_0 : i32, i32
  }
  func.func @transform_2(%arg0: i32) -> (i32, i32) {
    %c0_i32 = arith.constant 0 : i32
    %c0_i32_0 = arith.constant 0 : i32
    %c0_i32_1 = arith.constant 0 : i32
    return %c0_i32, %c0_i32_0 : i32, i32
  }
  func.func @transform_3(%arg0: i32) -> (i32, i32) {
    %c0_i32 = arith.constant 0 : i32
    %c0_i32_0 = arith.constant 0 : i32
    return %arg0, %c0_i32 : i32, i32
  }
}

module attributes {stable_mosaic.version = 11 : i64} {
  func.func @kernel(%arg0: i32, %arg1: memref<1x10x10x128xbf16, #tpu.memory_space<vmem>>, %arg2: memref<1152x128xbf16, #tpu.memory_space<vmem>>, %arg3: memref<1x128xf32, #tpu.memory_space<vmem>>, %arg4: memref<1x8x8x128xbf16, #tpu.memory_space<vmem>>, %arg5: memref<1x8x8x128xbf16, #tpu.memory_space<vmem>>) attributes {dimension_semantics = [#tpu.dimension_semantics<parallel>], iteration_bounds = array<i64: 2>, scalar_prefetch = 0 : i64, scratch_operands = 0 : i64, tpu.core_type = #tpu.core_type<tc>, window_params = [{transform_indices = @transform_0, window_bounds = array<i64: 1, 10, 10, 128>}, {pipeline_mode = #tpu.pipeline_mode<synchronous>, transform_indices = @transform_1, window_bounds = array<i64: 1152, 128>}, {pipeline_mode = #tpu.pipeline_mode<synchronous>, transform_indices = @transform_2, window_bounds = array<i64: 1, 128>}, {transform_indices = @transform_3, window_bounds = array<i64: 1, 8, 8, 128>}, {transform_indices = @transform_4, window_bounds = array<i64: 1, 8, 8, 128>}]} {
    %c0 = arith.constant 0 : index
    %c0_0 = arith.constant 0 : index
    %0 = vector.load %arg2[%c0, %c0_0] : memref<1152x128xbf16, #tpu.memory_space<vmem>>, vector<1152x128xbf16>
    %c0_1 = arith.constant 0 : index
    %c0_2 = arith.constant 0 : index
    %1 = vector.load %arg3[%c0_1, %c0_2] : memref<1x128xf32, #tpu.memory_space<vmem>>, vector<1x128xf32>
    %c0_3 = arith.constant 0 : index
    %c0_4 = arith.constant 0 : index
    %c0_5 = arith.constant 0 : index
    %c0_6 = arith.constant 0 : index
    %2 = vector.load %arg1[%c0_3, %c0_4, %c0_5, %c0_6] : memref<1x10x10x128xbf16, #tpu.memory_space<vmem>>, vector<1x1x8x128xbf16>
    %3 = vector.shape_cast %2 : vector<1x1x8x128xbf16> to vector<8x128xbf16>
    %c0_7 = arith.constant 0 : index
    %c0_8 = arith.constant 0 : index
    %c1 = arith.constant 1 : index
    %c0_9 = arith.constant 0 : index
    %4 = vector.load %arg1[%c0_7, %c0_8, %c1, %c0_9] : memref<1x10x10x128xbf16, #tpu.memory_space<vmem>>, vector<1x1x8x128xbf16>
    %5 = vector.shape_cast %4 : vector<1x1x8x128xbf16> to vector<8x128xbf16>
    %c0_10 = arith.constant 0 : index
    %c0_11 = arith.constant 0 : index
    %c2 = arith.constant 2 : index
    %c0_12 = arith.constant 0 : index
    %6 = vector.load %arg1[%c0_10, %c0_11, %c2, %c0_12] : memref<1x10x10x128xbf16, #tpu.memory_space<vmem>>, vector<1x1x8x128xbf16>
    %7 = vector.shape_cast %6 : vector<1x1x8x128xbf16> to vector<8x128xbf16>
    %c0_13 = arith.constant 0 : index
    %c1_14 = arith.constant 1 : index
    %c0_15 = arith.constant 0 : index
    %c0_16 = arith.constant 0 : index
    %8 = vector.load %arg1[%c0_13, %c1_14, %c0_15, %c0_16] : memref<1x10x10x128xbf16, #tpu.memory_space<vmem>>, vector<1x1x8x128xbf16>
    %9 = vector.shape_cast %8 : vector<1x1x8x128xbf16> to vector<8x128xbf16>
    %c0_17 = arith.constant 0 : index
    %c1_18 = arith.constant 1 : index
    %c1_19 = arith.constant 1 : index
    %c0_20 = arith.constant 0 : index
    %10 = vector.load %arg1[%c0_17, %c1_18, %c1_19, %c0_20] : memref<1x10x10x128xbf16, #tpu.memory_space<vmem>>, vector<1x1x8x128xbf16>
    %11 = vector.shape_cast %10 : vector<1x1x8x128xbf16> to vector<8x128xbf16>
    %c0_21 = arith.constant 0 : index
    %c1_22 = arith.constant 1 : index
    %c2_23 = arith.constant 2 : index
    %c0_24 = arith.constant 0 : index
    %12 = vector.load %arg1[%c0_21, %c1_22, %c2_23, %c0_24] : memref<1x10x10x128xbf16, #tpu.memory_space<vmem>>, vector<1x1x8x128xbf16>
    %13 = vector.shape_cast %12 : vector<1x1x8x128xbf16> to vector<8x128xbf16>
    %c0_25 = arith.constant 0 : index
    %c2_26 = arith.constant 2 : index
    %c0_27 = arith.constant 0 : index
    %c0_28 = arith.constant 0 : index
    %14 = vector.load %arg1[%c0_25, %c2_26, %c0_27, %c0_28] : memref<1x10x10x128xbf16, #tpu.memory_space<vmem>>, vector<1x1x8x128xbf16>
    %15 = vector.shape_cast %14 : vector<1x1x8x128xbf16> to vector<8x128xbf16>
    %c0_29 = arith.constant 0 : index
    %c2_30 = arith.constant 2 : index
    %c1_31 = arith.constant 1 : index
    %c0_32 = arith.constant 0 : index
    %16 = vector.load %arg1[%c0_29, %c2_30, %c1_31, %c0_32] : memref<1x10x10x128xbf16, #tpu.memory_space<vmem>>, vector<1x1x8x128xbf16>
    %17 = vector.shape_cast %16 : vector<1x1x8x128xbf16> to vector<8x128xbf16>
    %c0_33 = arith.constant 0 : index
    %c2_34 = arith.constant 2 : index
    %c2_35 = arith.constant 2 : index
    %c0_36 = arith.constant 0 : index
    %18 = vector.load %arg1[%c0_33, %c2_34, %c2_35, %c0_36] : memref<1x10x10x128xbf16, #tpu.memory_space<vmem>>, vector<1x1x8x128xbf16>
    %19 = vector.shape_cast %18 : vector<1x1x8x128xbf16> to vector<8x128xbf16>
    %20 = tpu.concatenate %3, %5, %7, %9, %11, %13, %15, %17, %19 in 1 : vector<8x128xbf16>, vector<8x128xbf16>, vector<8x128xbf16>, vector<8x128xbf16>, vector<8x128xbf16>, vector<8x128xbf16>, vector<8x128xbf16>, vector<8x128xbf16>, vector<8x128xbf16> -> vector<8x1152xbf16>
    %cst = arith.constant dense<0.000000e+00> : vector<8x128xf32>
    %21 = tpu.matmul %20, %0, %cst {dimension_numbers = #tpu.dot_dimension_numbers<[1], [0], [0], [1], [0, 0, 1, 1], [], []>} : vector<8x1152xbf16>, vector<1152x128xbf16>, vector<8x128xf32> -> vector<8x128xf32>
    %22 = vector.broadcast %1 : vector<1x128xf32> to vector<8x128xf32>
    %23 = arith.addf %21, %22 : vector<8x128xf32>
    %cst_37 = arith.constant 2.000000e+01 : f32
    %24 = vector.broadcast %cst_37 : f32 to vector<8x128xf32>
    %25 = arith.minimumf %23, %24 : vector<8x128xf32>
    %26 = math.exp %25 : vector<8x128xf32>
    %cst_38 = arith.constant 2.000000e+00 : f32
    %27 = vector.broadcast %cst_38 : f32 to vector<8x128xf32>
    %28 = arith.addf %26, %27 : vector<8x128xf32>
    %29 = arith.mulf %26, %28 : vector<8x128xf32>
    %cst_39 = arith.constant 2.000000e+00 : f32
    %30 = vector.broadcast %cst_39 : f32 to vector<8x128xf32>
    %31 = arith.addf %29, %30 : vector<8x128xf32>
    %32 = tpu.reciprocal %31 {approx = true} : vector<8x128xf32> -> vector<8x128xf32>
    %33 = arith.mulf %29, %32 : vector<8x128xf32>
    %cst_40 = arith.constant 2.000000e+01 : f32
    %34 = vector.broadcast %cst_40 : f32 to vector<8x128xf32>
    %35 = arith.cmpf ogt, %23, %34 : vector<8x128xf32>
    %36 = arith.mulf %23, %33 : vector<8x128xf32>
    %37 = arith.select %35, %23, %36 : vector<8x128xi1>, vector<8x128xf32>
    %c0_41 = arith.constant 0 : index
    %c0_42 = arith.constant 0 : index
    %c0_43 = arith.constant 0 : index
    %c0_44 = arith.constant 0 : index
    %38 = vector.load %arg4[%c0_41, %c0_42, %c0_43, %c0_44] : memref<1x8x8x128xbf16, #tpu.memory_space<vmem>>, vector<1x1x8x128xbf16>
    %39 = vector.shape_cast %38 : vector<1x1x8x128xbf16> to vector<8x128xbf16>
    %40 = arith.extf %39 : vector<8x128xbf16> to vector<8x128xf32>
    %41 = arith.addf %37, %40 : vector<8x128xf32>
    %42 = arith.truncf %41 : vector<8x128xf32> to vector<8x128xbf16>
    %c0_45 = arith.constant 0 : index
    %c0_46 = arith.constant 0 : index
    %c0_47 = arith.constant 0 : index
    %c0_48 = arith.constant 0 : index
    %43 = vector.load %arg5[%c0_45, %c0_46, %c0_47, %c0_48] : memref<1x8x8x128xbf16, #tpu.memory_space<vmem>>, vector<1x1x8x128xbf16>
    %44 = vector.shape_cast %43 : vector<1x1x8x128xbf16> to vector<8x128xbf16>
    %45 = vector.shape_cast %42 : vector<8x128xbf16> to vector<1x1x8x128xbf16>
    tpu.vector_store %arg5[%c0_45, %c0_46, %c0_47, %c0_48], %45 {strides = array<i32>} : memref<1x8x8x128xbf16, #tpu.memory_space<vmem>>, vector<1x1x8x128xbf16>,
    %c0_49 = arith.constant 0 : index
    %c1_50 = arith.constant 1 : index
    %c0_51 = arith.constant 0 : index
    %c0_52 = arith.constant 0 : index
    %46 = vector.load %arg1[%c0_49, %c1_50, %c0_51, %c0_52] : memref<1x10x10x128xbf16, #tpu.memory_space<vmem>>, vector<1x1x8x128xbf16>
    %47 = vector.shape_cast %46 : vector<1x1x8x128xbf16> to vector<8x128xbf16>
    %c0_53 = arith.constant 0 : index
    %c1_54 = arith.constant 1 : index
    %c1_55 = arith.constant 1 : index
    %c0_56 = arith.constant 0 : index
    %48 = vector.load %arg1[%c0_53, %c1_54, %c1_55, %c0_56] : memref<1x10x10x128xbf16, #tpu.memory_space<vmem>>, vector<1x1x8x128xbf16>
    %49 = vector.shape_cast %48 : vector<1x1x8x128xbf16> to vector<8x128xbf16>
    %c0_57 = arith.constant 0 : index
    %c1_58 = arith.constant 1 : index
    %c2_59 = arith.constant 2 : index
    %c0_60 = arith.constant 0 : index
    %50 = vector.load %arg1[%c0_57, %c1_58, %c2_59, %c0_60] : memref<1x10x10x128xbf16, #tpu.memory_space<vmem>>, vector<1x1x8x128xbf16>
    %51 = vector.shape_cast %50 : vector<1x1x8x128xbf16> to vector<8x128xbf16>
    %c0_61 = arith.constant 0 : index
    %c2_62 = arith.constant 2 : index
    %c0_63 = arith.constant 0 : index
    %c0_64 = arith.constant 0 : index
    %52 = vector.load %arg1[%c0_61, %c2_62, %c0_63, %c0_64] : memref<1x10x10x128xbf16, #tpu.memory_space<vmem>>, vector<1x1x8x128xbf16>
    %53 = vector.shape_cast %52 : vector<1x1x8x128xbf16> to vector<8x128xbf16>
    %c0_65 = arith.constant 0 : index
    %c2_66 = arith.constant 2 : index
    %c1_67 = arith.constant 1 : index
    %c0_68 = arith.constant 0 : index
    %54 = vector.load %arg1[%c0_65, %c2_66, %c1_67, %c0_68] : memref<1x10x10x128xbf16, #tpu.memory_space<vmem>>, vector<1x1x8x128xbf16>
    %55 = vector.shape_cast %54 : vector<1x1x8x128xbf16> to vector<8x128xbf16>
    %c0_69 = arith.constant 0 : index
    %c2_70 = arith.constant 2 : index
    %c2_71 = arith.constant 2 : index
    %c0_72 = arith.constant 0 : index
    %56 = vector.load %arg1[%c0_69, %c2_70, %c2_71, %c0_72] : memref<1x10x10x128xbf16, #tpu.memory_space<vmem>>, vector<1x1x8x128xbf16>
    %57 = vector.shape_cast %56 : vector<1x1x8x128xbf16> to vector<8x128xbf16>
    %c0_73 = arith.constant 0 : index
    %c3 = arith.constant 3 : index
    %c0_74 = arith.constant 0 : index
    %c0_75 = arith.constant 0 : index
    %58 = vector.load %arg1[%c0_73, %c3, %c0_74, %c0_75] : memref<1x10x10x128xbf16, #tpu.memory_space<vmem>>, vector<1x1x8x128xbf16>
    %59 = vector.shape_cast %58 : vector<1x1x8x128xbf16> to vector<8x128xbf16>
    %c0_76 = arith.constant 0 : index
    %c3_77 = arith.constant 3 : index
    %c1_78 = arith.constant 1 : index
    %c0_79 = arith.constant 0 : index
    %60 = vector.load %arg1[%c0_76, %c3_77, %c1_78, %c0_79] : memref<1x10x10x128xbf16, #tpu.memory_space<vmem>>, vector<1x1x8x128xbf16>
    %61 = vector.shape_cast %60 : vector<1x1x8x128xbf16> to vector<8x128xbf16>
    %c0_80 = arith.constant 0 : index
    %c3_81 = arith.constant 3 : index
    %c2_82 = arith.constant 2 : index
    %c0_83 = arith.constant 0 : index
    %62 = vector.load %arg1[%c0_80, %c3_81, %c2_82, %c0_83] : memref<1x10x10x128xbf16, #tpu.memory_space<vmem>>, vector<1x1x8x128xbf16>
    %63 = vector.shape_cast %62 : vector<1x1x8x128xbf16> to vector<8x128xbf16>
    %64 = tpu.concatenate %47, %49, %51, %53, %55, %57, %59, %61, %63 in 1 : vector<8x128xbf16>, vector<8x128xbf16>, vector<8x128xbf16>, vector<8x128xbf16>, vector<8x128xbf16>, vector<8x128xbf16>, vector<8x128xbf16>, vector<8x128xbf16>, vector<8x128xbf16> -> vector<8x1152xbf16>
    %cst_84 = arith.constant dense<0.000000e+00> : vector<8x128xf32>
    %65 = tpu.matmul %64, %0, %cst_84 {dimension_numbers = #tpu.dot_dimension_numbers<[1], [0], [0], [1], [0, 0, 1, 1], [], []>} : vector<8x1152xbf16>, vector<1152x128xbf16>, vector<8x128xf32> -> vector<8x128xf32>
    %66 = vector.broadcast %1 : vector<1x128xf32> to vector<8x128xf32>
    %67 = arith.addf %65, %66 : vector<8x128xf32>
    %cst_85 = arith.constant 2.000000e+01 : f32
    %68 = vector.broadcast %cst_85 : f32 to vector<8x128xf32>
    %69 = arith.minimumf %67, %68 : vector<8x128xf32>
    %70 = math.exp %69 : vector<8x128xf32>
    %cst_86 = arith.constant 2.000000e+00 : f32
    %71 = vector.broadcast %cst_86 : f32 to vector<8x128xf32>
    %72 = arith.addf %70, %71 : vector<8x128xf32>
    %73 = arith.mulf %70, %72 : vector<8x128xf32>
    %cst_87 = arith.constant 2.000000e+00 : f32
    %74 = vector.broadcast %cst_87 : f32 to vector<8x128xf32>
    %75 = arith.addf %73, %74 : vector<8x128xf32>
    %76 = tpu.reciprocal %75 {approx = true} : vector<8x128xf32> -> vector<8x128xf32>
    %77 = arith.mulf %73, %76 : vector<8x128xf32>
    %cst_88 = arith.constant 2.000000e+01 : f32
    %78 = vector.broadcast %cst_88 : f32 to vector<8x128xf32>
    %79 = arith.cmpf ogt, %67, %78 : vector<8x128xf32>
    %80 = arith.mulf %67, %77 : vector<8x128xf32>
    %81 = arith.select %79, %67, %80 : vector<8x128xi1>, vector<8x128xf32>
    %c0_89 = arith.constant 0 : index
    %c1_90 = arith.constant 1 : index
    %c0_91 = arith.constant 0 : index
    %c0_92 = arith.constant 0 : index
    %82 = vector.load %arg4[%c0_89, %c1_90, %c0_91, %c0_92] : memref<1x8x8x128xbf16, #tpu.memory_space<vmem>>, vector<1x1x8x128xbf16>
    %83 = vector.shape_cast %82 : vector<1x1x8x128xbf16> to vector<8x128xbf16>
    %84 = arith.extf %83 : vector<8x128xbf16> to vector<8x128xf32>
    %85 = arith.addf %81, %84 : vector<8x128xf32>
    %86 = arith.truncf %85 : vector<8x128xf32> to vector<8x128xbf16>
    %c0_93 = arith.constant 0 : index
    %c1_94 = arith.constant 1 : index
    %c0_95 = arith.constant 0 : index
    %c0_96 = arith.constant 0 : index
    %87 = vector.load %arg5[%c0_93, %c1_94, %c0_95, %c0_96] : memref<1x8x8x128xbf16, #tpu.memory_space<vmem>>, vector<1x1x8x128xbf16>
    %88 = vector.shape_cast %87 : vector<1x1x8x128xbf16> to vector<8x128xbf16>
    %89 = vector.shape_cast %86 : vector<8x128xbf16> to vector<1x1x8x128xbf16>
    tpu.vector_store %arg5[%c0_93, %c1_94, %c0_95, %c0_96], %89 {strides = array<i32>} : memref<1x8x8x128xbf16, #tpu.memory_space<vmem>>, vector<1x1x8x128xbf16>,
    %c0_97 = arith.constant 0 : index
    %c2_98 = arith.constant 2 : index
    %c0_99 = arith.constant 0 : index
    %c0_100 = arith.constant 0 : index
    %90 = vector.load %arg1[%c0_97, %c2_98, %c0_99, %c0_100] : memref<1x10x10x128xbf16, #tpu.memory_space<vmem>>, vector<1x1x8x128xbf16>
    %91 = vector.shape_cast %90 : vector<1x1x8x128xbf16> to vector<8x128xbf16>
    %c0_101 = arith.constant 0 : index
    %c2_102 = arith.constant 2 : index
    %c1_103 = arith.constant 1 : index
    %c0_104 = arith.constant 0 : index
    %92 = vector.load %arg1[%c0_101, %c2_102, %c1_103, %c0_104] : memref<1x10x10x128xbf16, #tpu.memory_space<vmem>>, vector<1x1x8x128xbf16>
    %93 = vector.shape_cast %92 : vector<1x1x8x128xbf16> to vector<8x128xbf16>
    %c0_105 = arith.constant 0 : index
    %c2_106 = arith.constant 2 : index
    %c2_107 = arith.constant 2 : index
    %c0_108 = arith.constant 0 : index
    %94 = vector.load %arg1[%c0_105, %c2_106, %c2_107, %c0_108] : memref<1x10x10x128xbf16, #tpu.memory_space<vmem>>, vector<1x1x8x128xbf16>
    %95 = vector.shape_cast %94 : vector<1x1x8x128xbf16> to vector<8x128xbf16>
    %c0_109 = arith.constant 0 : index
    %c3_110 = arith.constant 3 : index
    %c0_111 = arith.constant 0 : index
    %c0_112 = arith.constant 0 : index
    %96 = vector.load %arg1[%c0_109, %c3_110, %c0_111, %c0_112] : memref<1x10x10x128xbf16, #tpu.memory_space<vmem>>, vector<1x1x8x128xbf16>
    %97 = vector.shape_cast %96 : vector<1x1x8x128xbf16> to vector<8x128xbf16>
    %c0_113 = arith.constant 0 : index
    %c3_114 = arith.constant 3 : index
    %c1_115 = arith.constant 1 : index
    %c0_116 = arith.constant 0 : index
    %98 = vector.load %arg1[%c0_113, %c3_114, %c1_115, %c0_116] : memref<1x10x10x128xbf16, #tpu.memory_space<vmem>>, vector<1x1x8x128xbf16>
    %99 = vector.shape_cast %98 : vector<1x1x8x128xbf16> to vector<8x128xbf16>
    %c0_117 = arith.constant 0 : index
    %c3_118 = arith.constant 3 : index
    %c2_119 = arith.constant 2 : index
    %c0_120 = arith.constant 0 : index
    %100 = vector.load %arg1[%c0_117, %c3_118, %c2_119, %c0_120] : memref<1x10x10x128xbf16, #tpu.memory_space<vmem>>, vector<1x1x8x128xbf16>
    %101 = vector.shape_cast %100 : vector<1x1x8x128xbf16> to vector<8x128xbf16>
    %c0_121 = arith.constant 0 : index
    %c4 = arith.constant 4 : index
    %c0_122 = arith.constant 0 : index
    %c0_123 = arith.constant 0 : index
    %102 = vector.load %arg1[%c0_121, %c4, %c0_122, %c0_123] : memref<1x10x10x128xbf16, #tpu.memory_space<vmem>>, vector<1x1x8x128xbf16>
    %103 = vector.shape_cast %102 : vector<1x1x8x128xbf16> to vector<8x128xbf16>
    %c0_124 = arith.constant 0 : index
    %c4_125 = arith.constant 4 : index
    %c1_126 = arith.constant 1 : index
    %c0_127 = arith.constant 0 : index
    %104 = vector.load %arg1[%c0_124, %c4_125, %c1_126, %c0_127] : memref<1x10x10x128xbf16, #tpu.memory_space<vmem>>, vector<1x1x8x128xbf16>
    %105 = vector.shape_cast %104 : vector<1x1x8x128xbf16> to vector<8x128xbf16>
    %c0_128 = arith.constant 0 : index
    %c4_129 = arith.constant 4 : index
    %c2_130 = arith.constant 2 : index
    %c0_131 = arith.constant 0 : index
    %106 = vector.load %arg1[%c0_128, %c4_129, %c2_130, %c0_131] : memref<1x10x10x128xbf16, #tpu.memory_space<vmem>>, vector<1x1x8x128xbf16>
    %107 = vector.shape_cast %106 : vector<1x1x8x128xbf16> to vector<8x128xbf16>
    %108 = tpu.concatenate %91, %93, %95, %97, %99, %101, %103, %105, %107 in 1 : vector<8x128xbf16>, vector<8x128xbf16>, vector<8x128xbf16>, vector<8x128xbf16>, vector<8x128xbf16>, vector<8x128xbf16>, vector<8x128xbf16>, vector<8x128xbf16>, vector<8x128xbf16> -> vector<8x1152xbf16>
    %cst_132 = arith.constant dense<0.000000e+00> : vector<8x128xf32>
    %109 = tpu.matmul %108, %0, %cst_132 {dimension_numbers = #tpu.dot_dimension_numbers<[1], [0], [0], [1], [0, 0, 1, 1], [], []>} : vector<8x1152xbf16>, vector<1152x128xbf16>, vector<8x128xf32> -> vector<8x128xf32>
    %110 = vector.broadcast %1 : vector<1x128xf32> to vector<8x128xf32>
    %111 = arith.addf %109, %110 : vector<8x128xf32>
    %cst_133 = arith.constant 2.000000e+01 : f32
    %112 = vector.broadcast %cst_133 : f32 to vector<8x128xf32>
    %113 = arith.minimumf %111, %112 : vector<8x128xf32>
    %114 = math.exp %113 : vector<8x128xf32>
    %cst_134 = arith.constant 2.000000e+00 : f32
    %115 = vector.broadcast %cst_134 : f32 to vector<8x128xf32>
    %116 = arith.addf %114, %115 : vector<8x128xf32>
    %117 = arith.mulf %114, %116 : vector<8x128xf32>
    %cst_135 = arith.constant 2.000000e+00 : f32
    %118 = vector.broadcast %cst_135 : f32 to vector<8x128xf32>
    %119 = arith.addf %117, %118 : vector<8x128xf32>
    %120 = tpu.reciprocal %119 {approx = true} : vector<8x128xf32> -> vector<8x128xf32>
    %121 = arith.mulf %117, %120 : vector<8x128xf32>
    %cst_136 = arith.constant 2.000000e+01 : f32
    %122 = vector.broadcast %cst_136 : f32 to vector<8x128xf32>
    %123 = arith.cmpf ogt, %111, %122 : vector<8x128xf32>
    %124 = arith.mulf %111, %121 : vector<8x128xf32>
    %125 = arith.select %123, %111, %124 : vector<8x128xi1>, vector<8x128xf32>
    %c0_137 = arith.constant 0 : index
    %c2_138 = arith.constant 2 : index
    %c0_139 = arith.constant 0 : index
    %c0_140 = arith.constant 0 : index
    %126 = vector.load %arg4[%c0_137, %c2_138, %c0_139, %c0_140] : memref<1x8x8x128xbf16, #tpu.memory_space<vmem>>, vector<1x1x8x128xbf16>
    %127 = vector.shape_cast %126 : vector<1x1x8x128xbf16> to vector<8x128xbf16>
    %128 = arith.extf %127 : vector<8x128xbf16> to vector<8x128xf32>
    %129 = arith.addf %125, %128 : vector<8x128xf32>
    %130 = arith.truncf %129 : vector<8x128xf32> to vector<8x128xbf16>
    %c0_141 = arith.constant 0 : index
    %c2_142 = arith.constant 2 : index
    %c0_143 = arith.constant 0 : index
    %c0_144 = arith.constant 0 : index
    %131 = vector.load %arg5[%c0_141, %c2_142, %c0_143, %c0_144] : memref<1x8x8x128xbf16, #tpu.memory_space<vmem>>, vector<1x1x8x128xbf16>
    %132 = vector.shape_cast %131 : vector<1x1x8x128xbf16> to vector<8x128xbf16>
    %133 = vector.shape_cast %130 : vector<8x128xbf16> to vector<1x1x8x128xbf16>
    tpu.vector_store %arg5[%c0_141, %c2_142, %c0_143, %c0_144], %133 {strides = array<i32>} : memref<1x8x8x128xbf16, #tpu.memory_space<vmem>>, vector<1x1x8x128xbf16>,
    %c0_145 = arith.constant 0 : index
    %c3_146 = arith.constant 3 : index
    %c0_147 = arith.constant 0 : index
    %c0_148 = arith.constant 0 : index
    %134 = vector.load %arg1[%c0_145, %c3_146, %c0_147, %c0_148] : memref<1x10x10x128xbf16, #tpu.memory_space<vmem>>, vector<1x1x8x128xbf16>
    %135 = vector.shape_cast %134 : vector<1x1x8x128xbf16> to vector<8x128xbf16>
    %c0_149 = arith.constant 0 : index
    %c3_150 = arith.constant 3 : index
    %c1_151 = arith.constant 1 : index
    %c0_152 = arith.constant 0 : index
    %136 = vector.load %arg1[%c0_149, %c3_150, %c1_151, %c0_152] : memref<1x10x10x128xbf16, #tpu.memory_space<vmem>>, vector<1x1x8x128xbf16>
    %137 = vector.shape_cast %136 : vector<1x1x8x128xbf16> to vector<8x128xbf16>
    %c0_153 = arith.constant 0 : index
    %c3_154 = arith.constant 3 : index
    %c2_155 = arith.constant 2 : index
    %c0_156 = arith.constant 0 : index
    %138 = vector.load %arg1[%c0_153, %c3_154, %c2_155, %c0_156] : memref<1x10x10x128xbf16, #tpu.memory_space<vmem>>, vector<1x1x8x128xbf16>
    %139 = vector.shape_cast %138 : vector<1x1x8x128xbf16> to vector<8x128xbf16>
    %c0_157 = arith.constant 0 : index
    %c4_158 = arith.constant 4 : index
    %c0_159 = arith.constant 0 : index
    %c0_160 = arith.constant 0 : index
    %140 = vector.load %arg1[%c0_157, %c4_158, %c0_159, %c0_160] : memref<1x10x10x128xbf16, #tpu.memory_space<vmem>>, vector<1x1x8x128xbf16>
    %141 = vector.shape_cast %140 : vector<1x1x8x128xbf16> to vector<8x128xbf16>
    %c0_161 = arith.constant 0 : index
    %c4_162 = arith.constant 4 : index
    %c1_163 = arith.constant 1 : index
    %c0_164 = arith.constant 0 : index
    %142 = vector.load %arg1[%c0_161, %c4_162, %c1_163, %c0_164] : memref<1x10x10x128xbf16, #tpu.memory_space<vmem>>, vector<1x1x8x128xbf16>
    %143 = vector.shape_cast %142 : vector<1x1x8x128xbf16> to vector<8x128xbf16>
    %c0_165 = arith.constant 0 : index
    %c4_166 = arith.constant 4 : index
    %c2_167 = arith.constant 2 : index
    %c0_168 = arith.constant 0 : index
    %144 = vector.load %arg1[%c0_165, %c4_166, %c2_167, %c0_168] : memref<1x10x10x128xbf16, #tpu.memory_space<vmem>>, vector<1x1x8x128xbf16>
    %145 = vector.shape_cast %144 : vector<1x1x8x128xbf16> to vector<8x128xbf16>
    %c0_169 = arith.constant 0 : index
    %c5 = arith.constant 5 : index
    %c0_170 = arith.constant 0 : index
    %c0_171 = arith.constant 0 : index
    %146 = vector.load %arg1[%c0_169, %c5, %c0_170, %c0_171] : memref<1x10x10x128xbf16, #tpu.memory_space<vmem>>, vector<1x1x8x128xbf16>
    %147 = vector.shape_cast %146 : vector<1x1x8x128xbf16> to vector<8x128xbf16>
    %c0_172 = arith.constant 0 : index
    %c5_173 = arith.constant 5 : index
    %c1_174 = arith.constant 1 : index
    %c0_175 = arith.constant 0 : index
    %148 = vector.load %arg1[%c0_172, %c5_173, %c1_174, %c0_175] : memref<1x10x10x128xbf16, #tpu.memory_space<vmem>>, vector<1x1x8x128xbf16>
    %149 = vector.shape_cast %148 : vector<1x1x8x128xbf16> to vector<8x128xbf16>
    %c0_176 = arith.constant 0 : index
    %c5_177 = arith.constant 5 : index
    %c2_178 = arith.constant 2 : index
    %c0_179 = arith.constant 0 : index
    %150 = vector.load %arg1[%c0_176, %c5_177, %c2_178, %c0_179] : memref<1x10x10x128xbf16, #tpu.memory_space<vmem>>, vector<1x1x8x128xbf16>
    %151 = vector.shape_cast %150 : vector<1x1x8x128xbf16> to vector<8x128xbf16>
    %152 = tpu.concatenate %135, %137, %139, %141, %143, %145, %147, %149, %151 in 1 : vector<8x128xbf16>, vector<8x128xbf16>, vector<8x128xbf16>, vector<8x128xbf16>, vector<8x128xbf16>, vector<8x128xbf16>, vector<8x128xbf16>, vector<8x128xbf16>, vector<8x128xbf16> -> vector<8x1152xbf16>
    %cst_180 = arith.constant dense<0.000000e+00> : vector<8x128xf32>
    %153 = tpu.matmul %152, %0, %cst_180 {dimension_numbers = #tpu.dot_dimension_numbers<[1], [0], [0], [1], [0, 0, 1, 1], [], []>} : vector<8x1152xbf16>, vector<1152x128xbf16>, vector<8x128xf32> -> vector<8x128xf32>
    %154 = vector.broadcast %1 : vector<1x128xf32> to vector<8x128xf32>
    %155 = arith.addf %153, %154 : vector<8x128xf32>
    %cst_181 = arith.constant 2.000000e+01 : f32
    %156 = vector.broadcast %cst_181 : f32 to vector<8x128xf32>
    %157 = arith.minimumf %155, %156 : vector<8x128xf32>
    %158 = math.exp %157 : vector<8x128xf32>
    %cst_182 = arith.constant 2.000000e+00 : f32
    %159 = vector.broadcast %cst_182 : f32 to vector<8x128xf32>
    %160 = arith.addf %158, %159 : vector<8x128xf32>
    %161 = arith.mulf %158, %160 : vector<8x128xf32>
    %cst_183 = arith.constant 2.000000e+00 : f32
    %162 = vector.broadcast %cst_183 : f32 to vector<8x128xf32>
    %163 = arith.addf %161, %162 : vector<8x128xf32>
    %164 = tpu.reciprocal %163 {approx = true} : vector<8x128xf32> -> vector<8x128xf32>
    %165 = arith.mulf %161, %164 : vector<8x128xf32>
    %cst_184 = arith.constant 2.000000e+01 : f32
    %166 = vector.broadcast %cst_184 : f32 to vector<8x128xf32>
    %167 = arith.cmpf ogt, %155, %166 : vector<8x128xf32>
    %168 = arith.mulf %155, %165 : vector<8x128xf32>
    %169 = arith.select %167, %155, %168 : vector<8x128xi1>, vector<8x128xf32>
    %c0_185 = arith.constant 0 : index
    %c3_186 = arith.constant 3 : index
    %c0_187 = arith.constant 0 : index
    %c0_188 = arith.constant 0 : index
    %170 = vector.load %arg4[%c0_185, %c3_186, %c0_187, %c0_188] : memref<1x8x8x128xbf16, #tpu.memory_space<vmem>>, vector<1x1x8x128xbf16>
    %171 = vector.shape_cast %170 : vector<1x1x8x128xbf16> to vector<8x128xbf16>
    %172 = arith.extf %171 : vector<8x128xbf16> to vector<8x128xf32>
    %173 = arith.addf %169, %172 : vector<8x128xf32>
    %174 = arith.truncf %173 : vector<8x128xf32> to vector<8x128xbf16>
    %c0_189 = arith.constant 0 : index
    %c3_190 = arith.constant 3 : index
    %c0_191 = arith.constant 0 : index
    %c0_192 = arith.constant 0 : index
    %175 = vector.load %arg5[%c0_189, %c3_190, %c0_191, %c0_192] : memref<1x8x8x128xbf16, #tpu.memory_space<vmem>>, vector<1x1x8x128xbf16>
    %176 = vector.shape_cast %175 : vector<1x1x8x128xbf16> to vector<8x128xbf16>
    %177 = vector.shape_cast %174 : vector<8x128xbf16> to vector<1x1x8x128xbf16>
    tpu.vector_store %arg5[%c0_189, %c3_190, %c0_191, %c0_192], %177 {strides = array<i32>} : memref<1x8x8x128xbf16, #tpu.memory_space<vmem>>, vector<1x1x8x128xbf16>,
    %c0_193 = arith.constant 0 : index
    %c4_194 = arith.constant 4 : index
    %c0_195 = arith.constant 0 : index
    %c0_196 = arith.constant 0 : index
    %178 = vector.load %arg1[%c0_193, %c4_194, %c0_195, %c0_196] : memref<1x10x10x128xbf16, #tpu.memory_space<vmem>>, vector<1x1x8x128xbf16>
    %179 = vector.shape_cast %178 : vector<1x1x8x128xbf16> to vector<8x128xbf16>
    %c0_197 = arith.constant 0 : index
    %c4_198 = arith.constant 4 : index
    %c1_199 = arith.constant 1 : index
    %c0_200 = arith.constant 0 : index
    %180 = vector.load %arg1[%c0_197, %c4_198, %c1_199, %c0_200] : memref<1x10x10x128xbf16, #tpu.memory_space<vmem>>, vector<1x1x8x128xbf16>
    %181 = vector.shape_cast %180 : vector<1x1x8x128xbf16> to vector<8x128xbf16>
    %c0_201 = arith.constant 0 : index
    %c4_202 = arith.constant 4 : index
    %c2_203 = arith.constant 2 : index
    %c0_204 = arith.constant 0 : index
    %182 = vector.load %arg1[%c0_201, %c4_202, %c2_203, %c0_204] : memref<1x10x10x128xbf16, #tpu.memory_space<vmem>>, vector<1x1x8x128xbf16>
    %183 = vector.shape_cast %182 : vector<1x1x8x128xbf16> to vector<8x128xbf16>
    %c0_205 = arith.constant 0 : index
    %c5_206 = arith.constant 5 : index
    %c0_207 = arith.constant 0 : index
    %c0_208 = arith.constant 0 : index
    %184 = vector.load %arg1[%c0_205, %c5_206, %c0_207, %c0_208] : memref<1x10x10x128xbf16, #tpu.memory_space<vmem>>, vector<1x1x8x128xbf16>
    %185 = vector.shape_cast %184 : vector<1x1x8x128xbf16> to vector<8x128xbf16>
    %c0_209 = arith.constant 0 : index
    %c5_210 = arith.constant 5 : index
    %c1_211 = arith.constant 1 : index
    %c0_212 = arith.constant 0 : index
    %186 = vector.load %arg1[%c0_209, %c5_210, %c1_211, %c0_212] : memref<1x10x10x128xbf16, #tpu.memory_space<vmem>>, vector<1x1x8x128xbf16>
    %187 = vector.shape_cast %186 : vector<1x1x8x128xbf16> to vector<8x128xbf16>
    %c0_213 = arith.constant 0 : index
    %c5_214 = arith.constant 5 : index
    %c2_215 = arith.constant 2 : index
    %c0_216 = arith.constant 0 : index
    %188 = vector.load %arg1[%c0_213, %c5_214, %c2_215, %c0_216] : memref<1x10x10x128xbf16, #tpu.memory_space<vmem>>, vector<1x1x8x128xbf16>
    %189 = vector.shape_cast %188 : vector<1x1x8x128xbf16> to vector<8x128xbf16>
    %c0_217 = arith.constant 0 : index
    %c6 = arith.constant 6 : index
    %c0_218 = arith.constant 0 : index
    %c0_219 = arith.constant 0 : index
    %190 = vector.load %arg1[%c0_217, %c6, %c0_218, %c0_219] : memref<1x10x10x128xbf16, #tpu.memory_space<vmem>>, vector<1x1x8x128xbf16>
    %191 = vector.shape_cast %190 : vector<1x1x8x128xbf16> to vector<8x128xbf16>
    %c0_220 = arith.constant 0 : index
    %c6_221 = arith.constant 6 : index
    %c1_222 = arith.constant 1 : index
    %c0_223 = arith.constant 0 : index
    %192 = vector.load %arg1[%c0_220, %c6_221, %c1_222, %c0_223] : memref<1x10x10x128xbf16, #tpu.memory_space<vmem>>, vector<1x1x8x128xbf16>
    %193 = vector.shape_cast %192 : vector<1x1x8x128xbf16> to vector<8x128xbf16>
    %c0_224 = arith.constant 0 : index
    %c6_225 = arith.constant 6 : index
    %c2_226 = arith.constant 2 : index
    %c0_227 = arith.constant 0 : index
    %194 = vector.load %arg1[%c0_224, %c6_225, %c2_226, %c0_227] : memref<1x10x10x128xbf16, #tpu.memory_space<vmem>>, vector<1x1x8x128xbf16>
    %195 = vector.shape_cast %194 : vector<1x1x8x128xbf16> to vector<8x128xbf16>
    %196 = tpu.concatenate %179, %181, %183, %185, %187, %189, %191, %193, %195 in 1 : vector<8x128xbf16>, vector<8x128xbf16>, vector<8x128xbf16>, vector<8x128xbf16>, vector<8x128xbf16>, vector<8x128xbf16>, vector<8x128xbf16>, vector<8x128xbf16>, vector<8x128xbf16> -> vector<8x1152xbf16>
    %cst_228 = arith.constant dense<0.000000e+00> : vector<8x128xf32>
    %197 = tpu.matmul %196, %0, %cst_228 {dimension_numbers = #tpu.dot_dimension_numbers<[1], [0], [0], [1], [0, 0, 1, 1], [], []>} : vector<8x1152xbf16>, vector<1152x128xbf16>, vector<8x128xf32> -> vector<8x128xf32>
    %198 = vector.broadcast %1 : vector<1x128xf32> to vector<8x128xf32>
    %199 = arith.addf %197, %198 : vector<8x128xf32>
    %cst_229 = arith.constant 2.000000e+01 : f32
    %200 = vector.broadcast %cst_229 : f32 to vector<8x128xf32>
    %201 = arith.minimumf %199, %200 : vector<8x128xf32>
    %202 = math.exp %201 : vector<8x128xf32>
    %cst_230 = arith.constant 2.000000e+00 : f32
    %203 = vector.broadcast %cst_230 : f32 to vector<8x128xf32>
    %204 = arith.addf %202, %203 : vector<8x128xf32>
    %205 = arith.mulf %202, %204 : vector<8x128xf32>
    %cst_231 = arith.constant 2.000000e+00 : f32
    %206 = vector.broadcast %cst_231 : f32 to vector<8x128xf32>
    %207 = arith.addf %205, %206 : vector<8x128xf32>
    %208 = tpu.reciprocal %207 {approx = true} : vector<8x128xf32> -> vector<8x128xf32>
    %209 = arith.mulf %205, %208 : vector<8x128xf32>
    %cst_232 = arith.constant 2.000000e+01 : f32
    %210 = vector.broadcast %cst_232 : f32 to vector<8x128xf32>
    %211 = arith.cmpf ogt, %199, %210 : vector<8x128xf32>
    %212 = arith.mulf %199, %209 : vector<8x128xf32>
    %213 = arith.select %211, %199, %212 : vector<8x128xi1>, vector<8x128xf32>
    %c0_233 = arith.constant 0 : index
    %c4_234 = arith.constant 4 : index
    %c0_235 = arith.constant 0 : index
    %c0_236 = arith.constant 0 : index
    %214 = vector.load %arg4[%c0_233, %c4_234, %c0_235, %c0_236] : memref<1x8x8x128xbf16, #tpu.memory_space<vmem>>, vector<1x1x8x128xbf16>
    %215 = vector.shape_cast %214 : vector<1x1x8x128xbf16> to vector<8x128xbf16>
    %216 = arith.extf %215 : vector<8x128xbf16> to vector<8x128xf32>
    %217 = arith.addf %213, %216 : vector<8x128xf32>
    %218 = arith.truncf %217 : vector<8x128xf32> to vector<8x128xbf16>
    %c0_237 = arith.constant 0 : index
    %c4_238 = arith.constant 4 : index
    %c0_239 = arith.constant 0 : index
    %c0_240 = arith.constant 0 : index
    %219 = vector.load %arg5[%c0_237, %c4_238, %c0_239, %c0_240] : memref<1x8x8x128xbf16, #tpu.memory_space<vmem>>, vector<1x1x8x128xbf16>
    %220 = vector.shape_cast %219 : vector<1x1x8x128xbf16> to vector<8x128xbf16>
    %221 = vector.shape_cast %218 : vector<8x128xbf16> to vector<1x1x8x128xbf16>
    tpu.vector_store %arg5[%c0_237, %c4_238, %c0_239, %c0_240], %221 {strides = array<i32>} : memref<1x8x8x128xbf16, #tpu.memory_space<vmem>>, vector<1x1x8x128xbf16>,
    %c0_241 = arith.constant 0 : index
    %c5_242 = arith.constant 5 : index
    %c0_243 = arith.constant 0 : index
    %c0_244 = arith.constant 0 : index
    %222 = vector.load %arg1[%c0_241, %c5_242, %c0_243, %c0_244] : memref<1x10x10x128xbf16, #tpu.memory_space<vmem>>, vector<1x1x8x128xbf16>
    %223 = vector.shape_cast %222 : vector<1x1x8x128xbf16> to vector<8x128xbf16>
    %c0_245 = arith.constant 0 : index
    %c5_246 = arith.constant 5 : index
    %c1_247 = arith.constant 1 : index
    %c0_248 = arith.constant 0 : index
    %224 = vector.load %arg1[%c0_245, %c5_246, %c1_247, %c0_248] : memref<1x10x10x128xbf16, #tpu.memory_space<vmem>>, vector<1x1x8x128xbf16>
    %225 = vector.shape_cast %224 : vector<1x1x8x128xbf16> to vector<8x128xbf16>
    %c0_249 = arith.constant 0 : index
    %c5_250 = arith.constant 5 : index
    %c2_251 = arith.constant 2 : index
    %c0_252 = arith.constant 0 : index
    %226 = vector.load %arg1[%c0_249, %c5_250, %c2_251, %c0_252] : memref<1x10x10x128xbf16, #tpu.memory_space<vmem>>, vector<1x1x8x128xbf16>
    %227 = vector.shape_cast %226 : vector<1x1x8x128xbf16> to vector<8x128xbf16>
    %c0_253 = arith.constant 0 : index
    %c6_254 = arith.constant 6 : index
    %c0_255 = arith.constant 0 : index
    %c0_256 = arith.constant 0 : index
    %228 = vector.load %arg1[%c0_253, %c6_254, %c0_255, %c0_256] : memref<1x10x10x128xbf16, #tpu.memory_space<vmem>>, vector<1x1x8x128xbf16>
    %229 = vector.shape_cast %228 : vector<1x1x8x128xbf16> to vector<8x128xbf16>
    %c0_257 = arith.constant 0 : index
    %c6_258 = arith.constant 6 : index
    %c1_259 = arith.constant 1 : index
    %c0_260 = arith.constant 0 : index
    %230 = vector.load %arg1[%c0_257, %c6_258, %c1_259, %c0_260] : memref<1x10x10x128xbf16, #tpu.memory_space<vmem>>, vector<1x1x8x128xbf16>
    %231 = vector.shape_cast %230 : vector<1x1x8x128xbf16> to vector<8x128xbf16>
    %c0_261 = arith.constant 0 : index
    %c6_262 = arith.constant 6 : index
    %c2_263 = arith.constant 2 : index
    %c0_264 = arith.constant 0 : index
    %232 = vector.load %arg1[%c0_261, %c6_262, %c2_263, %c0_264] : memref<1x10x10x128xbf16, #tpu.memory_space<vmem>>, vector<1x1x8x128xbf16>
    %233 = vector.shape_cast %232 : vector<1x1x8x128xbf16> to vector<8x128xbf16>
    %c0_265 = arith.constant 0 : index
    %c7 = arith.constant 7 : index
    %c0_266 = arith.constant 0 : index
    %c0_267 = arith.constant 0 : index
    %234 = vector.load %arg1[%c0_265, %c7, %c0_266, %c0_267] : memref<1x10x10x128xbf16, #tpu.memory_space<vmem>>, vector<1x1x8x128xbf16>
    %235 = vector.shape_cast %234 : vector<1x1x8x128xbf16> to vector<8x128xbf16>
    %c0_268 = arith.constant 0 : index
    %c7_269 = arith.constant 7 : index
    %c1_270 = arith.constant 1 : index
    %c0_271 = arith.constant 0 : index
    %236 = vector.load %arg1[%c0_268, %c7_269, %c1_270, %c0_271] : memref<1x10x10x128xbf16, #tpu.memory_space<vmem>>, vector<1x1x8x128xbf16>
    %237 = vector.shape_cast %236 : vector<1x1x8x128xbf16> to vector<8x128xbf16>
    %c0_272 = arith.constant 0 : index
    %c7_273 = arith.constant 7 : index
    %c2_274 = arith.constant 2 : index
    %c0_275 = arith.constant 0 : index
    %238 = vector.load %arg1[%c0_272, %c7_273, %c2_274, %c0_275] : memref<1x10x10x128xbf16, #tpu.memory_space<vmem>>, vector<1x1x8x128xbf16>
    %239 = vector.shape_cast %238 : vector<1x1x8x128xbf16> to vector<8x128xbf16>
    %240 = tpu.concatenate %223, %225, %227, %229, %231, %233, %235, %237, %239 in 1 : vector<8x128xbf16>, vector<8x128xbf16>, vector<8x128xbf16>, vector<8x128xbf16>, vector<8x128xbf16>, vector<8x128xbf16>, vector<8x128xbf16>, vector<8x128xbf16>, vector<8x128xbf16> -> vector<8x1152xbf16>
    %cst_276 = arith.constant dense<0.000000e+00> : vector<8x128xf32>
    %241 = tpu.matmul %240, %0, %cst_276 {dimension_numbers = #tpu.dot_dimension_numbers<[1], [0], [0], [1], [0, 0, 1, 1], [], []>} : vector<8x1152xbf16>, vector<1152x128xbf16>, vector<8x128xf32> -> vector<8x128xf32>
    %242 = vector.broadcast %1 : vector<1x128xf32> to vector<8x128xf32>
    %243 = arith.addf %241, %242 : vector<8x128xf32>
    %cst_277 = arith.constant 2.000000e+01 : f32
    %244 = vector.broadcast %cst_277 : f32 to vector<8x128xf32>
    %245 = arith.minimumf %243, %244 : vector<8x128xf32>
    %246 = math.exp %245 : vector<8x128xf32>
    %cst_278 = arith.constant 2.000000e+00 : f32
    %247 = vector.broadcast %cst_278 : f32 to vector<8x128xf32>
    %248 = arith.addf %246, %247 : vector<8x128xf32>
    %249 = arith.mulf %246, %248 : vector<8x128xf32>
    %cst_279 = arith.constant 2.000000e+00 : f32
    %250 = vector.broadcast %cst_279 : f32 to vector<8x128xf32>
    %251 = arith.addf %249, %250 : vector<8x128xf32>
    %252 = tpu.reciprocal %251 {approx = true} : vector<8x128xf32> -> vector<8x128xf32>
    %253 = arith.mulf %249, %252 : vector<8x128xf32>
    %cst_280 = arith.constant 2.000000e+01 : f32
    %254 = vector.broadcast %cst_280 : f32 to vector<8x128xf32>
    %255 = arith.cmpf ogt, %243, %254 : vector<8x128xf32>
    %256 = arith.mulf %243, %253 : vector<8x128xf32>
    %257 = arith.select %255, %243, %256 : vector<8x128xi1>, vector<8x128xf32>
    %c0_281 = arith.constant 0 : index
    %c5_282 = arith.constant 5 : index
    %c0_283 = arith.constant 0 : index
    %c0_284 = arith.constant 0 : index
    %258 = vector.load %arg4[%c0_281, %c5_282, %c0_283, %c0_284] : memref<1x8x8x128xbf16, #tpu.memory_space<vmem>>, vector<1x1x8x128xbf16>
    %259 = vector.shape_cast %258 : vector<1x1x8x128xbf16> to vector<8x128xbf16>
    %260 = arith.extf %259 : vector<8x128xbf16> to vector<8x128xf32>
    %261 = arith.addf %257, %260 : vector<8x128xf32>
    %262 = arith.truncf %261 : vector<8x128xf32> to vector<8x128xbf16>
    %c0_285 = arith.constant 0 : index
    %c5_286 = arith.constant 5 : index
    %c0_287 = arith.constant 0 : index
    %c0_288 = arith.constant 0 : index
    %263 = vector.load %arg5[%c0_285, %c5_286, %c0_287, %c0_288] : memref<1x8x8x128xbf16, #tpu.memory_space<vmem>>, vector<1x1x8x128xbf16>
    %264 = vector.shape_cast %263 : vector<1x1x8x128xbf16> to vector<8x128xbf16>
    %265 = vector.shape_cast %262 : vector<8x128xbf16> to vector<1x1x8x128xbf16>
    tpu.vector_store %arg5[%c0_285, %c5_286, %c0_287, %c0_288], %265 {strides = array<i32>} : memref<1x8x8x128xbf16, #tpu.memory_space<vmem>>, vector<1x1x8x128xbf16>,
    %c0_289 = arith.constant 0 : index
    %c6_290 = arith.constant 6 : index
    %c0_291 = arith.constant 0 : index
    %c0_292 = arith.constant 0 : index
    %266 = vector.load %arg1[%c0_289, %c6_290, %c0_291, %c0_292] : memref<1x10x10x128xbf16, #tpu.memory_space<vmem>>, vector<1x1x8x128xbf16>
    %267 = vector.shape_cast %266 : vector<1x1x8x128xbf16> to vector<8x128xbf16>
    %c0_293 = arith.constant 0 : index
    %c6_294 = arith.constant 6 : index
    %c1_295 = arith.constant 1 : index
    %c0_296 = arith.constant 0 : index
    %268 = vector.load %arg1[%c0_293, %c6_294, %c1_295, %c0_296] : memref<1x10x10x128xbf16, #tpu.memory_space<vmem>>, vector<1x1x8x128xbf16>
    %269 = vector.shape_cast %268 : vector<1x1x8x128xbf16> to vector<8x128xbf16>
    %c0_297 = arith.constant 0 : index
    %c6_298 = arith.constant 6 : index
    %c2_299 = arith.constant 2 : index
    %c0_300 = arith.constant 0 : index
    %270 = vector.load %arg1[%c0_297, %c6_298, %c2_299, %c0_300] : memref<1x10x10x128xbf16, #tpu.memory_space<vmem>>, vector<1x1x8x128xbf16>
    %271 = vector.shape_cast %270 : vector<1x1x8x128xbf16> to vector<8x128xbf16>
    %c0_301 = arith.constant 0 : index
    %c7_302 = arith.constant 7 : index
    %c0_303 = arith.constant 0 : index
    %c0_304 = arith.constant 0 : index
    %272 = vector.load %arg1[%c0_301, %c7_302, %c0_303, %c0_304] : memref<1x10x10x128xbf16, #tpu.memory_space<vmem>>, vector<1x1x8x128xbf16>
    %273 = vector.shape_cast %272 : vector<1x1x8x128xbf16> to vector<8x128xbf16>
    %c0_305 = arith.constant 0 : index
    %c7_306 = arith.constant 7 : index
    %c1_307 = arith.constant 1 : index
    %c0_308 = arith.constant 0 : index
    %274 = vector.load %arg1[%c0_305, %c7_306, %c1_307, %c0_308] : memref<1x10x10x128xbf16, #tpu.memory_space<vmem>>, vector<1x1x8x128xbf16>
    %275 = vector.shape_cast %274 : vector<1x1x8x128xbf16> to vector<8x128xbf16>
    %c0_309 = arith.constant 0 : index
    %c7_310 = arith.constant 7 : index
    %c2_311 = arith.constant 2 : index
    %c0_312 = arith.constant 0 : index
    %276 = vector.load %arg1[%c0_309, %c7_310, %c2_311, %c0_312] : memref<1x10x10x128xbf16, #tpu.memory_space<vmem>>, vector<1x1x8x128xbf16>
    %277 = vector.shape_cast %276 : vector<1x1x8x128xbf16> to vector<8x128xbf16>
    %c0_313 = arith.constant 0 : index
    %c8 = arith.constant 8 : index
    %c0_314 = arith.constant 0 : index
    %c0_315 = arith.constant 0 : index
    %278 = vector.load %arg1[%c0_313, %c8, %c0_314, %c0_315] : memref<1x10x10x128xbf16, #tpu.memory_space<vmem>>, vector<1x1x8x128xbf16>
    %279 = vector.shape_cast %278 : vector<1x1x8x128xbf16> to vector<8x128xbf16>
    %c0_316 = arith.constant 0 : index
    %c8_317 = arith.constant 8 : index
    %c1_318 = arith.constant 1 : index
    %c0_319 = arith.constant 0 : index
    %280 = vector.load %arg1[%c0_316, %c8_317, %c1_318, %c0_319] : memref<1x10x10x128xbf16, #tpu.memory_space<vmem>>, vector<1x1x8x128xbf16>
    %281 = vector.shape_cast %280 : vector<1x1x8x128xbf16> to vector<8x128xbf16>
    %c0_320 = arith.constant 0 : index
    %c8_321 = arith.constant 8 : index
    %c2_322 = arith.constant 2 : index
    %c0_323 = arith.constant 0 : index
    %282 = vector.load %arg1[%c0_320, %c8_321, %c2_322, %c0_323] : memref<1x10x10x128xbf16, #tpu.memory_space<vmem>>, vector<1x1x8x128xbf16>
    %283 = vector.shape_cast %282 : vector<1x1x8x128xbf16> to vector<8x128xbf16>
    %284 = tpu.concatenate %267, %269, %271, %273, %275, %277, %279, %281, %283 in 1 : vector<8x128xbf16>, vector<8x128xbf16>, vector<8x128xbf16>, vector<8x128xbf16>, vector<8x128xbf16>, vector<8x128xbf16>, vector<8x128xbf16>, vector<8x128xbf16>, vector<8x128xbf16> -> vector<8x1152xbf16>
    %cst_324 = arith.constant dense<0.000000e+00> : vector<8x128xf32>
    %285 = tpu.matmul %284, %0, %cst_324 {dimension_numbers = #tpu.dot_dimension_numbers<[1], [0], [0], [1], [0, 0, 1, 1], [], []>} : vector<8x1152xbf16>, vector<1152x128xbf16>, vector<8x128xf32> -> vector<8x128xf32>
    %286 = vector.broadcast %1 : vector<1x128xf32> to vector<8x128xf32>
    %287 = arith.addf %285, %286 : vector<8x128xf32>
    %cst_325 = arith.constant 2.000000e+01 : f32
    %288 = vector.broadcast %cst_325 : f32 to vector<8x128xf32>
    %289 = arith.minimumf %287, %288 : vector<8x128xf32>
    %290 = math.exp %289 : vector<8x128xf32>
    %cst_326 = arith.constant 2.000000e+00 : f32
    %291 = vector.broadcast %cst_326 : f32 to vector<8x128xf32>
    %292 = arith.addf %290, %291 : vector<8x128xf32>
    %293 = arith.mulf %290, %292 : vector<8x128xf32>
    %cst_327 = arith.constant 2.000000e+00 : f32
    %294 = vector.broadcast %cst_327 : f32 to vector<8x128xf32>
    %295 = arith.addf %293, %294 : vector<8x128xf32>
    %296 = tpu.reciprocal %295 {approx = true} : vector<8x128xf32> -> vector<8x128xf32>
    %297 = arith.mulf %293, %296 : vector<8x128xf32>
    %cst_328 = arith.constant 2.000000e+01 : f32
    %298 = vector.broadcast %cst_328 : f32 to vector<8x128xf32>
    %299 = arith.cmpf ogt, %287, %298 : vector<8x128xf32>
    %300 = arith.mulf %287, %297 : vector<8x128xf32>
    %301 = arith.select %299, %287, %300 : vector<8x128xi1>, vector<8x128xf32>
    %c0_329 = arith.constant 0 : index
    %c6_330 = arith.constant 6 : index
    %c0_331 = arith.constant 0 : index
    %c0_332 = arith.constant 0 : index
    %302 = vector.load %arg4[%c0_329, %c6_330, %c0_331, %c0_332] : memref<1x8x8x128xbf16, #tpu.memory_space<vmem>>, vector<1x1x8x128xbf16>
    %303 = vector.shape_cast %302 : vector<1x1x8x128xbf16> to vector<8x128xbf16>
    %304 = arith.extf %303 : vector<8x128xbf16> to vector<8x128xf32>
    %305 = arith.addf %301, %304 : vector<8x128xf32>
    %306 = arith.truncf %305 : vector<8x128xf32> to vector<8x128xbf16>
    %c0_333 = arith.constant 0 : index
    %c6_334 = arith.constant 6 : index
    %c0_335 = arith.constant 0 : index
    %c0_336 = arith.constant 0 : index
    %307 = vector.load %arg5[%c0_333, %c6_334, %c0_335, %c0_336] : memref<1x8x8x128xbf16, #tpu.memory_space<vmem>>, vector<1x1x8x128xbf16>
    %308 = vector.shape_cast %307 : vector<1x1x8x128xbf16> to vector<8x128xbf16>
    %309 = vector.shape_cast %306 : vector<8x128xbf16> to vector<1x1x8x128xbf16>
    tpu.vector_store %arg5[%c0_333, %c6_334, %c0_335, %c0_336], %309 {strides = array<i32>} : memref<1x8x8x128xbf16, #tpu.memory_space<vmem>>, vector<1x1x8x128xbf16>,
    %c0_337 = arith.constant 0 : index
    %c7_338 = arith.constant 7 : index
    %c0_339 = arith.constant 0 : index
    %c0_340 = arith.constant 0 : index
    %310 = vector.load %arg1[%c0_337, %c7_338, %c0_339, %c0_340] : memref<1x10x10x128xbf16, #tpu.memory_space<vmem>>, vector<1x1x8x128xbf16>
    %311 = vector.shape_cast %310 : vector<1x1x8x128xbf16> to vector<8x128xbf16>
    %c0_341 = arith.constant 0 : index
    %c7_342 = arith.constant 7 : index
    %c1_343 = arith.constant 1 : index
    %c0_344 = arith.constant 0 : index
    %312 = vector.load %arg1[%c0_341, %c7_342, %c1_343, %c0_344] : memref<1x10x10x128xbf16, #tpu.memory_space<vmem>>, vector<1x1x8x128xbf16>
    %313 = vector.shape_cast %312 : vector<1x1x8x128xbf16> to vector<8x128xbf16>
    %c0_345 = arith.constant 0 : index
    %c7_346 = arith.constant 7 : index
    %c2_347 = arith.constant 2 : index
    %c0_348 = arith.constant 0 : index
    %314 = vector.load %arg1[%c0_345, %c7_346, %c2_347, %c0_348] : memref<1x10x10x128xbf16, #tpu.memory_space<vmem>>, vector<1x1x8x128xbf16>
    %315 = vector.shape_cast %314 : vector<1x1x8x128xbf16> to vector<8x128xbf16>
    %c0_349 = arith.constant 0 : index
    %c8_350 = arith.constant 8 : index
    %c0_351 = arith.constant 0 : index
    %c0_352 = arith.constant 0 : index
    %316 = vector.load %arg1[%c0_349, %c8_350, %c0_351, %c0_352] : memref<1x10x10x128xbf16, #tpu.memory_space<vmem>>, vector<1x1x8x128xbf16>
    %317 = vector.shape_cast %316 : vector<1x1x8x128xbf16> to vector<8x128xbf16>
    %c0_353 = arith.constant 0 : index
    %c8_354 = arith.constant 8 : index
    %c1_355 = arith.constant 1 : index
    %c0_356 = arith.constant 0 : index
    %318 = vector.load %arg1[%c0_353, %c8_354, %c1_355, %c0_356] : memref<1x10x10x128xbf16, #tpu.memory_space<vmem>>, vector<1x1x8x128xbf16>
    %319 = vector.shape_cast %318 : vector<1x1x8x128xbf16> to vector<8x128xbf16>
    %c0_357 = arith.constant 0 : index
    %c8_358 = arith.constant 8 : index
    %c2_359 = arith.constant 2 : index
    %c0_360 = arith.constant 0 : index
    %320 = vector.load %arg1[%c0_357, %c8_358, %c2_359, %c0_360] : memref<1x10x10x128xbf16, #tpu.memory_space<vmem>>, vector<1x1x8x128xbf16>
    %321 = vector.shape_cast %320 : vector<1x1x8x128xbf16> to vector<8x128xbf16>
    %c0_361 = arith.constant 0 : index
    %c9 = arith.constant 9 : index
    %c0_362 = arith.constant 0 : index
    %c0_363 = arith.constant 0 : index
    %322 = vector.load %arg1[%c0_361, %c9, %c0_362, %c0_363] : memref<1x10x10x128xbf16, #tpu.memory_space<vmem>>, vector<1x1x8x128xbf16>
    %323 = vector.shape_cast %322 : vector<1x1x8x128xbf16> to vector<8x128xbf16>
    %c0_364 = arith.constant 0 : index
    %c9_365 = arith.constant 9 : index
    %c1_366 = arith.constant 1 : index
    %c0_367 = arith.constant 0 : index
    %324 = vector.load %arg1[%c0_364, %c9_365, %c1_366, %c0_367] : memref<1x10x10x128xbf16, #tpu.memory_space<vmem>>, vector<1x1x8x128xbf16>
    %325 = vector.shape_cast %324 : vector<1x1x8x128xbf16> to vector<8x128xbf16>
    %c0_368 = arith.constant 0 : index
    %c9_369 = arith.constant 9 : index
    %c2_370 = arith.constant 2 : index
    %c0_371 = arith.constant 0 : index
    %326 = vector.load %arg1[%c0_368, %c9_369, %c2_370, %c0_371] : memref<1x10x10x128xbf16, #tpu.memory_space<vmem>>, vector<1x1x8x128xbf16>
    %327 = vector.shape_cast %326 : vector<1x1x8x128xbf16> to vector<8x128xbf16>
    %328 = tpu.concatenate %311, %313, %315, %317, %319, %321, %323, %325, %327 in 1 : vector<8x128xbf16>, vector<8x128xbf16>, vector<8x128xbf16>, vector<8x128xbf16>, vector<8x128xbf16>, vector<8x128xbf16>, vector<8x128xbf16>, vector<8x128xbf16>, vector<8x128xbf16> -> vector<8x1152xbf16>
    %cst_372 = arith.constant dense<0.000000e+00> : vector<8x128xf32>
    %329 = tpu.matmul %328, %0, %cst_372 {dimension_numbers = #tpu.dot_dimension_numbers<[1], [0], [0], [1], [0, 0, 1, 1], [], []>} : vector<8x1152xbf16>, vector<1152x128xbf16>, vector<8x128xf32> -> vector<8x128xf32>
    %330 = vector.broadcast %1 : vector<1x128xf32> to vector<8x128xf32>
    %331 = arith.addf %329, %330 : vector<8x128xf32>
    %cst_373 = arith.constant 2.000000e+01 : f32
    %332 = vector.broadcast %cst_373 : f32 to vector<8x128xf32>
    %333 = arith.minimumf %331, %332 : vector<8x128xf32>
    %334 = math.exp %333 : vector<8x128xf32>
    %cst_374 = arith.constant 2.000000e+00 : f32
    %335 = vector.broadcast %cst_374 : f32 to vector<8x128xf32>
    %336 = arith.addf %334, %335 : vector<8x128xf32>
    %337 = arith.mulf %334, %336 : vector<8x128xf32>
    %cst_375 = arith.constant 2.000000e+00 : f32
    %338 = vector.broadcast %cst_375 : f32 to vector<8x128xf32>
    %339 = arith.addf %337, %338 : vector<8x128xf32>
    %340 = tpu.reciprocal %339 {approx = true} : vector<8x128xf32> -> vector<8x128xf32>
    %341 = arith.mulf %337, %340 : vector<8x128xf32>
    %cst_376 = arith.constant 2.000000e+01 : f32
    %342 = vector.broadcast %cst_376 : f32 to vector<8x128xf32>
    %343 = arith.cmpf ogt, %331, %342 : vector<8x128xf32>
    %344 = arith.mulf %331, %341 : vector<8x128xf32>
    %345 = arith.select %343, %331, %344 : vector<8x128xi1>, vector<8x128xf32>
    %c0_377 = arith.constant 0 : index
    %c7_378 = arith.constant 7 : index
    %c0_379 = arith.constant 0 : index
    %c0_380 = arith.constant 0 : index
    %346 = vector.load %arg4[%c0_377, %c7_378, %c0_379, %c0_380] : memref<1x8x8x128xbf16, #tpu.memory_space<vmem>>, vector<1x1x8x128xbf16>
    %347 = vector.shape_cast %346 : vector<1x1x8x128xbf16> to vector<8x128xbf16>
    %348 = arith.extf %347 : vector<8x128xbf16> to vector<8x128xf32>
    %349 = arith.addf %345, %348 : vector<8x128xf32>
    %350 = arith.truncf %349 : vector<8x128xf32> to vector<8x128xbf16>
    %c0_381 = arith.constant 0 : index
    %c7_382 = arith.constant 7 : index
    %c0_383 = arith.constant 0 : index
    %c0_384 = arith.constant 0 : index
    %351 = vector.load %arg5[%c0_381, %c7_382, %c0_383, %c0_384] : memref<1x8x8x128xbf16, #tpu.memory_space<vmem>>, vector<1x1x8x128xbf16>
    %352 = vector.shape_cast %351 : vector<1x1x8x128xbf16> to vector<8x128xbf16>
    %353 = vector.shape_cast %350 : vector<8x128xbf16> to vector<1x1x8x128xbf16>
    tpu.vector_store %arg5[%c0_381, %c7_382, %c0_383, %c0_384], %353 {strides = array<i32>} : memref<1x8x8x128xbf16, #tpu.memory_space<vmem>>, vector<1x1x8x128xbf16>,
    return
  }
  func.func @transform_0(%arg0: i32) -> (i32, i32, i32, i32) {
    %c0_i32 = arith.constant 0 : i32
    %c0_i32_0 = arith.constant 0 : i32
    %c0_i32_1 = arith.constant 0 : i32
    %c0_i32_2 = arith.constant 0 : i32
    return %arg0, %c0_i32, %c0_i32_0, %c0_i32_1 : i32, i32, i32, i32
  }
  func.func @transform_1(%arg0: i32) -> (i32, i32) {
    %c0_i32 = arith.constant 0 : i32
    %c0_i32_0 = arith.constant 0 : i32
    %c0_i32_1 = arith.constant 0 : i32
    return %c0_i32, %c0_i32_0 : i32, i32
  }
  func.func @transform_2(%arg0: i32) -> (i32, i32) {
    %c0_i32 = arith.constant 0 : i32
    %c0_i32_0 = arith.constant 0 : i32
    %c0_i32_1 = arith.constant 0 : i32
    return %c0_i32, %c0_i32_0 : i32, i32
  }
  func.func @transform_3(%arg0: i32) -> (i32, i32, i32, i32) {
    %c0_i32 = arith.constant 0 : i32
    %c0_i32_0 = arith.constant 0 : i32
    %c0_i32_1 = arith.constant 0 : i32
    %c0_i32_2 = arith.constant 0 : i32
    return %arg0, %c0_i32, %c0_i32_0, %c0_i32_1 : i32, i32, i32, i32
  }
  func.func @transform_4(%arg0: i32) -> (i32, i32, i32, i32) {
    %c0_i32 = arith.constant 0 : i32
    %c0_i32_0 = arith.constant 0 : i32
    %c0_i32_1 = arith.constant 0 : i32
    %c0_i32_2 = arith.constant 0 : i32
    return %arg0, %c0_i32, %c0_i32_0, %c0_i32_1 : i32, i32, i32, i32
  }
}

module attributes {stable_mosaic.version = 11 : i64} {
  func.func @kernel(%arg0: i32, %arg1: memref<64x128xbf16, #tpu.memory_space<vmem>>, %arg2: memref<64x128xbf16, #tpu.memory_space<vmem>>, %arg3: memref<128x128xbf16, #tpu.memory_space<vmem>>, %arg4: memref<128x128xbf16, #tpu.memory_space<vmem>>, %arg5: memref<1x128xf32, #tpu.memory_space<vmem>>, %arg6: memref<64x128xf32, #tpu.memory_space<vmem>>) attributes {dimension_semantics = [#tpu.dimension_semantics<parallel>], iteration_bounds = array<i64: 2>, scalar_prefetch = 0 : i64, scratch_operands = 0 : i64, tpu.core_type = #tpu.core_type<tc>, window_params = [{transform_indices = @transform_0, window_bounds = array<i64: 64, 128>}, {transform_indices = @transform_1, window_bounds = array<i64: 64, 128>}, {pipeline_mode = #tpu.pipeline_mode<synchronous>, transform_indices = @transform_2, window_bounds = array<i64: 128, 128>}, {pipeline_mode = #tpu.pipeline_mode<synchronous>, transform_indices = @transform_3, window_bounds = array<i64: 128, 128>}, {pipeline_mode = #tpu.pipeline_mode<synchronous>, transform_indices = @transform_4, window_bounds = array<i64: 1, 128>}, {transform_indices = @transform_5, window_bounds = array<i64: 64, 128>}]} {
    %c0 = arith.constant 0 : index
    %c0_0 = arith.constant 0 : index
    %0 = vector.load %arg1[%c0, %c0_0] : memref<64x128xbf16, #tpu.memory_space<vmem>>, vector<64x128xbf16>
    %c0_1 = arith.constant 0 : index
    %c0_2 = arith.constant 0 : index
    %1 = vector.load %arg3[%c0_1, %c0_2] : memref<128x128xbf16, #tpu.memory_space<vmem>>, vector<128x128xbf16>
    %cst = arith.constant dense<0.000000e+00> : vector<64x128xf32>
    %2 = tpu.matmul %0, %1, %cst {dimension_numbers = #tpu.dot_dimension_numbers<[1], [0], [0], [1], [0, 0, 1, 1], [], []>} : vector<64x128xbf16>, vector<128x128xbf16>, vector<64x128xf32> -> vector<64x128xf32>
    %c0_3 = arith.constant 0 : index
    %c0_4 = arith.constant 0 : index
    %3 = vector.load %arg2[%c0_3, %c0_4] : memref<64x128xbf16, #tpu.memory_space<vmem>>, vector<64x128xbf16>
    %c0_5 = arith.constant 0 : index
    %c0_6 = arith.constant 0 : index
    %4 = vector.load %arg4[%c0_5, %c0_6] : memref<128x128xbf16, #tpu.memory_space<vmem>>, vector<128x128xbf16>
    %cst_7 = arith.constant dense<0.000000e+00> : vector<64x128xf32>
    %5 = tpu.matmul %3, %4, %cst_7 {dimension_numbers = #tpu.dot_dimension_numbers<[1], [0], [0], [1], [0, 0, 1, 1], [], []>} : vector<64x128xbf16>, vector<128x128xbf16>, vector<64x128xf32> -> vector<64x128xf32>
    %6 = arith.addf %2, %5 : vector<64x128xf32>
    %c0_8 = arith.constant 0 : index
    %c0_9 = arith.constant 0 : index
    %7 = vector.load %arg5[%c0_8, %c0_9] : memref<1x128xf32, #tpu.memory_space<vmem>>, vector<1x128xf32>
    %8 = vector.broadcast %7 : vector<1x128xf32> to vector<64x128xf32>
    %9 = arith.addf %6, %8 : vector<64x128xf32>
    %cst_10 = arith.constant 2.000000e+01 : f32
    %10 = vector.broadcast %cst_10 : f32 to vector<64x128xf32>
    %11 = arith.minimumf %9, %10 : vector<64x128xf32>
    %12 = math.exp %11 : vector<64x128xf32>
    %cst_11 = arith.constant 2.000000e+00 : f32
    %13 = vector.broadcast %cst_11 : f32 to vector<64x128xf32>
    %14 = arith.addf %12, %13 : vector<64x128xf32>
    %15 = arith.mulf %12, %14 : vector<64x128xf32>
    %cst_12 = arith.constant 2.000000e+00 : f32
    %16 = vector.broadcast %cst_12 : f32 to vector<64x128xf32>
    %17 = arith.addf %15, %16 : vector<64x128xf32>
    %18 = tpu.reciprocal %17 {approx = true} : vector<64x128xf32> -> vector<64x128xf32>
    %19 = arith.mulf %15, %18 : vector<64x128xf32>
    %cst_13 = arith.constant 2.000000e+01 : f32
    %20 = vector.broadcast %cst_13 : f32 to vector<64x128xf32>
    %21 = arith.cmpf ogt, %9, %20 : vector<64x128xf32>
    %22 = arith.mulf %9, %19 : vector<64x128xf32>
    %23 = arith.select %21, %9, %22 : vector<64x128xi1>, vector<64x128xf32>
    %c0_14 = arith.constant 0 : index
    %c0_15 = arith.constant 0 : index
    %24 = vector.load %arg6[%c0_14, %c0_15] : memref<64x128xf32, #tpu.memory_space<vmem>>, vector<64x128xf32>
    tpu.vector_store %arg6[%c0_14, %c0_15], %23 {strides = array<i32>} : memref<64x128xf32, #tpu.memory_space<vmem>>, vector<64x128xf32>,
    return
  }
  func.func @transform_0(%arg0: i32) -> (i32, i32) {
    %c0_i32 = arith.constant 0 : i32
    %c0_i32_0 = arith.constant 0 : i32
    return %arg0, %c0_i32 : i32, i32
  }
  func.func @transform_1(%arg0: i32) -> (i32, i32) {
    %c0_i32 = arith.constant 0 : i32
    %c0_i32_0 = arith.constant 0 : i32
    return %arg0, %c0_i32 : i32, i32
  }
  func.func @transform_2(%arg0: i32) -> (i32, i32) {
    %c0_i32 = arith.constant 0 : i32
    %c0_i32_0 = arith.constant 0 : i32
    %c0_i32_1 = arith.constant 0 : i32
    return %c0_i32, %c0_i32_0 : i32, i32
  }
  func.func @transform_3(%arg0: i32) -> (i32, i32) {
    %c0_i32 = arith.constant 0 : i32
    %c0_i32_0 = arith.constant 0 : i32
    %c0_i32_1 = arith.constant 0 : i32
    return %c0_i32, %c0_i32_0 : i32, i32
  }
  func.func @transform_4(%arg0: i32) -> (i32, i32) {
    %c0_i32 = arith.constant 0 : i32
    %c0_i32_0 = arith.constant 0 : i32
    %c0_i32_1 = arith.constant 0 : i32
    return %c0_i32, %c0_i32_0 : i32, i32
  }
  func.func @transform_5(%arg0: i32) -> (i32, i32) {
    %c0_i32 = arith.constant 0 : i32
    %c0_i32_0 = arith.constant 0 : i32
    return %arg0, %c0_i32 : i32, i32
  }
}

</mosaic_0001>

<llo_original>
// kernel: resblock_body_forward.9
$region0: #{resblock_body_forward.9}
  #allocation0 [shape = 'u32[]', space=smem, size = 0x4, offset = 0x4, fixed_abs, tag = 'smem constant byte address 0x4 - core index']
  #allocation1 [shape = 'u32[144,128]{1,0:T(1,128)}', space=vmem, size = 0x12000, scoped, tag = 'internal scratch']
  %s0 = inlined_call_operand.vmem [shape: bf16[128,128], index: 0, kind: input, shape index: {}]
  %s1 = inlined_call_operand.vmem [shape: bf16[128,128], index: 1, kind: input, shape index: {}]
  %s2 = inlined_call_operand.vmem [shape: f32[1,128], index: 2, kind: input, shape index: {}]
  %s3 = inlined_call_operand.vmem [shape: bf16[128,128], index: 3, kind: output, shape index: {}]
  %s4 = sld [smem:[#allocation0]]
  $region45: #{resblock_body_forward.9} parent=0
    _
  %s6 = ssub.s32 1, %s4
  %s7 = scalar_select 0, %s6, %s4
  loop: start=0, step=1, limit=4
  $region2: #{resblock_body_forward.9} parent=0 // loop_pre_header
    _
  $region3: #{resblock_body_forward.9} parent=0 // loop_header
    %s9 = sphi 0, %s13
    %p10 = scmp.ge.s32.totalorder %s9, 4
    %s19 = sphi 0, %s21
    %s22 = sphi 0, %s19
    %s23 = sphi 0, %s22
    %s39 = sphi 0, %s23
    %s43 = sphi 0, %s43
    %s45 = sphi 0, %s43
    %s46 = sphi 0, %s45
    %s60 = sphi 0, %s46
    %s64 = sphi 0, %s64
    %s66 = sphi 0, %s64
    %s67 = sphi 0, %s66
    %s81 = sphi 0, %s67
    %s87 = sphi 0, %s89
    %s90 = sphi 0, %s87
    %s91 = sphi 0, %s90
    %s107 = sphi 0, %s91
  $region4: #{resblock_body_forward.9} parent=0 // loop_header_branch
    %12 = sbr.rel (%p10) target = $region8
  $region5: #{resblock_body_forward.9} parent=0 // loop_body
    %s14 = ssub.s32 %s9, 1
    %s15 = ssub.s32 %s9, 2
    %s16 = sadd.s32 %s9, 1
    %s17 = ssub.s32 %s9, %s16
    %p18 = scmp.eq.s32.totalorder %s17, 0
    %s20 = sadd.s32 %s19, 1
    %s21 = scalar_select %p18, %s19, %s20
    %p24 = pneg %p18
    %p25 = scmp.eq.s32.totalorder %s9, 1
    %p26 = por %p24, %p25
    %p27 = scmp.ne.s32.totalorder %s19, %s22
    %p28 = scmp.eq.s32.totalorder %s9, 0
    %p29 = por %p27, %p28
    %p30 = scmp.ne.s32.totalorder %s19, %s22
    %p31 = scmp.eq.s32.totalorder %s14, 1
    %p32 = por %p30, %p31
    %p33 = scmp.ne.s32.totalorder %s22, %s23
    %p34 = scmp.eq.s32.totalorder %s14, 0
    %p35 = por %p33, %p34
    %p36 = scmp.ne.s32.totalorder %s22, %s23
    %p37 = scmp.eq.s32.totalorder %s15, 1
    %p38 = por %p36, %p37
    %p40 = scmp.ne.s32.totalorder %s23, %s39
    %p41 = scmp.eq.s32.totalorder %s15, 0
    %p42 = por %p40, %p41
    %s44 = sadd.s32 %s43, 1
    %p47 = scmp.eq.s32.totalorder %s9, 1
    %p48 = scmp.ne.s32.totalorder %s43, %s45
    %p49 = scmp.eq.s32.totalorder %s9, 0
    %p50 = por %p48, %p49
    %p51 = scmp.ne.s32.totalorder %s43, %s45
    %p52 = scmp.eq.s32.totalorder %s14, 1
    %p53 = por %p51, %p52
    %p54 = scmp.ne.s32.totalorder %s45, %s46
    %p55 = scmp.eq.s32.totalorder %s14, 0
    %p56 = por %p54, %p55
    %p57 = scmp.ne.s32.totalorder %s45, %s46
    %p58 = scmp.eq.s32.totalorder %s15, 1
    %p59 = por %p57, %p58
    %p61 = scmp.ne.s32.totalorder %s46, %s60
    %p62 = scmp.eq.s32.totalorder %s15, 0
    %p63 = por %p61, %p62
    %s65 = sadd.s32 %s64, 1
    %p68 = scmp.eq.s32.totalorder %s9, 1
    %p69 = scmp.ne.s32.totalorder %s64, %s66
    %p70 = scmp.eq.s32.totalorder %s9, 0
    %p71 = por %p69, %p70
    %p72 = scmp.ne.s32.totalorder %s64, %s66
    %p73 = scmp.eq.s32.totalorder %s14, 1
    %p74 = por %p72, %p73
    %p75 = scmp.ne.s32.totalorder %s66, %s67
    %p76 = scmp.eq.s32.totalorder %s14, 0
    %p77 = por %p75, %p76
    %p78 = scmp.ne.s32.totalorder %s66, %s67
    %p79 = scmp.eq.s32.totalorder %s15, 1
    %p80 = por %p78, %p79
    %p82 = scmp.ne.s32.totalorder %s67, %s81
    %p83 = scmp.eq.s32.totalorder %s15, 0
    %p84 = por %p82, %p83
    %s85 = ssub.s32 %s9, %s16
    %p86 = scmp.eq.s32.totalorder %s85, 0
    %s88 = sadd.s32 %s87, 1
    %s89 = scalar_select %p86, %s87, %s88
    %p92 = pneg %p86
    %p93 = scmp.eq.s32.totalorder %s9, 1
    %p94 = por %p92, %p93
    %p95 = scmp.ne.s32.totalorder %s87, %s90
    %p96 = scmp.eq.s32.totalorder %s9, 0
    %p97 = por %p95, %p96
    %p98 = scmp.ne.s32.totalorder %s87, %s90
    %p99 = scmp.eq.s32.totalorder %s14, 1
    %p100 = por %p98, %p99
    %p101 = scmp.ne.s32.totalorder %s90, %s91
    %p102 = scmp.eq.s32.totalorder %s14, 0
    %p103 = por %p101, %p102
    %p104 = scmp.ne.s32.totalorder %s90, %s91
    %p105 = scmp.eq.s32.totalorder %s15, 1
    %p106 = por %p104, %p105
    %p108 = scmp.ne.s32.totalorder %s91, %s107
    %p109 = scmp.eq.s32.totalorder %s15, 0
    %p110 = por %p108, %p109
    %p111 = scmp.le.s32.totalorder 1, %s9
    %p112 = scmp.lt.s32.totalorder %s9, 3
    %p113 = pnand %p111, %p112
    %p114 = pneg %p113
    // Predicated region
    $region9: #{resblock_body_forward.9} parent=5 // pred_check
      _
    $region10: #{resblock_body_forward.9} parent=5 // pred_check_branch
      %116 = sbr.rel (%p113) target = $region12
    $region11: #{resblock_body_forward.9} parent=5 // pred_region
      %s117 = ssub.s32 %s9, 1
      // Predicated region
      $region13: #{resblock_body_forward.9} parent=11 // pred_check
        %p118 = pneg %p56
      $region14: #{resblock_body_forward.9} parent=11 // pred_check_branch
        %120 = sbr.rel (%p118) target = $region16
      $region15: #{resblock_body_forward.9} parent=11 // pred_region
        _
      $region16: #{resblock_body_forward.9} parent=11 // pred_fallthru
        _
      // Predicated region
      $region17: #{resblock_body_forward.9} parent=11 // pred_check
        %p121 = pneg %p77
      $region18: #{resblock_body_forward.9} parent=11 // pred_check_branch
        %123 = sbr.rel (%p121) target = $region20
      $region19: #{resblock_body_forward.9} parent=11 // pred_region
        _
      $region20: #{resblock_body_forward.9} parent=11 // pred_fallthru
        _
    $region12: #{resblock_body_forward.9} parent=5 // pred_fallthru
      _
    %p124 = scmp.lt.s32.totalorder %s9, 2
    // Predicated region
    $region21: #{resblock_body_forward.9} parent=5 // pred_check
      %p125 = pneg %p124
    $region22: #{resblock_body_forward.9} parent=5 // pred_check_branch
      %127 = sbr.rel (%p125) target = $region24
    $region23: #{resblock_body_forward.9} parent=5 // pred_region
      // Predicated region
      $region25: #{resblock_body_forward.9} parent=23 // pred_check
        %p128 = pneg %p29
      $region26: #{resblock_body_forward.9} parent=23 // pred_check_branch
        %130 = sbr.rel (%p128) target = $region28
      $region27: #{resblock_body_forward.9} parent=23 // pred_region
        %s131 = smul.u32 8, %s9
        %p132 = scmp.lt.s32.totalorder %s131, 15
        %s133 = scalar_select %p132, %s131, 15
        %s134 = smul.addr %s133, 4
        %s135 = scalar_lea.vmem %s0, %s134
        %s136 = smul.u32 8, %s9
      $region28: #{resblock_body_forward.9} parent=23 // pred_fallthru
        _
    $region24: #{resblock_body_forward.9} parent=5 // pred_fallthru
      _
    %p137 = scmp.le.s32.totalorder 1, %s9
    %p138 = scmp.lt.s32.totalorder %s9, 3
    %p139 = pnand %p137, %p138
    %p140 = pneg %p139
    // Predicated region
    $region29: #{resblock_body_forward.9} parent=5 // pred_check
      _
    $region30: #{resblock_body_forward.9} parent=5 // pred_check_branch
      %142 = sbr.rel (%p139) target = $region32
    $region31: #{resblock_body_forward.9} parent=5 // pred_region
      %s143 = ssub.s32 %s9, 1
      %s144 = smul.u32 8, %s14
      %p145 = scmp.lt.s32.totalorder %s144, 15
      %s146 = scalar_select %p145, %s144, 15
      %s147 = smul.addr %s146, 4
      %s148 = scalar_lea.vmem %s0, %s147
      %p149 = pneg %p35
      %p150 = pneg %p32
      %p151 = pneg %p56
      %p152 = pneg %p53
      %p153 = pneg %p77
      %p154 = pneg %p74
      %p155 = pneg %p103
      %p156 = pneg %p100
      %s157 = smul.u32 8, %s14
      %p158 = scmp.lt.s32.totalorder %s157, 15
      %s159 = scalar_select %p158, %s157, 15
      %s160 = smul.addr %s159, 4
      %s161 = scalar_lea.vmem %s3, %s160
      %s162 = smul.u32 8, %s14
      %p163 = scmp.lt.s32.totalorder %s162, 15
      %s164 = scalar_select %p163, %s162, 15
      %s165 = smul.addr %s164, 4
      %s166 = scalar_lea.vmem %s0, %s165
      %s167 = smul.u32 8, %s14
      %s168 = smul.u32 8, %s14
      %p169 = scmp.lt.s32.totalorder %s168, 15
      %s170 = scalar_select %p169, %s168, 15
      %s171 = smul.addr %s170, 4
      %s172 = scalar_lea.vmem %s3, %s171
      %s173 = smul.u32 8, %s14
      %v175 = vld [vmem:[%s166] sm:$0xf]
      %v176 = vld [vmem:[%s166 + $0x4] sm:$0xf]
      %v177 = vld [vmem:[%s166 + $0x8] sm:$0xf]
      %v178 = vld [vmem:[%s166 + $0xc] sm:$0xf]
      %v179 = vld [vmem:[%s166 + $0x10] sm:$0xf]
      %v180 = vld [vmem:[%s166 + $0x14] sm:$0xf]
      %v181 = vld [vmem:[%s166 + $0x18] sm:$0xf]
      %v182 = vld [vmem:[%s166 + $0x1c] sm:$0xf]
      %v183 = vld [vmem:[%s1] sm:$0xf]
      %v184 = vld [vmem:[%s1 + $0x4] sm:$0xf]
      %v185 = vld [vmem:[%s1 + $0x8] sm:$0xf]
      %v186 = vld [vmem:[%s1 + $0xc] sm:$0xf]
      %v187 = vld [vmem:[%s1 + $0x10] sm:$0xf]
      %v188 = vld [vmem:[%s1 + $0x14] sm:$0xf]
      %v189 = vld [vmem:[%s1 + $0x18] sm:$0xf]
      %v190 = vld [vmem:[%s1 + $0x1c] sm:$0xf]
      %v191 = vld [vmem:[%s1 + $0x20] sm:$0xf]
      %v192 = vld [vmem:[%s1 + $0x24] sm:$0xf]
      %v193 = vld [vmem:[%s1 + $0x28] sm:$0xf]
      %v194 = vld [vmem:[%s1 + $0x2c] sm:$0xf]
      %v195 = vld [vmem:[%s1 + $0x30] sm:$0xf]
      %v196 = vld [vmem:[%s1 + $0x34] sm:$0xf]
      %v197 = vld [vmem:[%s1 + $0x38] sm:$0xf]
      %v198 = vld [vmem:[%s1 + $0x3c] sm:$0xf]
      %v199 = vld [vmem:[%s2] sm:$0x1]
      %v201 = vlaneseq
      %v202 = vshrl.u32 %v201, 7
      %v203 = vsub.s32 0, %v202
      %v204 = vrot.slane %v199, %v203
      %v214 = vunpack.c.l.b16 %v175
      %v215 = vunpack.c.l.b16 %v176
      %v216 = vunpack.c.l.b16 %v177
      %v217 = vunpack.c.l.b16 %v178
      %v218 = vunpack.c.l.b16 %v179
      %v219 = vunpack.c.l.b16 %v180
      %v220 = vunpack.c.l.b16 %v181
      %v221 = vunpack.c.l.b16 %v182
      %v222 = vpack.c.b16 %v215, %v214
      %v223 = vpack.c.b16 %v217, %v216
      %v224 = vpack.c.b16 %v219, %v218
      %v225 = vpack.c.b16 %v221, %v220
      %v246 = vunpack.c.l.b16 %v183
      %v247 = vunpack.c.l.b16 %v184
      %v248 = vunpack.c.l.b16 %v185
      %v249 = vunpack.c.l.b16 %v186
      %v250 = vunpack.c.l.b16 %v187
      %v251 = vunpack.c.l.b16 %v188
      %v252 = vunpack.c.l.b16 %v189
      %v253 = vunpack.c.l.b16 %v190
      %v254 = vunpack.c.l.b16 %v191
      %v255 = vunpack.c.l.b16 %v192
      %v256 = vunpack.c.l.b16 %v193
      %v257 = vunpack.c.l.b16 %v194
      %v258 = vunpack.c.l.b16 %v195
      %v259 = vunpack.c.l.b16 %v196
      %v260 = vunpack.c.l.b16 %v197
      %v261 = vunpack.c.l.b16 %v198
      %v262 = vpack.c.b16 %v247, %v246
      %v263 = vpack.c.b16 %v249, %v248
      %v264 = vpack.c.b16 %v251, %v250
      %v265 = vpack.c.b16 %v253, %v252
      %v266 = vpack.c.b16 %v255, %v254
      %v267 = vpack.c.b16 %v257, %v256
      %v268 = vpack.c.b16 %v259, %v258
      %v269 = vpack.c.b16 %v261, %v260
      %278 = vmatprep.subr.bf16.mxu0 0
      %279 = vmatpush1.bf16.msra.mxu0 %v262
      %280 = vmatprep.subr.bf16.mxu0 0
      %281 = vmatpush1.bf16.msra.mxu0 %v263
      %282 = vmatprep.subr.bf16.mxu0 0
      %283 = vmatpush1.bf16.msra.mxu0 %v264
      %284 = vmatprep.subr.bf16.mxu0 0
      %285 = vmatpush1.bf16.msra.mxu0 %v265
      %286 = vmatprep.subr.bf16.mxu0 0
      %287 = vmatpush1.bf16.msra.mxu0 %v266
      %288 = vmatprep.subr.bf16.mxu0 0
      %289 = vmatpush1.bf16.msra.mxu0 %v267
      %290 = vmatprep.subr.bf16.mxu0 0
      %291 = vmatpush1.bf16.msra.mxu0 %v268
      %292 = vmatprep.subr.bf16.mxu0 0
      %293 = vmatpush1.bf16.msra.mxu0 %v269
      %294 = vmatprep.subr.bf16.mxu0 0
      %295 = vmatpush1.bf16.msra.mxu0 0
      %296 = vmatprep.subr.bf16.mxu0 0
      %297 = vmatpush1.bf16.msra.mxu0 0
      %298 = vmatprep.subr.bf16.mxu0 0
      %299 = vmatpush1.bf16.msra.mxu0 0
      %300 = vmatprep.subr.bf16.mxu0 0
      %301 = vmatpush1.bf16.msra.mxu0 0
      %302 = vmatprep.subr.bf16.mxu0 0
      %303 = vmatpush1.bf16.msra.mxu0 0
      %304 = vmatprep.subr.bf16.mxu0 0
      %305 = vmatpush1.bf16.msra.mxu0 0
      %306 = vmatprep.subr.bf16.mxu0 0
      %307 = vmatpush1.bf16.msra.mxu0 0
      %308 = vmatprep.subr.bf16.mxu0 0
      %309 = vmatpush1.bf16.msra.mxu0 0
      %310 = vmatprep.mubr.bf16.mxu0 0
      %311 = vmatmul.mubr.bf16.gmra.mrb[0].mxu0 %v222
      %v312 = vpop.f32.mrb[0].mxu0
      %v313 = vadd.f32 %v204, %v312
      %v314 = vpop.f32.mrb[0].mxu0
      %v315 = vpop.f32.mrb[0].mxu0
      %v316 = vadd.f32 %v204, %v315
      %v317 = vpop.f32.mrb[0].mxu0
      %318 = vmatprep.mubr.bf16.mxu0 0
      %319 = vmatmul.mubr.bf16.gmra.mrb[0].mxu0 %v223
      %v320 = vpop.f32.mrb[0].mxu0
      %v321 = vadd.f32 %v204, %v320
      %v322 = vpop.f32.mrb[0].mxu0
      %v323 = vpop.f32.mrb[0].mxu0
      %v324 = vadd.f32 %v204, %v323
      %v325 = vpop.f32.mrb[0].mxu0
      %326 = vmatprep.mubr.bf16.mxu0 0
      %327 = vmatmul.mubr.bf16.gmra.mrb[0].mxu0 %v224
      %v328 = vpop.f32.mrb[0].mxu0
      %v329 = vadd.f32 %v204, %v328
      %v330 = vpop.f32.mrb[0].mxu0
      %v331 = vpop.f32.mrb[0].mxu0
      %v332 = vadd.f32 %v204, %v331
      %v333 = vpop.f32.mrb[0].mxu0
      %334 = vmatprep.mubr.bf16.mxu0 0
      %335 = vmatmul.mubr.bf16.gmra.mrb[0].mxu0 %v225
      %v336 = vpop.f32.mrb[0].mxu0
      %v337 = vadd.f32 %v204, %v336
      %v338 = vpop.f32.mrb[0].mxu0
      %v339 = vpop.f32.mrb[0].mxu0
      %v340 = vadd.f32 %v204, %v339
      %v341 = vpop.f32.mrb[0].mxu0
      %342 = vdwg.mxu0
      %v343 = vmin.f32 %v313, 20.0
      %v344 = vmin.f32 %v316, 20.0
      %v345 = vmin.f32 %v321, 20.0
      %v346 = vmin.f32 %v324, 20.0
      %v347 = vmin.f32 %v329, 20.0
      %v348 = vmin.f32 %v332, 20.0
      %v349 = vmin.f32 %v337, 20.0
      %v350 = vmin.f32 %v340, 20.0
      %v351 = vmul.f32 %v343, 1.442695
      %v352 = vpow.pop %v351
      %v353 = vmul.f32 %v344, 1.442695
      %v354 = vpow.pop %v353
      %v355 = vmul.f32 %v345, 1.442695
      %v356 = vpow.pop %v355
      %v357 = vmul.f32 %v346, 1.442695
      %v358 = vpow.pop %v357
      %v359 = vmul.f32 %v347, 1.442695
      %v360 = vpow.pop %v359
      %v361 = vmul.f32 %v348, 1.442695
      %v362 = vpow.pop %v361
      %v363 = vmul.f32 %v349, 1.442695
      %v364 = vpow.pop %v363
      %v365 = vmul.f32 %v350, 1.442695
      %v366 = vpow.pop %v365
      %v367 = vadd.f32 %v352, 2.0
      %v368 = vadd.f32 %v354, 2.0
      %v369 = vadd.f32 %v356, 2.0
      %v370 = vadd.f32 %v358, 2.0
      %v371 = vadd.f32 %v360, 2.0
      %v372 = vadd.f32 %v362, 2.0
      %v373 = vadd.f32 %v364, 2.0
      %v374 = vadd.f32 %v366, 2.0
      %v375 = vmul.f32 %v352, %v367
      %v376 = vmul.f32 %v354, %v368
      %v377 = vmul.f32 %v356, %v369
      %v378 = vmul.f32 %v358, %v370
      %v379 = vmul.f32 %v360, %v371
      %v380 = vmul.f32 %v362, %v372
      %v381 = vmul.f32 %v364, %v373
      %v382 = vmul.f32 %v366, %v374
      %v383 = vadd.f32 %v375, 2.0
      %v384 = vadd.f32 %v376, 2.0
      %v385 = vadd.f32 %v377, 2.0
      %v386 = vadd.f32 %v378, 2.0
      %v387 = vadd.f32 %v379, 2.0
      %v388 = vadd.f32 %v380, 2.0
      %v389 = vadd.f32 %v381, 2.0
      %v390 = vadd.f32 %v382, 2.0
      %v391 = vrcp.pop %v383
      %v392 = vrcp.pop %v384
      %v393 = vrcp.pop %v385
      %v394 = vrcp.pop %v386
      %v395 = vrcp.pop %v387
      %v396 = vrcp.pop %v388
      %v397 = vrcp.pop %v389
      %v398 = vrcp.pop %v390
      %v399 = vmul.f32 %v375, %v391
      %v400 = vmul.f32 %v376, %v392
      %v401 = vmul.f32 %v377, %v393
      %v402 = vmul.f32 %v378, %v394
      %v403 = vmul.f32 %v379, %v395
      %v404 = vmul.f32 %v380, %v396
      %v405 = vmul.f32 %v381, %v397
      %v406 = vmul.f32 %v382, %v398
      %vm407 = vcmp.gt.f32.partialorder %v313, 20.0
      %vm408 = vcmp.gt.f32.partialorder %v316, 20.0
      %vm409 = vcmp.gt.f32.partialorder %v321, 20.0
      %vm410 = vcmp.gt.f32.partialorder %v324, 20.0
      %vm411 = vcmp.gt.f32.partialorder %v329, 20.0
      %vm412 = vcmp.gt.f32.partialorder %v332, 20.0
      %vm413 = vcmp.gt.f32.partialorder %v337, 20.0
      %vm414 = vcmp.gt.f32.partialorder %v340, 20.0
      %v415 = vmul.f32 %v313, %v399
      %v416 = vmul.f32 %v316, %v400
      %v417 = vmul.f32 %v321, %v401
      %v418 = vmul.f32 %v324, %v402
      %v419 = vmul.f32 %v329, %v403
      %v420 = vmul.f32 %v332, %v404
      %v421 = vmul.f32 %v337, %v405
      %v422 = vmul.f32 %v340, %v406
      %v423 = vsel %vm407, %v313, %v415
      %v424 = vsel %vm408, %v316, %v416
      %v425 = vsel %vm409, %v321, %v417
      %v426 = vsel %vm410, %v324, %v418
      %v427 = vsel %vm411, %v329, %v419
      %v428 = vsel %vm412, %v332, %v420
      %v429 = vsel %vm413, %v337, %v421
      %v430 = vsel %vm414, %v340, %v422
      %v431 = vpack.c.bf16 %v424, %v423
      %v432 = vpack.c.bf16 %v426, %v425
      %v433 = vpack.c.bf16 %v428, %v427
      %v434 = vpack.c.bf16 %v430, %v429
      %v439 = vunpack.c.l.b16 %v431
      %v440 = vunpack.c.h.b16 %v431
      %v441 = vunpack.c.l.b16 %v432
      %v442 = vunpack.c.h.b16 %v432
      %v443 = vunpack.c.l.b16 %v433
      %v444 = vunpack.c.h.b16 %v433
      %v445 = vunpack.c.l.b16 %v434
      %v446 = vunpack.c.h.b16 %v434
      %v447 = vpack.c.b16 %v439, %v439
      %v448 = vpack.c.b16 %v440, %v440
      %v449 = vpack.c.b16 %v441, %v441
      %v450 = vpack.c.b16 %v442, %v442
      %v451 = vpack.c.b16 %v443, %v443
      %v452 = vpack.c.b16 %v444, %v444
      %v453 = vpack.c.b16 %v445, %v445
      %v454 = vpack.c.b16 %v446, %v446
      %463 = vst [vmem:[%s172] sm:$0xf] %v447
      %464 = vst [vmem:[%s172 + $0x4] sm:$0xf] %v448
      %465 = vst [vmem:[%s172 + $0x8] sm:$0xf] %v449
      %466 = vst [vmem:[%s172 + $0xc] sm:$0xf] %v450
      %467 = vst [vmem:[%s172 + $0x10] sm:$0xf] %v451
      %468 = vst [vmem:[%s172 + $0x14] sm:$0xf] %v452
      %469 = vst [vmem:[%s172 + $0x18] sm:$0xf] %v453
      %470 = vst [vmem:[%s172 + $0x1c] sm:$0xf] %v454
      %s471 = smul.u32 8, %s14
      %p472 = scmp.lt.s32.totalorder %s471, 15
      %s473 = scalar_select %p472, %s471, 15
      %s474 = smul.addr %s473, 4
      %s475 = scalar_lea.vmem %s3, %s474
      // Predicated region
      $region33: #{resblock_body_forward.9} parent=31 // pred_check
        %p476 = pneg %p100
      $region34: #{resblock_body_forward.9} parent=31 // pred_check_branch
        %478 = sbr.rel (%p476) target = $region36
      $region35: #{resblock_body_forward.9} parent=31 // pred_region
        %s479 = smul.u32 8, %s14
      $region36: #{resblock_body_forward.9} parent=31 // pred_fallthru
        _
    $region32: #{resblock_body_forward.9} parent=5 // pred_fallthru
      _
    %p480 = scmp.le.s32.totalorder 2, %s9
    // Predicated region
    $region37: #{resblock_body_forward.9} parent=5 // pred_check
      %p481 = pneg %p480
    $region38: #{resblock_body_forward.9} parent=5 // pred_check_branch
      %483 = sbr.rel (%p481) target = $region40
    $region39: #{resblock_body_forward.9} parent=5 // pred_region
      %s484 = ssub.s32 %s9, 2
      // Predicated region
      $region41: #{resblock_body_forward.9} parent=39 // pred_check
        %p485 = pneg %p106
      $region42: #{resblock_body_forward.9} parent=39 // pred_check_branch
        %487 = sbr.rel (%p485) target = $region44
      $region43: #{resblock_body_forward.9} parent=39 // pred_region
        %s488 = smul.u32 8, %s15
        %p489 = scmp.lt.s32.totalorder %s488, 15
        %s490 = scalar_select %p489, %s488, 15
        %s491 = smul.addr %s490, 4
        %s492 = scalar_lea.vmem %s3, %s491
      $region44: #{resblock_body_forward.9} parent=39 // pred_fallthru
        _
    $region40: #{resblock_body_forward.9} parent=5 // pred_fallthru
      _
  $region6: #{resblock_body_forward.9} parent=0 // loop_footer
    %s13 = sadd.s32 1, %s9
  $region7: #{resblock_body_forward.9} parent=0 // loop_footer_branch
    %8 = sbr.rel target = $region3
  $region8: #{resblock_body_forward.9} parent=0 // loop_exit
    _

// kernel: resblock_body_forward.7
$region0: #{resblock_body_forward.7}
  #allocation0 [shape = 'u32[]', space=smem, size = 0x4, offset = 0x4, fixed_abs, tag = 'smem constant byte address 0x4 - core index']
  #allocation1 [shape = 'u32[144,128]{1,0:T(1,128)}', space=vmem, size = 0x12000, scoped, tag = 'internal scratch']
  %s0 = inlined_call_operand.vmem [shape: bf16[2,9,9,512], index: 0, kind: input, shape index: {}]
  %s1 = inlined_call_operand.vmem [shape: bf16[1152,128], index: 1, kind: input, shape index: {}]
  %s2 = inlined_call_operand.vmem [shape: f32[1,128], index: 2, kind: input, shape index: {}]
  %s3 = inlined_call_operand.vmem [shape: bf16[2,8,8,128], index: 3, kind: output, shape index: {}]
  %s4 = sld [smem:[#allocation0]]
  $region45: #{resblock_body_forward.7} parent=0
    _
  %s6 = ssub.s32 1, %s4
  %s7 = scalar_select 0, %s6, %s4
  loop: start=0, step=1, limit=4
  $region2: #{resblock_body_forward.7} parent=0 // loop_pre_header
    _
  $region3: #{resblock_body_forward.7} parent=0 // loop_header
    %s9 = sphi 0, %s13
    %p10 = scmp.ge.s32.totalorder %s9, 4
    %s19 = sphi 0, %s21
    %s22 = sphi 0, %s19
    %s23 = sphi 0, %s22
    %s39 = sphi 0, %s23
    %s43 = sphi 0, %s43
    %s45 = sphi 0, %s43
    %s46 = sphi 0, %s45
    %s60 = sphi 0, %s46
    %s64 = sphi 0, %s64
    %s66 = sphi 0, %s64
    %s67 = sphi 0, %s66
    %s81 = sphi 0, %s67
    %s87 = sphi 0, %s89
    %s90 = sphi 0, %s87
    %s91 = sphi 0, %s90
    %s107 = sphi 0, %s91
  $region4: #{resblock_body_forward.7} parent=0 // loop_header_branch
    %12 = sbr.rel (%p10) target = $region8
  $region5: #{resblock_body_forward.7} parent=0 // loop_body
    %s14 = ssub.s32 %s9, 1
    %s15 = ssub.s32 %s9, 2
    %s16 = sadd.s32 %s9, 1
    %s17 = ssub.s32 %s9, %s16
    %p18 = scmp.eq.s32.totalorder %s17, 0
    %s20 = sadd.s32 %s19, 1
    %s21 = scalar_select %p18, %s19, %s20
    %p24 = pneg %p18
    %p25 = scmp.eq.s32.totalorder %s9, 1
    %p26 = por %p24, %p25
    %p27 = scmp.ne.s32.totalorder %s19, %s22
    %p28 = scmp.eq.s32.totalorder %s9, 0
    %p29 = por %p27, %p28
    %p30 = scmp.ne.s32.totalorder %s19, %s22
    %p31 = scmp.eq.s32.totalorder %s14, 1
    %p32 = por %p30, %p31
    %p33 = scmp.ne.s32.totalorder %s22, %s23
    %p34 = scmp.eq.s32.totalorder %s14, 0
    %p35 = por %p33, %p34
    %p36 = scmp.ne.s32.totalorder %s22, %s23
    %p37 = scmp.eq.s32.totalorder %s15, 1
    %p38 = por %p36, %p37
    %p40 = scmp.ne.s32.totalorder %s23, %s39
    %p41 = scmp.eq.s32.totalorder %s15, 0
    %p42 = por %p40, %p41
    %s44 = sadd.s32 %s43, 1
    %p47 = scmp.eq.s32.totalorder %s9, 1
    %p48 = scmp.ne.s32.totalorder %s43, %s45
    %p49 = scmp.eq.s32.totalorder %s9, 0
    %p50 = por %p48, %p49
    %p51 = scmp.ne.s32.totalorder %s43, %s45
    %p52 = scmp.eq.s32.totalorder %s14, 1
    %p53 = por %p51, %p52
    %p54 = scmp.ne.s32.totalorder %s45, %s46
    %p55 = scmp.eq.s32.totalorder %s14, 0
    %p56 = por %p54, %p55
    %p57 = scmp.ne.s32.totalorder %s45, %s46
    %p58 = scmp.eq.s32.totalorder %s15, 1
    %p59 = por %p57, %p58
    %p61 = scmp.ne.s32.totalorder %s46, %s60
    %p62 = scmp.eq.s32.totalorder %s15, 0
    %p63 = por %p61, %p62
    %s65 = sadd.s32 %s64, 1
    %p68 = scmp.eq.s32.totalorder %s9, 1
    %p69 = scmp.ne.s32.totalorder %s64, %s66
    %p70 = scmp.eq.s32.totalorder %s9, 0
    %p71 = por %p69, %p70
    %p72 = scmp.ne.s32.totalorder %s64, %s66
    %p73 = scmp.eq.s32.totalorder %s14, 1
    %p74 = por %p72, %p73
    %p75 = scmp.ne.s32.totalorder %s66, %s67
    %p76 = scmp.eq.s32.totalorder %s14, 0
    %p77 = por %p75, %p76
    %p78 = scmp.ne.s32.totalorder %s66, %s67
    %p79 = scmp.eq.s32.totalorder %s15, 1
    %p80 = por %p78, %p79
    %p82 = scmp.ne.s32.totalorder %s67, %s81
    %p83 = scmp.eq.s32.totalorder %s15, 0
    %p84 = por %p82, %p83
    %s85 = ssub.s32 %s9, %s16
    %p86 = scmp.eq.s32.totalorder %s85, 0
    %s88 = sadd.s32 %s87, 1
    %s89 = scalar_select %p86, %s87, %s88
    %p92 = pneg %p86
    %p93 = scmp.eq.s32.totalorder %s9, 1
    %p94 = por %p92, %p93
    %p95 = scmp.ne.s32.totalorder %s87, %s90
    %p96 = scmp.eq.s32.totalorder %s9, 0
    %p97 = por %p95, %p96
    %p98 = scmp.ne.s32.totalorder %s87, %s90
    %p99 = scmp.eq.s32.totalorder %s14, 1
    %p100 = por %p98, %p99
    %p101 = scmp.ne.s32.totalorder %s90, %s91
    %p102 = scmp.eq.s32.totalorder %s14, 0
    %p103 = por %p101, %p102
    %p104 = scmp.ne.s32.totalorder %s90, %s91
    %p105 = scmp.eq.s32.totalorder %s15, 1
    %p106 = por %p104, %p105
    %p108 = scmp.ne.s32.totalorder %s91, %s107
    %p109 = scmp.eq.s32.totalorder %s15, 0
    %p110 = por %p108, %p109
    %p111 = scmp.le.s32.totalorder 1, %s9
    %p112 = scmp.lt.s32.totalorder %s9, 3
    %p113 = pnand %p111, %p112
    %p114 = pneg %p113
    // Predicated region
    $region9: #{resblock_body_forward.7} parent=5 // pred_check
      _
    $region10: #{resblock_body_forward.7} parent=5 // pred_check_branch
      %116 = sbr.rel (%p113) target = $region12
    $region11: #{resblock_body_forward.7} parent=5 // pred_region
      %s117 = ssub.s32 %s9, 1
      // Predicated region
      $region13: #{resblock_body_forward.7} parent=11 // pred_check
        %p118 = pneg %p56
      $region14: #{resblock_body_forward.7} parent=11 // pred_check_branch
        %120 = sbr.rel (%p118) target = $region16
      $region15: #{resblock_body_forward.7} parent=11 // pred_region
        _
      $region16: #{resblock_body_forward.7} parent=11 // pred_fallthru
        _
      // Predicated region
      $region17: #{resblock_body_forward.7} parent=11 // pred_check
        %p121 = pneg %p77
      $region18: #{resblock_body_forward.7} parent=11 // pred_check_branch
        %123 = sbr.rel (%p121) target = $region20
      $region19: #{resblock_body_forward.7} parent=11 // pred_region
        _
      $region20: #{resblock_body_forward.7} parent=11 // pred_fallthru
        _
    $region12: #{resblock_body_forward.7} parent=5 // pred_fallthru
      _
    %p124 = scmp.lt.s32.totalorder %s9, 2
    // Predicated region
    $region21: #{resblock_body_forward.7} parent=5 // pred_check
      %p125 = pneg %p124
    $region22: #{resblock_body_forward.7} parent=5 // pred_check_branch
      %127 = sbr.rel (%p125) target = $region24
    $region23: #{resblock_body_forward.7} parent=5 // pred_region
      // Predicated region
      $region25: #{resblock_body_forward.7} parent=23 // pred_check
        %p128 = pneg %p29
      $region26: #{resblock_body_forward.7} parent=23 // pred_check_branch
        %130 = sbr.rel (%p128) target = $region28
      $region27: #{resblock_body_forward.7} parent=23 // pred_region
        %p131 = scmp.lt.s32.totalorder %s9, 1
        %s132 = scalar_select %p131, %s9, 1
        %s133 = smul.addr %s132, 72
        %s134 = smul.addr %s133, 4
        %s135 = scalar_lea.vmem %s0, %s134
      $region28: #{resblock_body_forward.7} parent=23 // pred_fallthru
        _
    $region24: #{resblock_body_forward.7} parent=5 // pred_fallthru
      _
    %p136 = scmp.le.s32.totalorder 1, %s9
    %p137 = scmp.lt.s32.totalorder %s9, 3
    %p138 = pnand %p136, %p137
    %p139 = pneg %p138
    // Predicated region
    $region29: #{resblock_body_forward.7} parent=5 // pred_check
      _
    $region30: #{resblock_body_forward.7} parent=5 // pred_check_branch
      %141 = sbr.rel (%p138) target = $region32
    $region31: #{resblock_body_forward.7} parent=5 // pred_region
      %s142 = ssub.s32 %s9, 1
      %p143 = scmp.lt.s32.totalorder %s14, 1
      %s144 = scalar_select %p143, %s14, 1
      %s145 = smul.addr %s144, 72
      %s146 = smul.addr %s145, 4
      %s147 = scalar_lea.vmem %s0, %s146
      %p148 = pneg %p35
      %p149 = pneg %p32
      %p150 = pneg %p56
      %p151 = pneg %p53
      %p152 = pneg %p77
      %p153 = pneg %p74
      %p154 = pneg %p103
      %p155 = pneg %p100
      %p156 = scmp.lt.s32.totalorder %s14, 1
      %s157 = scalar_select %p156, %s14, 1
      %s158 = smul.addr %s157, 8
      %s159 = smul.addr %s158, 4
      %s160 = scalar_lea.vmem %s3, %s159
      %p161 = scmp.lt.s32.totalorder %s14, 1
      %s162 = scalar_select %p161, %s14, 1
      %s163 = smul.addr %s162, 72
      %s164 = smul.addr %s163, 4
      %s165 = scalar_lea.vmem %s0, %s164
      %p166 = scmp.lt.s32.totalorder %s14, 1
      %s167 = scalar_select %p166, %s14, 1
      %s168 = smul.addr %s167, 8
      %s169 = smul.addr %s168, 4
      %s170 = scalar_lea.vmem %s3, %s169
      %v172 = vld [vmem:[%s1] sm:$0xf]
      %v173 = vld [vmem:[%s1 + $0x4] sm:$0xf]
      %v174 = vld [vmem:[%s1 + $0x8] sm:$0xf]
      %v175 = vld [vmem:[%s1 + $0xc] sm:$0xf]
      %v176 = vld [vmem:[%s1 + $0x10] sm:$0xf]
      %v177 = vld [vmem:[%s1 + $0x14] sm:$0xf]
      %v178 = vld [vmem:[%s1 + $0x18] sm:$0xf]
      %v179 = vld [vmem:[%s1 + $0x1c] sm:$0xf]
      %v180 = vld [vmem:[%s1 + $0x20] sm:$0xf]
      %v181 = vld [vmem:[%s1 + $0x24] sm:$0xf]
      %v182 = vld [vmem:[%s1 + $0x28] sm:$0xf]
      %v183 = vld [vmem:[%s1 + $0x2c] sm:$0xf]
      %v184 = vld [vmem:[%s1 + $0x30] sm:$0xf]
      %v185 = vld [vmem:[%s1 + $0x34] sm:$0xf]
      %v186 = vld [vmem:[%s1 + $0x38] sm:$0xf]
      %v187 = vld [vmem:[%s1 + $0x3c] sm:$0xf]
      %v188 = vld [vmem:[%s1 + $0x40] sm:$0xf]
      %v189 = vld [vmem:[%s1 + $0x44] sm:$0xf]
      %v190 = vld [vmem:[%s1 + $0x48] sm:$0xf]
      %v191 = vld [vmem:[%s1 + $0x4c] sm:$0xf]
      %v192 = vld [vmem:[%s1 + $0x50] sm:$0xf]
      %v193 = vld [vmem:[%s1 + $0x54] sm:$0xf]
      %v194 = vld [vmem:[%s1 + $0x58] sm:$0xf]
      %v195 = vld [vmem:[%s1 + $0x5c] sm:$0xf]
      %v196 = vld [vmem:[%s1 + $0x60] sm:$0xf]
      %v197 = vld [vmem:[%s1 + $0x64] sm:$0xf]
      %v198 = vld [vmem:[%s1 + $0x68] sm:$0xf]
      %v199 = vld [vmem:[%s1 + $0x6c] sm:$0xf]
      %v200 = vld [vmem:[%s1 + $0x70] sm:$0xf]
      %v201 = vld [vmem:[%s1 + $0x74] sm:$0xf]
      %v202 = vld [vmem:[%s1 + $0x78] sm:$0xf]
      %v203 = vld [vmem:[%s1 + $0x7c] sm:$0xf]
      %v204 = vld [vmem:[%s1 + $0x80] sm:$0xf]
      %v205 = vld [vmem:[%s1 + $0x84] sm:$0xf]
      %v206 = vld [vmem:[%s1 + $0x88] sm:$0xf]
      %v207 = vld [vmem:[%s1 + $0x8c] sm:$0xf]
      %v208 = vld [vmem:[%s1 + $0x90] sm:$0xf]
      %v209 = vld [vmem:[%s1 + $0x94] sm:$0xf]
      %v210 = vld [vmem:[%s1 + $0x98] sm:$0xf]
      %v211 = vld [vmem:[%s1 + $0x9c] sm:$0xf]
      %v212 = vld [vmem:[%s1 + $0xa0] sm:$0xf]
      %v213 = vld [vmem:[%s1 + $0xa4] sm:$0xf]
      %v214 = vld [vmem:[%s1 + $0xa8] sm:$0xf]
      %v215 = vld [vmem:[%s1 + $0xac] sm:$0xf]
      %v216 = vld [vmem:[%s1 + $0xb0] sm:$0xf]
      %v217 = vld [vmem:[%s1 + $0xb4] sm:$0xf]
      %v218 = vld [vmem:[%s1 + $0xb8] sm:$0xf]
      %v219 = vld [vmem:[%s1 + $0xbc] sm:$0xf]
      %v220 = vld [vmem:[%s1 + $0xc0] sm:$0xf]
      %v221 = vld [vmem:[%s1 + $0xc4] sm:$0xf]
      %v222 = vld [vmem:[%s1 + $0xc8] sm:$0xf]
      %v223 = vld [vmem:[%s1 + $0xcc] sm:$0xf]
      %v224 = vld [vmem:[%s1 + $0xd0] sm:$0xf]
      %v225 = vld [vmem:[%s1 + $0xd4] sm:$0xf]
      %v226 = vld [vmem:[%s1 + $0xd8] sm:$0xf]
      %v227 = vld [vmem:[%s1 + $0xdc] sm:$0xf]
      %v228 = vld [vmem:[%s1 + $0xe0] sm:$0xf]
      %v229 = vld [vmem:[%s1 + $0xe4] sm:$0xf]
      %v230 = vld [vmem:[%s1 + $0xe8] sm:$0xf]
      %v231 = vld [vmem:[%s1 + $0xec] sm:$0xf]
      %v232 = vld [vmem:[%s1 + $0xf0] sm:$0xf]
      %v233 = vld [vmem:[%s1 + $0xf4] sm:$0xf]
      %v234 = vld [vmem:[%s1 + $0xf8] sm:$0xf]
      %v235 = vld [vmem:[%s1 + $0xfc] sm:$0xf]
      %v236 = vld [vmem:[%s1 + $0x100] sm:$0xf]
      %v237 = vld [vmem:[%s1 + $0x104] sm:$0xf]
      %v238 = vld [vmem:[%s1 + $0x108] sm:$0xf]
      %v239 = vld [vmem:[%s1 + $0x10c] sm:$0xf]
      %v240 = vld [vmem:[%s1 + $0x110] sm:$0xf]
      %v241 = vld [vmem:[%s1 + $0x114] sm:$0xf]
      %v242 = vld [vmem:[%s1 + $0x118] sm:$0xf]
      %v243 = vld [vmem:[%s1 + $0x11c] sm:$0xf]
      %v244 = vld [vmem:[%s1 + $0x120] sm:$0xf]
      %v245 = vld [vmem:[%s1 + $0x124] sm:$0xf]
      %v246 = vld [vmem:[%s1 + $0x128] sm:$0xf]
      %v247 = vld [vmem:[%s1 + $0x12c] sm:$0xf]
      %v248 = vld [vmem:[%s1 + $0x130] sm:$0xf]
      %v249 = vld [vmem:[%s1 + $0x134] sm:$0xf]
      %v250 = vld [vmem:[%s1 + $0x138] sm:$0xf]
      %v251 = vld [vmem:[%s1 + $0x13c] sm:$0xf]
      %v252 = vld [vmem:[%s1 + $0x140] sm:$0xf]
      %v253 = vld [vmem:[%s1 + $0x144] sm:$0xf]
      %v254 = vld [vmem:[%s1 + $0x148] sm:$0xf]
      %v255 = vld [vmem:[%s1 + $0x14c] sm:$0xf]
      %v256 = vld [vmem:[%s1 + $0x150] sm:$0xf]
      %v257 = vld [vmem:[%s1 + $0x154] sm:$0xf]
      %v258 = vld [vmem:[%s1 + $0x158] sm:$0xf]
      %v259 = vld [vmem:[%s1 + $0x15c] sm:$0xf]
      %v260 = vld [vmem:[%s1 + $0x160] sm:$0xf]
      %v261 = vld [vmem:[%s1 + $0x164] sm:$0xf]
      %v262 = vld [vmem:[%s1 + $0x168] sm:$0xf]
      %v263 = vld [vmem:[%s1 + $0x16c] sm:$0xf]
      %v264 = vld [vmem:[%s1 + $0x170] sm:$0xf]
      %v265 = vld [vmem:[%s1 + $0x174] sm:$0xf]
      %v266 = vld [vmem:[%s1 + $0x178] sm:$0xf]
      %v267 = vld [vmem:[%s1 + $0x17c] sm:$0xf]
      %v268 = vld [vmem:[%s1 + $0x180] sm:$0xf]
      %v269 = vld [vmem:[%s1 + $0x184] sm:$0xf]
      %v270 = vld [vmem:[%s1 + $0x188] sm:$0xf]
      %v271 = vld [vmem:[%s1 + $0x18c] sm:$0xf]
      %v272 = vld [vmem:[%s1 + $0x190] sm:$0xf]
      %v273 = vld [vmem:[%s1 + $0x194] sm:$0xf]
      %v274 = vld [vmem:[%s1 + $0x198] sm:$0xf]
      %v275 = vld [vmem:[%s1 + $0x19c] sm:$0xf]
      %v276 = vld [vmem:[%s1 + $0x1a0] sm:$0xf]
      %v277 = vld [vmem:[%s1 + $0x1a4] sm:$0xf]
      %v278 = vld [vmem:[%s1 + $0x1a8] sm:$0xf]
      %v279 = vld [vmem:[%s1 + $0x1ac] sm:$0xf]
      %v280 = vld [vmem:[%s1 + $0x1b0] sm:$0xf]
      %v281 = vld [vmem:[%s1 + $0x1b4] sm:$0xf]
      %v282 = vld [vmem:[%s1 + $0x1b8] sm:$0xf]
      %v283 = vld [vmem:[%s1 + $0x1bc] sm:$0xf]
      %v284 = vld [vmem:[%s1 + $0x1c0] sm:$0xf]
      %v285 = vld [vmem:[%s1 + $0x1c4] sm:$0xf]
      %v286 = vld [vmem:[%s1 + $0x1c8] sm:$0xf]
      %v287 = vld [vmem:[%s1 + $0x1cc] sm:$0xf]
      %v288 = vld [vmem:[%s1 + $0x1d0] sm:$0xf]
      %v289 = vld [vmem:[%s1 + $0x1d4] sm:$0xf]
      %v290 = vld [vmem:[%s1 + $0x1d8] sm:$0xf]
      %v291 = vld [vmem:[%s1 + $0x1dc] sm:$0xf]
      %v292 = vld [vmem:[%s1 + $0x1e0] sm:$0xf]
      %v293 = vld [vmem:[%s1 + $0x1e4] sm:$0xf]
      %v294 = vld [vmem:[%s1 + $0x1e8] sm:$0xf]
      %v295 = vld [vmem:[%s1 + $0x1ec] sm:$0xf]
      %v296 = vld [vmem:[%s1 + $0x1f0] sm:$0xf]
      %v297 = vld [vmem:[%s1 + $0x1f4] sm:$0xf]
      %v298 = vld [vmem:[%s1 + $0x1f8] sm:$0xf]
      %v299 = vld [vmem:[%s1 + $0x1fc] sm:$0xf]
      %v300 = vld [vmem:[%s1 + $0x200] sm:$0xf]
      %v301 = vld [vmem:[%s1 + $0x204] sm:$0xf]
      %v302 = vld [vmem:[%s1 + $0x208] sm:$0xf]
      %v303 = vld [vmem:[%s1 + $0x20c] sm:$0xf]
      %v304 = vld [vmem:[%s1 + $0x210] sm:$0xf]
      %v305 = vld [vmem:[%s1 + $0x214] sm:$0xf]
      %v306 = vld [vmem:[%s1 + $0x218] sm:$0xf]
      %v307 = vld [vmem:[%s1 + $0x21c] sm:$0xf]
      %v308 = vld [vmem:[%s1 + $0x220] sm:$0xf]
      %v309 = vld [vmem:[%s1 + $0x224] sm:$0xf]
      %v310 = vld [vmem:[%s1 + $0x228] sm:$0xf]
      %v311 = vld [vmem:[%s1 + $0x22c] sm:$0xf]
      %v312 = vld [vmem:[%s1 + $0x230] sm:$0xf]
      %v313 = vld [vmem:[%s1 + $0x234] sm:$0xf]
      %v314 = vld [vmem:[%s1 + $0x238] sm:$0xf]
      %v315 = vld [vmem:[%s1 + $0x23c] sm:$0xf]
      %v316 = vld [vmem:[%s2] sm:$0x1]
      %v317 = vld [vmem:[%s165] sm:$0xf]
      %v318 = vld [vmem:[%s165 + $0x4] sm:$0xf]
      %v319 = vld [vmem:[%s165 + $0x10] sm:$0x1]
      %v320 = vld [vmem:[%s165 + $0x8] sm:$0xf]
      %v321 = vld [vmem:[%s165 + $0xc] sm:$0xf]
      %v322 = vld [vmem:[%s165 + $0x18] sm:$0x1]
      %s323 = scalar_lea.vmem %s165, 32
      %v324 = vld [vmem:[%s323] sm:$0xf]
      %v325 = vld [vmem:[%s323 + $0x4] sm:$0xf]
      %v326 = vld [vmem:[%s323 + $0x10] sm:$0x1]
      %v329 = vunpack.c.l.b16 %v317
      %v330 = vunpack.c.l.b16 %v319
      %v331 = vpack.c.b16 %v330, %v329
      %v333 = vshrl.u32 %v331, 16
      %v335 = vshll.u32 %v331, 16
      %v337 = vrot.slane %v335, 1
      %v338 = vor.u32 %v333, %v337
      %v342 = vunpack.c.l.b16 %v320
      %v343 = vunpack.c.l.b16 %v322
      %v344 = vpack.c.b16 %v343, %v342
      %v346 = vshrl.u32 %v344, 16
      %v348 = vshll.u32 %v344, 16
      %v350 = vrot.slane %v348, 1
      %v351 = vor.u32 %v346, %v350
      %v355 = vunpack.c.l.b16 %v324
      %v356 = vunpack.c.l.b16 %v326
      %v357 = vpack.c.b16 %v356, %v355
      %v359 = vshrl.u32 %v357, 16
      %v361 = vshll.u32 %v357, 16
      %v363 = vrot.slane %v361, 1
      %v364 = vor.u32 %v359, %v363
      %v367 = vlaneseq
      %v368 = vshrl.u32 %v367, 7
      %v369 = vsub.s32 0, %v368
      %v370 = vrot.slane %v316, %v369
      %v516 = vunpack.c.l.b16 %v172
      %v517 = vunpack.c.l.b16 %v173
      %v518 = vunpack.c.l.b16 %v174
      %v519 = vunpack.c.l.b16 %v175
      %v520 = vunpack.c.l.b16 %v176
      %v521 = vunpack.c.l.b16 %v177
      %v522 = vunpack.c.l.b16 %v178
      %v523 = vunpack.c.l.b16 %v179
      %v524 = vunpack.c.l.b16 %v180
      %v525 = vunpack.c.l.b16 %v181
      %v526 = vunpack.c.l.b16 %v182
      %v527 = vunpack.c.l.b16 %v183
      %v528 = vunpack.c.l.b16 %v184
      %v529 = vunpack.c.l.b16 %v185
      %v530 = vunpack.c.l.b16 %v186
      %v531 = vunpack.c.l.b16 %v187
      %v532 = vunpack.c.l.b16 %v188
      %v533 = vunpack.c.l.b16 %v189
      %v534 = vunpack.c.l.b16 %v190
      %v535 = vunpack.c.l.b16 %v191
      %v536 = vunpack.c.l.b16 %v192
      %v537 = vunpack.c.l.b16 %v193
      %v538 = vunpack.c.l.b16 %v194
      %v539 = vunpack.c.l.b16 %v195
      %v540 = vunpack.c.l.b16 %v196
      %v541 = vunpack.c.l.b16 %v197
      %v542 = vunpack.c.l.b16 %v198
      %v543 = vunpack.c.l.b16 %v199
      %v544 = vunpack.c.l.b16 %v200
      %v545 = vunpack.c.l.b16 %v201
      %v546 = vunpack.c.l.b16 %v202
      %v547 = vunpack.c.l.b16 %v203
      %v548 = vunpack.c.l.b16 %v204
      %v549 = vunpack.c.l.b16 %v205
      %v550 = vunpack.c.l.b16 %v206
      %v551 = vunpack.c.l.b16 %v207
      %v552 = vunpack.c.l.b16 %v208
      %v553 = vunpack.c.l.b16 %v209
      %v554 = vunpack.c.l.b16 %v210
      %v555 = vunpack.c.l.b16 %v211
      %v556 = vunpack.c.l.b16 %v212
      %v557 = vunpack.c.l.b16 %v213
      %v558 = vunpack.c.l.b16 %v214
      %v559 = vunpack.c.l.b16 %v215
      %v560 = vunpack.c.l.b16 %v216
      %v561 = vunpack.c.l.b16 %v217
      %v562 = vunpack.c.l.b16 %v218
      %v563 = vunpack.c.l.b16 %v219
      %v564 = vunpack.c.l.b16 %v220
      %v565 = vunpack.c.l.b16 %v221
      %v566 = vunpack.c.l.b16 %v222
      %v567 = vunpack.c.l.b16 %v223
      %v568 = vunpack.c.l.b16 %v224
      %v569 = vunpack.c.l.b16 %v225
      %v570 = vunpack.c.l.b16 %v226
      %v571 = vunpack.c.l.b16 %v227
      %v572 = vunpack.c.l.b16 %v228
      %v573 = vunpack.c.l.b16 %v229
      %v574 = vunpack.c.l.b16 %v230
      %v575 = vunpack.c.l.b16 %v231
      %v576 = vunpack.c.l.b16 %v232
      %v577 = vunpack.c.l.b16 %v233
      %v578 = vunpack.c.l.b16 %v234
      %v579 = vunpack.c.l.b16 %v235
      %v580 = vunpack.c.l.b16 %v236
      %v581 = vunpack.c.l.b16 %v237
      %v582 = vunpack.c.l.b16 %v238
      %v583 = vunpack.c.l.b16 %v239
      %v584 = vunpack.c.l.b16 %v240
      %v585 = vunpack.c.l.b16 %v241
      %v586 = vunpack.c.l.b16 %v242
      %v587 = vunpack.c.l.b16 %v243
      %v588 = vunpack.c.l.b16 %v244
      %v589 = vunpack.c.l.b16 %v245
      %v590 = vunpack.c.l.b16 %v246
      %v591 = vunpack.c.l.b16 %v247
      %v592 = vunpack.c.l.b16 %v248
      %v593 = vunpack.c.l.b16 %v249
      %v594 = vunpack.c.l.b16 %v250
      %v595 = vunpack.c.l.b16 %v251
      %v596 = vunpack.c.l.b16 %v252
      %v597 = vunpack.c.l.b16 %v253
      %v598 = vunpack.c.l.b16 %v254
      %v599 = vunpack.c.l.b16 %v255
      %v600 = vunpack.c.l.b16 %v256
      %v601 = vunpack.c.l.b16 %v257
      %v602 = vunpack.c.l.b16 %v258
      %v603 = vunpack.c.l.b16 %v259
      %v604 = vunpack.c.l.b16 %v260
      %v605 = vunpack.c.l.b16 %v261
      %v606 = vunpack.c.l.b16 %v262
      %v607 = vunpack.c.l.b16 %v263
      %v608 = vunpack.c.l.b16 %v264
      %v609 = vunpack.c.l.b16 %v265
      %v610 = vunpack.c.l.b16 %v266
      %v611 = vunpack.c.l.b16 %v267
      %v612 = vunpack.c.l.b16 %v268
      %v613 = vunpack.c.l.b16 %v269
      %v614 = vunpack.c.l.b16 %v270
      %v615 = vunpack.c.l.b16 %v271
      %v616 = vunpack.c.l.b16 %v272
      %v617 = vunpack.c.l.b16 %v273
      %v618 = vunpack.c.l.b16 %v274
      %v619 = vunpack.c.l.b16 %v275
      %v620 = vunpack.c.l.b16 %v276
      %v621 = vunpack.c.l.b16 %v277
      %v622 = vunpack.c.l.b16 %v278
      %v623 = vunpack.c.l.b16 %v279
      %v624 = vunpack.c.l.b16 %v280
      %v625 = vunpack.c.l.b16 %v281
      %v626 = vunpack.c.l.b16 %v282
      %v627 = vunpack.c.l.b16 %v283
      %v628 = vunpack.c.l.b16 %v284
      %v629 = vunpack.c.l.b16 %v285
      %v630 = vunpack.c.l.b16 %v286
      %v631 = vunpack.c.l.b16 %v287
      %v632 = vunpack.c.l.b16 %v288
      %v633 = vunpack.c.l.b16 %v289
      %v634 = vunpack.c.l.b16 %v290
      %v635 = vunpack.c.l.b16 %v291
      %v636 = vunpack.c.l.b16 %v292
      %v637 = vunpack.c.l.b16 %v293
      %v638 = vunpack.c.l.b16 %v294
      %v639 = vunpack.c.l.b16 %v295
      %v640 = vunpack.c.l.b16 %v296
      %v641 = vunpack.c.l.b16 %v297
      %v642 = vunpack.c.l.b16 %v298
      %v643 = vunpack.c.l.b16 %v299
      %v644 = vunpack.c.l.b16 %v300
      %v645 = vunpack.c.l.b16 %v301
      %v646 = vunpack.c.l.b16 %v302
      %v647 = vunpack.c.l.b16 %v303
      %v648 = vunpack.c.l.b16 %v304
      %v649 = vunpack.c.l.b16 %v305
      %v650 = vunpack.c.l.b16 %v306
      %v651 = vunpack.c.l.b16 %v307
      %v652 = vunpack.c.l.b16 %v308
      %v653 = vunpack.c.l.b16 %v309
      %v654 = vunpack.c.l.b16 %v310
      %v655 = vunpack.c.l.b16 %v311
      %v656 = vunpack.c.l.b16 %v312
      %v657 = vunpack.c.l.b16 %v313
      %v658 = vunpack.c.l.b16 %v314
      %v659 = vunpack.c.l.b16 %v315
      %v660 = vpack.c.b16 %v517, %v516
      %v661 = vpack.c.b16 %v519, %v518
      %v662 = vpack.c.b16 %v521, %v520
      %v663 = vpack.c.b16 %v523, %v522
      %v664 = vpack.c.b16 %v525, %v524
      %v665 = vpack.c.b16 %v527, %v526
      %v666 = vpack.c.b16 %v529, %v528
      %v667 = vpack.c.b16 %v531, %v530
      %v668 = vpack.c.b16 %v533, %v532
      %v669 = vpack.c.b16 %v535, %v534
      %v670 = vpack.c.b16 %v537, %v536
      %v671 = vpack.c.b16 %v539, %v538
      %v672 = vpack.c.b16 %v541, %v540
      %v673 = vpack.c.b16 %v543, %v542
      %v674 = vpack.c.b16 %v545, %v544
      %v675 = vpack.c.b16 %v547, %v546
      %v676 = vpack.c.b16 %v549, %v548
      %v677 = vpack.c.b16 %v551, %v550
      %v678 = vpack.c.b16 %v553, %v552
      %v679 = vpack.c.b16 %v555, %v554
      %v680 = vpack.c.b16 %v557, %v556
      %v681 = vpack.c.b16 %v559, %v558
      %v682 = vpack.c.b16 %v561, %v560
      %v683 = vpack.c.b16 %v563, %v562
      %v684 = vpack.c.b16 %v565, %v564
      %v685 = vpack.c.b16 %v567, %v566
      %v686 = vpack.c.b16 %v569, %v568
      %v687 = vpack.c.b16 %v571, %v570
      %v688 = vpack.c.b16 %v573, %v572
      %v689 = vpack.c.b16 %v575, %v574
      %v690 = vpack.c.b16 %v577, %v576
      %v691 = vpack.c.b16 %v579, %v578
      %v692 = vpack.c.b16 %v581, %v580
      %v693 = vpack.c.b16 %v583, %v582
      %v694 = vpack.c.b16 %v585, %v584
      %v695 = vpack.c.b16 %v587, %v586
      %v696 = vpack.c.b16 %v589, %v588
      %v697 = vpack.c.b16 %v591, %v590
      %v698 = vpack.c.b16 %v593, %v592
      %v699 = vpack.c.b16 %v595, %v594
      %v700 = vpack.c.b16 %v597, %v596
      %v701 = vpack.c.b16 %v599, %v598
      %v702 = vpack.c.b16 %v601, %v600
      %v703 = vpack.c.b16 %v603, %v602
      %v704 = vpack.c.b16 %v605, %v604
      %v705 = vpack.c.b16 %v607, %v606
      %v706 = vpack.c.b16 %v609, %v608
      %v707 = vpack.c.b16 %v611, %v610
      %v708 = vpack.c.b16 %v613, %v612
      %v709 = vpack.c.b16 %v615, %v614
      %v710 = vpack.c.b16 %v617, %v616
      %v711 = vpack.c.b16 %v619, %v618
      %v712 = vpack.c.b16 %v621, %v620
      %v713 = vpack.c.b16 %v623, %v622
      %v714 = vpack.c.b16 %v625, %v624
      %v715 = vpack.c.b16 %v627, %v626
      %v716 = vpack.c.b16 %v629, %v628
      %v717 = vpack.c.b16 %v631, %v630
      %v718 = vpack.c.b16 %v633, %v632
      %v719 = vpack.c.b16 %v635, %v634
      %v720 = vpack.c.b16 %v637, %v636
      %v721 = vpack.c.b16 %v639, %v638
      %v722 = vpack.c.b16 %v641, %v640
      %v723 = vpack.c.b16 %v643, %v642
      %v724 = vpack.c.b16 %v645, %v644
      %v725 = vpack.c.b16 %v647, %v646
      %v726 = vpack.c.b16 %v649, %v648
      %v727 = vpack.c.b16 %v651, %v650
      %v728 = vpack.c.b16 %v653, %v652
      %v729 = vpack.c.b16 %v655, %v654
      %v730 = vpack.c.b16 %v657, %v656
      %v731 = vpack.c.b16 %v659, %v658
      %804 = vmatprep.subr.bf16.mxu0 0
      %805 = vmatpush1.bf16.msra.mxu0 %v660
      %806 = vmatprep.subr.bf16.mxu0 0
      %807 = vmatpush1.bf16.msra.mxu0 %v661
      %808 = vmatprep.subr.bf16.mxu0 0
      %809 = vmatpush1.bf16.msra.mxu0 %v662
      %810 = vmatprep.subr.bf16.mxu0 0
      %811 = vmatpush1.bf16.msra.mxu0 %v663
      %812 = vmatprep.subr.bf16.mxu0 0
      %813 = vmatpush1.bf16.msra.mxu0 %v664
      %814 = vmatprep.subr.bf16.mxu0 0
      %815 = vmatpush1.bf16.msra.mxu0 %v665
      %816 = vmatprep.subr.bf16.mxu0 0
      %817 = vmatpush1.bf16.msra.mxu0 %v666
      %818 = vmatprep.subr.bf16.mxu0 0
      %819 = vmatpush1.bf16.msra.mxu0 %v667
      %820 = vmatprep.subr.bf16.mxu0 0
      %821 = vmatpush1.bf16.msra.mxu0 %v668
      %822 = vmatprep.subr.bf16.mxu0 0
      %823 = vmatpush1.bf16.msra.mxu0 %v669
      %824 = vmatprep.subr.bf16.mxu0 0
      %825 = vmatpush1.bf16.msra.mxu0 %v670
      %826 = vmatprep.subr.bf16.mxu0 0
      %827 = vmatpush1.bf16.msra.mxu0 %v671
      %828 = vmatprep.subr.bf16.mxu0 0
      %829 = vmatpush1.bf16.msra.mxu0 %v672
      %830 = vmatprep.subr.bf16.mxu0 0
      %831 = vmatpush1.bf16.msra.mxu0 %v673
      %832 = vmatprep.subr.bf16.mxu0 0
      %833 = vmatpush1.bf16.msra.mxu0 %v674
      %834 = vmatprep.subr.bf16.mxu0 0
      %835 = vmatpush1.bf16.msra.mxu0 %v675
      %836 = vmatprep.mubr.bf16.mxu0 %v318
      %837 = vmatmul.mubr.bf16.gmra.mrb[0].mxu0 %v317
      %v838 = vpop.f32.mrb[0].mxu0
      %v839 = vadd.f32 %v370, %v838
      %v840 = vpop.f32.mrb[0].mxu0
      %v841 = vpop.f32.mrb[0].mxu0
      %v842 = vpop.f32.mrb[0].mxu0
      %843 = vdwg.mxu0
      %844 = vmatprep.subr.bf16.mxu0 0
      %845 = vmatpush1.bf16.msra.mxu0 %v676
      %846 = vmatprep.subr.bf16.mxu0 0
      %847 = vmatpush1.bf16.msra.mxu0 %v677
      %848 = vmatprep.subr.bf16.mxu0 0
      %849 = vmatpush1.bf16.msra.mxu0 %v678
      %850 = vmatprep.subr.bf16.mxu0 0
      %851 = vmatpush1.bf16.msra.mxu0 %v679
      %852 = vmatprep.subr.bf16.mxu0 0
      %853 = vmatpush1.bf16.msra.mxu0 %v680
      %854 = vmatprep.subr.bf16.mxu0 0
      %855 = vmatpush1.bf16.msra.mxu0 %v681
      %856 = vmatprep.subr.bf16.mxu0 0
      %857 = vmatpush1.bf16.msra.mxu0 %v682
      %858 = vmatprep.subr.bf16.mxu0 0
      %859 = vmatpush1.bf16.msra.mxu0 %v683
      %860 = vmatprep.subr.bf16.mxu0 0
      %861 = vmatpush1.bf16.msra.mxu0 %v684
      %862 = vmatprep.subr.bf16.mxu0 0
      %863 = vmatpush1.bf16.msra.mxu0 %v685
      %864 = vmatprep.subr.bf16.mxu0 0
      %865 = vmatpush1.bf16.msra.mxu0 %v686
      %866 = vmatprep.subr.bf16.mxu0 0
      %867 = vmatpush1.bf16.msra.mxu0 %v687
      %868 = vmatprep.subr.bf16.mxu0 0
      %869 = vmatpush1.bf16.msra.mxu0 %v688
      %870 = vmatprep.subr.bf16.mxu0 0
      %871 = vmatpush1.bf16.msra.mxu0 %v689
      %872 = vmatprep.subr.bf16.mxu0 0
      %873 = vmatpush1.bf16.msra.mxu0 %v690
      %874 = vmatprep.subr.bf16.mxu0 0
      %875 = vmatpush1.bf16.msra.mxu0 %v691
      %876 = vmatprep.mubr.bf16.mxu0 %v320
      %877 = vmatmul.mubr.bf16.gmra.mrb[0].mxu0 %v338
      %v878 = vpop.f32.mrb[0].mxu0
      %v879 = vadd.f32 %v839, %v878
      %v880 = vpop.f32.mrb[0].mxu0
      %v881 = vpop.f32.mrb[0].mxu0
      %v882 = vpop.f32.mrb[0].mxu0
      %883 = vdwg.mxu0
      %884 = vmatprep.subr.bf16.mxu0 0
      %885 = vmatpush1.bf16.msra.mxu0 %v692
      %886 = vmatprep.subr.bf16.mxu0 0
      %887 = vmatpush1.bf16.msra.mxu0 %v693
      %888 = vmatprep.subr.bf16.mxu0 0
      %889 = vmatpush1.bf16.msra.mxu0 %v694
      %890 = vmatprep.subr.bf16.mxu0 0
      %891 = vmatpush1.bf16.msra.mxu0 %v695
      %892 = vmatprep.subr.bf16.mxu0 0
      %893 = vmatpush1.bf16.msra.mxu0 %v696
      %894 = vmatprep.subr.bf16.mxu0 0
      %895 = vmatpush1.bf16.msra.mxu0 %v697
      %896 = vmatprep.subr.bf16.mxu0 0
      %897 = vmatpush1.bf16.msra.mxu0 %v698
      %898 = vmatprep.subr.bf16.mxu0 0
      %899 = vmatpush1.bf16.msra.mxu0 %v699
      %900 = vmatprep.subr.bf16.mxu0 0
      %901 = vmatpush1.bf16.msra.mxu0 %v700
      %902 = vmatprep.subr.bf16.mxu0 0
      %903 = vmatpush1.bf16.msra.mxu0 %v701
      %904 = vmatprep.subr.bf16.mxu0 0
      %905 = vmatpush1.bf16.msra.mxu0 %v702
      %906 = vmatprep.subr.bf16.mxu0 0
      %907 = vmatpush1.bf16.msra.mxu0 %v703
      %908 = vmatprep.subr.bf16.mxu0 0
      %909 = vmatpush1.bf16.msra.mxu0 %v704
      %910 = vmatprep.subr.bf16.mxu0 0
      %911 = vmatpush1.bf16.msra.mxu0 %v705
      %912 = vmatprep.subr.bf16.mxu0 0
      %913 = vmatpush1.bf16.msra.mxu0 %v706
      %914 = vmatprep.subr.bf16.mxu0 0
      %915 = vmatpush1.bf16.msra.mxu0 %v707
      %916 = vmatprep.mubr.bf16.mxu0 %v351
      %917 = vmatmul.mubr.bf16.gmra.mrb[0].mxu0 %v321
      %v918 = vpop.f32.mrb[0].mxu0
      %v919 = vadd.f32 %v879, %v918
      %v920 = vpop.f32.mrb[0].mxu0
      %v921 = vpop.f32.mrb[0].mxu0
      %v922 = vpop.f32.mrb[0].mxu0
      %923 = vdwg.mxu0
      %924 = vmatprep.subr.bf16.mxu0 0
      %925 = vmatpush1.bf16.msra.mxu0 %v708
      %926 = vmatprep.subr.bf16.mxu0 0
      %927 = vmatpush1.bf16.msra.mxu0 %v709
      %928 = vmatprep.subr.bf16.mxu0 0
      %929 = vmatpush1.bf16.msra.mxu0 %v710
      %930 = vmatprep.subr.bf16.mxu0 0
      %931 = vmatpush1.bf16.msra.mxu0 %v711
      %932 = vmatprep.subr.bf16.mxu0 0
      %933 = vmatpush1.bf16.msra.mxu0 %v712
      %934 = vmatprep.subr.bf16.mxu0 0
      %935 = vmatpush1.bf16.msra.mxu0 %v713
      %936 = vmatprep.subr.bf16.mxu0 0
      %937 = vmatpush1.bf16.msra.mxu0 %v714
      %938 = vmatprep.subr.bf16.mxu0 0
      %939 = vmatpush1.bf16.msra.mxu0 %v715
      %940 = vmatprep.subr.bf16.mxu0 0
      %941 = vmatpush1.bf16.msra.mxu0 %v716
      %942 = vmatprep.subr.bf16.mxu0 0
      %943 = vmatpush1.bf16.msra.mxu0 %v717
      %944 = vmatprep.subr.bf16.mxu0 0
      %945 = vmatpush1.bf16.msra.mxu0 %v718
      %946 = vmatprep.subr.bf16.mxu0 0
      %947 = vmatpush1.bf16.msra.mxu0 %v719
      %948 = vmatprep.subr.bf16.mxu0 0
      %949 = vmatpush1.bf16.msra.mxu0 %v720
      %950 = vmatprep.subr.bf16.mxu0 0
      %951 = vmatpush1.bf16.msra.mxu0 %v721
      %952 = vmatprep.subr.bf16.mxu0 0
      %953 = vmatpush1.bf16.msra.mxu0 %v722
      %954 = vmatprep.subr.bf16.mxu0 0
      %955 = vmatpush1.bf16.msra.mxu0 %v723
      %956 = vmatprep.mubr.bf16.mxu0 %v325
      %957 = vmatmul.mubr.bf16.gmra.mrb[0].mxu0 %v324
      %v958 = vpop.f32.mrb[0].mxu0
      %v959 = vadd.f32 %v919, %v958
      %v960 = vpop.f32.mrb[0].mxu0
      %v961 = vpop.f32.mrb[0].mxu0
      %v962 = vpop.f32.mrb[0].mxu0
      %963 = vdwg.mxu0
      %964 = vmatprep.subr.bf16.mxu0 0
      %965 = vmatpush1.bf16.msra.mxu0 %v724
      %966 = vmatprep.subr.bf16.mxu0 0
      %967 = vmatpush1.bf16.msra.mxu0 %v725
      %968 = vmatprep.subr.bf16.mxu0 0
      %969 = vmatpush1.bf16.msra.mxu0 %v726
      %970 = vmatprep.subr.bf16.mxu0 0
      %971 = vmatpush1.bf16.msra.mxu0 %v727
      %972 = vmatprep.subr.bf16.mxu0 0
      %973 = vmatpush1.bf16.msra.mxu0 %v728
      %974 = vmatprep.subr.bf16.mxu0 0
      %975 = vmatpush1.bf16.msra.mxu0 %v729
      %976 = vmatprep.subr.bf16.mxu0 0
      %977 = vmatpush1.bf16.msra.mxu0 %v730
      %978 = vmatprep.subr.bf16.mxu0 0
      %979 = vmatpush1.bf16.msra.mxu0 %v731
      %980 = vmatprep.subr.bf16.mxu0 0
      %981 = vmatpush1.bf16.msra.mxu0 0
      %982 = vmatprep.subr.bf16.mxu0 0
      %983 = vmatpush1.bf16.msra.mxu0 0
      %984 = vmatprep.subr.bf16.mxu0 0
      %985 = vmatpush1.bf16.msra.mxu0 0
      %986 = vmatprep.subr.bf16.mxu0 0
      %987 = vmatpush1.bf16.msra.mxu0 0
      %988 = vmatprep.subr.bf16.mxu0 0
      %989 = vmatpush1.bf16.msra.mxu0 0
      %990 = vmatprep.subr.bf16.mxu0 0
      %991 = vmatpush1.bf16.msra.mxu0 0
      %992 = vmatprep.subr.bf16.mxu0 0
      %993 = vmatpush1.bf16.msra.mxu0 0
      %994 = vmatprep.subr.bf16.mxu0 0
      %995 = vmatpush1.bf16.msra.mxu0 0
      %996 = vmatprep.mubr.bf16.mxu0 0
      %997 = vmatmul.mubr.bf16.gmra.mrb[0].mxu0 %v364
      %v998 = vpop.f32.mrb[0].mxu0
      %v999 = vadd.f32 %v959, %v998
      %v1000 = vpop.f32.mrb[0].mxu0
      %v1001 = vpop.f32.mrb[0].mxu0
      %v1002 = vpop.f32.mrb[0].mxu0
      %1003 = vdwg.mxu0
      %v1004 = vmin.f32 %v999, 20.0
      %v1005 = vmul.f32 %v1004, 1.442695
      %v1006 = vpow.pop %v1005
      %v1007 = vadd.f32 %v1006, 2.0
      %v1008 = vmul.f32 %v1006, %v1007
      %v1009 = vadd.f32 %v1008, 2.0
      %v1010 = vrcp.pop %v1009
      %v1011 = vmul.f32 %v1008, %v1010
      %vm1012 = vcmp.gt.f32.partialorder %v999, 20.0
      %v1013 = vmul.f32 %v999, %v1011
      %v1014 = vsel %vm1012, %v999, %v1013
      %v1015 = vpack.c.bf16 %v1014, %v1014
      %1016 = vst [vmem:[%s170] sm:$0xf] %v1015
      %v1017 = vld [vmem:[%s323] sm:$0xf]
      %v1018 = vld [vmem:[%s323 + $0x4] sm:$0xf]
      %v1019 = vld [vmem:[%s323 + $0x10] sm:$0x1]
      %v1020 = vld [vmem:[%s323 + $0x8] sm:$0xf]
      %v1021 = vld [vmem:[%s323 + $0xc] sm:$0xf]
      %v1022 = vld [vmem:[%s323 + $0x18] sm:$0x1]
      %s1023 = scalar_lea.vmem %s165, 64
      %v1024 = vld [vmem:[%s1023] sm:$0xf]
      %v1025 = vld [vmem:[%s1023 + $0x4] sm:$0xf]
      %v1026 = vld [vmem:[%s1023 + $0x10] sm:$0x1]
      %v1029 = vunpack.c.l.b16 %v1017
      %v1030 = vunpack.c.l.b16 %v1019
      %v1031 = vpack.c.b16 %v1030, %v1029
      %v1033 = vshrl.u32 %v1031, 16
      %v1035 = vshll.u32 %v1031, 16
      %v1037 = vrot.slane %v1035, 1
      %v1038 = vor.u32 %v1033, %v1037
      %v1042 = vunpack.c.l.b16 %v1020
      %v1043 = vunpack.c.l.b16 %v1022
      %v1044 = vpack.c.b16 %v1043, %v1042
      %v1046 = vshrl.u32 %v1044, 16
      %v1048 = vshll.u32 %v1044, 16
      %v1050 = vrot.slane %v1048, 1
      %v1051 = vor.u32 %v1046, %v1050
      %v1055 = vunpack.c.l.b16 %v1024
      %v1056 = vunpack.c.l.b16 %v1026
      %v1057 = vpack.c.b16 %v1056, %v1055
      %v1059 = vshrl.u32 %v1057, 16
      %v1061 = vshll.u32 %v1057, 16
      %v1063 = vrot.slane %v1061, 1
      %v1064 = vor.u32 %v1059, %v1063
      %1066 = vmatprep.subr.bf16.mxu0 0
      %1067 = vmatpush1.bf16.msra.mxu0 %v660
      %1068 = vmatprep.subr.bf16.mxu0 0
      %1069 = vmatpush1.bf16.msra.mxu0 %v661
      %1070 = vmatprep.subr.bf16.mxu0 0
      %1071 = vmatpush1.bf16.msra.mxu0 %v662
      %1072 = vmatprep.subr.bf16.mxu0 0
      %1073 = vmatpush1.bf16.msra.mxu0 %v663
      %1074 = vmatprep.subr.bf16.mxu0 0
      %1075 = vmatpush1.bf16.msra.mxu0 %v664
      %1076 = vmatprep.subr.bf16.mxu0 0
      %1077 = vmatpush1.bf16.msra.mxu0 %v665
      %1078 = vmatprep.subr.bf16.mxu0 0
      %1079 = vmatpush1.bf16.msra.mxu0 %v666
      %1080 = vmatprep.subr.bf16.mxu0 0
      %1081 = vmatpush1.bf16.msra.mxu0 %v667
      %1082 = vmatprep.subr.bf16.mxu0 0
      %1083 = vmatpush1.bf16.msra.mxu0 %v668
      %1084 = vmatprep.subr.bf16.mxu0 0
      %1085 = vmatpush1.bf16.msra.mxu0 %v669
      %1086 = vmatprep.subr.bf16.mxu0 0
      %1087 = vmatpush1.bf16.msra.mxu0 %v670
      %1088 = vmatprep.subr.bf16.mxu0 0
      %1089 = vmatpush1.bf16.msra.mxu0 %v671
      %1090 = vmatprep.subr.bf16.mxu0 0
      %1091 = vmatpush1.bf16.msra.mxu0 %v672
      %1092 = vmatprep.subr.bf16.mxu0 0
      %1093 = vmatpush1.bf16.msra.mxu0 %v673
      %1094 = vmatprep.subr.bf16.mxu0 0
      %1095 = vmatpush1.bf16.msra.mxu0 %v674
      %1096 = vmatprep.subr.bf16.mxu0 0
      %1097 = vmatpush1.bf16.msra.mxu0 %v675
      %1098 = vmatprep.mubr.bf16.mxu0 %v1018
      %1099 = vmatmul.mubr.bf16.gmra.mrb[0].mxu0 %v1017
      %v1100 = vpop.f32.mrb[0].mxu0
      %v1101 = vadd.f32 %v370, %v1100
      %v1102 = vpop.f32.mrb[0].mxu0
      %v1103 = vpop.f32.mrb[0].mxu0
      %v1104 = vpop.f32.mrb[0].mxu0
      %1105 = vdwg.mxu0
      %1106 = vmatprep.subr.bf16.mxu0 0
      %1107 = vmatpush1.bf16.msra.mxu0 %v676
      %1108 = vmatprep.subr.bf16.mxu0 0
      %1109 = vmatpush1.bf16.msra.mxu0 %v677
      %1110 = vmatprep.subr.bf16.mxu0 0
      %1111 = vmatpush1.bf16.msra.mxu0 %v678
      %1112 = vmatprep.subr.bf16.mxu0 0
      %1113 = vmatpush1.bf16.msra.mxu0 %v679
      %1114 = vmatprep.subr.bf16.mxu0 0
      %1115 = vmatpush1.bf16.msra.mxu0 %v680
      %1116 = vmatprep.subr.bf16.mxu0 0
      %1117 = vmatpush1.bf16.msra.mxu0 %v681
      %1118 = vmatprep.subr.bf16.mxu0 0
      %1119 = vmatpush1.bf16.msra.mxu0 %v682
      %1120 = vmatprep.subr.bf16.mxu0 0
      %1121 = vmatpush1.bf16.msra.mxu0 %v683
      %1122 = vmatprep.subr.bf16.mxu0 0
      %1123 = vmatpush1.bf16.msra.mxu0 %v684
      %1124 = vmatprep.subr.bf16.mxu0 0
      %1125 = vmatpush1.bf16.msra.mxu0 %v685
      %1126 = vmatprep.subr.bf16.mxu0 0
      %1127 = vmatpush1.bf16.msra.mxu0 %v686
      %1128 = vmatprep.subr.bf16.mxu0 0
      %1129 = vmatpush1.bf16.msra.mxu0 %v687
      %1130 = vmatprep.subr.bf16.mxu0 0
      %1131 = vmatpush1.bf16.msra.mxu0 %v688
      %1132 = vmatprep.subr.bf16.mxu0 0
      %1133 = vmatpush1.bf16.msra.mxu0 %v689
      %1134 = vmatprep.subr.bf16.mxu0 0
      %1135 = vmatpush1.bf16.msra.mxu0 %v690
      %1136 = vmatprep.subr.bf16.mxu0 0
      %1137 = vmatpush1.bf16.msra.mxu0 %v691
      %1138 = vmatprep.mubr.bf16.mxu0 %v1020
      %1139 = vmatmul.mubr.bf16.gmra.mrb[0].mxu0 %v1038
      %v1140 = vpop.f32.mrb[0].mxu0
      %v1141 = vadd.f32 %v1101, %v1140
      %v1142 = vpop.f32.mrb[0].mxu0
      %v1143 = vpop.f32.mrb[0].mxu0
      %v1144 = vpop.f32.mrb[0].mxu0
      %1145 = vdwg.mxu0
      %1146 = vmatprep.subr.bf16.mxu0 0
      %1147 = vmatpush1.bf16.msra.mxu0 %v692
      %1148 = vmatprep.subr.bf16.mxu0 0
      %1149 = vmatpush1.bf16.msra.mxu0 %v693
      %1150 = vmatprep.subr.bf16.mxu0 0
      %1151 = vmatpush1.bf16.msra.mxu0 %v694
      %1152 = vmatprep.subr.bf16.mxu0 0
      %1153 = vmatpush1.bf16.msra.mxu0 %v695
      %1154 = vmatprep.subr.bf16.mxu0 0
      %1155 = vmatpush1.bf16.msra.mxu0 %v696
      %1156 = vmatprep.subr.bf16.mxu0 0
      %1157 = vmatpush1.bf16.msra.mxu0 %v697
      %1158 = vmatprep.subr.bf16.mxu0 0
      %1159 = vmatpush1.bf16.msra.mxu0 %v698
      %1160 = vmatprep.subr.bf16.mxu0 0
      %1161 = vmatpush1.bf16.msra.mxu0 %v699
      %1162 = vmatprep.subr.bf16.mxu0 0
      %1163 = vmatpush1.bf16.msra.mxu0 %v700
      %1164 = vmatprep.subr.bf16.mxu0 0
      %1165 = vmatpush1.bf16.msra.mxu0 %v701
      %1166 = vmatprep.subr.bf16.mxu0 0
      %1167 = vmatpush1.bf16.msra.mxu0 %v702
      %1168 = vmatprep.subr.bf16.mxu0 0
      %1169 = vmatpush1.bf16.msra.mxu0 %v703
      %1170 = vmatprep.subr.bf16.mxu0 0
      %1171 = vmatpush1.bf16.msra.mxu0 %v704
      %1172 = vmatprep.subr.bf16.mxu0 0
      %1173 = vmatpush1.bf16.msra.mxu0 %v705
      %1174 = vmatprep.subr.bf16.mxu0 0
      %1175 = vmatpush1.bf16.msra.mxu0 %v706
      %1176 = vmatprep.subr.bf16.mxu0 0
      %1177 = vmatpush1.bf16.msra.mxu0 %v707
      %1178 = vmatprep.mubr.bf16.mxu0 %v1051
      %1179 = vmatmul.mubr.bf16.gmra.mrb[0].mxu0 %v1021
      %v1180 = vpop.f32.mrb[0].mxu0
      %v1181 = vadd.f32 %v1141, %v1180
      %v1182 = vpop.f32.mrb[0].mxu0
      %v1183 = vpop.f32.mrb[0].mxu0
      %v1184 = vpop.f32.mrb[0].mxu0
      %1185 = vdwg.mxu0
      %1186 = vmatprep.subr.bf16.mxu0 0
      %1187 = vmatpush1.bf16.msra.mxu0 %v708
      %1188 = vmatprep.subr.bf16.mxu0 0
      %1189 = vmatpush1.bf16.msra.mxu0 %v709
      %1190 = vmatprep.subr.bf16.mxu0 0
      %1191 = vmatpush1.bf16.msra.mxu0 %v710
      %1192 = vmatprep.subr.bf16.mxu0 0
      %1193 = vmatpush1.bf16.msra.mxu0 %v711
      %1194 = vmatprep.subr.bf16.mxu0 0
      %1195 = vmatpush1.bf16.msra.mxu0 %v712
      %1196 = vmatprep.subr.bf16.mxu0 0
      %1197 = vmatpush1.bf16.msra.mxu0 %v713
      %1198 = vmatprep.subr.bf16.mxu0 0
      %1199 = vmatpush1.bf16.msra.mxu0 %v714
      %1200 = vmatprep.subr.bf16.mxu0 0
      %1201 = vmatpush1.bf16.msra.mxu0 %v715
      %1202 = vmatprep.subr.bf16.mxu0 0
      %1203 = vmatpush1.bf16.msra.mxu0 %v716
      %1204 = vmatprep.subr.bf16.mxu0 0
      %1205 = vmatpush1.bf16.msra.mxu0 %v717
      %1206 = vmatprep.subr.bf16.mxu0 0
      %1207 = vmatpush1.bf16.msra.mxu0 %v718
      %1208 = vmatprep.subr.bf16.mxu0 0
      %1209 = vmatpush1.bf16.msra.mxu0 %v719
      %1210 = vmatprep.subr.bf16.mxu0 0
      %1211 = vmatpush1.bf16.msra.mxu0 %v720
      %1212 = vmatprep.subr.bf16.mxu0 0
      %1213 = vmatpush1.bf16.msra.mxu0 %v721
      %1214 = vmatprep.subr.bf16.mxu0 0
      %1215 = vmatpush1.bf16.msra.mxu0 %v722
      %1216 = vmatprep.subr.bf16.mxu0 0
      %1217 = vmatpush1.bf16.msra.mxu0 %v723
      %1218 = vmatprep.mubr.bf16.mxu0 %v1025
      %1219 = vmatmul.mubr.bf16.gmra.mrb[0].mxu0 %v1024
      %v1220 = vpop.f32.mrb[0].mxu0
      %v1221 = vadd.f32 %v1181, %v1220
      %v1222 = vpop.f32.mrb[0].mxu0
      %v1223 = vpop.f32.mrb[0].mxu0
      %v1224 = vpop.f32.mrb[0].mxu0
      %1225 = vdwg.mxu0
      %1226 = vmatprep.subr.bf16.mxu0 0
      %1227 = vmatpush1.bf16.msra.mxu0 %v724
      %1228 = vmatprep.subr.bf16.mxu0 0
      %1229 = vmatpush1.bf16.msra.mxu0 %v725
      %1230 = vmatprep.subr.bf16.mxu0 0
      %1231 = vmatpush1.bf16.msra.mxu0 %v726
      %1232 = vmatprep.subr.bf16.mxu0 0
      %1233 = vmatpush1.bf16.msra.mxu0 %v727
      %1234 = vmatprep.subr.bf16.mxu0 0
      %1235 = vmatpush1.bf16.msra.mxu0 %v728
      %1236 = vmatprep.subr.bf16.mxu0 0
      %1237 = vmatpush1.bf16.msra.mxu0 %v729
      %1238 = vmatprep.subr.bf16.mxu0 0
      %1239 = vmatpush1.bf16.msra.mxu0 %v730
      %1240 = vmatprep.subr.bf16.mxu0 0
      %1241 = vmatpush1.bf16.msra.mxu0 %v731
      %1242 = vmatprep.subr.bf16.mxu0 0
      %1243 = vmatpush1.bf16.msra.mxu0 0
      %1244 = vmatprep.subr.bf16.mxu0 0
      %1245 = vmatpush1.bf16.msra.mxu0 0
      %1246 = vmatprep.subr.bf16.mxu0 0
      %1247 = vmatpush1.bf16.msra.mxu0 0
      %1248 = vmatprep.subr.bf16.mxu0 0
      %1249 = vmatpush1.bf16.msra.mxu0 0
      %1250 = vmatprep.subr.bf16.mxu0 0
      %1251 = vmatpush1.bf16.msra.mxu0 0
      %1252 = vmatprep.subr.bf16.mxu0 0
      %1253 = vmatpush1.bf16.msra.mxu0 0
      %1254 = vmatprep.subr.bf16.mxu0 0
      %1255 = vmatpush1.bf16.msra.mxu0 0
      %1256 = vmatprep.subr.bf16.mxu0 0
      %1257 = vmatpush1.bf16.msra.mxu0 0
      %1258 = vmatprep.mubr.bf16.mxu0 0
      %1259 = vmatmul.mubr.bf16.gmra.mrb[0].mxu0 %v1064
      %v1260 = vpop.f32.mrb[0].mxu0
      %v1261 = vadd.f32 %v1221, %v1260
      %v1262 = vpop.f32.mrb[0].mxu0
      %v1263 = vpop.f32.mrb[0].mxu0
      %v1264 = vpop.f32.mrb[0].mxu0
      %1265 = vdwg.mxu0
      %v1266 = vmin.f32 %v1261, 20.0
      %v1267 = vmul.f32 %v1266, 1.442695
      %v1268 = vpow.pop %v1267
      %v1269 = vadd.f32 %v1268, 2.0
      %v1270 = vmul.f32 %v1268, %v1269
      %v1271 = vadd.f32 %v1270, 2.0
      %v1272 = vrcp.pop %v1271
      %v1273 = vmul.f32 %v1270, %v1272
      %vm1274 = vcmp.gt.f32.partialorder %v1261, 20.0
      %v1275 = vmul.f32 %v1261, %v1273
      %v1276 = vsel %vm1274, %v1261, %v1275
      %v1277 = vpack.c.bf16 %v1276, %v1276
      %s1278 = scalar_lea.vmem %s170, 4
      %1279 = vst [vmem:[%s1278] sm:$0xf] %v1277
      %v1280 = vld [vmem:[%s1023] sm:$0xf]
      %v1281 = vld [vmem:[%s1023 + $0x4] sm:$0xf]
      %v1282 = vld [vmem:[%s1023 + $0x10] sm:$0x1]
      %v1283 = vld [vmem:[%s1023 + $0x8] sm:$0xf]
      %v1284 = vld [vmem:[%s1023 + $0xc] sm:$0xf]
      %v1285 = vld [vmem:[%s1023 + $0x18] sm:$0x1]
      %s1286 = scalar_lea.vmem %s165, 96
      %v1287 = vld [vmem:[%s1286] sm:$0xf]
      %v1288 = vld [vmem:[%s1286 + $0x4] sm:$0xf]
      %v1289 = vld [vmem:[%s1286 + $0x10] sm:$0x1]
      %v1292 = vunpack.c.l.b16 %v1280
      %v1293 = vunpack.c.l.b16 %v1282
      %v1294 = vpack.c.b16 %v1293, %v1292
      %v1296 = vshrl.u32 %v1294, 16
      %v1298 = vshll.u32 %v1294, 16
      %v1300 = vrot.slane %v1298, 1
      %v1301 = vor.u32 %v1296, %v1300
      %v1305 = vunpack.c.l.b16 %v1283
      %v1306 = vunpack.c.l.b16 %v1285
      %v1307 = vpack.c.b16 %v1306, %v1305
      %v1309 = vshrl.u32 %v1307, 16
      %v1311 = vshll.u32 %v1307, 16
      %v1313 = vrot.slane %v1311, 1
      %v1314 = vor.u32 %v1309, %v1313
      %v1318 = vunpack.c.l.b16 %v1287
      %v1319 = vunpack.c.l.b16 %v1289
      %v1320 = vpack.c.b16 %v1319, %v1318
      %v1322 = vshrl.u32 %v1320, 16
      %v1324 = vshll.u32 %v1320, 16
      %v1326 = vrot.slane %v1324, 1
      %v1327 = vor.u32 %v1322, %v1326
      %1329 = vmatprep.subr.bf16.mxu0 0
      %1330 = vmatpush1.bf16.msra.mxu0 %v660
      %1331 = vmatprep.subr.bf16.mxu0 0
      %1332 = vmatpush1.bf16.msra.mxu0 %v661
      %1333 = vmatprep.subr.bf16.mxu0 0
      %1334 = vmatpush1.bf16.msra.mxu0 %v662
      %1335 = vmatprep.subr.bf16.mxu0 0
      %1336 = vmatpush1.bf16.msra.mxu0 %v663
      %1337 = vmatprep.subr.bf16.mxu0 0
      %1338 = vmatpush1.bf16.msra.mxu0 %v664
      %1339 = vmatprep.subr.bf16.mxu0 0
      %1340 = vmatpush1.bf16.msra.mxu0 %v665
      %1341 = vmatprep.subr.bf16.mxu0 0
      %1342 = vmatpush1.bf16.msra.mxu0 %v666
      %1343 = vmatprep.subr.bf16.mxu0 0
      %1344 = vmatpush1.bf16.msra.mxu0 %v667
      %1345 = vmatprep.subr.bf16.mxu0 0
      %1346 = vmatpush1.bf16.msra.mxu0 %v668
      %1347 = vmatprep.subr.bf16.mxu0 0
      %1348 = vmatpush1.bf16.msra.mxu0 %v669
      %1349 = vmatprep.subr.bf16.mxu0 0
      %1350 = vmatpush1.bf16.msra.mxu0 %v670
      %1351 = vmatprep.subr.bf16.mxu0 0
      %1352 = vmatpush1.bf16.msra.mxu0 %v671
      %1353 = vmatprep.subr.bf16.mxu0 0
      %1354 = vmatpush1.bf16.msra.mxu0 %v672
      %1355 = vmatprep.subr.bf16.mxu0 0
      %1356 = vmatpush1.bf16.msra.mxu0 %v673
      %1357 = vmatprep.subr.bf16.mxu0 0
      %1358 = vmatpush1.bf16.msra.mxu0 %v674
      %1359 = vmatprep.subr.bf16.mxu0 0
      %1360 = vmatpush1.bf16.msra.mxu0 %v675
      %1361 = vmatprep.mubr.bf16.mxu0 %v1281
      %1362 = vmatmul.mubr.bf16.gmra.mrb[0].mxu0 %v1280
      %v1363 = vpop.f32.mrb[0].mxu0
      %v1364 = vadd.f32 %v370, %v1363
      %v1365 = vpop.f32.mrb[0].mxu0
      %v1366 = vpop.f32.mrb[0].mxu0
      %v1367 = vpop.f32.mrb[0].mxu0
      %1368 = vdwg.mxu0
      %1369 = vmatprep.subr.bf16.mxu0 0
      %1370 = vmatpush1.bf16.msra.mxu0 %v676
      %1371 = vmatprep.subr.bf16.mxu0 0
      %1372 = vmatpush1.bf16.msra.mxu0 %v677
      %1373 = vmatprep.subr.bf16.mxu0 0
      %1374 = vmatpush1.bf16.msra.mxu0 %v678
      %1375 = vmatprep.subr.bf16.mxu0 0
      %1376 = vmatpush1.bf16.msra.mxu0 %v679
      %1377 = vmatprep.subr.bf16.mxu0 0
      %1378 = vmatpush1.bf16.msra.mxu0 %v680
      %1379 = vmatprep.subr.bf16.mxu0 0
      %1380 = vmatpush1.bf16.msra.mxu0 %v681
      %1381 = vmatprep.subr.bf16.mxu0 0
      %1382 = vmatpush1.bf16.msra.mxu0 %v682
      %1383 = vmatprep.subr.bf16.mxu0 0
      %1384 = vmatpush1.bf16.msra.mxu0 %v683
      %1385 = vmatprep.subr.bf16.mxu0 0
      %1386 = vmatpush1.bf16.msra.mxu0 %v684
      %1387 = vmatprep.subr.bf16.mxu0 0
      %1388 = vmatpush1.bf16.msra.mxu0 %v685
      %1389 = vmatprep.subr.bf16.mxu0 0
      %1390 = vmatpush1.bf16.msra.mxu0 %v686
      %1391 = vmatprep.subr.bf16.mxu0 0
      %1392 = vmatpush1.bf16.msra.mxu0 %v687
      %1393 = vmatprep.subr.bf16.mxu0 0
      %1394 = vmatpush1.bf16.msra.mxu0 %v688
      %1395 = vmatprep.subr.bf16.mxu0 0
      %1396 = vmatpush1.bf16.msra.mxu0 %v689
      %1397 = vmatprep.subr.bf16.mxu0 0
      %1398 = vmatpush1.bf16.msra.mxu0 %v690
      %1399 = vmatprep.subr.bf16.mxu0 0
      %1400 = vmatpush1.bf16.msra.mxu0 %v691
      %1401 = vmatprep.mubr.bf16.mxu0 %v1283
      %1402 = vmatmul.mubr.bf16.gmra.mrb[0].mxu0 %v1301
      %v1403 = vpop.f32.mrb[0].mxu0
      %v1404 = vadd.f32 %v1364, %v1403
      %v1405 = vpop.f32.mrb[0].mxu0
      %v1406 = vpop.f32.mrb[0].mxu0
      %v1407 = vpop.f32.mrb[0].mxu0
      %1408 = vdwg.mxu0
      %1409 = vmatprep.subr.bf16.mxu0 0
      %1410 = vmatpush1.bf16.msra.mxu0 %v692
      %1411 = vmatprep.subr.bf16.mxu0 0
      %1412 = vmatpush1.bf16.msra.mxu0 %v693
      %1413 = vmatprep.subr.bf16.mxu0 0
      %1414 = vmatpush1.bf16.msra.mxu0 %v694
      %1415 = vmatprep.subr.bf16.mxu0 0
      %1416 = vmatpush1.bf16.msra.mxu0 %v695
      %1417 = vmatprep.subr.bf16.mxu0 0
      %1418 = vmatpush1.bf16.msra.mxu0 %v696
      %1419 = vmatprep.subr.bf16.mxu0 0
      %1420 = vmatpush1.bf16.msra.mxu0 %v697
      %1421 = vmatprep.subr.bf16.mxu0 0
      %1422 = vmatpush1.bf16.msra.mxu0 %v698
      %1423 = vmatprep.subr.bf16.mxu0 0
      %1424 = vmatpush1.bf16.msra.mxu0 %v699
      %1425 = vmatprep.subr.bf16.mxu0 0
      %1426 = vmatpush1.bf16.msra.mxu0 %v700
      %1427 = vmatprep.subr.bf16.mxu0 0
      %1428 = vmatpush1.bf16.msra.mxu0 %v701
      %1429 = vmatprep.subr.bf16.mxu0 0
      %1430 = vmatpush1.bf16.msra.mxu0 %v702
      %1431 = vmatprep.subr.bf16.mxu0 0
      %1432 = vmatpush1.bf16.msra.mxu0 %v703
      %1433 = vmatprep.subr.bf16.mxu0 0
      %1434 = vmatpush1.bf16.msra.mxu0 %v704
      %1435 = vmatprep.subr.bf16.mxu0 0
      %1436 = vmatpush1.bf16.msra.mxu0 %v705
      %1437 = vmatprep.subr.bf16.mxu0 0
      %1438 = vmatpush1.bf16.msra.mxu0 %v706
      %1439 = vmatprep.subr.bf16.mxu0 0
      %1440 = vmatpush1.bf16.msra.mxu0 %v707
      %1441 = vmatprep.mubr.bf16.mxu0 %v1314
      %1442 = vmatmul.mubr.bf16.gmra.mrb[0].mxu0 %v1284
      %v1443 = vpop.f32.mrb[0].mxu0
      %v1444 = vadd.f32 %v1404, %v1443
      %v1445 = vpop.f32.mrb[0].mxu0
      %v1446 = vpop.f32.mrb[0].mxu0
      %v1447 = vpop.f32.mrb[0].mxu0
      %1448 = vdwg.mxu0
      %1449 = vmatprep.subr.bf16.mxu0 0
      %1450 = vmatpush1.bf16.msra.mxu0 %v708
      %1451 = vmatprep.subr.bf16.mxu0 0
      %1452 = vmatpush1.bf16.msra.mxu0 %v709
      %1453 = vmatprep.subr.bf16.mxu0 0
      %1454 = vmatpush1.bf16.msra.mxu0 %v710
      %1455 = vmatprep.subr.bf16.mxu0 0
      %1456 = vmatpush1.bf16.msra.mxu0 %v711
      %1457 = vmatprep.subr.bf16.mxu0 0
      %1458 = vmatpush1.bf16.msra.mxu0 %v712
      %1459 = vmatprep.subr.bf16.mxu0 0
      %1460 = vmatpush1.bf16.msra.mxu0 %v713
      %1461 = vmatprep.subr.bf16.mxu0 0
      %1462 = vmatpush1.bf16.msra.mxu0 %v714
      %1463 = vmatprep.subr.bf16.mxu0 0
      %1464 = vmatpush1.bf16.msra.mxu0 %v715
      %1465 = vmatprep.subr.bf16.mxu0 0
      %1466 = vmatpush1.bf16.msra.mxu0 %v716
      %1467 = vmatprep.subr.bf16.mxu0 0
      %1468 = vmatpush1.bf16.msra.mxu0 %v717
      %1469 = vmatprep.subr.bf16.mxu0 0
      %1470 = vmatpush1.bf16.msra.mxu0 %v718
      %1471 = vmatprep.subr.bf16.mxu0 0
      %1472 = vmatpush1.bf16.msra.mxu0 %v719
      %1473 = vmatprep.subr.bf16.mxu0 0
      %1474 = vmatpush1.bf16.msra.mxu0 %v720
      %1475 = vmatprep.subr.bf16.mxu0 0
      %1476 = vmatpush1.bf16.msra.mxu0 %v721
      %1477 = vmatprep.subr.bf16.mxu0 0
      %1478 = vmatpush1.bf16.msra.mxu0 %v722
      %1479 = vmatprep.subr.bf16.mxu0 0
      %1480 = vmatpush1.bf16.msra.mxu0 %v723
      %1481 = vmatprep.mubr.bf16.mxu0 %v1288
      %1482 = vmatmul.mubr.bf16.gmra.mrb[0].mxu0 %v1287
      %v1483 = vpop.f32.mrb[0].mxu0
      %v1484 = vadd.f32 %v1444, %v1483
      %v1485 = vpop.f32.mrb[0].mxu0
      %v1486 = vpop.f32.mrb[0].mxu0
      %v1487 = vpop.f32.mrb[0].mxu0
      %1488 = vdwg.mxu0
      %1489 = vmatprep.subr.bf16.mxu0 0
      %1490 = vmatpush1.bf16.msra.mxu0 %v724
      %1491 = vmatprep.subr.bf16.mxu0 0
      %1492 = vmatpush1.bf16.msra.mxu0 %v725
      %1493 = vmatprep.subr.bf16.mxu0 0
      %1494 = vmatpush1.bf16.msra.mxu0 %v726
      %1495 = vmatprep.subr.bf16.mxu0 0
      %1496 = vmatpush1.bf16.msra.mxu0 %v727
      %1497 = vmatprep.subr.bf16.mxu0 0
      %1498 = vmatpush1.bf16.msra.mxu0 %v728
      %1499 = vmatprep.subr.bf16.mxu0 0
      %1500 = vmatpush1.bf16.msra.mxu0 %v729
      %1501 = vmatprep.subr.bf16.mxu0 0
      %1502 = vmatpush1.bf16.msra.mxu0 %v730
      %1503 = vmatprep.subr.bf16.mxu0 0
      %1504 = vmatpush1.bf16.msra.mxu0 %v731
      %1505 = vmatprep.subr.bf16.mxu0 0
      %1506 = vmatpush1.bf16.msra.mxu0 0
      %1507 = vmatprep.subr.bf16.mxu0 0
      %1508 = vmatpush1.bf16.msra.mxu0 0
      %1509 = vmatprep.subr.bf16.mxu0 0
      %1510 = vmatpush1.bf16.msra.mxu0 0
      %1511 = vmatprep.subr.bf16.mxu0 0
      %1512 = vmatpush1.bf16.msra.mxu0 0
      %1513 = vmatprep.subr.bf16.mxu0 0
      %1514 = vmatpush1.bf16.msra.mxu0 0
      %1515 = vmatprep.subr.bf16.mxu0 0
      %1516 = vmatpush1.bf16.msra.mxu0 0
      %1517 = vmatprep.subr.bf16.mxu0 0
      %1518 = vmatpush1.bf16.msra.mxu0 0
      %1519 = vmatprep.subr.bf16.mxu0 0
      %1520 = vmatpush1.bf16.msra.mxu0 0
      %1521 = vmatprep.mubr.bf16.mxu0 0
      %1522 = vmatmul.mubr.bf16.gmra.mrb[0].mxu0 %v1327
      %v1523 = vpop.f32.mrb[0].mxu0
      %v1524 = vadd.f32 %v1484, %v1523
      %v1525 = vpop.f32.mrb[0].mxu0
      %v1526 = vpop.f32.mrb[0].mxu0
      %v1527 = vpop.f32.mrb[0].mxu0
      %1528 = vdwg.mxu0
      %v1529 = vmin.f32 %v1524, 20.0
      %v1530 = vmul.f32 %v1529, 1.442695
      %v1531 = vpow.pop %v1530
      %v1532 = vadd.f32 %v1531, 2.0
      %v1533 = vmul.f32 %v1531, %v1532
      %v1534 = vadd.f32 %v1533, 2.0
      %v1535 = vrcp.pop %v1534
      %v1536 = vmul.f32 %v1533, %v1535
      %vm1537 = vcmp.gt.f32.partialorder %v1524, 20.0
      %v1538 = vmul.f32 %v1524, %v1536
      %v1539 = vsel %vm1537, %v1524, %v1538
      %v1540 = vpack.c.bf16 %v1539, %v1539
      %s1541 = scalar_lea.vmem %s170, 8
      %1542 = vst [vmem:[%s1541] sm:$0xf] %v1540
      %v1543 = vld [vmem:[%s1286] sm:$0xf]
      %v1544 = vld [vmem:[%s1286 + $0x4] sm:$0xf]
      %v1545 = vld [vmem:[%s1286 + $0x10] sm:$0x1]
      %v1546 = vld [vmem:[%s1286 + $0x8] sm:$0xf]
      %v1547 = vld [vmem:[%s1286 + $0xc] sm:$0xf]
      %v1548 = vld [vmem:[%s1286 + $0x18] sm:$0x1]
      %s1549 = scalar_lea.vmem %s165, 128
      %v1550 = vld [vmem:[%s1549] sm:$0xf]
      %v1551 = vld [vmem:[%s1549 + $0x4] sm:$0xf]
      %v1552 = vld [vmem:[%s1549 + $0x10] sm:$0x1]
      %v1555 = vunpack.c.l.b16 %v1543
      %v1556 = vunpack.c.l.b16 %v1545
      %v1557 = vpack.c.b16 %v1556, %v1555
      %v1559 = vshrl.u32 %v1557, 16
      %v1561 = vshll.u32 %v1557, 16
      %v1563 = vrot.slane %v1561, 1
      %v1564 = vor.u32 %v1559, %v1563
      %v1568 = vunpack.c.l.b16 %v1546
      %v1569 = vunpack.c.l.b16 %v1548
      %v1570 = vpack.c.b16 %v1569, %v1568
      %v1572 = vshrl.u32 %v1570, 16
      %v1574 = vshll.u32 %v1570, 16
      %v1576 = vrot.slane %v1574, 1
      %v1577 = vor.u32 %v1572, %v1576
      %v1581 = vunpack.c.l.b16 %v1550
      %v1582 = vunpack.c.l.b16 %v1552
      %v1583 = vpack.c.b16 %v1582, %v1581
      %v1585 = vshrl.u32 %v1583, 16
      %v1587 = vshll.u32 %v1583, 16
      %v1589 = vrot.slane %v1587, 1
      %v1590 = vor.u32 %v1585, %v1589
      %1592 = vmatprep.subr.bf16.mxu0 0
      %1593 = vmatpush1.bf16.msra.mxu0 %v660
      %1594 = vmatprep.subr.bf16.mxu0 0
      %1595 = vmatpush1.bf16.msra.mxu0 %v661
      %1596 = vmatprep.subr.bf16.mxu0 0
      %1597 = vmatpush1.bf16.msra.mxu0 %v662
      %1598 = vmatprep.subr.bf16.mxu0 0
      %1599 = vmatpush1.bf16.msra.mxu0 %v663
      %1600 = vmatprep.subr.bf16.mxu0 0
      %1601 = vmatpush1.bf16.msra.mxu0 %v664
      %1602 = vmatprep.subr.bf16.mxu0 0
      %1603 = vmatpush1.bf16.msra.mxu0 %v665
      %1604 = vmatprep.subr.bf16.mxu0 0
      %1605 = vmatpush1.bf16.msra.mxu0 %v666
      %1606 = vmatprep.subr.bf16.mxu0 0
      %1607 = vmatpush1.bf16.msra.mxu0 %v667
      %1608 = vmatprep.subr.bf16.mxu0 0
      %1609 = vmatpush1.bf16.msra.mxu0 %v668
      %1610 = vmatprep.subr.bf16.mxu0 0
      %1611 = vmatpush1.bf16.msra.mxu0 %v669
      %1612 = vmatprep.subr.bf16.mxu0 0
      %1613 = vmatpush1.bf16.msra.mxu0 %v670
      %1614 = vmatprep.subr.bf16.mxu0 0
      %1615 = vmatpush1.bf16.msra.mxu0 %v671
      %1616 = vmatprep.subr.bf16.mxu0 0
      %1617 = vmatpush1.bf16.msra.mxu0 %v672
      %1618 = vmatprep.subr.bf16.mxu0 0
      %1619 = vmatpush1.bf16.msra.mxu0 %v673
      %1620 = vmatprep.subr.bf16.mxu0 0
      %1621 = vmatpush1.bf16.msra.mxu0 %v674
      %1622 = vmatprep.subr.bf16.mxu0 0
      %1623 = vmatpush1.bf16.msra.mxu0 %v675
      %1624 = vmatprep.mubr.bf16.mxu0 %v1544
      %1625 = vmatmul.mubr.bf16.gmra.mrb[0].mxu0 %v1543
      %v1626 = vpop.f32.mrb[0].mxu0
      %v1627 = vadd.f32 %v370, %v1626
      %v1628 = vpop.f32.mrb[0].mxu0
      %v1629 = vpop.f32.mrb[0].mxu0
      %v1630 = vpop.f32.mrb[0].mxu0
      %1631 = vdwg.mxu0
      %1632 = vmatprep.subr.bf16.mxu0 0
      %1633 = vmatpush1.bf16.msra.mxu0 %v676
      %1634 = vmatprep.subr.bf16.mxu0 0
      %1635 = vmatpush1.bf16.msra.mxu0 %v677
      %1636 = vmatprep.subr.bf16.mxu0 0
      %1637 = vmatpush1.bf16.msra.mxu0 %v678
      %1638 = vmatprep.subr.bf16.mxu0 0
      %1639 = vmatpush1.bf16.msra.mxu0 %v679
      %1640 = vmatprep.subr.bf16.mxu0 0
      %1641 = vmatpush1.bf16.msra.mxu0 %v680
      %1642 = vmatprep.subr.bf16.mxu0 0
      %1643 = vmatpush1.bf16.msra.mxu0 %v681
      %1644 = vmatprep.subr.bf16.mxu0 0
      %1645 = vmatpush1.bf16.msra.mxu0 %v682
      %1646 = vmatprep.subr.bf16.mxu0 0
      %1647 = vmatpush1.bf16.msra.mxu0 %v683
      %1648 = vmatprep.subr.bf16.mxu0 0
      %1649 = vmatpush1.bf16.msra.mxu0 %v684
      %1650 = vmatprep.subr.bf16.mxu0 0
      %1651 = vmatpush1.bf16.msra.mxu0 %v685
      %1652 = vmatprep.subr.bf16.mxu0 0
      %1653 = vmatpush1.bf16.msra.mxu0 %v686
      %1654 = vmatprep.subr.bf16.mxu0 0
      %1655 = vmatpush1.bf16.msra.mxu0 %v687
      %1656 = vmatprep.subr.bf16.mxu0 0
      %1657 = vmatpush1.bf16.msra.mxu0 %v688
      %1658 = vmatprep.subr.bf16.mxu0 0
      %1659 = vmatpush1.bf16.msra.mxu0 %v689
      %1660 = vmatprep.subr.bf16.mxu0 0
      %1661 = vmatpush1.bf16.msra.mxu0 %v690
      %1662 = vmatprep.subr.bf16.mxu0 0
      %1663 = vmatpush1.bf16.msra.mxu0 %v691
      %1664 = vmatprep.mubr.bf16.mxu0 %v1546
      %1665 = vmatmul.mubr.bf16.gmra.mrb[0].mxu0 %v1564
      %v1666 = vpop.f32.mrb[0].mxu0
      %v1667 = vadd.f32 %v1627, %v1666
      %v1668 = vpop.f32.mrb[0].mxu0
      %v1669 = vpop.f32.mrb[0].mxu0
      %v1670 = vpop.f32.mrb[0].mxu0
      %1671 = vdwg.mxu0
      %1672 = vmatprep.subr.bf16.mxu0 0
      %1673 = vmatpush1.bf16.msra.mxu0 %v692
      %1674 = vmatprep.subr.bf16.mxu0 0
      %1675 = vmatpush1.bf16.msra.mxu0 %v693
      %1676 = vmatprep.subr.bf16.mxu0 0
      %1677 = vmatpush1.bf16.msra.mxu0 %v694
      %1678 = vmatprep.subr.bf16.mxu0 0
      %1679 = vmatpush1.bf16.msra.mxu0 %v695
      %1680 = vmatprep.subr.bf16.mxu0 0
      %1681 = vmatpush1.bf16.msra.mxu0 %v696
      %1682 = vmatprep.subr.bf16.mxu0 0
      %1683 = vmatpush1.bf16.msra.mxu0 %v697
      %1684 = vmatprep.subr.bf16.mxu0 0
      %1685 = vmatpush1.bf16.msra.mxu0 %v698
      %1686 = vmatprep.subr.bf16.mxu0 0
      %1687 = vmatpush1.bf16.msra.mxu0 %v699
      %1688 = vmatprep.subr.bf16.mxu0 0
      %1689 = vmatpush1.bf16.msra.mxu0 %v700
      %1690 = vmatprep.subr.bf16.mxu0 0
      %1691 = vmatpush1.bf16.msra.mxu0 %v701
      %1692 = vmatprep.subr.bf16.mxu0 0
      %1693 = vmatpush1.bf16.msra.mxu0 %v702
      %1694 = vmatprep.subr.bf16.mxu0 0
      %1695 = vmatpush1.bf16.msra.mxu0 %v703
      %1696 = vmatprep.subr.bf16.mxu0 0
      %1697 = vmatpush1.bf16.msra.mxu0 %v704
      %1698 = vmatprep.subr.bf16.mxu0 0
      %1699 = vmatpush1.bf16.msra.mxu0 %v705
      %1700 = vmatprep.subr.bf16.mxu0 0
      %1701 = vmatpush1.bf16.msra.mxu0 %v706
      %1702 = vmatprep.subr.bf16.mxu0 0
      %1703 = vmatpush1.bf16.msra.mxu0 %v707
      %1704 = vmatprep.mubr.bf16.mxu0 %v1577
      %1705 = vmatmul.mubr.bf16.gmra.mrb[0].mxu0 %v1547
      %v1706 = vpop.f32.mrb[0].mxu0
      %v1707 = vadd.f32 %v1667, %v1706
      %v1708 = vpop.f32.mrb[0].mxu0
      %v1709 = vpop.f32.mrb[0].mxu0
      %v1710 = vpop.f32.mrb[0].mxu0
      %1711 = vdwg.mxu0
      %1712 = vmatprep.subr.bf16.mxu0 0
      %1713 = vmatpush1.bf16.msra.mxu0 %v708
      %1714 = vmatprep.subr.bf16.mxu0 0
      %1715 = vmatpush1.bf16.msra.mxu0 %v709
      %1716 = vmatprep.subr.bf16.mxu0 0
      %1717 = vmatpush1.bf16.msra.mxu0 %v710
      %1718 = vmatprep.subr.bf16.mxu0 0
      %1719 = vmatpush1.bf16.msra.mxu0 %v711
      %1720 = vmatprep.subr.bf16.mxu0 0
      %1721 = vmatpush1.bf16.msra.mxu0 %v712
      %1722 = vmatprep.subr.bf16.mxu0 0
      %1723 = vmatpush1.bf16.msra.mxu0 %v713
      %1724 = vmatprep.subr.bf16.mxu0 0
      %1725 = vmatpush1.bf16.msra.mxu0 %v714
      %1726 = vmatprep.subr.bf16.mxu0 0
      %1727 = vmatpush1.bf16.msra.mxu0 %v715
      %1728 = vmatprep.subr.bf16.mxu0 0
      %1729 = vmatpush1.bf16.msra.mxu0 %v716
      %1730 = vmatprep.subr.bf16.mxu0 0
      %1731 = vmatpush1.bf16.msra.mxu0 %v717
      %1732 = vmatprep.subr.bf16.mxu0 0
      %1733 = vmatpush1.bf16.msra.mxu0 %v718
      %1734 = vmatprep.subr.bf16.mxu0 0
      %1735 = vmatpush1.bf16.msra.mxu0 %v719
      %1736 = vmatprep.subr.bf16.mxu0 0
      %1737 = vmatpush1.bf16.msra.mxu0 %v720
      %1738 = vmatprep.subr.bf16.mxu0 0
      %1739 = vmatpush1.bf16.msra.mxu0 %v721
      %1740 = vmatprep.subr.bf16.mxu0 0
      %1741 = vmatpush1.bf16.msra.mxu0 %v722
      %1742 = vmatprep.subr.bf16.mxu0 0
      %1743 = vmatpush1.bf16.msra.mxu0 %v723
      %1744 = vmatprep.mubr.bf16.mxu0 %v1551
      %1745 = vmatmul.mubr.bf16.gmra.mrb[0].mxu0 %v1550
      %v1746 = vpop.f32.mrb[0].mxu0
      %v1747 = vadd.f32 %v1707, %v1746
      %v1748 = vpop.f32.mrb[0].mxu0
      %v1749 = vpop.f32.mrb[0].mxu0
      %v1750 = vpop.f32.mrb[0].mxu0
      %1751 = vdwg.mxu0
      %1752 = vmatprep.subr.bf16.mxu0 0
      %1753 = vmatpush1.bf16.msra.mxu0 %v724
      %1754 = vmatprep.subr.bf16.mxu0 0
      %1755 = vmatpush1.bf16.msra.mxu0 %v725
      %1756 = vmatprep.subr.bf16.mxu0 0
      %1757 = vmatpush1.bf16.msra.mxu0 %v726
      %1758 = vmatprep.subr.bf16.mxu0 0
      %1759 = vmatpush1.bf16.msra.mxu0 %v727
      %1760 = vmatprep.subr.bf16.mxu0 0
      %1761 = vmatpush1.bf16.msra.mxu0 %v728
      %1762 = vmatprep.subr.bf16.mxu0 0
      %1763 = vmatpush1.bf16.msra.mxu0 %v729
      %1764 = vmatprep.subr.bf16.mxu0 0
      %1765 = vmatpush1.bf16.msra.mxu0 %v730
      %1766 = vmatprep.subr.bf16.mxu0 0
      %1767 = vmatpush1.bf16.msra.mxu0 %v731
      %1768 = vmatprep.subr.bf16.mxu0 0
      %1769 = vmatpush1.bf16.msra.mxu0 0
      %1770 = vmatprep.subr.bf16.mxu0 0
      %1771 = vmatpush1.bf16.msra.mxu0 0
      %1772 = vmatprep.subr.bf16.mxu0 0
      %1773 = vmatpush1.bf16.msra.mxu0 0
      %1774 = vmatprep.subr.bf16.mxu0 0
      %1775 = vmatpush1.bf16.msra.mxu0 0
      %1776 = vmatprep.subr.bf16.mxu0 0
      %1777 = vmatpush1.bf16.msra.mxu0 0
      %1778 = vmatprep.subr.bf16.mxu0 0
      %1779 = vmatpush1.bf16.msra.mxu0 0
      %1780 = vmatprep.subr.bf16.mxu0 0
      %1781 = vmatpush1.bf16.msra.mxu0 0
      %1782 = vmatprep.subr.bf16.mxu0 0
      %1783 = vmatpush1.bf16.msra.mxu0 0
      %1784 = vmatprep.mubr.bf16.mxu0 0
      %1785 = vmatmul.mubr.bf16.gmra.mrb[0].mxu0 %v1590
      %v1786 = vpop.f32.mrb[0].mxu0
      %v1787 = vadd.f32 %v1747, %v1786
      %v1788 = vpop.f32.mrb[0].mxu0
      %v1789 = vpop.f32.mrb[0].mxu0
      %v1790 = vpop.f32.mrb[0].mxu0
      %1791 = vdwg.mxu0
      %v1792 = vmin.f32 %v1787, 20.0
      %v1793 = vmul.f32 %v1792, 1.442695
      %v1794 = vpow.pop %v1793
      %v1795 = vadd.f32 %v1794, 2.0
      %v1796 = vmul.f32 %v1794, %v1795
      %v1797 = vadd.f32 %v1796, 2.0
      %v1798 = vrcp.pop %v1797
      %v1799 = vmul.f32 %v1796, %v1798
      %vm1800 = vcmp.gt.f32.partialorder %v1787, 20.0
      %v1801 = vmul.f32 %v1787, %v1799
      %v1802 = vsel %vm1800, %v1787, %v1801
      %v1803 = vpack.c.bf16 %v1802, %v1802
      %s1804 = scalar_lea.vmem %s170, 12
      %1805 = vst [vmem:[%s1804] sm:$0xf] %v1803
      %v1806 = vld [vmem:[%s1549] sm:$0xf]
      %v1807 = vld [vmem:[%s1549 + $0x4] sm:$0xf]
      %v1808 = vld [vmem:[%s1549 + $0x10] sm:$0x1]
      %v1809 = vld [vmem:[%s1549 + $0x8] sm:$0xf]
      %v1810 = vld [vmem:[%s1549 + $0xc] sm:$0xf]
      %v1811 = vld [vmem:[%s1549 + $0x18] sm:$0x1]
      %s1812 = scalar_lea.vmem %s165, 160
      %v1813 = vld [vmem:[%s1812] sm:$0xf]
      %v1814 = vld [vmem:[%s1812 + $0x4] sm:$0xf]
      %v1815 = vld [vmem:[%s1812 + $0x10] sm:$0x1]
      %v1818 = vunpack.c.l.b16 %v1806
      %v1819 = vunpack.c.l.b16 %v1808
      %v1820 = vpack.c.b16 %v1819, %v1818
      %v1822 = vshrl.u32 %v1820, 16
      %v1824 = vshll.u32 %v1820, 16
      %v1826 = vrot.slane %v1824, 1
      %v1827 = vor.u32 %v1822, %v1826
      %v1831 = vunpack.c.l.b16 %v1809
      %v1832 = vunpack.c.l.b16 %v1811
      %v1833 = vpack.c.b16 %v1832, %v1831
      %v1835 = vshrl.u32 %v1833, 16
      %v1837 = vshll.u32 %v1833, 16
      %v1839 = vrot.slane %v1837, 1
      %v1840 = vor.u32 %v1835, %v1839
      %v1844 = vunpack.c.l.b16 %v1813
      %v1845 = vunpack.c.l.b16 %v1815
      %v1846 = vpack.c.b16 %v1845, %v1844
      %v1848 = vshrl.u32 %v1846, 16
      %v1850 = vshll.u32 %v1846, 16
      %v1852 = vrot.slane %v1850, 1
      %v1853 = vor.u32 %v1848, %v1852
      %1855 = vmatprep.subr.bf16.mxu0 0
      %1856 = vmatpush1.bf16.msra.mxu0 %v660
      %1857 = vmatprep.subr.bf16.mxu0 0
      %1858 = vmatpush1.bf16.msra.mxu0 %v661
      %1859 = vmatprep.subr.bf16.mxu0 0
      %1860 = vmatpush1.bf16.msra.mxu0 %v662
      %1861 = vmatprep.subr.bf16.mxu0 0
      %1862 = vmatpush1.bf16.msra.mxu0 %v663
      %1863 = vmatprep.subr.bf16.mxu0 0
      %1864 = vmatpush1.bf16.msra.mxu0 %v664
      %1865 = vmatprep.subr.bf16.mxu0 0
      %1866 = vmatpush1.bf16.msra.mxu0 %v665
      %1867 = vmatprep.subr.bf16.mxu0 0
      %1868 = vmatpush1.bf16.msra.mxu0 %v666
      %1869 = vmatprep.subr.bf16.mxu0 0
      %1870 = vmatpush1.bf16.msra.mxu0 %v667
      %1871 = vmatprep.subr.bf16.mxu0 0
      %1872 = vmatpush1.bf16.msra.mxu0 %v668
      %1873 = vmatprep.subr.bf16.mxu0 0
      %1874 = vmatpush1.bf16.msra.mxu0 %v669
      %1875 = vmatprep.subr.bf16.mxu0 0
      %1876 = vmatpush1.bf16.msra.mxu0 %v670
      %1877 = vmatprep.subr.bf16.mxu0 0
      %1878 = vmatpush1.bf16.msra.mxu0 %v671
      %1879 = vmatprep.subr.bf16.mxu0 0
      %1880 = vmatpush1.bf16.msra.mxu0 %v672
      %1881 = vmatprep.subr.bf16.mxu0 0
      %1882 = vmatpush1.bf16.msra.mxu0 %v673
      %1883 = vmatprep.subr.bf16.mxu0 0
      %1884 = vmatpush1.bf16.msra.mxu0 %v674
      %1885 = vmatprep.subr.bf16.mxu0 0
      %1886 = vmatpush1.bf16.msra.mxu0 %v675
      %1887 = vmatprep.mubr.bf16.mxu0 %v1807
      %1888 = vmatmul.mubr.bf16.gmra.mrb[0].mxu0 %v1806
      %v1889 = vpop.f32.mrb[0].mxu0
      %v1890 = vadd.f32 %v370, %v1889
      %v1891 = vpop.f32.mrb[0].mxu0
      %v1892 = vpop.f32.mrb[0].mxu0
      %v1893 = vpop.f32.mrb[0].mxu0
      %1894 = vdwg.mxu0
      %1895 = vmatprep.subr.bf16.mxu0 0
      %1896 = vmatpush1.bf16.msra.mxu0 %v676
      %1897 = vmatprep.subr.bf16.mxu0 0
      %1898 = vmatpush1.bf16.msra.mxu0 %v677
      %1899 = vmatprep.subr.bf16.mxu0 0
      %1900 = vmatpush1.bf16.msra.mxu0 %v678
      %1901 = vmatprep.subr.bf16.mxu0 0
      %1902 = vmatpush1.bf16.msra.mxu0 %v679
      %1903 = vmatprep.subr.bf16.mxu0 0
      %1904 = vmatpush1.bf16.msra.mxu0 %v680
      %1905 = vmatprep.subr.bf16.mxu0 0
      %1906 = vmatpush1.bf16.msra.mxu0 %v681
      %1907 = vmatprep.subr.bf16.mxu0 0
      %1908 = vmatpush1.bf16.msra.mxu0 %v682
      %1909 = vmatprep.subr.bf16.mxu0 0
      %1910 = vmatpush1.bf16.msra.mxu0 %v683
      %1911 = vmatprep.subr.bf16.mxu0 0
      %1912 = vmatpush1.bf16.msra.mxu0 %v684
      %1913 = vmatprep.subr.bf16.mxu0 0
      %1914 = vmatpush1.bf16.msra.mxu0 %v685
      %1915 = vmatprep.subr.bf16.mxu0 0
      %1916 = vmatpush1.bf16.msra.mxu0 %v686
      %1917 = vmatprep.subr.bf16.mxu0 0
      %1918 = vmatpush1.bf16.msra.mxu0 %v687
      %1919 = vmatprep.subr.bf16.mxu0 0
      %1920 = vmatpush1.bf16.msra.mxu0 %v688
      %1921 = vmatprep.subr.bf16.mxu0 0
      %1922 = vmatpush1.bf16.msra.mxu0 %v689
      %1923 = vmatprep.subr.bf16.mxu0 0
      %1924 = vmatpush1.bf16.msra.mxu0 %v690
      %1925 = vmatprep.subr.bf16.mxu0 0
      %1926 = vmatpush1.bf16.msra.mxu0 %v691
      %1927 = vmatprep.mubr.bf16.mxu0 %v1809
      %1928 = vmatmul.mubr.bf16.gmra.mrb[0].mxu0 %v1827
      %v1929 = vpop.f32.mrb[0].mxu0
      %v1930 = vadd.f32 %v1890, %v1929
      %v1931 = vpop.f32.mrb[0].mxu0
      %v1932 = vpop.f32.mrb[0].mxu0
      %v1933 = vpop.f32.mrb[0].mxu0
      %1934 = vdwg.mxu0
      %1935 = vmatprep.subr.bf16.mxu0 0
      %1936 = vmatpush1.bf16.msra.mxu0 %v692
      %1937 = vmatprep.subr.bf16.mxu0 0
      %1938 = vmatpush1.bf16.msra.mxu0 %v693
      %1939 = vmatprep.subr.bf16.mxu0 0
      %1940 = vmatpush1.bf16.msra.mxu0 %v694
      %1941 = vmatprep.subr.bf16.mxu0 0
      %1942 = vmatpush1.bf16.msra.mxu0 %v695
      %1943 = vmatprep.subr.bf16.mxu0 0
      %1944 = vmatpush1.bf16.msra.mxu0 %v696
      %1945 = vmatprep.subr.bf16.mxu0 0
      %1946 = vmatpush1.bf16.msra.mxu0 %v697
      %1947 = vmatprep.subr.bf16.mxu0 0
      %1948 = vmatpush1.bf16.msra.mxu0 %v698
      %1949 = vmatprep.subr.bf16.mxu0 0
      %1950 = vmatpush1.bf16.msra.mxu0 %v699
      %1951 = vmatprep.subr.bf16.mxu0 0
      %1952 = vmatpush1.bf16.msra.mxu0 %v700
      %1953 = vmatprep.subr.bf16.mxu0 0
      %1954 = vmatpush1.bf16.msra.mxu0 %v701
      %1955 = vmatprep.subr.bf16.mxu0 0
      %1956 = vmatpush1.bf16.msra.mxu0 %v702
      %1957 = vmatprep.subr.bf16.mxu0 0
      %1958 = vmatpush1.bf16.msra.mxu0 %v703
      %1959 = vmatprep.subr.bf16.mxu0 0
      %1960 = vmatpush1.bf16.msra.mxu0 %v704
      %1961 = vmatprep.subr.bf16.mxu0 0
      %1962 = vmatpush1.bf16.msra.mxu0 %v705
      %1963 = vmatprep.subr.bf16.mxu0 0
      %1964 = vmatpush1.bf16.msra.mxu0 %v706
      %1965 = vmatprep.subr.bf16.mxu0 0
      %1966 = vmatpush1.bf16.msra.mxu0 %v707
      %1967 = vmatprep.mubr.bf16.mxu0 %v1840
      %1968 = vmatmul.mubr.bf16.gmra.mrb[0].mxu0 %v1810
      %v1969 = vpop.f32.mrb[0].mxu0
      %v1970 = vadd.f32 %v1930, %v1969
      %v1971 = vpop.f32.mrb[0].mxu0
      %v1972 = vpop.f32.mrb[0].mxu0
      %v1973 = vpop.f32.mrb[0].mxu0
      %1974 = vdwg.mxu0
      %1975 = vmatprep.subr.bf16.mxu0 0
      %1976 = vmatpush1.bf16.msra.mxu0 %v708
      %1977 = vmatprep.subr.bf16.mxu0 0
      %1978 = vmatpush1.bf16.msra.mxu0 %v709
      %1979 = vmatprep.subr.bf16.mxu0 0
      %1980 = vmatpush1.bf16.msra.mxu0 %v710
      %1981 = vmatprep.subr.bf16.mxu0 0
      %1982 = vmatpush1.bf16.msra.mxu0 %v711
      %1983 = vmatprep.subr.bf16.mxu0 0
      %1984 = vmatpush1.bf16.msra.mxu0 %v712
      %1985 = vmatprep.subr.bf16.mxu0 0
      %1986 = vmatpush1.bf16.msra.mxu0 %v713
      %1987 = vmatprep.subr.bf16.mxu0 0
      %1988 = vmatpush1.bf16.msra.mxu0 %v714
      %1989 = vmatprep.subr.bf16.mxu0 0
      %1990 = vmatpush1.bf16.msra.mxu0 %v715
      %1991 = vmatprep.subr.bf16.mxu0 0
      %1992 = vmatpush1.bf16.msra.mxu0 %v716
      %1993 = vmatprep.subr.bf16.mxu0 0
      %1994 = vmatpush1.bf16.msra.mxu0 %v717
      %1995 = vmatprep.subr.bf16.mxu0 0
      %1996 = vmatpush1.bf16.msra.mxu0 %v718
      %1997 = vmatprep.subr.bf16.mxu0 0
      %1998 = vmatpush1.bf16.msra.mxu0 %v719
      %1999 = vmatprep.subr.bf16.mxu0 0
      %2000 = vmatpush1.bf16.msra.mxu0 %v720
      %2001 = vmatprep.subr.bf16.mxu0 0
      %2002 = vmatpush1.bf16.msra.mxu0 %v721
      %2003 = vmatprep.subr.bf16.mxu0 0
      %2004 = vmatpush1.bf16.msra.mxu0 %v722
      %2005 = vmatprep.subr.bf16.mxu0 0
      %2006 = vmatpush1.bf16.msra.mxu0 %v723
      %2007 = vmatprep.mubr.bf16.mxu0 %v1814
      %2008 = vmatmul.mubr.bf16.gmra.mrb[0].mxu0 %v1813
      %v2009 = vpop.f32.mrb[0].mxu0
      %v2010 = vadd.f32 %v1970, %v2009
      %v2011 = vpop.f32.mrb[0].mxu0
      %v2012 = vpop.f32.mrb[0].mxu0
      %v2013 = vpop.f32.mrb[0].mxu0
      %2014 = vdwg.mxu0
      %2015 = vmatprep.subr.bf16.mxu0 0
      %2016 = vmatpush1.bf16.msra.mxu0 %v724
      %2017 = vmatprep.subr.bf16.mxu0 0
      %2018 = vmatpush1.bf16.msra.mxu0 %v725
      %2019 = vmatprep.subr.bf16.mxu0 0
      %2020 = vmatpush1.bf16.msra.mxu0 %v726
      %2021 = vmatprep.subr.bf16.mxu0 0
      %2022 = vmatpush1.bf16.msra.mxu0 %v727
      %2023 = vmatprep.subr.bf16.mxu0 0
      %2024 = vmatpush1.bf16.msra.mxu0 %v728
      %2025 = vmatprep.subr.bf16.mxu0 0
      %2026 = vmatpush1.bf16.msra.mxu0 %v729
      %2027 = vmatprep.subr.bf16.mxu0 0
      %2028 = vmatpush1.bf16.msra.mxu0 %v730
      %2029 = vmatprep.subr.bf16.mxu0 0
      %2030 = vmatpush1.bf16.msra.mxu0 %v731
      %2031 = vmatprep.subr.bf16.mxu0 0
      %2032 = vmatpush1.bf16.msra.mxu0 0
      %2033 = vmatprep.subr.bf16.mxu0 0
      %2034 = vmatpush1.bf16.msra.mxu0 0
      %2035 = vmatprep.subr.bf16.mxu0 0
      %2036 = vmatpush1.bf16.msra.mxu0 0
      %2037 = vmatprep.subr.bf16.mxu0 0
      %2038 = vmatpush1.bf16.msra.mxu0 0
      %2039 = vmatprep.subr.bf16.mxu0 0
      %2040 = vmatpush1.bf16.msra.mxu0 0
      %2041 = vmatprep.subr.bf16.mxu0 0
      %2042 = vmatpush1.bf16.msra.mxu0 0
      %2043 = vmatprep.subr.bf16.mxu0 0
      %2044 = vmatpush1.bf16.msra.mxu0 0
      %2045 = vmatprep.subr.bf16.mxu0 0
      %2046 = vmatpush1.bf16.msra.mxu0 0
      %2047 = vmatprep.mubr.bf16.mxu0 0
      %2048 = vmatmul.mubr.bf16.gmra.mrb[0].mxu0 %v1853
      %v2049 = vpop.f32.mrb[0].mxu0
      %v2050 = vadd.f32 %v2010, %v2049
      %v2051 = vpop.f32.mrb[0].mxu0
      %v2052 = vpop.f32.mrb[0].mxu0
      %v2053 = vpop.f32.mrb[0].mxu0
      %2054 = vdwg.mxu0
      %v2055 = vmin.f32 %v2050, 20.0
      %v2056 = vmul.f32 %v2055, 1.442695
      %v2057 = vpow.pop %v2056
      %v2058 = vadd.f32 %v2057, 2.0
      %v2059 = vmul.f32 %v2057, %v2058
      %v2060 = vadd.f32 %v2059, 2.0
      %v2061 = vrcp.pop %v2060
      %v2062 = vmul.f32 %v2059, %v2061
      %vm2063 = vcmp.gt.f32.partialorder %v2050, 20.0
      %v2064 = vmul.f32 %v2050, %v2062
      %v2065 = vsel %vm2063, %v2050, %v2064
      %v2066 = vpack.c.bf16 %v2065, %v2065
      %s2067 = scalar_lea.vmem %s170, 16
      %2068 = vst [vmem:[%s2067] sm:$0xf] %v2066
      %v2069 = vld [vmem:[%s1812] sm:$0xf]
      %v2070 = vld [vmem:[%s1812 + $0x4] sm:$0xf]
      %v2071 = vld [vmem:[%s1812 + $0x10] sm:$0x1]
      %v2072 = vld [vmem:[%s1812 + $0x8] sm:$0xf]
      %v2073 = vld [vmem:[%s1812 + $0xc] sm:$0xf]
      %v2074 = vld [vmem:[%s1812 + $0x18] sm:$0x1]
      %s2075 = scalar_lea.vmem %s165, 192
      %v2076 = vld [vmem:[%s2075] sm:$0xf]
      %v2077 = vld [vmem:[%s2075 + $0x4] sm:$0xf]
      %v2078 = vld [vmem:[%s2075 + $0x10] sm:$0x1]
      %v2081 = vunpack.c.l.b16 %v2069
      %v2082 = vunpack.c.l.b16 %v2071
      %v2083 = vpack.c.b16 %v2082, %v2081
      %v2085 = vshrl.u32 %v2083, 16
      %v2087 = vshll.u32 %v2083, 16
      %v2089 = vrot.slane %v2087, 1
      %v2090 = vor.u32 %v2085, %v2089
      %v2094 = vunpack.c.l.b16 %v2072
      %v2095 = vunpack.c.l.b16 %v2074
      %v2096 = vpack.c.b16 %v2095, %v2094
      %v2098 = vshrl.u32 %v2096, 16
      %v2100 = vshll.u32 %v2096, 16
      %v2102 = vrot.slane %v2100, 1
      %v2103 = vor.u32 %v2098, %v2102
      %v2107 = vunpack.c.l.b16 %v2076
      %v2108 = vunpack.c.l.b16 %v2078
      %v2109 = vpack.c.b16 %v2108, %v2107
      %v2111 = vshrl.u32 %v2109, 16
      %v2113 = vshll.u32 %v2109, 16
      %v2115 = vrot.slane %v2113, 1
      %v2116 = vor.u32 %v2111, %v2115
      %2118 = vmatprep.subr.bf16.mxu0 0
      %2119 = vmatpush1.bf16.msra.mxu0 %v660
      %2120 = vmatprep.subr.bf16.mxu0 0
      %2121 = vmatpush1.bf16.msra.mxu0 %v661
      %2122 = vmatprep.subr.bf16.mxu0 0
      %2123 = vmatpush1.bf16.msra.mxu0 %v662
      %2124 = vmatprep.subr.bf16.mxu0 0
      %2125 = vmatpush1.bf16.msra.mxu0 %v663
      %2126 = vmatprep.subr.bf16.mxu0 0
      %2127 = vmatpush1.bf16.msra.mxu0 %v664
      %2128 = vmatprep.subr.bf16.mxu0 0
      %2129 = vmatpush1.bf16.msra.mxu0 %v665
      %2130 = vmatprep.subr.bf16.mxu0 0
      %2131 = vmatpush1.bf16.msra.mxu0 %v666
      %2132 = vmatprep.subr.bf16.mxu0 0
      %2133 = vmatpush1.bf16.msra.mxu0 %v667
      %2134 = vmatprep.subr.bf16.mxu0 0
      %2135 = vmatpush1.bf16.msra.mxu0 %v668
      %2136 = vmatprep.subr.bf16.mxu0 0
      %2137 = vmatpush1.bf16.msra.mxu0 %v669
      %2138 = vmatprep.subr.bf16.mxu0 0
      %2139 = vmatpush1.bf16.msra.mxu0 %v670
      %2140 = vmatprep.subr.bf16.mxu0 0
      %2141 = vmatpush1.bf16.msra.mxu0 %v671
      %2142 = vmatprep.subr.bf16.mxu0 0
      %2143 = vmatpush1.bf16.msra.mxu0 %v672
      %2144 = vmatprep.subr.bf16.mxu0 0
      %2145 = vmatpush1.bf16.msra.mxu0 %v673
      %2146 = vmatprep.subr.bf16.mxu0 0
      %2147 = vmatpush1.bf16.msra.mxu0 %v674
      %2148 = vmatprep.subr.bf16.mxu0 0
      %2149 = vmatpush1.bf16.msra.mxu0 %v675
      %2150 = vmatprep.mubr.bf16.mxu0 %v2070
      %2151 = vmatmul.mubr.bf16.gmra.mrb[0].mxu0 %v2069
      %v2152 = vpop.f32.mrb[0].mxu0
      %v2153 = vadd.f32 %v370, %v2152
      %v2154 = vpop.f32.mrb[0].mxu0
      %v2155 = vpop.f32.mrb[0].mxu0
      %v2156 = vpop.f32.mrb[0].mxu0
      %2157 = vdwg.mxu0
      %2158 = vmatprep.subr.bf16.mxu0 0
      %2159 = vmatpush1.bf16.msra.mxu0 %v676
      %2160 = vmatprep.subr.bf16.mxu0 0
      %2161 = vmatpush1.bf16.msra.mxu0 %v677
      %2162 = vmatprep.subr.bf16.mxu0 0
      %2163 = vmatpush1.bf16.msra.mxu0 %v678
      %2164 = vmatprep.subr.bf16.mxu0 0
      %2165 = vmatpush1.bf16.msra.mxu0 %v679
      %2166 = vmatprep.subr.bf16.mxu0 0
      %2167 = vmatpush1.bf16.msra.mxu0 %v680
      %2168 = vmatprep.subr.bf16.mxu0 0
      %2169 = vmatpush1.bf16.msra.mxu0 %v681
      %2170 = vmatprep.subr.bf16.mxu0 0
      %2171 = vmatpush1.bf16.msra.mxu0 %v682
      %2172 = vmatprep.subr.bf16.mxu0 0
      %2173 = vmatpush1.bf16.msra.mxu0 %v683
      %2174 = vmatprep.subr.bf16.mxu0 0
      %2175 = vmatpush1.bf16.msra.mxu0 %v684
      %2176 = vmatprep.subr.bf16.mxu0 0
      %2177 = vmatpush1.bf16.msra.mxu0 %v685
      %2178 = vmatprep.subr.bf16.mxu0 0
      %2179 = vmatpush1.bf16.msra.mxu0 %v686
      %2180 = vmatprep.subr.bf16.mxu0 0
      %2181 = vmatpush1.bf16.msra.mxu0 %v687
      %2182 = vmatprep.subr.bf16.mxu0 0
      %2183 = vmatpush1.bf16.msra.mxu0 %v688
      %2184 = vmatprep.subr.bf16.mxu0 0
      %2185 = vmatpush1.bf16.msra.mxu0 %v689
      %2186 = vmatprep.subr.bf16.mxu0 0
      %2187 = vmatpush1.bf16.msra.mxu0 %v690
      %2188 = vmatprep.subr.bf16.mxu0 0
      %2189 = vmatpush1.bf16.msra.mxu0 %v691
      %2190 = vmatprep.mubr.bf16.mxu0 %v2072
      %2191 = vmatmul.mubr.bf16.gmra.mrb[0].mxu0 %v2090
      %v2192 = vpop.f32.mrb[0].mxu0
      %v2193 = vadd.f32 %v2153, %v2192
      %v2194 = vpop.f32.mrb[0].mxu0
      %v2195 = vpop.f32.mrb[0].mxu0
      %v2196 = vpop.f32.mrb[0].mxu0
      %2197 = vdwg.mxu0
      %2198 = vmatprep.subr.bf16.mxu0 0
      %2199 = vmatpush1.bf16.msra.mxu0 %v692
      %2200 = vmatprep.subr.bf16.mxu0 0
      %2201 = vmatpush1.bf16.msra.mxu0 %v693
      %2202 = vmatprep.subr.bf16.mxu0 0
      %2203 = vmatpush1.bf16.msra.mxu0 %v694
      %2204 = vmatprep.subr.bf16.mxu0 0
      %2205 = vmatpush1.bf16.msra.mxu0 %v695
      %2206 = vmatprep.subr.bf16.mxu0 0
      %2207 = vmatpush1.bf16.msra.mxu0 %v696
      %2208 = vmatprep.subr.bf16.mxu0 0
      %2209 = vmatpush1.bf16.msra.mxu0 %v697
      %2210 = vmatprep.subr.bf16.mxu0 0
      %2211 = vmatpush1.bf16.msra.mxu0 %v698
      %2212 = vmatprep.subr.bf16.mxu0 0
      %2213 = vmatpush1.bf16.msra.mxu0 %v699
      %2214 = vmatprep.subr.bf16.mxu0 0
      %2215 = vmatpush1.bf16.msra.mxu0 %v700
      %2216 = vmatprep.subr.bf16.mxu0 0
      %2217 = vmatpush1.bf16.msra.mxu0 %v701
      %2218 = vmatprep.subr.bf16.mxu0 0
      %2219 = vmatpush1.bf16.msra.mxu0 %v702
      %2220 = vmatprep.subr.bf16.mxu0 0
      %2221 = vmatpush1.bf16.msra.mxu0 %v703
      %2222 = vmatprep.subr.bf16.mxu0 0
      %2223 = vmatpush1.bf16.msra.mxu0 %v704
      %2224 = vmatprep.subr.bf16.mxu0 0
      %2225 = vmatpush1.bf16.msra.mxu0 %v705
      %2226 = vmatprep.subr.bf16.mxu0 0
      %2227 = vmatpush1.bf16.msra.mxu0 %v706
      %2228 = vmatprep.subr.bf16.mxu0 0
      %2229 = vmatpush1.bf16.msra.mxu0 %v707
      %2230 = vmatprep.mubr.bf16.mxu0 %v2103
      %2231 = vmatmul.mubr.bf16.gmra.mrb[0].mxu0 %v2073
      %v2232 = vpop.f32.mrb[0].mxu0
      %v2233 = vadd.f32 %v2193, %v2232
      %v2234 = vpop.f32.mrb[0].mxu0
      %v2235 = vpop.f32.mrb[0].mxu0
      %v2236 = vpop.f32.mrb[0].mxu0
      %2237 = vdwg.mxu0
      %2238 = vmatprep.subr.bf16.mxu0 0
      %2239 = vmatpush1.bf16.msra.mxu0 %v708
      %2240 = vmatprep.subr.bf16.mxu0 0
      %2241 = vmatpush1.bf16.msra.mxu0 %v709
      %2242 = vmatprep.subr.bf16.mxu0 0
      %2243 = vmatpush1.bf16.msra.mxu0 %v710
      %2244 = vmatprep.subr.bf16.mxu0 0
      %2245 = vmatpush1.bf16.msra.mxu0 %v711
      %2246 = vmatprep.subr.bf16.mxu0 0
      %2247 = vmatpush1.bf16.msra.mxu0 %v712
      %2248 = vmatprep.subr.bf16.mxu0 0
      %2249 = vmatpush1.bf16.msra.mxu0 %v713
      %2250 = vmatprep.subr.bf16.mxu0 0
      %2251 = vmatpush1.bf16.msra.mxu0 %v714
      %2252 = vmatprep.subr.bf16.mxu0 0
      %2253 = vmatpush1.bf16.msra.mxu0 %v715
      %2254 = vmatprep.subr.bf16.mxu0 0
      %2255 = vmatpush1.bf16.msra.mxu0 %v716
      %2256 = vmatprep.subr.bf16.mxu0 0
      %2257 = vmatpush1.bf16.msra.mxu0 %v717
      %2258 = vmatprep.subr.bf16.mxu0 0
      %2259 = vmatpush1.bf16.msra.mxu0 %v718
      %2260 = vmatprep.subr.bf16.mxu0 0
      %2261 = vmatpush1.bf16.msra.mxu0 %v719
      %2262 = vmatprep.subr.bf16.mxu0 0
      %2263 = vmatpush1.bf16.msra.mxu0 %v720
      %2264 = vmatprep.subr.bf16.mxu0 0
      %2265 = vmatpush1.bf16.msra.mxu0 %v721
      %2266 = vmatprep.subr.bf16.mxu0 0
      %2267 = vmatpush1.bf16.msra.mxu0 %v722
      %2268 = vmatprep.subr.bf16.mxu0 0
      %2269 = vmatpush1.bf16.msra.mxu0 %v723
      %2270 = vmatprep.mubr.bf16.mxu0 %v2077
      %2271 = vmatmul.mubr.bf16.gmra.mrb[0].mxu0 %v2076
      %v2272 = vpop.f32.mrb[0].mxu0
      %v2273 = vadd.f32 %v2233, %v2272
      %v2274 = vpop.f32.mrb[0].mxu0
      %v2275 = vpop.f32.mrb[0].mxu0
      %v2276 = vpop.f32.mrb[0].mxu0
      %2277 = vdwg.mxu0
      %2278 = vmatprep.subr.bf16.mxu0 0
      %2279 = vmatpush1.bf16.msra.mxu0 %v724
      %2280 = vmatprep.subr.bf16.mxu0 0
      %2281 = vmatpush1.bf16.msra.mxu0 %v725
      %2282 = vmatprep.subr.bf16.mxu0 0
      %2283 = vmatpush1.bf16.msra.mxu0 %v726
      %2284 = vmatprep.subr.bf16.mxu0 0
      %2285 = vmatpush1.bf16.msra.mxu0 %v727
      %2286 = vmatprep.subr.bf16.mxu0 0
      %2287 = vmatpush1.bf16.msra.mxu0 %v728
      %2288 = vmatprep.subr.bf16.mxu0 0
      %2289 = vmatpush1.bf16.msra.mxu0 %v729
      %2290 = vmatprep.subr.bf16.mxu0 0
      %2291 = vmatpush1.bf16.msra.mxu0 %v730
      %2292 = vmatprep.subr.bf16.mxu0 0
      %2293 = vmatpush1.bf16.msra.mxu0 %v731
      %2294 = vmatprep.subr.bf16.mxu0 0
      %2295 = vmatpush1.bf16.msra.mxu0 0
      %2296 = vmatprep.subr.bf16.mxu0 0
      %2297 = vmatpush1.bf16.msra.mxu0 0
      %2298 = vmatprep.subr.bf16.mxu0 0
      %2299 = vmatpush1.bf16.msra.mxu0 0
      %2300 = vmatprep.subr.bf16.mxu0 0
      %2301 = vmatpush1.bf16.msra.mxu0 0
      %2302 = vmatprep.subr.bf16.mxu0 0
      %2303 = vmatpush1.bf16.msra.mxu0 0
      %2304 = vmatprep.subr.bf16.mxu0 0
      %2305 = vmatpush1.bf16.msra.mxu0 0
      %2306 = vmatprep.subr.bf16.mxu0 0
      %2307 = vmatpush1.bf16.msra.mxu0 0
      %2308 = vmatprep.subr.bf16.mxu0 0
      %2309 = vmatpush1.bf16.msra.mxu0 0
      %2310 = vmatprep.mubr.bf16.mxu0 0
      %2311 = vmatmul.mubr.bf16.gmra.mrb[0].mxu0 %v2116
      %v2312 = vpop.f32.mrb[0].mxu0
      %v2313 = vadd.f32 %v2273, %v2312
      %v2314 = vpop.f32.mrb[0].mxu0
      %v2315 = vpop.f32.mrb[0].mxu0
      %v2316 = vpop.f32.mrb[0].mxu0
      %2317 = vdwg.mxu0
      %v2318 = vmin.f32 %v2313, 20.0
      %v2319 = vmul.f32 %v2318, 1.442695
      %v2320 = vpow.pop %v2319
      %v2321 = vadd.f32 %v2320, 2.0
      %v2322 = vmul.f32 %v2320, %v2321
      %v2323 = vadd.f32 %v2322, 2.0
      %v2324 = vrcp.pop %v2323
      %v2325 = vmul.f32 %v2322, %v2324
      %vm2326 = vcmp.gt.f32.partialorder %v2313, 20.0
      %v2327 = vmul.f32 %v2313, %v2325
      %v2328 = vsel %vm2326, %v2313, %v2327
      %v2329 = vpack.c.bf16 %v2328, %v2328
      %s2330 = scalar_lea.vmem %s170, 20
      %2331 = vst [vmem:[%s2330] sm:$0xf] %v2329
      %v2332 = vld [vmem:[%s2075] sm:$0xf]
      %v2333 = vld [vmem:[%s2075 + $0x4] sm:$0xf]
      %v2334 = vld [vmem:[%s2075 + $0x10] sm:$0x1]
      %v2335 = vld [vmem:[%s2075 + $0x8] sm:$0xf]
      %v2336 = vld [vmem:[%s2075 + $0xc] sm:$0xf]
      %v2337 = vld [vmem:[%s2075 + $0x18] sm:$0x1]
      %s2338 = scalar_lea.vmem %s165, 224
      %v2339 = vld [vmem:[%s2338] sm:$0xf]
      %v2340 = vld [vmem:[%s2338 + $0x4] sm:$0xf]
      %v2341 = vld [vmem:[%s2338 + $0x10] sm:$0x1]
      %v2344 = vunpack.c.l.b16 %v2332
      %v2345 = vunpack.c.l.b16 %v2334
      %v2346 = vpack.c.b16 %v2345, %v2344
      %v2348 = vshrl.u32 %v2346, 16
      %v2350 = vshll.u32 %v2346, 16
      %v2352 = vrot.slane %v2350, 1
      %v2353 = vor.u32 %v2348, %v2352
      %v2357 = vunpack.c.l.b16 %v2335
      %v2358 = vunpack.c.l.b16 %v2337
      %v2359 = vpack.c.b16 %v2358, %v2357
      %v2361 = vshrl.u32 %v2359, 16
      %v2363 = vshll.u32 %v2359, 16
      %v2365 = vrot.slane %v2363, 1
      %v2366 = vor.u32 %v2361, %v2365
      %v2370 = vunpack.c.l.b16 %v2339
      %v2371 = vunpack.c.l.b16 %v2341
      %v2372 = vpack.c.b16 %v2371, %v2370
      %v2374 = vshrl.u32 %v2372, 16
      %v2376 = vshll.u32 %v2372, 16
      %v2378 = vrot.slane %v2376, 1
      %v2379 = vor.u32 %v2374, %v2378
      %2381 = vmatprep.subr.bf16.mxu0 0
      %2382 = vmatpush1.bf16.msra.mxu0 %v660
      %2383 = vmatprep.subr.bf16.mxu0 0
      %2384 = vmatpush1.bf16.msra.mxu0 %v661
      %2385 = vmatprep.subr.bf16.mxu0 0
      %2386 = vmatpush1.bf16.msra.mxu0 %v662
      %2387 = vmatprep.subr.bf16.mxu0 0
      %2388 = vmatpush1.bf16.msra.mxu0 %v663
      %2389 = vmatprep.subr.bf16.mxu0 0
      %2390 = vmatpush1.bf16.msra.mxu0 %v664
      %2391 = vmatprep.subr.bf16.mxu0 0
      %2392 = vmatpush1.bf16.msra.mxu0 %v665
      %2393 = vmatprep.subr.bf16.mxu0 0
      %2394 = vmatpush1.bf16.msra.mxu0 %v666
      %2395 = vmatprep.subr.bf16.mxu0 0
      %2396 = vmatpush1.bf16.msra.mxu0 %v667
      %2397 = vmatprep.subr.bf16.mxu0 0
      %2398 = vmatpush1.bf16.msra.mxu0 %v668
      %2399 = vmatprep.subr.bf16.mxu0 0
      %2400 = vmatpush1.bf16.msra.mxu0 %v669
      %2401 = vmatprep.subr.bf16.mxu0 0
      %2402 = vmatpush1.bf16.msra.mxu0 %v670
      %2403 = vmatprep.subr.bf16.mxu0 0
      %2404 = vmatpush1.bf16.msra.mxu0 %v671
      %2405 = vmatprep.subr.bf16.mxu0 0
      %2406 = vmatpush1.bf16.msra.mxu0 %v672
      %2407 = vmatprep.subr.bf16.mxu0 0
      %2408 = vmatpush1.bf16.msra.mxu0 %v673
      %2409 = vmatprep.subr.bf16.mxu0 0
      %2410 = vmatpush1.bf16.msra.mxu0 %v674
      %2411 = vmatprep.subr.bf16.mxu0 0
      %2412 = vmatpush1.bf16.msra.mxu0 %v675
      %2413 = vmatprep.mubr.bf16.mxu0 %v2333
      %2414 = vmatmul.mubr.bf16.gmra.mrb[0].mxu0 %v2332
      %v2415 = vpop.f32.mrb[0].mxu0
      %v2416 = vadd.f32 %v370, %v2415
      %v2417 = vpop.f32.mrb[0].mxu0
      %v2418 = vpop.f32.mrb[0].mxu0
      %v2419 = vpop.f32.mrb[0].mxu0
      %2420 = vdwg.mxu0
      %2421 = vmatprep.subr.bf16.mxu0 0
      %2422 = vmatpush1.bf16.msra.mxu0 %v676
      %2423 = vmatprep.subr.bf16.mxu0 0
      %2424 = vmatpush1.bf16.msra.mxu0 %v677
      %2425 = vmatprep.subr.bf16.mxu0 0
      %2426 = vmatpush1.bf16.msra.mxu0 %v678
      %2427 = vmatprep.subr.bf16.mxu0 0
      %2428 = vmatpush1.bf16.msra.mxu0 %v679
      %2429 = vmatprep.subr.bf16.mxu0 0
      %2430 = vmatpush1.bf16.msra.mxu0 %v680
      %2431 = vmatprep.subr.bf16.mxu0 0
      %2432 = vmatpush1.bf16.msra.mxu0 %v681
      %2433 = vmatprep.subr.bf16.mxu0 0
      %2434 = vmatpush1.bf16.msra.mxu0 %v682
      %2435 = vmatprep.subr.bf16.mxu0 0
      %2436 = vmatpush1.bf16.msra.mxu0 %v683
      %2437 = vmatprep.subr.bf16.mxu0 0
      %2438 = vmatpush1.bf16.msra.mxu0 %v684
      %2439 = vmatprep.subr.bf16.mxu0 0
      %2440 = vmatpush1.bf16.msra.mxu0 %v685
      %2441 = vmatprep.subr.bf16.mxu0 0
      %2442 = vmatpush1.bf16.msra.mxu0 %v686
      %2443 = vmatprep.subr.bf16.mxu0 0
      %2444 = vmatpush1.bf16.msra.mxu0 %v687
      %2445 = vmatprep.subr.bf16.mxu0 0
      %2446 = vmatpush1.bf16.msra.mxu0 %v688
      %2447 = vmatprep.subr.bf16.mxu0 0
      %2448 = vmatpush1.bf16.msra.mxu0 %v689
      %2449 = vmatprep.subr.bf16.mxu0 0
      %2450 = vmatpush1.bf16.msra.mxu0 %v690
      %2451 = vmatprep.subr.bf16.mxu0 0
      %2452 = vmatpush1.bf16.msra.mxu0 %v691
      %2453 = vmatprep.mubr.bf16.mxu0 %v2335
      %2454 = vmatmul.mubr.bf16.gmra.mrb[0].mxu0 %v2353
      %v2455 = vpop.f32.mrb[0].mxu0
      %v2456 = vadd.f32 %v2416, %v2455
      %v2457 = vpop.f32.mrb[0].mxu0
      %v2458 = vpop.f32.mrb[0].mxu0
      %v2459 = vpop.f32.mrb[0].mxu0
      %2460 = vdwg.mxu0
      %2461 = vmatprep.subr.bf16.mxu0 0
      %2462 = vmatpush1.bf16.msra.mxu0 %v692
      %2463 = vmatprep.subr.bf16.mxu0 0
      %2464 = vmatpush1.bf16.msra.mxu0 %v693
      %2465 = vmatprep.subr.bf16.mxu0 0
      %2466 = vmatpush1.bf16.msra.mxu0 %v694
      %2467 = vmatprep.subr.bf16.mxu0 0
      %2468 = vmatpush1.bf16.msra.mxu0 %v695
      %2469 = vmatprep.subr.bf16.mxu0 0
      %2470 = vmatpush1.bf16.msra.mxu0 %v696
      %2471 = vmatprep.subr.bf16.mxu0 0
      %2472 = vmatpush1.bf16.msra.mxu0 %v697
      %2473 = vmatprep.subr.bf16.mxu0 0
      %2474 = vmatpush1.bf16.msra.mxu0 %v698
      %2475 = vmatprep.subr.bf16.mxu0 0
      %2476 = vmatpush1.bf16.msra.mxu0 %v699
      %2477 = vmatprep.subr.bf16.mxu0 0
      %2478 = vmatpush1.bf16.msra.mxu0 %v700
      %2479 = vmatprep.subr.bf16.mxu0 0
      %2480 = vmatpush1.bf16.msra.mxu0 %v701
      %2481 = vmatprep.subr.bf16.mxu0 0
      %2482 = vmatpush1.bf16.msra.mxu0 %v702
      %2483 = vmatprep.subr.bf16.mxu0 0
      %2484 = vmatpush1.bf16.msra.mxu0 %v703
      %2485 = vmatprep.subr.bf16.mxu0 0
      %2486 = vmatpush1.bf16.msra.mxu0 %v704
      %2487 = vmatprep.subr.bf16.mxu0 0
      %2488 = vmatpush1.bf16.msra.mxu0 %v705
      %2489 = vmatprep.subr.bf16.mxu0 0
      %2490 = vmatpush1.bf16.msra.mxu0 %v706
      %2491 = vmatprep.subr.bf16.mxu0 0
      %2492 = vmatpush1.bf16.msra.mxu0 %v707
      %2493 = vmatprep.mubr.bf16.mxu0 %v2366
      %2494 = vmatmul.mubr.bf16.gmra.mrb[0].mxu0 %v2336
      %v2495 = vpop.f32.mrb[0].mxu0
      %v2496 = vadd.f32 %v2456, %v2495
      %v2497 = vpop.f32.mrb[0].mxu0
      %v2498 = vpop.f32.mrb[0].mxu0
      %v2499 = vpop.f32.mrb[0].mxu0
      %2500 = vdwg.mxu0
      %2501 = vmatprep.subr.bf16.mxu0 0
      %2502 = vmatpush1.bf16.msra.mxu0 %v708
      %2503 = vmatprep.subr.bf16.mxu0 0
      %2504 = vmatpush1.bf16.msra.mxu0 %v709
      %2505 = vmatprep.subr.bf16.mxu0 0
      %2506 = vmatpush1.bf16.msra.mxu0 %v710
      %2507 = vmatprep.subr.bf16.mxu0 0
      %2508 = vmatpush1.bf16.msra.mxu0 %v711
      %2509 = vmatprep.subr.bf16.mxu0 0
      %2510 = vmatpush1.bf16.msra.mxu0 %v712
      %2511 = vmatprep.subr.bf16.mxu0 0
      %2512 = vmatpush1.bf16.msra.mxu0 %v713
      %2513 = vmatprep.subr.bf16.mxu0 0
      %2514 = vmatpush1.bf16.msra.mxu0 %v714
      %2515 = vmatprep.subr.bf16.mxu0 0
      %2516 = vmatpush1.bf16.msra.mxu0 %v715
      %2517 = vmatprep.subr.bf16.mxu0 0
      %2518 = vmatpush1.bf16.msra.mxu0 %v716
      %2519 = vmatprep.subr.bf16.mxu0 0
      %2520 = vmatpush1.bf16.msra.mxu0 %v717
      %2521 = vmatprep.subr.bf16.mxu0 0
      %2522 = vmatpush1.bf16.msra.mxu0 %v718
      %2523 = vmatprep.subr.bf16.mxu0 0
      %2524 = vmatpush1.bf16.msra.mxu0 %v719
      %2525 = vmatprep.subr.bf16.mxu0 0
      %2526 = vmatpush1.bf16.msra.mxu0 %v720
      %2527 = vmatprep.subr.bf16.mxu0 0
      %2528 = vmatpush1.bf16.msra.mxu0 %v721
      %2529 = vmatprep.subr.bf16.mxu0 0
      %2530 = vmatpush1.bf16.msra.mxu0 %v722
      %2531 = vmatprep.subr.bf16.mxu0 0
      %2532 = vmatpush1.bf16.msra.mxu0 %v723
      %2533 = vmatprep.mubr.bf16.mxu0 %v2340
      %2534 = vmatmul.mubr.bf16.gmra.mrb[0].mxu0 %v2339
      %v2535 = vpop.f32.mrb[0].mxu0
      %v2536 = vadd.f32 %v2496, %v2535
      %v2537 = vpop.f32.mrb[0].mxu0
      %v2538 = vpop.f32.mrb[0].mxu0
      %v2539 = vpop.f32.mrb[0].mxu0
      %2540 = vdwg.mxu0
      %2541 = vmatprep.subr.bf16.mxu0 0
      %2542 = vmatpush1.bf16.msra.mxu0 %v724
      %2543 = vmatprep.subr.bf16.mxu0 0
      %2544 = vmatpush1.bf16.msra.mxu0 %v725
      %2545 = vmatprep.subr.bf16.mxu0 0
      %2546 = vmatpush1.bf16.msra.mxu0 %v726
      %2547 = vmatprep.subr.bf16.mxu0 0
      %2548 = vmatpush1.bf16.msra.mxu0 %v727
      %2549 = vmatprep.subr.bf16.mxu0 0
      %2550 = vmatpush1.bf16.msra.mxu0 %v728
      %2551 = vmatprep.subr.bf16.mxu0 0
      %2552 = vmatpush1.bf16.msra.mxu0 %v729
      %2553 = vmatprep.subr.bf16.mxu0 0
      %2554 = vmatpush1.bf16.msra.mxu0 %v730
      %2555 = vmatprep.subr.bf16.mxu0 0
      %2556 = vmatpush1.bf16.msra.mxu0 %v731
      %2557 = vmatprep.subr.bf16.mxu0 0
      %2558 = vmatpush1.bf16.msra.mxu0 0
      %2559 = vmatprep.subr.bf16.mxu0 0
      %2560 = vmatpush1.bf16.msra.mxu0 0
      %2561 = vmatprep.subr.bf16.mxu0 0
      %2562 = vmatpush1.bf16.msra.mxu0 0
      %2563 = vmatprep.subr.bf16.mxu0 0
      %2564 = vmatpush1.bf16.msra.mxu0 0
      %2565 = vmatprep.subr.bf16.mxu0 0
      %2566 = vmatpush1.bf16.msra.mxu0 0
      %2567 = vmatprep.subr.bf16.mxu0 0
      %2568 = vmatpush1.bf16.msra.mxu0 0
      %2569 = vmatprep.subr.bf16.mxu0 0
      %2570 = vmatpush1.bf16.msra.mxu0 0
      %2571 = vmatprep.subr.bf16.mxu0 0
      %2572 = vmatpush1.bf16.msra.mxu0 0
      %2573 = vmatprep.mubr.bf16.mxu0 0
      %2574 = vmatmul.mubr.bf16.gmra.mrb[0].mxu0 %v2379
      %v2575 = vpop.f32.mrb[0].mxu0
      %v2576 = vadd.f32 %v2536, %v2575
      %v2577 = vpop.f32.mrb[0].mxu0
      %v2578 = vpop.f32.mrb[0].mxu0
      %v2579 = vpop.f32.mrb[0].mxu0
      %2580 = vdwg.mxu0
      %v2581 = vmin.f32 %v2576, 20.0
      %v2582 = vmul.f32 %v2581, 1.442695
      %v2583 = vpow.pop %v2582
      %v2584 = vadd.f32 %v2583, 2.0
      %v2585 = vmul.f32 %v2583, %v2584
      %v2586 = vadd.f32 %v2585, 2.0
      %v2587 = vrcp.pop %v2586
      %v2588 = vmul.f32 %v2585, %v2587
      %vm2589 = vcmp.gt.f32.partialorder %v2576, 20.0
      %v2590 = vmul.f32 %v2576, %v2588
      %v2591 = vsel %vm2589, %v2576, %v2590
      %v2592 = vpack.c.bf16 %v2591, %v2591
      %s2593 = scalar_lea.vmem %s170, 24
      %2594 = vst [vmem:[%s2593] sm:$0xf] %v2592
      %v2595 = vld [vmem:[%s2338] sm:$0xf]
      %v2596 = vld [vmem:[%s2338 + $0x4] sm:$0xf]
      %v2597 = vld [vmem:[%s2338 + $0x10] sm:$0x1]
      %v2598 = vld [vmem:[%s2338 + $0x8] sm:$0xf]
      %v2599 = vld [vmem:[%s2338 + $0xc] sm:$0xf]
      %v2600 = vld [vmem:[%s2338 + $0x18] sm:$0x1]
      %s2601 = scalar_lea.vmem %s165, 256
      %v2602 = vld [vmem:[%s2601] sm:$0xf]
      %v2603 = vld [vmem:[%s2601 + $0x4] sm:$0xf]
      %v2604 = vld [vmem:[%s2601 + $0x10] sm:$0x1]
      %v2607 = vunpack.c.l.b16 %v2595
      %v2608 = vunpack.c.l.b16 %v2597
      %v2609 = vpack.c.b16 %v2608, %v2607
      %v2611 = vshrl.u32 %v2609, 16
      %v2613 = vshll.u32 %v2609, 16
      %v2615 = vrot.slane %v2613, 1
      %v2616 = vor.u32 %v2611, %v2615
      %v2620 = vunpack.c.l.b16 %v2598
      %v2621 = vunpack.c.l.b16 %v2600
      %v2622 = vpack.c.b16 %v2621, %v2620
      %v2624 = vshrl.u32 %v2622, 16
      %v2626 = vshll.u32 %v2622, 16
      %v2628 = vrot.slane %v2626, 1
      %v2629 = vor.u32 %v2624, %v2628
      %v2633 = vunpack.c.l.b16 %v2602
      %v2634 = vunpack.c.l.b16 %v2604
      %v2635 = vpack.c.b16 %v2634, %v2633
      %v2637 = vshrl.u32 %v2635, 16
      %v2639 = vshll.u32 %v2635, 16
      %v2641 = vrot.slane %v2639, 1
      %v2642 = vor.u32 %v2637, %v2641
      %2644 = vmatprep.subr.bf16.mxu0 0
      %2645 = vmatpush1.bf16.msra.mxu0 %v660
      %2646 = vmatprep.subr.bf16.mxu0 0
      %2647 = vmatpush1.bf16.msra.mxu0 %v661
      %2648 = vmatprep.subr.bf16.mxu0 0
      %2649 = vmatpush1.bf16.msra.mxu0 %v662
      %2650 = vmatprep.subr.bf16.mxu0 0
      %2651 = vmatpush1.bf16.msra.mxu0 %v663
      %2652 = vmatprep.subr.bf16.mxu0 0
      %2653 = vmatpush1.bf16.msra.mxu0 %v664
      %2654 = vmatprep.subr.bf16.mxu0 0
      %2655 = vmatpush1.bf16.msra.mxu0 %v665
      %2656 = vmatprep.subr.bf16.mxu0 0
      %2657 = vmatpush1.bf16.msra.mxu0 %v666
      %2658 = vmatprep.subr.bf16.mxu0 0
      %2659 = vmatpush1.bf16.msra.mxu0 %v667
      %2660 = vmatprep.subr.bf16.mxu0 0
      %2661 = vmatpush1.bf16.msra.mxu0 %v668
      %2662 = vmatprep.subr.bf16.mxu0 0
      %2663 = vmatpush1.bf16.msra.mxu0 %v669
      %2664 = vmatprep.subr.bf16.mxu0 0
      %2665 = vmatpush1.bf16.msra.mxu0 %v670
      %2666 = vmatprep.subr.bf16.mxu0 0
      %2667 = vmatpush1.bf16.msra.mxu0 %v671
      %2668 = vmatprep.subr.bf16.mxu0 0
      %2669 = vmatpush1.bf16.msra.mxu0 %v672
      %2670 = vmatprep.subr.bf16.mxu0 0
      %2671 = vmatpush1.bf16.msra.mxu0 %v673
      %2672 = vmatprep.subr.bf16.mxu0 0
      %2673 = vmatpush1.bf16.msra.mxu0 %v674
      %2674 = vmatprep.subr.bf16.mxu0 0
      %2675 = vmatpush1.bf16.msra.mxu0 %v675
      %2676 = vmatprep.mubr.bf16.mxu0 %v2596
      %2677 = vmatmul.mubr.bf16.gmra.mrb[0].mxu0 %v2595
      %v2678 = vpop.f32.mrb[0].mxu0
      %v2679 = vadd.f32 %v370, %v2678
      %v2680 = vpop.f32.mrb[0].mxu0
      %v2681 = vpop.f32.mrb[0].mxu0
      %v2682 = vpop.f32.mrb[0].mxu0
      %2683 = vdwg.mxu0
      %2684 = vmatprep.subr.bf16.mxu0 0
      %2685 = vmatpush1.bf16.msra.mxu0 %v676
      %2686 = vmatprep.subr.bf16.mxu0 0
      %2687 = vmatpush1.bf16.msra.mxu0 %v677
      %2688 = vmatprep.subr.bf16.mxu0 0
      %2689 = vmatpush1.bf16.msra.mxu0 %v678
      %2690 = vmatprep.subr.bf16.mxu0 0
      %2691 = vmatpush1.bf16.msra.mxu0 %v679
      %2692 = vmatprep.subr.bf16.mxu0 0
      %2693 = vmatpush1.bf16.msra.mxu0 %v680
      %2694 = vmatprep.subr.bf16.mxu0 0
      %2695 = vmatpush1.bf16.msra.mxu0 %v681
      %2696 = vmatprep.subr.bf16.mxu0 0
      %2697 = vmatpush1.bf16.msra.mxu0 %v682
      %2698 = vmatprep.subr.bf16.mxu0 0
      %2699 = vmatpush1.bf16.msra.mxu0 %v683
      %2700 = vmatprep.subr.bf16.mxu0 0
      %2701 = vmatpush1.bf16.msra.mxu0 %v684
      %2702 = vmatprep.subr.bf16.mxu0 0
      %2703 = vmatpush1.bf16.msra.mxu0 %v685
      %2704 = vmatprep.subr.bf16.mxu0 0
      %2705 = vmatpush1.bf16.msra.mxu0 %v686
      %2706 = vmatprep.subr.bf16.mxu0 0
      %2707 = vmatpush1.bf16.msra.mxu0 %v687
      %2708 = vmatprep.subr.bf16.mxu0 0
      %2709 = vmatpush1.bf16.msra.mxu0 %v688
      %2710 = vmatprep.subr.bf16.mxu0 0
      %2711 = vmatpush1.bf16.msra.mxu0 %v689
      %2712 = vmatprep.subr.bf16.mxu0 0
      %2713 = vmatpush1.bf16.msra.mxu0 %v690
      %2714 = vmatprep.subr.bf16.mxu0 0
      %2715 = vmatpush1.bf16.msra.mxu0 %v691
      %2716 = vmatprep.mubr.bf16.mxu0 %v2598
      %2717 = vmatmul.mubr.bf16.gmra.mrb[0].mxu0 %v2616
      %v2718 = vpop.f32.mrb[0].mxu0
      %v2719 = vadd.f32 %v2679, %v2718
      %v2720 = vpop.f32.mrb[0].mxu0
      %v2721 = vpop.f32.mrb[0].mxu0
      %v2722 = vpop.f32.mrb[0].mxu0
      %2723 = vdwg.mxu0
      %2724 = vmatprep.subr.bf16.mxu0 0
      %2725 = vmatpush1.bf16.msra.mxu0 %v692
      %2726 = vmatprep.subr.bf16.mxu0 0
      %2727 = vmatpush1.bf16.msra.mxu0 %v693
      %2728 = vmatprep.subr.bf16.mxu0 0
      %2729 = vmatpush1.bf16.msra.mxu0 %v694
      %2730 = vmatprep.subr.bf16.mxu0 0
      %2731 = vmatpush1.bf16.msra.mxu0 %v695
      %2732 = vmatprep.subr.bf16.mxu0 0
      %2733 = vmatpush1.bf16.msra.mxu0 %v696
      %2734 = vmatprep.subr.bf16.mxu0 0
      %2735 = vmatpush1.bf16.msra.mxu0 %v697
      %2736 = vmatprep.subr.bf16.mxu0 0
      %2737 = vmatpush1.bf16.msra.mxu0 %v698
      %2738 = vmatprep.subr.bf16.mxu0 0
      %2739 = vmatpush1.bf16.msra.mxu0 %v699
      %2740 = vmatprep.subr.bf16.mxu0 0
      %2741 = vmatpush1.bf16.msra.mxu0 %v700
      %2742 = vmatprep.subr.bf16.mxu0 0
      %2743 = vmatpush1.bf16.msra.mxu0 %v701
      %2744 = vmatprep.subr.bf16.mxu0 0
      %2745 = vmatpush1.bf16.msra.mxu0 %v702
      %2746 = vmatprep.subr.bf16.mxu0 0
      %2747 = vmatpush1.bf16.msra.mxu0 %v703
      %2748 = vmatprep.subr.bf16.mxu0 0
      %2749 = vmatpush1.bf16.msra.mxu0 %v704
      %2750 = vmatprep.subr.bf16.mxu0 0
      %2751 = vmatpush1.bf16.msra.mxu0 %v705
      %2752 = vmatprep.subr.bf16.mxu0 0
      %2753 = vmatpush1.bf16.msra.mxu0 %v706
      %2754 = vmatprep.subr.bf16.mxu0 0
      %2755 = vmatpush1.bf16.msra.mxu0 %v707
      %2756 = vmatprep.mubr.bf16.mxu0 %v2629
      %2757 = vmatmul.mubr.bf16.gmra.mrb[0].mxu0 %v2599
      %v2758 = vpop.f32.mrb[0].mxu0
      %v2759 = vadd.f32 %v2719, %v2758
      %v2760 = vpop.f32.mrb[0].mxu0
      %v2761 = vpop.f32.mrb[0].mxu0
      %v2762 = vpop.f32.mrb[0].mxu0
      %2763 = vdwg.mxu0
      %2764 = vmatprep.subr.bf16.mxu0 0
      %2765 = vmatpush1.bf16.msra.mxu0 %v708
      %2766 = vmatprep.subr.bf16.mxu0 0
      %2767 = vmatpush1.bf16.msra.mxu0 %v709
      %2768 = vmatprep.subr.bf16.mxu0 0
      %2769 = vmatpush1.bf16.msra.mxu0 %v710
      %2770 = vmatprep.subr.bf16.mxu0 0
      %2771 = vmatpush1.bf16.msra.mxu0 %v711
      %2772 = vmatprep.subr.bf16.mxu0 0
      %2773 = vmatpush1.bf16.msra.mxu0 %v712
      %2774 = vmatprep.subr.bf16.mxu0 0
      %2775 = vmatpush1.bf16.msra.mxu0 %v713
      %2776 = vmatprep.subr.bf16.mxu0 0
      %2777 = vmatpush1.bf16.msra.mxu0 %v714
      %2778 = vmatprep.subr.bf16.mxu0 0
      %2779 = vmatpush1.bf16.msra.mxu0 %v715
      %2780 = vmatprep.subr.bf16.mxu0 0
      %2781 = vmatpush1.bf16.msra.mxu0 %v716
      %2782 = vmatprep.subr.bf16.mxu0 0
      %2783 = vmatpush1.bf16.msra.mxu0 %v717
      %2784 = vmatprep.subr.bf16.mxu0 0
      %2785 = vmatpush1.bf16.msra.mxu0 %v718
      %2786 = vmatprep.subr.bf16.mxu0 0
      %2787 = vmatpush1.bf16.msra.mxu0 %v719
      %2788 = vmatprep.subr.bf16.mxu0 0
      %2789 = vmatpush1.bf16.msra.mxu0 %v720
      %2790 = vmatprep.subr.bf16.mxu0 0
      %2791 = vmatpush1.bf16.msra.mxu0 %v721
      %2792 = vmatprep.subr.bf16.mxu0 0
      %2793 = vmatpush1.bf16.msra.mxu0 %v722
      %2794 = vmatprep.subr.bf16.mxu0 0
      %2795 = vmatpush1.bf16.msra.mxu0 %v723
      %2796 = vmatprep.mubr.bf16.mxu0 %v2603
      %2797 = vmatmul.mubr.bf16.gmra.mrb[0].mxu0 %v2602
      %v2798 = vpop.f32.mrb[0].mxu0
      %v2799 = vadd.f32 %v2759, %v2798
      %v2800 = vpop.f32.mrb[0].mxu0
      %v2801 = vpop.f32.mrb[0].mxu0
      %v2802 = vpop.f32.mrb[0].mxu0
      %2803 = vdwg.mxu0
      %2804 = vmatprep.subr.bf16.mxu0 0
      %2805 = vmatpush1.bf16.msra.mxu0 %v724
      %2806 = vmatprep.subr.bf16.mxu0 0
      %2807 = vmatpush1.bf16.msra.mxu0 %v725
      %2808 = vmatprep.subr.bf16.mxu0 0
      %2809 = vmatpush1.bf16.msra.mxu0 %v726
      %2810 = vmatprep.subr.bf16.mxu0 0
      %2811 = vmatpush1.bf16.msra.mxu0 %v727
      %2812 = vmatprep.subr.bf16.mxu0 0
      %2813 = vmatpush1.bf16.msra.mxu0 %v728
      %2814 = vmatprep.subr.bf16.mxu0 0
      %2815 = vmatpush1.bf16.msra.mxu0 %v729
      %2816 = vmatprep.subr.bf16.mxu0 0
      %2817 = vmatpush1.bf16.msra.mxu0 %v730
      %2818 = vmatprep.subr.bf16.mxu0 0
      %2819 = vmatpush1.bf16.msra.mxu0 %v731
      %2820 = vmatprep.subr.bf16.mxu0 0
      %2821 = vmatpush1.bf16.msra.mxu0 0
      %2822 = vmatprep.subr.bf16.mxu0 0
      %2823 = vmatpush1.bf16.msra.mxu0 0
      %2824 = vmatprep.subr.bf16.mxu0 0
      %2825 = vmatpush1.bf16.msra.mxu0 0
      %2826 = vmatprep.subr.bf16.mxu0 0
      %2827 = vmatpush1.bf16.msra.mxu0 0
      %2828 = vmatprep.subr.bf16.mxu0 0
      %2829 = vmatpush1.bf16.msra.mxu0 0
      %2830 = vmatprep.subr.bf16.mxu0 0
      %2831 = vmatpush1.bf16.msra.mxu0 0
      %2832 = vmatprep.subr.bf16.mxu0 0
      %2833 = vmatpush1.bf16.msra.mxu0 0
      %2834 = vmatprep.subr.bf16.mxu0 0
      %2835 = vmatpush1.bf16.msra.mxu0 0
      %2836 = vmatprep.mubr.bf16.mxu0 0
      %2837 = vmatmul.mubr.bf16.gmra.mrb[0].mxu0 %v2642
      %v2838 = vpop.f32.mrb[0].mxu0
      %v2839 = vadd.f32 %v2799, %v2838
      %v2840 = vpop.f32.mrb[0].mxu0
      %v2841 = vpop.f32.mrb[0].mxu0
      %v2842 = vpop.f32.mrb[0].mxu0
      %2843 = vdwg.mxu0
      %v2844 = vmin.f32 %v2839, 20.0
      %v2845 = vmul.f32 %v2844, 1.442695
      %v2846 = vpow.pop %v2845
      %v2847 = vadd.f32 %v2846, 2.0
      %v2848 = vmul.f32 %v2846, %v2847
      %v2849 = vadd.f32 %v2848, 2.0
      %v2850 = vrcp.pop %v2849
      %v2851 = vmul.f32 %v2848, %v2850
      %vm2852 = vcmp.gt.f32.partialorder %v2839, 20.0
      %v2853 = vmul.f32 %v2839, %v2851
      %v2854 = vsel %vm2852, %v2839, %v2853
      %v2855 = vpack.c.bf16 %v2854, %v2854
      %s2856 = scalar_lea.vmem %s170, 28
      %2857 = vst [vmem:[%s2856] sm:$0xf] %v2855
      %p2858 = scmp.lt.s32.totalorder %s14, 1
      %s2859 = scalar_select %p2858, %s14, 1
      %s2860 = smul.addr %s2859, 8
      %s2861 = smul.addr %s2860, 4
      %s2862 = scalar_lea.vmem %s3, %s2861
      // Predicated region
      $region33: #{resblock_body_forward.7} parent=31 // pred_check
        %p2863 = pneg %p100
      $region34: #{resblock_body_forward.7} parent=31 // pred_check_branch
        %2865 = sbr.rel (%p2863) target = $region36
      $region35: #{resblock_body_forward.7} parent=31 // pred_region
        _
      $region36: #{resblock_body_forward.7} parent=31 // pred_fallthru
        _
    $region32: #{resblock_body_forward.7} parent=5 // pred_fallthru
      _
    %p2866 = scmp.le.s32.totalorder 2, %s9
    // Predicated region
    $region37: #{resblock_body_forward.7} parent=5 // pred_check
      %p2867 = pneg %p2866
    $region38: #{resblock_body_forward.7} parent=5 // pred_check_branch
      %2869 = sbr.rel (%p2867) target = $region40
    $region39: #{resblock_body_forward.7} parent=5 // pred_region
      %s2870 = ssub.s32 %s9, 2
      // Predicated region
      $region41: #{resblock_body_forward.7} parent=39 // pred_check
        %p2871 = pneg %p106
      $region42: #{resblock_body_forward.7} parent=39 // pred_check_branch
        %2873 = sbr.rel (%p2871) target = $region44
      $region43: #{resblock_body_forward.7} parent=39 // pred_region
        %p2874 = scmp.lt.s32.totalorder %s15, 1
        %s2875 = scalar_select %p2874, %s15, 1
        %s2876 = smul.addr %s2875, 8
        %s2877 = smul.addr %s2876, 4
        %s2878 = scalar_lea.vmem %s3, %s2877
      $region44: #{resblock_body_forward.7} parent=39 // pred_fallthru
        _
    $region40: #{resblock_body_forward.7} parent=5 // pred_fallthru
      _
  $region6: #{resblock_body_forward.7} parent=0 // loop_footer
    %s13 = sadd.s32 1, %s9
  $region7: #{resblock_body_forward.7} parent=0 // loop_footer_branch
    %8 = sbr.rel target = $region3
  $region8: #{resblock_body_forward.7} parent=0 // loop_exit
    _

// kernel: resblock_body_forward.13
$region0: #{resblock_body_forward.13}
  #allocation0 [shape = 'u32[]', space=smem, size = 0x4, offset = 0x4, fixed_abs, tag = 'smem constant byte address 0x4 - core index']
  #allocation1 [shape = 'u32[144,128]{1,0:T(1,128)}', space=vmem, size = 0x12000, scoped, tag = 'internal scratch']
  %s0 = inlined_call_operand.vmem [shape: bf16[128,128], index: 0, kind: input, shape index: {}]
  %s1 = inlined_call_operand.vmem [shape: bf16[128,128], index: 1, kind: input, shape index: {}]
  %s2 = inlined_call_operand.vmem [shape: bf16[128,128], index: 2, kind: input, shape index: {}]
  %s3 = inlined_call_operand.vmem [shape: bf16[128,128], index: 3, kind: input, shape index: {}]
  %s4 = inlined_call_operand.vmem [shape: f32[1,128], index: 4, kind: input, shape index: {}]
  %s5 = inlined_call_operand.vmem [shape: f32[128,128], index: 5, kind: output, shape index: {}]
  %s6 = sld [smem:[#allocation0]]
  $region53: #{resblock_body_forward.13} parent=0
    _
  %s8 = ssub.s32 1, %s6
  %s9 = scalar_select 0, %s8, %s6
  loop: start=0, step=1, limit=4
  $region2: #{resblock_body_forward.13} parent=0 // loop_pre_header
    _
  $region3: #{resblock_body_forward.13} parent=0 // loop_header
    %s11 = sphi 0, %s15
    %p12 = scmp.ge.s32.totalorder %s11, 4
    %s21 = sphi 0, %s23
    %s24 = sphi 0, %s21
    %s25 = sphi 0, %s24
    %s41 = sphi 0, %s25
    %s47 = sphi 0, %s49
    %s50 = sphi 0, %s47
    %s51 = sphi 0, %s50
    %s67 = sphi 0, %s51
    %s71 = sphi 0, %s71
    %s73 = sphi 0, %s71
    %s74 = sphi 0, %s73
    %s88 = sphi 0, %s74
    %s92 = sphi 0, %s92
    %s94 = sphi 0, %s92
    %s95 = sphi 0, %s94
    %s109 = sphi 0, %s95
    %s113 = sphi 0, %s113
    %s115 = sphi 0, %s113
    %s116 = sphi 0, %s115
    %s130 = sphi 0, %s116
    %s136 = sphi 0, %s138
    %s139 = sphi 0, %s136
    %s140 = sphi 0, %s139
    %s156 = sphi 0, %s140
  $region4: #{resblock_body_forward.13} parent=0 // loop_header_branch
    %14 = sbr.rel (%p12) target = $region8
  $region5: #{resblock_body_forward.13} parent=0 // loop_body
    %s16 = ssub.s32 %s11, 1
    %s17 = ssub.s32 %s11, 2
    %s18 = sadd.s32 %s11, 1
    %s19 = ssub.s32 %s11, %s18
    %p20 = scmp.eq.s32.totalorder %s19, 0
    %s22 = sadd.s32 %s21, 1
    %s23 = scalar_select %p20, %s21, %s22
    %p26 = pneg %p20
    %p27 = scmp.eq.s32.totalorder %s11, 1
    %p28 = por %p26, %p27
    %p29 = scmp.ne.s32.totalorder %s21, %s24
    %p30 = scmp.eq.s32.totalorder %s11, 0
    %p31 = por %p29, %p30
    %p32 = scmp.ne.s32.totalorder %s21, %s24
    %p33 = scmp.eq.s32.totalorder %s16, 1
    %p34 = por %p32, %p33
    %p35 = scmp.ne.s32.totalorder %s24, %s25
    %p36 = scmp.eq.s32.totalorder %s16, 0
    %p37 = por %p35, %p36
    %p38 = scmp.ne.s32.totalorder %s24, %s25
    %p39 = scmp.eq.s32.totalorder %s17, 1
    %p40 = por %p38, %p39
    %p42 = scmp.ne.s32.totalorder %s25, %s41
    %p43 = scmp.eq.s32.totalorder %s17, 0
    %p44 = por %p42, %p43
    %s45 = ssub.s32 %s11, %s18
    %p46 = scmp.eq.s32.totalorder %s45, 0
    %s48 = sadd.s32 %s47, 1
    %s49 = scalar_select %p46, %s47, %s48
    %p52 = pneg %p46
    %p53 = scmp.eq.s32.totalorder %s11, 1
    %p54 = por %p52, %p53
    %p55 = scmp.ne.s32.totalorder %s47, %s50
    %p56 = scmp.eq.s32.totalorder %s11, 0
    %p57 = por %p55, %p56
    %p58 = scmp.ne.s32.totalorder %s47, %s50
    %p59 = scmp.eq.s32.totalorder %s16, 1
    %p60 = por %p58, %p59
    %p61 = scmp.ne.s32.totalorder %s50, %s51
    %p62 = scmp.eq.s32.totalorder %s16, 0
    %p63 = por %p61, %p62
    %p64 = scmp.ne.s32.totalorder %s50, %s51
    %p65 = scmp.eq.s32.totalorder %s17, 1
    %p66 = por %p64, %p65
    %p68 = scmp.ne.s32.totalorder %s51, %s67
    %p69 = scmp.eq.s32.totalorder %s17, 0
    %p70 = por %p68, %p69
    %s72 = sadd.s32 %s71, 1
    %p75 = scmp.eq.s32.totalorder %s11, 1
    %p76 = scmp.ne.s32.totalorder %s71, %s73
    %p77 = scmp.eq.s32.totalorder %s11, 0
    %p78 = por %p76, %p77
    %p79 = scmp.ne.s32.totalorder %s71, %s73
    %p80 = scmp.eq.s32.totalorder %s16, 1
    %p81 = por %p79, %p80
    %p82 = scmp.ne.s32.totalorder %s73, %s74
    %p83 = scmp.eq.s32.totalorder %s16, 0
    %p84 = por %p82, %p83
    %p85 = scmp.ne.s32.totalorder %s73, %s74
    %p86 = scmp.eq.s32.totalorder %s17, 1
    %p87 = por %p85, %p86
    %p89 = scmp.ne.s32.totalorder %s74, %s88
    %p90 = scmp.eq.s32.totalorder %s17, 0
    %p91 = por %p89, %p90
    %s93 = sadd.s32 %s92, 1
    %p96 = scmp.eq.s32.totalorder %s11, 1
    %p97 = scmp.ne.s32.totalorder %s92, %s94
    %p98 = scmp.eq.s32.totalorder %s11, 0
    %p99 = por %p97, %p98
    %p100 = scmp.ne.s32.totalorder %s92, %s94
    %p101 = scmp.eq.s32.totalorder %s16, 1
    %p102 = por %p100, %p101
    %p103 = scmp.ne.s32.totalorder %s94, %s95
    %p104 = scmp.eq.s32.totalorder %s16, 0
    %p105 = por %p103, %p104
    %p106 = scmp.ne.s32.totalorder %s94, %s95
    %p107 = scmp.eq.s32.totalorder %s17, 1
    %p108 = por %p106, %p107
    %p110 = scmp.ne.s32.totalorder %s95, %s109
    %p111 = scmp.eq.s32.totalorder %s17, 0
    %p112 = por %p110, %p111
    %s114 = sadd.s32 %s113, 1
    %p117 = scmp.eq.s32.totalorder %s11, 1
    %p118 = scmp.ne.s32.totalorder %s113, %s115
    %p119 = scmp.eq.s32.totalorder %s11, 0
    %p120 = por %p118, %p119
    %p121 = scmp.ne.s32.totalorder %s113, %s115
    %p122 = scmp.eq.s32.totalorder %s16, 1
    %p123 = por %p121, %p122
    %p124 = scmp.ne.s32.totalorder %s115, %s116
    %p125 = scmp.eq.s32.totalorder %s16, 0
    %p126 = por %p124, %p125
    %p127 = scmp.ne.s32.totalorder %s115, %s116
    %p128 = scmp.eq.s32.totalorder %s17, 1
    %p129 = por %p127, %p128
    %p131 = scmp.ne.s32.totalorder %s116, %s130
    %p132 = scmp.eq.s32.totalorder %s17, 0
    %p133 = por %p131, %p132
    %s134 = ssub.s32 %s11, %s18
    %p135 = scmp.eq.s32.totalorder %s134, 0
    %s137 = sadd.s32 %s136, 1
    %s138 = scalar_select %p135, %s136, %s137
    %p141 = pneg %p135
    %p142 = scmp.eq.s32.totalorder %s11, 1
    %p143 = por %p141, %p142
    %p144 = scmp.ne.s32.totalorder %s136, %s139
    %p145 = scmp.eq.s32.totalorder %s11, 0
    %p146 = por %p144, %p145
    %p147 = scmp.ne.s32.totalorder %s136, %s139
    %p148 = scmp.eq.s32.totalorder %s16, 1
    %p149 = por %p147, %p148
    %p150 = scmp.ne.s32.totalorder %s139, %s140
    %p151 = scmp.eq.s32.totalorder %s16, 0
    %p152 = por %p150, %p151
    %p153 = scmp.ne.s32.totalorder %s139, %s140
    %p154 = scmp.eq.s32.totalorder %s17, 1
    %p155 = por %p153, %p154
    %p157 = scmp.ne.s32.totalorder %s140, %s156
    %p158 = scmp.eq.s32.totalorder %s17, 0
    %p159 = por %p157, %p158
    %p160 = scmp.le.s32.totalorder 1, %s11
    %p161 = scmp.lt.s32.totalorder %s11, 3
    %p162 = pnand %p160, %p161
    %p163 = pneg %p162
    // Predicated region
    $region9: #{resblock_body_forward.13} parent=5 // pred_check
      _
    $region10: #{resblock_body_forward.13} parent=5 // pred_check_branch
      %165 = sbr.rel (%p162) target = $region12
    $region11: #{resblock_body_forward.13} parent=5 // pred_region
      %s166 = ssub.s32 %s11, 1
      // Predicated region
      $region13: #{resblock_body_forward.13} parent=11 // pred_check
        %p167 = pneg %p84
      $region14: #{resblock_body_forward.13} parent=11 // pred_check_branch
        %169 = sbr.rel (%p167) target = $region16
      $region15: #{resblock_body_forward.13} parent=11 // pred_region
        _
      $region16: #{resblock_body_forward.13} parent=11 // pred_fallthru
        _
      // Predicated region
      $region17: #{resblock_body_forward.13} parent=11 // pred_check
        %p170 = pneg %p105
      $region18: #{resblock_body_forward.13} parent=11 // pred_check_branch
        %172 = sbr.rel (%p170) target = $region20
      $region19: #{resblock_body_forward.13} parent=11 // pred_region
        _
      $region20: #{resblock_body_forward.13} parent=11 // pred_fallthru
        _
      // Predicated region
      $region21: #{resblock_body_forward.13} parent=11 // pred_check
        %p173 = pneg %p126
      $region22: #{resblock_body_forward.13} parent=11 // pred_check_branch
        %175 = sbr.rel (%p173) target = $region24
      $region23: #{resblock_body_forward.13} parent=11 // pred_region
        _
      $region24: #{resblock_body_forward.13} parent=11 // pred_fallthru
        _
    $region12: #{resblock_body_forward.13} parent=5 // pred_fallthru
      _
    %p176 = scmp.lt.s32.totalorder %s11, 2
    // Predicated region
    $region25: #{resblock_body_forward.13} parent=5 // pred_check
      %p177 = pneg %p176
    $region26: #{resblock_body_forward.13} parent=5 // pred_check_branch
      %179 = sbr.rel (%p177) target = $region28
    $region27: #{resblock_body_forward.13} parent=5 // pred_region
      // Predicated region
      $region29: #{resblock_body_forward.13} parent=27 // pred_check
        %p180 = pneg %p31
      $region30: #{resblock_body_forward.13} parent=27 // pred_check_branch
        %182 = sbr.rel (%p180) target = $region32
      $region31: #{resblock_body_forward.13} parent=27 // pred_region
        %s183 = smul.u32 8, %s11
        %p184 = scmp.lt.s32.totalorder %s183, 15
        %s185 = scalar_select %p184, %s183, 15
        %s186 = smul.addr %s185, 4
        %s187 = scalar_lea.vmem %s0, %s186
        %s188 = smul.u32 8, %s11
      $region32: #{resblock_body_forward.13} parent=27 // pred_fallthru
        _
      // Predicated region
      $region33: #{resblock_body_forward.13} parent=27 // pred_check
        %p189 = pneg %p57
      $region34: #{resblock_body_forward.13} parent=27 // pred_check_branch
        %191 = sbr.rel (%p189) target = $region36
      $region35: #{resblock_body_forward.13} parent=27 // pred_region
        %s192 = smul.u32 8, %s11
        %p193 = scmp.lt.s32.totalorder %s192, 15
        %s194 = scalar_select %p193, %s192, 15
        %s195 = smul.addr %s194, 4
        %s196 = scalar_lea.vmem %s1, %s195
        %s197 = smul.u32 8, %s11
      $region36: #{resblock_body_forward.13} parent=27 // pred_fallthru
        _
    $region28: #{resblock_body_forward.13} parent=5 // pred_fallthru
      _
    %p198 = scmp.le.s32.totalorder 1, %s11
    %p199 = scmp.lt.s32.totalorder %s11, 3
    %p200 = pnand %p198, %p199
    %p201 = pneg %p200
    // Predicated region
    $region37: #{resblock_body_forward.13} parent=5 // pred_check
      _
    $region38: #{resblock_body_forward.13} parent=5 // pred_check_branch
      %203 = sbr.rel (%p200) target = $region40
    $region39: #{resblock_body_forward.13} parent=5 // pred_region
      %s204 = ssub.s32 %s11, 1
      %s205 = smul.u32 8, %s16
      %p206 = scmp.lt.s32.totalorder %s205, 15
      %s207 = scalar_select %p206, %s205, 15
      %s208 = smul.addr %s207, 4
      %s209 = scalar_lea.vmem %s0, %s208
      %p210 = pneg %p37
      %p211 = pneg %p34
      %s212 = smul.u32 8, %s16
      %p213 = scmp.lt.s32.totalorder %s212, 15
      %s214 = scalar_select %p213, %s212, 15
      %s215 = smul.addr %s214, 4
      %s216 = scalar_lea.vmem %s1, %s215
      %p217 = pneg %p63
      %p218 = pneg %p60
      %p219 = pneg %p84
      %p220 = pneg %p81
      %p221 = pneg %p105
      %p222 = pneg %p102
      %p223 = pneg %p126
      %p224 = pneg %p123
      %p225 = pneg %p152
      %p226 = pneg %p149
      %s227 = smul.u32 8, %s16
      %p228 = scmp.lt.s32.totalorder %s227, 15
      %s229 = scalar_select %p228, %s227, 15
      %s230 = smul.addr %s229, 8
      %s231 = scalar_lea.vmem %s5, %s230
      %s232 = smul.u32 8, %s16
      %p233 = scmp.lt.s32.totalorder %s232, 15
      %s234 = scalar_select %p233, %s232, 15
      %s235 = smul.addr %s234, 4
      %s236 = scalar_lea.vmem %s0, %s235
      %s237 = smul.u32 8, %s16
      %s238 = smul.u32 8, %s16
      %p239 = scmp.lt.s32.totalorder %s238, 15
      %s240 = scalar_select %p239, %s238, 15
      %s241 = smul.addr %s240, 4
      %s242 = scalar_lea.vmem %s1, %s241
      %s243 = smul.u32 8, %s16
      %s244 = smul.u32 8, %s16
      %p245 = scmp.lt.s32.totalorder %s244, 15
      %s246 = scalar_select %p245, %s244, 15
      %s247 = smul.addr %s246, 8
      %s248 = scalar_lea.vmem %s5, %s247
      %s249 = smul.u32 8, %s16
      %v251 = vld [vmem:[%s236] sm:$0xf]
      %v252 = vld [vmem:[%s236 + $0x4] sm:$0xf]
      %v253 = vld [vmem:[%s236 + $0x8] sm:$0xf]
      %v254 = vld [vmem:[%s236 + $0xc] sm:$0xf]
      %v255 = vld [vmem:[%s236 + $0x10] sm:$0xf]
      %v256 = vld [vmem:[%s236 + $0x14] sm:$0xf]
      %v257 = vld [vmem:[%s236 + $0x18] sm:$0xf]
      %v258 = vld [vmem:[%s236 + $0x1c] sm:$0xf]
      %v259 = vld [vmem:[%s2] sm:$0xf]
      %v260 = vld [vmem:[%s2 + $0x4] sm:$0xf]
      %v261 = vld [vmem:[%s2 + $0x8] sm:$0xf]
      %v262 = vld [vmem:[%s2 + $0xc] sm:$0xf]
      %v263 = vld [vmem:[%s2 + $0x10] sm:$0xf]
      %v264 = vld [vmem:[%s2 + $0x14] sm:$0xf]
      %v265 = vld [vmem:[%s2 + $0x18] sm:$0xf]
      %v266 = vld [vmem:[%s2 + $0x1c] sm:$0xf]
      %v267 = vld [vmem:[%s2 + $0x20] sm:$0xf]
      %v268 = vld [vmem:[%s2 + $0x24] sm:$0xf]
      %v269 = vld [vmem:[%s2 + $0x28] sm:$0xf]
      %v270 = vld [vmem:[%s2 + $0x2c] sm:$0xf]
      %v271 = vld [vmem:[%s2 + $0x30] sm:$0xf]
      %v272 = vld [vmem:[%s2 + $0x34] sm:$0xf]
      %v273 = vld [vmem:[%s2 + $0x38] sm:$0xf]
      %v274 = vld [vmem:[%s2 + $0x3c] sm:$0xf]
      %v275 = vld [vmem:[%s242] sm:$0xf]
      %v276 = vld [vmem:[%s242 + $0x4] sm:$0xf]
      %v277 = vld [vmem:[%s242 + $0x8] sm:$0xf]
      %v278 = vld [vmem:[%s242 + $0xc] sm:$0xf]
      %v279 = vld [vmem:[%s242 + $0x10] sm:$0xf]
      %v280 = vld [vmem:[%s242 + $0x14] sm:$0xf]
      %v281 = vld [vmem:[%s242 + $0x18] sm:$0xf]
      %v282 = vld [vmem:[%s242 + $0x1c] sm:$0xf]
      %v283 = vld [vmem:[%s3] sm:$0xf]
      %v284 = vld [vmem:[%s3 + $0x4] sm:$0xf]
      %v285 = vld [vmem:[%s3 + $0x8] sm:$0xf]
      %v286 = vld [vmem:[%s3 + $0xc] sm:$0xf]
      %v287 = vld [vmem:[%s3 + $0x10] sm:$0xf]
      %v288 = vld [vmem:[%s3 + $0x14] sm:$0xf]
      %v289 = vld [vmem:[%s3 + $0x18] sm:$0xf]
      %v290 = vld [vmem:[%s3 + $0x1c] sm:$0xf]
      %v291 = vld [vmem:[%s3 + $0x20] sm:$0xf]
      %v292 = vld [vmem:[%s3 + $0x24] sm:$0xf]
      %v293 = vld [vmem:[%s3 + $0x28] sm:$0xf]
      %v294 = vld [vmem:[%s3 + $0x2c] sm:$0xf]
      %v295 = vld [vmem:[%s3 + $0x30] sm:$0xf]
      %v296 = vld [vmem:[%s3 + $0x34] sm:$0xf]
      %v297 = vld [vmem:[%s3 + $0x38] sm:$0xf]
      %v298 = vld [vmem:[%s3 + $0x3c] sm:$0xf]
      %v307 = vunpack.c.l.b16 %v275
      %v308 = vunpack.c.l.b16 %v276
      %v309 = vunpack.c.l.b16 %v277
      %v310 = vunpack.c.l.b16 %v278
      %v311 = vunpack.c.l.b16 %v279
      %v312 = vunpack.c.l.b16 %v280
      %v313 = vunpack.c.l.b16 %v281
      %v314 = vunpack.c.l.b16 %v282
      %v315 = vpack.c.b16 %v308, %v307
      %v316 = vpack.c.b16 %v310, %v309
      %v317 = vpack.c.b16 %v312, %v311
      %v318 = vpack.c.b16 %v314, %v313
      %v339 = vunpack.c.l.b16 %v283
      %v340 = vunpack.c.l.b16 %v284
      %v341 = vunpack.c.l.b16 %v285
      %v342 = vunpack.c.l.b16 %v286
      %v343 = vunpack.c.l.b16 %v287
      %v344 = vunpack.c.l.b16 %v288
      %v345 = vunpack.c.l.b16 %v289
      %v346 = vunpack.c.l.b16 %v290
      %v347 = vunpack.c.l.b16 %v291
      %v348 = vunpack.c.l.b16 %v292
      %v349 = vunpack.c.l.b16 %v293
      %v350 = vunpack.c.l.b16 %v294
      %v351 = vunpack.c.l.b16 %v295
      %v352 = vunpack.c.l.b16 %v296
      %v353 = vunpack.c.l.b16 %v297
      %v354 = vunpack.c.l.b16 %v298
      %v355 = vpack.c.b16 %v340, %v339
      %v356 = vpack.c.b16 %v342, %v341
      %v357 = vpack.c.b16 %v344, %v343
      %v358 = vpack.c.b16 %v346, %v345
      %v359 = vpack.c.b16 %v348, %v347
      %v360 = vpack.c.b16 %v350, %v349
      %v361 = vpack.c.b16 %v352, %v351
      %v362 = vpack.c.b16 %v354, %v353
      %371 = vmatprep.subr.bf16.mxu0 0
      %372 = vmatpush1.bf16.msra.mxu0 %v355
      %373 = vmatprep.subr.bf16.mxu0 0
      %374 = vmatpush1.bf16.msra.mxu0 %v356
      %375 = vmatprep.subr.bf16.mxu0 0
      %376 = vmatpush1.bf16.msra.mxu0 %v357
      %377 = vmatprep.subr.bf16.mxu0 0
      %378 = vmatpush1.bf16.msra.mxu0 %v358
      %379 = vmatprep.subr.bf16.mxu0 0
      %380 = vmatpush1.bf16.msra.mxu0 %v359
      %381 = vmatprep.subr.bf16.mxu0 0
      %382 = vmatpush1.bf16.msra.mxu0 %v360
      %383 = vmatprep.subr.bf16.mxu0 0
      %384 = vmatpush1.bf16.msra.mxu0 %v361
      %385 = vmatprep.subr.bf16.mxu0 0
      %386 = vmatpush1.bf16.msra.mxu0 %v362
      %387 = vmatprep.subr.bf16.mxu0 0
      %388 = vmatpush1.bf16.msra.mxu0 0
      %389 = vmatprep.subr.bf16.mxu0 0
      %390 = vmatpush1.bf16.msra.mxu0 0
      %391 = vmatprep.subr.bf16.mxu0 0
      %392 = vmatpush1.bf16.msra.mxu0 0
      %393 = vmatprep.subr.bf16.mxu0 0
      %394 = vmatpush1.bf16.msra.mxu0 0
      %395 = vmatprep.subr.bf16.mxu0 0
      %396 = vmatpush1.bf16.msra.mxu0 0
      %397 = vmatprep.subr.bf16.mxu0 0
      %398 = vmatpush1.bf16.msra.mxu0 0
      %399 = vmatprep.subr.bf16.mxu0 0
      %400 = vmatpush1.bf16.msra.mxu0 0
      %401 = vmatprep.subr.bf16.mxu0 0
      %402 = vmatpush1.bf16.msra.mxu0 0
      %403 = vmatprep.mubr.bf16.mxu0 0
      %404 = vmatmul.mubr.bf16.gmra.mrb[0].mxu0 %v315
      %v405 = vpop.f32.mrb[0].mxu0
      %v406 = vadd.f32 0.0, %v405
      %v407 = vpop.f32.mrb[0].mxu0
      %v408 = vpop.f32.mrb[0].mxu0
      %v409 = vadd.f32 0.0, %v408
      %v410 = vpop.f32.mrb[0].mxu0
      %411 = vmatprep.mubr.bf16.mxu0 0
      %412 = vmatmul.mubr.bf16.gmra.mrb[0].mxu0 %v316
      %v413 = vpop.f32.mrb[0].mxu0
      %v414 = vadd.f32 0.0, %v413
      %v415 = vpop.f32.mrb[0].mxu0
      %v416 = vpop.f32.mrb[0].mxu0
      %v417 = vadd.f32 0.0, %v416
      %v418 = vpop.f32.mrb[0].mxu0
      %419 = vmatprep.mubr.bf16.mxu0 0
      %420 = vmatmul.mubr.bf16.gmra.mrb[0].mxu0 %v317
      %v421 = vpop.f32.mrb[0].mxu0
      %v422 = vadd.f32 0.0, %v421
      %v423 = vpop.f32.mrb[0].mxu0
      %v424 = vpop.f32.mrb[0].mxu0
      %v425 = vadd.f32 0.0, %v424
      %v426 = vpop.f32.mrb[0].mxu0
      %427 = vmatprep.mubr.bf16.mxu0 0
      %428 = vmatmul.mubr.bf16.gmra.mrb[0].mxu0 %v318
      %v429 = vpop.f32.mrb[0].mxu0
      %v430 = vadd.f32 0.0, %v429
      %v431 = vpop.f32.mrb[0].mxu0
      %v432 = vpop.f32.mrb[0].mxu0
      %v433 = vadd.f32 0.0, %v432
      %v434 = vpop.f32.mrb[0].mxu0
      %435 = vdwg.mxu0
      %v444 = vunpack.c.l.b16 %v251
      %v445 = vunpack.c.l.b16 %v252
      %v446 = vunpack.c.l.b16 %v253
      %v447 = vunpack.c.l.b16 %v254
      %v448 = vunpack.c.l.b16 %v255
      %v449 = vunpack.c.l.b16 %v256
      %v450 = vunpack.c.l.b16 %v257
      %v451 = vunpack.c.l.b16 %v258
      %v452 = vpack.c.b16 %v445, %v444
      %v453 = vpack.c.b16 %v447, %v446
      %v454 = vpack.c.b16 %v449, %v448
      %v455 = vpack.c.b16 %v451, %v450
      %v476 = vunpack.c.l.b16 %v259
      %v477 = vunpack.c.l.b16 %v260
      %v478 = vunpack.c.l.b16 %v261
      %v479 = vunpack.c.l.b16 %v262
      %v480 = vunpack.c.l.b16 %v263
      %v481 = vunpack.c.l.b16 %v264
      %v482 = vunpack.c.l.b16 %v265
      %v483 = vunpack.c.l.b16 %v266
      %v484 = vunpack.c.l.b16 %v267
      %v485 = vunpack.c.l.b16 %v268
      %v486 = vunpack.c.l.b16 %v269
      %v487 = vunpack.c.l.b16 %v270
      %v488 = vunpack.c.l.b16 %v271
      %v489 = vunpack.c.l.b16 %v272
      %v490 = vunpack.c.l.b16 %v273
      %v491 = vunpack.c.l.b16 %v274
      %v492 = vpack.c.b16 %v477, %v476
      %v493 = vpack.c.b16 %v479, %v478
      %v494 = vpack.c.b16 %v481, %v480
      %v495 = vpack.c.b16 %v483, %v482
      %v496 = vpack.c.b16 %v485, %v484
      %v497 = vpack.c.b16 %v487, %v486
      %v498 = vpack.c.b16 %v489, %v488
      %v499 = vpack.c.b16 %v491, %v490
      %508 = vmatprep.subr.bf16.mxu0 0
      %509 = vmatpush1.bf16.msra.mxu0 %v492
      %510 = vmatprep.subr.bf16.mxu0 0
      %511 = vmatpush1.bf16.msra.mxu0 %v493
      %512 = vmatprep.subr.bf16.mxu0 0
      %513 = vmatpush1.bf16.msra.mxu0 %v494
      %514 = vmatprep.subr.bf16.mxu0 0
      %515 = vmatpush1.bf16.msra.mxu0 %v495
      %516 = vmatprep.subr.bf16.mxu0 0
      %517 = vmatpush1.bf16.msra.mxu0 %v496
      %518 = vmatprep.subr.bf16.mxu0 0
      %519 = vmatpush1.bf16.msra.mxu0 %v497
      %520 = vmatprep.subr.bf16.mxu0 0
      %521 = vmatpush1.bf16.msra.mxu0 %v498
      %522 = vmatprep.subr.bf16.mxu0 0
      %523 = vmatpush1.bf16.msra.mxu0 %v499
      %524 = vmatprep.subr.bf16.mxu0 0
      %525 = vmatpush1.bf16.msra.mxu0 0
      %526 = vmatprep.subr.bf16.mxu0 0
      %527 = vmatpush1.bf16.msra.mxu0 0
      %528 = vmatprep.subr.bf16.mxu0 0
      %529 = vmatpush1.bf16.msra.mxu0 0
      %530 = vmatprep.subr.bf16.mxu0 0
      %531 = vmatpush1.bf16.msra.mxu0 0
      %532 = vmatprep.subr.bf16.mxu0 0
      %533 = vmatpush1.bf16.msra.mxu0 0
      %534 = vmatprep.subr.bf16.mxu0 0
      %535 = vmatpush1.bf16.msra.mxu0 0
      %536 = vmatprep.subr.bf16.mxu0 0
      %537 = vmatpush1.bf16.msra.mxu0 0
      %538 = vmatprep.subr.bf16.mxu0 0
      %539 = vmatpush1.bf16.msra.mxu0 0
      %540 = vmatprep.mubr.bf16.mxu0 0
      %541 = vmatmul.mubr.bf16.gmra.mrb[0].mxu0 %v452
      %v542 = vpop.f32.mrb[0].mxu0
      %v543 = vadd.f32 %v406, %v542
      %v544 = vpop.f32.mrb[0].mxu0
      %v545 = vpop.f32.mrb[0].mxu0
      %v546 = vadd.f32 %v409, %v545
      %v547 = vpop.f32.mrb[0].mxu0
      %548 = vmatprep.mubr.bf16.mxu0 0
      %549 = vmatmul.mubr.bf16.gmra.mrb[0].mxu0 %v453
      %v550 = vpop.f32.mrb[0].mxu0
      %v551 = vadd.f32 %v414, %v550
      %v552 = vpop.f32.mrb[0].mxu0
      %v553 = vpop.f32.mrb[0].mxu0
      %v554 = vadd.f32 %v417, %v553
      %v555 = vpop.f32.mrb[0].mxu0
      %556 = vmatprep.mubr.bf16.mxu0 0
      %557 = vmatmul.mubr.bf16.gmra.mrb[0].mxu0 %v454
      %v558 = vpop.f32.mrb[0].mxu0
      %v559 = vadd.f32 %v422, %v558
      %v560 = vpop.f32.mrb[0].mxu0
      %v561 = vpop.f32.mrb[0].mxu0
      %v562 = vadd.f32 %v425, %v561
      %v563 = vpop.f32.mrb[0].mxu0
      %564 = vmatprep.mubr.bf16.mxu0 0
      %565 = vmatmul.mubr.bf16.gmra.mrb[0].mxu0 %v455
      %v566 = vpop.f32.mrb[0].mxu0
      %v567 = vadd.f32 %v430, %v566
      %v568 = vpop.f32.mrb[0].mxu0
      %v569 = vpop.f32.mrb[0].mxu0
      %v570 = vadd.f32 %v433, %v569
      %v571 = vpop.f32.mrb[0].mxu0
      %572 = vdwg.mxu0
      %v573 = vld [vmem:[%s4] sm:$0x1]
      %v575 = vlaneseq
      %v576 = vshrl.u32 %v575, 7
      %v577 = vsub.s32 0, %v576
      %v578 = vrot.slane %v573, %v577
      %v580 = vadd.f32 %v543, %v578
      %v581 = vadd.f32 %v546, %v578
      %v582 = vadd.f32 %v551, %v578
      %v583 = vadd.f32 %v554, %v578
      %v584 = vadd.f32 %v559, %v578
      %v585 = vadd.f32 %v562, %v578
      %v586 = vadd.f32 %v567, %v578
      %v587 = vadd.f32 %v570, %v578
      %v588 = vmin.f32 %v580, 20.0
      %v589 = vmin.f32 %v581, 20.0
      %v590 = vmin.f32 %v582, 20.0
      %v591 = vmin.f32 %v583, 20.0
      %v592 = vmin.f32 %v584, 20.0
      %v593 = vmin.f32 %v585, 20.0
      %v594 = vmin.f32 %v586, 20.0
      %v595 = vmin.f32 %v587, 20.0
      %v596 = vmul.f32 %v588, 1.442695
      %v597 = vpow.pop %v596
      %v598 = vmul.f32 %v589, 1.442695
      %v599 = vpow.pop %v598
      %v600 = vmul.f32 %v590, 1.442695
      %v601 = vpow.pop %v600
      %v602 = vmul.f32 %v591, 1.442695
      %v603 = vpow.pop %v602
      %v604 = vmul.f32 %v592, 1.442695
      %v605 = vpow.pop %v604
      %v606 = vmul.f32 %v593, 1.442695
      %v607 = vpow.pop %v606
      %v608 = vmul.f32 %v594, 1.442695
      %v609 = vpow.pop %v608
      %v610 = vmul.f32 %v595, 1.442695
      %v611 = vpow.pop %v610
      %v612 = vadd.f32 %v597, 2.0
      %v613 = vadd.f32 %v599, 2.0
      %v614 = vadd.f32 %v601, 2.0
      %v615 = vadd.f32 %v603, 2.0
      %v616 = vadd.f32 %v605, 2.0
      %v617 = vadd.f32 %v607, 2.0
      %v618 = vadd.f32 %v609, 2.0
      %v619 = vadd.f32 %v611, 2.0
      %v620 = vmul.f32 %v597, %v612
      %v621 = vmul.f32 %v599, %v613
      %v622 = vmul.f32 %v601, %v614
      %v623 = vmul.f32 %v603, %v615
      %v624 = vmul.f32 %v605, %v616
      %v625 = vmul.f32 %v607, %v617
      %v626 = vmul.f32 %v609, %v618
      %v627 = vmul.f32 %v611, %v619
      %v628 = vadd.f32 %v620, 2.0
      %v629 = vadd.f32 %v621, 2.0
      %v630 = vadd.f32 %v622, 2.0
      %v631 = vadd.f32 %v623, 2.0
      %v632 = vadd.f32 %v624, 2.0
      %v633 = vadd.f32 %v625, 2.0
      %v634 = vadd.f32 %v626, 2.0
      %v635 = vadd.f32 %v627, 2.0
      %v636 = vrcp.pop %v628
      %v637 = vrcp.pop %v629
      %v638 = vrcp.pop %v630
      %v639 = vrcp.pop %v631
      %v640 = vrcp.pop %v632
      %v641 = vrcp.pop %v633
      %v642 = vrcp.pop %v634
      %v643 = vrcp.pop %v635
      %v644 = vmul.f32 %v620, %v636
      %v645 = vmul.f32 %v621, %v637
      %v646 = vmul.f32 %v622, %v638
      %v647 = vmul.f32 %v623, %v639
      %v648 = vmul.f32 %v624, %v640
      %v649 = vmul.f32 %v625, %v641
      %v650 = vmul.f32 %v626, %v642
      %v651 = vmul.f32 %v627, %v643
      %vm652 = vcmp.gt.f32.partialorder %v580, 20.0
      %vm653 = vcmp.gt.f32.partialorder %v581, 20.0
      %vm654 = vcmp.gt.f32.partialorder %v582, 20.0
      %vm655 = vcmp.gt.f32.partialorder %v583, 20.0
      %vm656 = vcmp.gt.f32.partialorder %v584, 20.0
      %vm657 = vcmp.gt.f32.partialorder %v585, 20.0
      %vm658 = vcmp.gt.f32.partialorder %v586, 20.0
      %vm659 = vcmp.gt.f32.partialorder %v587, 20.0
      %v660 = vmul.f32 %v580, %v644
      %v661 = vmul.f32 %v581, %v645
      %v662 = vmul.f32 %v582, %v646
      %v663 = vmul.f32 %v583, %v647
      %v664 = vmul.f32 %v584, %v648
      %v665 = vmul.f32 %v585, %v649
      %v666 = vmul.f32 %v586, %v650
      %v667 = vmul.f32 %v587, %v651
      %v668 = vsel %vm652, %v580, %v660
      %v669 = vsel %vm653, %v581, %v661
      %v670 = vsel %vm654, %v582, %v662
      %v671 = vsel %vm655, %v583, %v663
      %v672 = vsel %vm656, %v584, %v664
      %v673 = vsel %vm657, %v585, %v665
      %v674 = vsel %vm658, %v586, %v666
      %v675 = vsel %vm659, %v587, %v667
      %676 = vst [vmem:[%s248] sm:$0xff] %v668
      %677 = vst [vmem:[%s248 + $0x8] sm:$0xff] %v669
      %678 = vst [vmem:[%s248 + $0x10] sm:$0xff] %v670
      %679 = vst [vmem:[%s248 + $0x18] sm:$0xff] %v671
      %680 = vst [vmem:[%s248 + $0x20] sm:$0xff] %v672
      %681 = vst [vmem:[%s248 + $0x28] sm:$0xff] %v673
      %682 = vst [vmem:[%s248 + $0x30] sm:$0xff] %v674
      %683 = vst [vmem:[%s248 + $0x38] sm:$0xff] %v675
      %s684 = smul.u32 8, %s16
      %p685 = scmp.lt.s32.totalorder %s684, 15
      %s686 = scalar_select %p685, %s684, 15
      %s687 = smul.addr %s686, 8
      %s688 = scalar_lea.vmem %s5, %s687
      // Predicated region
      $region41: #{resblock_body_forward.13} parent=39 // pred_check
        %p689 = pneg %p149
      $region42: #{resblock_body_forward.13} parent=39 // pred_check_branch
        %691 = sbr.rel (%p689) target = $region44
      $region43: #{resblock_body_forward.13} parent=39 // pred_region
        %s692 = smul.u32 8, %s16
      $region44: #{resblock_body_forward.13} parent=39 // pred_fallthru
        _
    $region40: #{resblock_body_forward.13} parent=5 // pred_fallthru
      _
    %p693 = scmp.le.s32.totalorder 2, %s11
    // Predicated region
    $region45: #{resblock_body_forward.13} parent=5 // pred_check
      %p694 = pneg %p693
    $region46: #{resblock_body_forward.13} parent=5 // pred_check_branch
      %696 = sbr.rel (%p694) target = $region48
    $region47: #{resblock_body_forward.13} parent=5 // pred_region
      %s697 = ssub.s32 %s11, 2
      // Predicated region
      $region49: #{resblock_body_forward.13} parent=47 // pred_check
        %p698 = pneg %p155
      $region50: #{resblock_body_forward.13} parent=47 // pred_check_branch
        %700 = sbr.rel (%p698) target = $region52
      $region51: #{resblock_body_forward.13} parent=47 // pred_region
        %s701 = smul.u32 8, %s17
        %p702 = scmp.lt.s32.totalorder %s701, 15
        %s703 = scalar_select %p702, %s701, 15
        %s704 = smul.addr %s703, 8
        %s705 = scalar_lea.vmem %s5, %s704
      $region52: #{resblock_body_forward.13} parent=47 // pred_fallthru
        _
    $region48: #{resblock_body_forward.13} parent=5 // pred_fallthru
      _
  $region6: #{resblock_body_forward.13} parent=0 // loop_footer
    %s15 = sadd.s32 1, %s11
  $region7: #{resblock_body_forward.13} parent=0 // loop_footer_branch
    %10 = sbr.rel target = $region3
  $region8: #{resblock_body_forward.13} parent=0 // loop_exit
    _

// kernel: resblock_body_forward.11
$region0: #{resblock_body_forward.11}
  #allocation0 [shape = 'u32[]', space=smem, size = 0x4, offset = 0x4, fixed_abs, tag = 'smem constant byte address 0x4 - core index']
  #allocation1 [shape = 'u32[144,128]{1,0:T(1,128)}', space=vmem, size = 0x12000, scoped, tag = 'internal scratch']
  %s0 = inlined_call_operand.vmem [shape: bf16[2,10,10,128], index: 0, kind: input, shape index: {}]
  %s1 = inlined_call_operand.vmem [shape: bf16[1152,128], index: 1, kind: input, shape index: {}]
  %s2 = inlined_call_operand.vmem [shape: f32[1,128], index: 2, kind: input, shape index: {}]
  %s3 = inlined_call_operand.vmem [shape: bf16[2,8,8,128], index: 3, kind: input, shape index: {}]
  %s4 = inlined_call_operand.vmem [shape: bf16[2,8,8,128], index: 4, kind: output, shape index: {}]
  %s5 = sld [smem:[#allocation0]]
  $region49: #{resblock_body_forward.11} parent=0
    _
  %s7 = ssub.s32 1, %s5
  %s8 = scalar_select 0, %s7, %s5
  loop: start=0, step=1, limit=4
  $region2: #{resblock_body_forward.11} parent=0 // loop_pre_header
    _
  $region3: #{resblock_body_forward.11} parent=0 // loop_header
    %s10 = sphi 0, %s14
    %p11 = scmp.ge.s32.totalorder %s10, 4
    %s20 = sphi 0, %s22
    %s23 = sphi 0, %s20
    %s24 = sphi 0, %s23
    %s40 = sphi 0, %s24
    %s44 = sphi 0, %s44
    %s46 = sphi 0, %s44
    %s47 = sphi 0, %s46
    %s61 = sphi 0, %s47
    %s65 = sphi 0, %s65
    %s67 = sphi 0, %s65
    %s68 = sphi 0, %s67
    %s82 = sphi 0, %s68
    %s88 = sphi 0, %s90
    %s91 = sphi 0, %s88
    %s92 = sphi 0, %s91
    %s108 = sphi 0, %s92
    %s114 = sphi 0, %s116
    %s117 = sphi 0, %s114
    %s118 = sphi 0, %s117
    %s134 = sphi 0, %s118
  $region4: #{resblock_body_forward.11} parent=0 // loop_header_branch
    %13 = sbr.rel (%p11) target = $region8
  $region5: #{resblock_body_forward.11} parent=0 // loop_body
    %s15 = ssub.s32 %s10, 1
    %s16 = ssub.s32 %s10, 2
    %s17 = sadd.s32 %s10, 1
    %s18 = ssub.s32 %s10, %s17
    %p19 = scmp.eq.s32.totalorder %s18, 0
    %s21 = sadd.s32 %s20, 1
    %s22 = scalar_select %p19, %s20, %s21
    %p25 = pneg %p19
    %p26 = scmp.eq.s32.totalorder %s10, 1
    %p27 = por %p25, %p26
    %p28 = scmp.ne.s32.totalorder %s20, %s23
    %p29 = scmp.eq.s32.totalorder %s10, 0
    %p30 = por %p28, %p29
    %p31 = scmp.ne.s32.totalorder %s20, %s23
    %p32 = scmp.eq.s32.totalorder %s15, 1
    %p33 = por %p31, %p32
    %p34 = scmp.ne.s32.totalorder %s23, %s24
    %p35 = scmp.eq.s32.totalorder %s15, 0
    %p36 = por %p34, %p35
    %p37 = scmp.ne.s32.totalorder %s23, %s24
    %p38 = scmp.eq.s32.totalorder %s16, 1
    %p39 = por %p37, %p38
    %p41 = scmp.ne.s32.totalorder %s24, %s40
    %p42 = scmp.eq.s32.totalorder %s16, 0
    %p43 = por %p41, %p42
    %s45 = sadd.s32 %s44, 1
    %p48 = scmp.eq.s32.totalorder %s10, 1
    %p49 = scmp.ne.s32.totalorder %s44, %s46
    %p50 = scmp.eq.s32.totalorder %s10, 0
    %p51 = por %p49, %p50
    %p52 = scmp.ne.s32.totalorder %s44, %s46
    %p53 = scmp.eq.s32.totalorder %s15, 1
    %p54 = por %p52, %p53
    %p55 = scmp.ne.s32.totalorder %s46, %s47
    %p56 = scmp.eq.s32.totalorder %s15, 0
    %p57 = por %p55, %p56
    %p58 = scmp.ne.s32.totalorder %s46, %s47
    %p59 = scmp.eq.s32.totalorder %s16, 1
    %p60 = por %p58, %p59
    %p62 = scmp.ne.s32.totalorder %s47, %s61
    %p63 = scmp.eq.s32.totalorder %s16, 0
    %p64 = por %p62, %p63
    %s66 = sadd.s32 %s65, 1
    %p69 = scmp.eq.s32.totalorder %s10, 1
    %p70 = scmp.ne.s32.totalorder %s65, %s67
    %p71 = scmp.eq.s32.totalorder %s10, 0
    %p72 = por %p70, %p71
    %p73 = scmp.ne.s32.totalorder %s65, %s67
    %p74 = scmp.eq.s32.totalorder %s15, 1
    %p75 = por %p73, %p74
    %p76 = scmp.ne.s32.totalorder %s67, %s68
    %p77 = scmp.eq.s32.totalorder %s15, 0
    %p78 = por %p76, %p77
    %p79 = scmp.ne.s32.totalorder %s67, %s68
    %p80 = scmp.eq.s32.totalorder %s16, 1
    %p81 = por %p79, %p80
    %p83 = scmp.ne.s32.totalorder %s68, %s82
    %p84 = scmp.eq.s32.totalorder %s16, 0
    %p85 = por %p83, %p84
    %s86 = ssub.s32 %s10, %s17
    %p87 = scmp.eq.s32.totalorder %s86, 0
    %s89 = sadd.s32 %s88, 1
    %s90 = scalar_select %p87, %s88, %s89
    %p93 = pneg %p87
    %p94 = scmp.eq.s32.totalorder %s10, 1
    %p95 = por %p93, %p94
    %p96 = scmp.ne.s32.totalorder %s88, %s91
    %p97 = scmp.eq.s32.totalorder %s10, 0
    %p98 = por %p96, %p97
    %p99 = scmp.ne.s32.totalorder %s88, %s91
    %p100 = scmp.eq.s32.totalorder %s15, 1
    %p101 = por %p99, %p100
    %p102 = scmp.ne.s32.totalorder %s91, %s92
    %p103 = scmp.eq.s32.totalorder %s15, 0
    %p104 = por %p102, %p103
    %p105 = scmp.ne.s32.totalorder %s91, %s92
    %p106 = scmp.eq.s32.totalorder %s16, 1
    %p107 = por %p105, %p106
    %p109 = scmp.ne.s32.totalorder %s92, %s108
    %p110 = scmp.eq.s32.totalorder %s16, 0
    %p111 = por %p109, %p110
    %s112 = ssub.s32 %s10, %s17
    %p113 = scmp.eq.s32.totalorder %s112, 0
    %s115 = sadd.s32 %s114, 1
    %s116 = scalar_select %p113, %s114, %s115
    %p119 = pneg %p113
    %p120 = scmp.eq.s32.totalorder %s10, 1
    %p121 = por %p119, %p120
    %p122 = scmp.ne.s32.totalorder %s114, %s117
    %p123 = scmp.eq.s32.totalorder %s10, 0
    %p124 = por %p122, %p123
    %p125 = scmp.ne.s32.totalorder %s114, %s117
    %p126 = scmp.eq.s32.totalorder %s15, 1
    %p127 = por %p125, %p126
    %p128 = scmp.ne.s32.totalorder %s117, %s118
    %p129 = scmp.eq.s32.totalorder %s15, 0
    %p130 = por %p128, %p129
    %p131 = scmp.ne.s32.totalorder %s117, %s118
    %p132 = scmp.eq.s32.totalorder %s16, 1
    %p133 = por %p131, %p132
    %p135 = scmp.ne.s32.totalorder %s118, %s134
    %p136 = scmp.eq.s32.totalorder %s16, 0
    %p137 = por %p135, %p136
    %p138 = scmp.le.s32.totalorder 1, %s10
    %p139 = scmp.lt.s32.totalorder %s10, 3
    %p140 = pnand %p138, %p139
    %p141 = pneg %p140
    // Predicated region
    $region9: #{resblock_body_forward.11} parent=5 // pred_check
      _
    $region10: #{resblock_body_forward.11} parent=5 // pred_check_branch
      %143 = sbr.rel (%p140) target = $region12
    $region11: #{resblock_body_forward.11} parent=5 // pred_region
      %s144 = ssub.s32 %s10, 1
      // Predicated region
      $region13: #{resblock_body_forward.11} parent=11 // pred_check
        %p145 = pneg %p57
      $region14: #{resblock_body_forward.11} parent=11 // pred_check_branch
        %147 = sbr.rel (%p145) target = $region16
      $region15: #{resblock_body_forward.11} parent=11 // pred_region
        _
      $region16: #{resblock_body_forward.11} parent=11 // pred_fallthru
        _
      // Predicated region
      $region17: #{resblock_body_forward.11} parent=11 // pred_check
        %p148 = pneg %p78
      $region18: #{resblock_body_forward.11} parent=11 // pred_check_branch
        %150 = sbr.rel (%p148) target = $region20
      $region19: #{resblock_body_forward.11} parent=11 // pred_region
        _
      $region20: #{resblock_body_forward.11} parent=11 // pred_fallthru
        _
    $region12: #{resblock_body_forward.11} parent=5 // pred_fallthru
      _
    %p151 = scmp.lt.s32.totalorder %s10, 2
    // Predicated region
    $region21: #{resblock_body_forward.11} parent=5 // pred_check
      %p152 = pneg %p151
    $region22: #{resblock_body_forward.11} parent=5 // pred_check_branch
      %154 = sbr.rel (%p152) target = $region24
    $region23: #{resblock_body_forward.11} parent=5 // pred_region
      // Predicated region
      $region25: #{resblock_body_forward.11} parent=23 // pred_check
        %p155 = pneg %p30
      $region26: #{resblock_body_forward.11} parent=23 // pred_check_branch
        %157 = sbr.rel (%p155) target = $region28
      $region27: #{resblock_body_forward.11} parent=23 // pred_region
        %p158 = scmp.lt.s32.totalorder %s10, 1
        %s159 = scalar_select %p158, %s10, 1
        %s160 = smul.addr %s159, 20
        %s161 = smul.addr %s160, 4
        %s162 = scalar_lea.vmem %s0, %s161
      $region28: #{resblock_body_forward.11} parent=23 // pred_fallthru
        _
      // Predicated region
      $region29: #{resblock_body_forward.11} parent=23 // pred_check
        %p163 = pneg %p98
      $region30: #{resblock_body_forward.11} parent=23 // pred_check_branch
        %165 = sbr.rel (%p163) target = $region32
      $region31: #{resblock_body_forward.11} parent=23 // pred_region
        %p166 = scmp.lt.s32.totalorder %s10, 1
        %s167 = scalar_select %p166, %s10, 1
        %s168 = smul.addr %s167, 8
        %s169 = smul.addr %s168, 4
        %s170 = scalar_lea.vmem %s3, %s169
      $region32: #{resblock_body_forward.11} parent=23 // pred_fallthru
        _
    $region24: #{resblock_body_forward.11} parent=5 // pred_fallthru
      _
    %p171 = scmp.le.s32.totalorder 1, %s10
    %p172 = scmp.lt.s32.totalorder %s10, 3
    %p173 = pnand %p171, %p172
    %p174 = pneg %p173
    // Predicated region
    $region33: #{resblock_body_forward.11} parent=5 // pred_check
      _
    $region34: #{resblock_body_forward.11} parent=5 // pred_check_branch
      %176 = sbr.rel (%p173) target = $region36
    $region35: #{resblock_body_forward.11} parent=5 // pred_region
      %s177 = ssub.s32 %s10, 1
      %p178 = scmp.lt.s32.totalorder %s15, 1
      %s179 = scalar_select %p178, %s15, 1
      %s180 = smul.addr %s179, 20
      %s181 = smul.addr %s180, 4
      %s182 = scalar_lea.vmem %s0, %s181
      %p183 = pneg %p36
      %p184 = pneg %p33
      %p185 = pneg %p57
      %p186 = pneg %p54
      %p187 = pneg %p78
      %p188 = pneg %p75
      %p189 = scmp.lt.s32.totalorder %s15, 1
      %s190 = scalar_select %p189, %s15, 1
      %s191 = smul.addr %s190, 8
      %s192 = smul.addr %s191, 4
      %s193 = scalar_lea.vmem %s3, %s192
      %p194 = pneg %p104
      %p195 = pneg %p101
      %p196 = pneg %p130
      %p197 = pneg %p127
      %p198 = scmp.lt.s32.totalorder %s15, 1
      %s199 = scalar_select %p198, %s15, 1
      %s200 = smul.addr %s199, 8
      %s201 = smul.addr %s200, 4
      %s202 = scalar_lea.vmem %s4, %s201
      %p203 = scmp.lt.s32.totalorder %s15, 1
      %s204 = scalar_select %p203, %s15, 1
      %s205 = smul.addr %s204, 20
      %s206 = smul.addr %s205, 4
      %s207 = scalar_lea.vmem %s0, %s206
      %p208 = scmp.lt.s32.totalorder %s15, 1
      %s209 = scalar_select %p208, %s15, 1
      %s210 = smul.addr %s209, 8
      %s211 = smul.addr %s210, 4
      %s212 = scalar_lea.vmem %s3, %s211
      %p213 = scmp.lt.s32.totalorder %s15, 1
      %s214 = scalar_select %p213, %s15, 1
      %s215 = smul.addr %s214, 8
      %s216 = smul.addr %s215, 4
      %s217 = scalar_lea.vmem %s4, %s216
      %v219 = vld [vmem:[%s1] sm:$0xf]
      %v220 = vld [vmem:[%s1 + $0x4] sm:$0xf]
      %v221 = vld [vmem:[%s1 + $0x8] sm:$0xf]
      %v222 = vld [vmem:[%s1 + $0xc] sm:$0xf]
      %v223 = vld [vmem:[%s1 + $0x10] sm:$0xf]
      %v224 = vld [vmem:[%s1 + $0x14] sm:$0xf]
      %v225 = vld [vmem:[%s1 + $0x18] sm:$0xf]
      %v226 = vld [vmem:[%s1 + $0x1c] sm:$0xf]
      %v227 = vld [vmem:[%s1 + $0x20] sm:$0xf]
      %v228 = vld [vmem:[%s1 + $0x24] sm:$0xf]
      %v229 = vld [vmem:[%s1 + $0x28] sm:$0xf]
      %v230 = vld [vmem:[%s1 + $0x2c] sm:$0xf]
      %v231 = vld [vmem:[%s1 + $0x30] sm:$0xf]
      %v232 = vld [vmem:[%s1 + $0x34] sm:$0xf]
      %v233 = vld [vmem:[%s1 + $0x38] sm:$0xf]
      %v234 = vld [vmem:[%s1 + $0x3c] sm:$0xf]
      %v235 = vld [vmem:[%s1 + $0x40] sm:$0xf]
      %v236 = vld [vmem:[%s1 + $0x44] sm:$0xf]
      %v237 = vld [vmem:[%s1 + $0x48] sm:$0xf]
      %v238 = vld [vmem:[%s1 + $0x4c] sm:$0xf]
      %v239 = vld [vmem:[%s1 + $0x50] sm:$0xf]
      %v240 = vld [vmem:[%s1 + $0x54] sm:$0xf]
      %v241 = vld [vmem:[%s1 + $0x58] sm:$0xf]
      %v242 = vld [vmem:[%s1 + $0x5c] sm:$0xf]
      %v243 = vld [vmem:[%s1 + $0x60] sm:$0xf]
      %v244 = vld [vmem:[%s1 + $0x64] sm:$0xf]
      %v245 = vld [vmem:[%s1 + $0x68] sm:$0xf]
      %v246 = vld [vmem:[%s1 + $0x6c] sm:$0xf]
      %v247 = vld [vmem:[%s1 + $0x70] sm:$0xf]
      %v248 = vld [vmem:[%s1 + $0x74] sm:$0xf]
      %v249 = vld [vmem:[%s1 + $0x78] sm:$0xf]
      %v250 = vld [vmem:[%s1 + $0x7c] sm:$0xf]
      %v251 = vld [vmem:[%s1 + $0x80] sm:$0xf]
      %v252 = vld [vmem:[%s1 + $0x84] sm:$0xf]
      %v253 = vld [vmem:[%s1 + $0x88] sm:$0xf]
      %v254 = vld [vmem:[%s1 + $0x8c] sm:$0xf]
      %v255 = vld [vmem:[%s1 + $0x90] sm:$0xf]
      %v256 = vld [vmem:[%s1 + $0x94] sm:$0xf]
      %v257 = vld [vmem:[%s1 + $0x98] sm:$0xf]
      %v258 = vld [vmem:[%s1 + $0x9c] sm:$0xf]
      %v259 = vld [vmem:[%s1 + $0xa0] sm:$0xf]
      %v260 = vld [vmem:[%s1 + $0xa4] sm:$0xf]
      %v261 = vld [vmem:[%s1 + $0xa8] sm:$0xf]
      %v262 = vld [vmem:[%s1 + $0xac] sm:$0xf]
      %v263 = vld [vmem:[%s1 + $0xb0] sm:$0xf]
      %v264 = vld [vmem:[%s1 + $0xb4] sm:$0xf]
      %v265 = vld [vmem:[%s1 + $0xb8] sm:$0xf]
      %v266 = vld [vmem:[%s1 + $0xbc] sm:$0xf]
      %v267 = vld [vmem:[%s1 + $0xc0] sm:$0xf]
      %v268 = vld [vmem:[%s1 + $0xc4] sm:$0xf]
      %v269 = vld [vmem:[%s1 + $0xc8] sm:$0xf]
      %v270 = vld [vmem:[%s1 + $0xcc] sm:$0xf]
      %v271 = vld [vmem:[%s1 + $0xd0] sm:$0xf]
      %v272 = vld [vmem:[%s1 + $0xd4] sm:$0xf]
      %v273 = vld [vmem:[%s1 + $0xd8] sm:$0xf]
      %v274 = vld [vmem:[%s1 + $0xdc] sm:$0xf]
      %v275 = vld [vmem:[%s1 + $0xe0] sm:$0xf]
      %v276 = vld [vmem:[%s1 + $0xe4] sm:$0xf]
      %v277 = vld [vmem:[%s1 + $0xe8] sm:$0xf]
      %v278 = vld [vmem:[%s1 + $0xec] sm:$0xf]
      %v279 = vld [vmem:[%s1 + $0xf0] sm:$0xf]
      %v280 = vld [vmem:[%s1 + $0xf4] sm:$0xf]
      %v281 = vld [vmem:[%s1 + $0xf8] sm:$0xf]
      %v282 = vld [vmem:[%s1 + $0xfc] sm:$0xf]
      %v283 = vld [vmem:[%s1 + $0x100] sm:$0xf]
      %v284 = vld [vmem:[%s1 + $0x104] sm:$0xf]
      %v285 = vld [vmem:[%s1 + $0x108] sm:$0xf]
      %v286 = vld [vmem:[%s1 + $0x10c] sm:$0xf]
      %v287 = vld [vmem:[%s1 + $0x110] sm:$0xf]
      %v288 = vld [vmem:[%s1 + $0x114] sm:$0xf]
      %v289 = vld [vmem:[%s1 + $0x118] sm:$0xf]
      %v290 = vld [vmem:[%s1 + $0x11c] sm:$0xf]
      %v291 = vld [vmem:[%s1 + $0x120] sm:$0xf]
      %v292 = vld [vmem:[%s1 + $0x124] sm:$0xf]
      %v293 = vld [vmem:[%s1 + $0x128] sm:$0xf]
      %v294 = vld [vmem:[%s1 + $0x12c] sm:$0xf]
      %v295 = vld [vmem:[%s1 + $0x130] sm:$0xf]
      %v296 = vld [vmem:[%s1 + $0x134] sm:$0xf]
      %v297 = vld [vmem:[%s1 + $0x138] sm:$0xf]
      %v298 = vld [vmem:[%s1 + $0x13c] sm:$0xf]
      %v299 = vld [vmem:[%s1 + $0x140] sm:$0xf]
      %v300 = vld [vmem:[%s1 + $0x144] sm:$0xf]
      %v301 = vld [vmem:[%s1 + $0x148] sm:$0xf]
      %v302 = vld [vmem:[%s1 + $0x14c] sm:$0xf]
      %v303 = vld [vmem:[%s1 + $0x150] sm:$0xf]
      %v304 = vld [vmem:[%s1 + $0x154] sm:$0xf]
      %v305 = vld [vmem:[%s1 + $0x158] sm:$0xf]
      %v306 = vld [vmem:[%s1 + $0x15c] sm:$0xf]
      %v307 = vld [vmem:[%s1 + $0x160] sm:$0xf]
      %v308 = vld [vmem:[%s1 + $0x164] sm:$0xf]
      %v309 = vld [vmem:[%s1 + $0x168] sm:$0xf]
      %v310 = vld [vmem:[%s1 + $0x16c] sm:$0xf]
      %v311 = vld [vmem:[%s1 + $0x170] sm:$0xf]
      %v312 = vld [vmem:[%s1 + $0x174] sm:$0xf]
      %v313 = vld [vmem:[%s1 + $0x178] sm:$0xf]
      %v314 = vld [vmem:[%s1 + $0x17c] sm:$0xf]
      %v315 = vld [vmem:[%s1 + $0x180] sm:$0xf]
      %v316 = vld [vmem:[%s1 + $0x184] sm:$0xf]
      %v317 = vld [vmem:[%s1 + $0x188] sm:$0xf]
      %v318 = vld [vmem:[%s1 + $0x18c] sm:$0xf]
      %v319 = vld [vmem:[%s1 + $0x190] sm:$0xf]
      %v320 = vld [vmem:[%s1 + $0x194] sm:$0xf]
      %v321 = vld [vmem:[%s1 + $0x198] sm:$0xf]
      %v322 = vld [vmem:[%s1 + $0x19c] sm:$0xf]
      %v323 = vld [vmem:[%s1 + $0x1a0] sm:$0xf]
      %v324 = vld [vmem:[%s1 + $0x1a4] sm:$0xf]
      %v325 = vld [vmem:[%s1 + $0x1a8] sm:$0xf]
      %v326 = vld [vmem:[%s1 + $0x1ac] sm:$0xf]
      %v327 = vld [vmem:[%s1 + $0x1b0] sm:$0xf]
      %v328 = vld [vmem:[%s1 + $0x1b4] sm:$0xf]
      %v329 = vld [vmem:[%s1 + $0x1b8] sm:$0xf]
      %v330 = vld [vmem:[%s1 + $0x1bc] sm:$0xf]
      %v331 = vld [vmem:[%s1 + $0x1c0] sm:$0xf]
      %v332 = vld [vmem:[%s1 + $0x1c4] sm:$0xf]
      %v333 = vld [vmem:[%s1 + $0x1c8] sm:$0xf]
      %v334 = vld [vmem:[%s1 + $0x1cc] sm:$0xf]
      %v335 = vld [vmem:[%s1 + $0x1d0] sm:$0xf]
      %v336 = vld [vmem:[%s1 + $0x1d4] sm:$0xf]
      %v337 = vld [vmem:[%s1 + $0x1d8] sm:$0xf]
      %v338 = vld [vmem:[%s1 + $0x1dc] sm:$0xf]
      %v339 = vld [vmem:[%s1 + $0x1e0] sm:$0xf]
      %v340 = vld [vmem:[%s1 + $0x1e4] sm:$0xf]
      %v341 = vld [vmem:[%s1 + $0x1e8] sm:$0xf]
      %v342 = vld [vmem:[%s1 + $0x1ec] sm:$0xf]
      %v343 = vld [vmem:[%s1 + $0x1f0] sm:$0xf]
      %v344 = vld [vmem:[%s1 + $0x1f4] sm:$0xf]
      %v345 = vld [vmem:[%s1 + $0x1f8] sm:$0xf]
      %v346 = vld [vmem:[%s1 + $0x1fc] sm:$0xf]
      %v347 = vld [vmem:[%s1 + $0x200] sm:$0xf]
      %v348 = vld [vmem:[%s1 + $0x204] sm:$0xf]
      %v349 = vld [vmem:[%s1 + $0x208] sm:$0xf]
      %v350 = vld [vmem:[%s1 + $0x20c] sm:$0xf]
      %v351 = vld [vmem:[%s1 + $0x210] sm:$0xf]
      %v352 = vld [vmem:[%s1 + $0x214] sm:$0xf]
      %v353 = vld [vmem:[%s1 + $0x218] sm:$0xf]
      %v354 = vld [vmem:[%s1 + $0x21c] sm:$0xf]
      %v355 = vld [vmem:[%s1 + $0x220] sm:$0xf]
      %v356 = vld [vmem:[%s1 + $0x224] sm:$0xf]
      %v357 = vld [vmem:[%s1 + $0x228] sm:$0xf]
      %v358 = vld [vmem:[%s1 + $0x22c] sm:$0xf]
      %v359 = vld [vmem:[%s1 + $0x230] sm:$0xf]
      %v360 = vld [vmem:[%s1 + $0x234] sm:$0xf]
      %v361 = vld [vmem:[%s1 + $0x238] sm:$0xf]
      %v362 = vld [vmem:[%s1 + $0x23c] sm:$0xf]
      %v363 = vld [vmem:[%s2] sm:$0x1]
      %v364 = vld [vmem:[%s207] sm:$0xf]
      %v365 = vld [vmem:[%s207 + $0x4] sm:$0x1]
      %v366 = vld [vmem:[%s207] sm:$0xe]
      %s367 = scalar_lea.vmem %s207, 8
      %v368 = vld [vmem:[%s367] sm:$0xf]
      %v369 = vld [vmem:[%s367 + $0x4] sm:$0x1]
      %v370 = vld [vmem:[%s367] sm:$0xe]
      %s371 = scalar_lea.vmem %s207, 16
      %v372 = vld [vmem:[%s371] sm:$0xf]
      %v373 = vld [vmem:[%s371 + $0x4] sm:$0x1]
      %v374 = vld [vmem:[%s371] sm:$0xe]
      %v377 = vunpack.c.l.b16 %v364
      %v378 = vunpack.c.l.b16 %v365
      %v379 = vpack.c.b16 %v378, %v377
      %v381 = vshrl.u32 %v379, 16
      %v383 = vshll.u32 %v379, 16
      %v385 = vrot.slane %v383, 1
      %v386 = vor.u32 %v381, %v385
      %v389 = vunpack.c.l.b16 %v366
      %v390 = vpack.c.b16 %v378, %v389
      %v391 = vrot.slane %v390, 1
      %v395 = vunpack.c.l.b16 %v368
      %v396 = vunpack.c.l.b16 %v369
      %v397 = vpack.c.b16 %v396, %v395
      %v399 = vshrl.u32 %v397, 16
      %v401 = vshll.u32 %v397, 16
      %v403 = vrot.slane %v401, 1
      %v404 = vor.u32 %v399, %v403
      %v407 = vunpack.c.l.b16 %v370
      %v408 = vpack.c.b16 %v396, %v407
      %v409 = vrot.slane %v408, 1
      %v413 = vunpack.c.l.b16 %v372
      %v414 = vunpack.c.l.b16 %v373
      %v415 = vpack.c.b16 %v414, %v413
      %v417 = vshrl.u32 %v415, 16
      %v419 = vshll.u32 %v415, 16
      %v421 = vrot.slane %v419, 1
      %v422 = vor.u32 %v417, %v421
      %v425 = vunpack.c.l.b16 %v374
      %v426 = vpack.c.b16 %v414, %v425
      %v427 = vrot.slane %v426, 1
      %v430 = vlaneseq
      %v431 = vshrl.u32 %v430, 7
      %v432 = vsub.s32 0, %v431
      %v433 = vrot.slane %v363, %v432
      %v579 = vunpack.c.l.b16 %v219
      %v580 = vunpack.c.l.b16 %v220
      %v581 = vunpack.c.l.b16 %v221
      %v582 = vunpack.c.l.b16 %v222
      %v583 = vunpack.c.l.b16 %v223
      %v584 = vunpack.c.l.b16 %v224
      %v585 = vunpack.c.l.b16 %v225
      %v586 = vunpack.c.l.b16 %v226
      %v587 = vunpack.c.l.b16 %v227
      %v588 = vunpack.c.l.b16 %v228
      %v589 = vunpack.c.l.b16 %v229
      %v590 = vunpack.c.l.b16 %v230
      %v591 = vunpack.c.l.b16 %v231
      %v592 = vunpack.c.l.b16 %v232
      %v593 = vunpack.c.l.b16 %v233
      %v594 = vunpack.c.l.b16 %v234
      %v595 = vunpack.c.l.b16 %v235
      %v596 = vunpack.c.l.b16 %v236
      %v597 = vunpack.c.l.b16 %v237
      %v598 = vunpack.c.l.b16 %v238
      %v599 = vunpack.c.l.b16 %v239
      %v600 = vunpack.c.l.b16 %v240
      %v601 = vunpack.c.l.b16 %v241
      %v602 = vunpack.c.l.b16 %v242
      %v603 = vunpack.c.l.b16 %v243
      %v604 = vunpack.c.l.b16 %v244
      %v605 = vunpack.c.l.b16 %v245
      %v606 = vunpack.c.l.b16 %v246
      %v607 = vunpack.c.l.b16 %v247
      %v608 = vunpack.c.l.b16 %v248
      %v609 = vunpack.c.l.b16 %v249
      %v610 = vunpack.c.l.b16 %v250
      %v611 = vunpack.c.l.b16 %v251
      %v612 = vunpack.c.l.b16 %v252
      %v613 = vunpack.c.l.b16 %v253
      %v614 = vunpack.c.l.b16 %v254
      %v615 = vunpack.c.l.b16 %v255
      %v616 = vunpack.c.l.b16 %v256
      %v617 = vunpack.c.l.b16 %v257
      %v618 = vunpack.c.l.b16 %v258
      %v619 = vunpack.c.l.b16 %v259
      %v620 = vunpack.c.l.b16 %v260
      %v621 = vunpack.c.l.b16 %v261
      %v622 = vunpack.c.l.b16 %v262
      %v623 = vunpack.c.l.b16 %v263
      %v624 = vunpack.c.l.b16 %v264
      %v625 = vunpack.c.l.b16 %v265
      %v626 = vunpack.c.l.b16 %v266
      %v627 = vunpack.c.l.b16 %v267
      %v628 = vunpack.c.l.b16 %v268
      %v629 = vunpack.c.l.b16 %v269
      %v630 = vunpack.c.l.b16 %v270
      %v631 = vunpack.c.l.b16 %v271
      %v632 = vunpack.c.l.b16 %v272
      %v633 = vunpack.c.l.b16 %v273
      %v634 = vunpack.c.l.b16 %v274
      %v635 = vunpack.c.l.b16 %v275
      %v636 = vunpack.c.l.b16 %v276
      %v637 = vunpack.c.l.b16 %v277
      %v638 = vunpack.c.l.b16 %v278
      %v639 = vunpack.c.l.b16 %v279
      %v640 = vunpack.c.l.b16 %v280
      %v641 = vunpack.c.l.b16 %v281
      %v642 = vunpack.c.l.b16 %v282
      %v643 = vunpack.c.l.b16 %v283
      %v644 = vunpack.c.l.b16 %v284
      %v645 = vunpack.c.l.b16 %v285
      %v646 = vunpack.c.l.b16 %v286
      %v647 = vunpack.c.l.b16 %v287
      %v648 = vunpack.c.l.b16 %v288
      %v649 = vunpack.c.l.b16 %v289
      %v650 = vunpack.c.l.b16 %v290
      %v651 = vunpack.c.l.b16 %v291
      %v652 = vunpack.c.l.b16 %v292
      %v653 = vunpack.c.l.b16 %v293
      %v654 = vunpack.c.l.b16 %v294
      %v655 = vunpack.c.l.b16 %v295
      %v656 = vunpack.c.l.b16 %v296
      %v657 = vunpack.c.l.b16 %v297
      %v658 = vunpack.c.l.b16 %v298
      %v659 = vunpack.c.l.b16 %v299
      %v660 = vunpack.c.l.b16 %v300
      %v661 = vunpack.c.l.b16 %v301
      %v662 = vunpack.c.l.b16 %v302
      %v663 = vunpack.c.l.b16 %v303
      %v664 = vunpack.c.l.b16 %v304
      %v665 = vunpack.c.l.b16 %v305
      %v666 = vunpack.c.l.b16 %v306
      %v667 = vunpack.c.l.b16 %v307
      %v668 = vunpack.c.l.b16 %v308
      %v669 = vunpack.c.l.b16 %v309
      %v670 = vunpack.c.l.b16 %v310
      %v671 = vunpack.c.l.b16 %v311
      %v672 = vunpack.c.l.b16 %v312
      %v673 = vunpack.c.l.b16 %v313
      %v674 = vunpack.c.l.b16 %v314
      %v675 = vunpack.c.l.b16 %v315
      %v676 = vunpack.c.l.b16 %v316
      %v677 = vunpack.c.l.b16 %v317
      %v678 = vunpack.c.l.b16 %v318
      %v679 = vunpack.c.l.b16 %v319
      %v680 = vunpack.c.l.b16 %v320
      %v681 = vunpack.c.l.b16 %v321
      %v682 = vunpack.c.l.b16 %v322
      %v683 = vunpack.c.l.b16 %v323
      %v684 = vunpack.c.l.b16 %v324
      %v685 = vunpack.c.l.b16 %v325
      %v686 = vunpack.c.l.b16 %v326
      %v687 = vunpack.c.l.b16 %v327
      %v688 = vunpack.c.l.b16 %v328
      %v689 = vunpack.c.l.b16 %v329
      %v690 = vunpack.c.l.b16 %v330
      %v691 = vunpack.c.l.b16 %v331
      %v692 = vunpack.c.l.b16 %v332
      %v693 = vunpack.c.l.b16 %v333
      %v694 = vunpack.c.l.b16 %v334
      %v695 = vunpack.c.l.b16 %v335
      %v696 = vunpack.c.l.b16 %v336
      %v697 = vunpack.c.l.b16 %v337
      %v698 = vunpack.c.l.b16 %v338
      %v699 = vunpack.c.l.b16 %v339
      %v700 = vunpack.c.l.b16 %v340
      %v701 = vunpack.c.l.b16 %v341
      %v702 = vunpack.c.l.b16 %v342
      %v703 = vunpack.c.l.b16 %v343
      %v704 = vunpack.c.l.b16 %v344
      %v705 = vunpack.c.l.b16 %v345
      %v706 = vunpack.c.l.b16 %v346
      %v707 = vunpack.c.l.b16 %v347
      %v708 = vunpack.c.l.b16 %v348
      %v709 = vunpack.c.l.b16 %v349
      %v710 = vunpack.c.l.b16 %v350
      %v711 = vunpack.c.l.b16 %v351
      %v712 = vunpack.c.l.b16 %v352
      %v713 = vunpack.c.l.b16 %v353
      %v714 = vunpack.c.l.b16 %v354
      %v715 = vunpack.c.l.b16 %v355
      %v716 = vunpack.c.l.b16 %v356
      %v717 = vunpack.c.l.b16 %v357
      %v718 = vunpack.c.l.b16 %v358
      %v719 = vunpack.c.l.b16 %v359
      %v720 = vunpack.c.l.b16 %v360
      %v721 = vunpack.c.l.b16 %v361
      %v722 = vunpack.c.l.b16 %v362
      %v723 = vpack.c.b16 %v580, %v579
      %v724 = vpack.c.b16 %v582, %v581
      %v725 = vpack.c.b16 %v584, %v583
      %v726 = vpack.c.b16 %v586, %v585
      %v727 = vpack.c.b16 %v588, %v587
      %v728 = vpack.c.b16 %v590, %v589
      %v729 = vpack.c.b16 %v592, %v591
      %v730 = vpack.c.b16 %v594, %v593
      %v731 = vpack.c.b16 %v596, %v595
      %v732 = vpack.c.b16 %v598, %v597
      %v733 = vpack.c.b16 %v600, %v599
      %v734 = vpack.c.b16 %v602, %v601
      %v735 = vpack.c.b16 %v604, %v603
      %v736 = vpack.c.b16 %v606, %v605
      %v737 = vpack.c.b16 %v608, %v607
      %v738 = vpack.c.b16 %v610, %v609
      %v739 = vpack.c.b16 %v612, %v611
      %v740 = vpack.c.b16 %v614, %v613
      %v741 = vpack.c.b16 %v616, %v615
      %v742 = vpack.c.b16 %v618, %v617
      %v743 = vpack.c.b16 %v620, %v619
      %v744 = vpack.c.b16 %v622, %v621
      %v745 = vpack.c.b16 %v624, %v623
      %v746 = vpack.c.b16 %v626, %v625
      %v747 = vpack.c.b16 %v628, %v627
      %v748 = vpack.c.b16 %v630, %v629
      %v749 = vpack.c.b16 %v632, %v631
      %v750 = vpack.c.b16 %v634, %v633
      %v751 = vpack.c.b16 %v636, %v635
      %v752 = vpack.c.b16 %v638, %v637
      %v753 = vpack.c.b16 %v640, %v639
      %v754 = vpack.c.b16 %v642, %v641
      %v755 = vpack.c.b16 %v644, %v643
      %v756 = vpack.c.b16 %v646, %v645
      %v757 = vpack.c.b16 %v648, %v647
      %v758 = vpack.c.b16 %v650, %v649
      %v759 = vpack.c.b16 %v652, %v651
      %v760 = vpack.c.b16 %v654, %v653
      %v761 = vpack.c.b16 %v656, %v655
      %v762 = vpack.c.b16 %v658, %v657
      %v763 = vpack.c.b16 %v660, %v659
      %v764 = vpack.c.b16 %v662, %v661
      %v765 = vpack.c.b16 %v664, %v663
      %v766 = vpack.c.b16 %v666, %v665
      %v767 = vpack.c.b16 %v668, %v667
      %v768 = vpack.c.b16 %v670, %v669
      %v769 = vpack.c.b16 %v672, %v671
      %v770 = vpack.c.b16 %v674, %v673
      %v771 = vpack.c.b16 %v676, %v675
      %v772 = vpack.c.b16 %v678, %v677
      %v773 = vpack.c.b16 %v680, %v679
      %v774 = vpack.c.b16 %v682, %v681
      %v775 = vpack.c.b16 %v684, %v683
      %v776 = vpack.c.b16 %v686, %v685
      %v777 = vpack.c.b16 %v688, %v687
      %v778 = vpack.c.b16 %v690, %v689
      %v779 = vpack.c.b16 %v692, %v691
      %v780 = vpack.c.b16 %v694, %v693
      %v781 = vpack.c.b16 %v696, %v695
      %v782 = vpack.c.b16 %v698, %v697
      %v783 = vpack.c.b16 %v700, %v699
      %v784 = vpack.c.b16 %v702, %v701
      %v785 = vpack.c.b16 %v704, %v703
      %v786 = vpack.c.b16 %v706, %v705
      %v787 = vpack.c.b16 %v708, %v707
      %v788 = vpack.c.b16 %v710, %v709
      %v789 = vpack.c.b16 %v712, %v711
      %v790 = vpack.c.b16 %v714, %v713
      %v791 = vpack.c.b16 %v716, %v715
      %v792 = vpack.c.b16 %v718, %v717
      %v793 = vpack.c.b16 %v720, %v719
      %v794 = vpack.c.b16 %v722, %v721
      %867 = vmatprep.subr.bf16.mxu0 0
      %868 = vmatpush1.bf16.msra.mxu0 %v723
      %869 = vmatprep.subr.bf16.mxu0 0
      %870 = vmatpush1.bf16.msra.mxu0 %v724
      %871 = vmatprep.subr.bf16.mxu0 0
      %872 = vmatpush1.bf16.msra.mxu0 %v725
      %873 = vmatprep.subr.bf16.mxu0 0
      %874 = vmatpush1.bf16.msra.mxu0 %v726
      %875 = vmatprep.subr.bf16.mxu0 0
      %876 = vmatpush1.bf16.msra.mxu0 %v727
      %877 = vmatprep.subr.bf16.mxu0 0
      %878 = vmatpush1.bf16.msra.mxu0 %v728
      %879 = vmatprep.subr.bf16.mxu0 0
      %880 = vmatpush1.bf16.msra.mxu0 %v729
      %881 = vmatprep.subr.bf16.mxu0 0
      %882 = vmatpush1.bf16.msra.mxu0 %v730
      %883 = vmatprep.subr.bf16.mxu0 0
      %884 = vmatpush1.bf16.msra.mxu0 %v731
      %885 = vmatprep.subr.bf16.mxu0 0
      %886 = vmatpush1.bf16.msra.mxu0 %v732
      %887 = vmatprep.subr.bf16.mxu0 0
      %888 = vmatpush1.bf16.msra.mxu0 %v733
      %889 = vmatprep.subr.bf16.mxu0 0
      %890 = vmatpush1.bf16.msra.mxu0 %v734
      %891 = vmatprep.subr.bf16.mxu0 0
      %892 = vmatpush1.bf16.msra.mxu0 %v735
      %893 = vmatprep.subr.bf16.mxu0 0
      %894 = vmatpush1.bf16.msra.mxu0 %v736
      %895 = vmatprep.subr.bf16.mxu0 0
      %896 = vmatpush1.bf16.msra.mxu0 %v737
      %897 = vmatprep.subr.bf16.mxu0 0
      %898 = vmatpush1.bf16.msra.mxu0 %v738
      %899 = vmatprep.mubr.bf16.mxu0 %v386
      %900 = vmatmul.mubr.bf16.gmra.mrb[0].mxu0 %v364
      %v901 = vpop.f32.mrb[0].mxu0
      %v902 = vadd.f32 %v433, %v901
      %v903 = vpop.f32.mrb[0].mxu0
      %v904 = vpop.f32.mrb[0].mxu0
      %v905 = vpop.f32.mrb[0].mxu0
      %906 = vdwg.mxu0
      %907 = vmatprep.subr.bf16.mxu0 0
      %908 = vmatpush1.bf16.msra.mxu0 %v739
      %909 = vmatprep.subr.bf16.mxu0 0
      %910 = vmatpush1.bf16.msra.mxu0 %v740
      %911 = vmatprep.subr.bf16.mxu0 0
      %912 = vmatpush1.bf16.msra.mxu0 %v741
      %913 = vmatprep.subr.bf16.mxu0 0
      %914 = vmatpush1.bf16.msra.mxu0 %v742
      %915 = vmatprep.subr.bf16.mxu0 0
      %916 = vmatpush1.bf16.msra.mxu0 %v743
      %917 = vmatprep.subr.bf16.mxu0 0
      %918 = vmatpush1.bf16.msra.mxu0 %v744
      %919 = vmatprep.subr.bf16.mxu0 0
      %920 = vmatpush1.bf16.msra.mxu0 %v745
      %921 = vmatprep.subr.bf16.mxu0 0
      %922 = vmatpush1.bf16.msra.mxu0 %v746
      %923 = vmatprep.subr.bf16.mxu0 0
      %924 = vmatpush1.bf16.msra.mxu0 %v747
      %925 = vmatprep.subr.bf16.mxu0 0
      %926 = vmatpush1.bf16.msra.mxu0 %v748
      %927 = vmatprep.subr.bf16.mxu0 0
      %928 = vmatpush1.bf16.msra.mxu0 %v749
      %929 = vmatprep.subr.bf16.mxu0 0
      %930 = vmatpush1.bf16.msra.mxu0 %v750
      %931 = vmatprep.subr.bf16.mxu0 0
      %932 = vmatpush1.bf16.msra.mxu0 %v751
      %933 = vmatprep.subr.bf16.mxu0 0
      %934 = vmatpush1.bf16.msra.mxu0 %v752
      %935 = vmatprep.subr.bf16.mxu0 0
      %936 = vmatpush1.bf16.msra.mxu0 %v753
      %937 = vmatprep.subr.bf16.mxu0 0
      %938 = vmatpush1.bf16.msra.mxu0 %v754
      %939 = vmatprep.mubr.bf16.mxu0 %v368
      %940 = vmatmul.mubr.bf16.gmra.mrb[0].mxu0 %v391
      %v941 = vpop.f32.mrb[0].mxu0
      %v942 = vadd.f32 %v902, %v941
      %v943 = vpop.f32.mrb[0].mxu0
      %v944 = vpop.f32.mrb[0].mxu0
      %v945 = vpop.f32.mrb[0].mxu0
      %946 = vdwg.mxu0
      %947 = vmatprep.subr.bf16.mxu0 0
      %948 = vmatpush1.bf16.msra.mxu0 %v755
      %949 = vmatprep.subr.bf16.mxu0 0
      %950 = vmatpush1.bf16.msra.mxu0 %v756
      %951 = vmatprep.subr.bf16.mxu0 0
      %952 = vmatpush1.bf16.msra.mxu0 %v757
      %953 = vmatprep.subr.bf16.mxu0 0
      %954 = vmatpush1.bf16.msra.mxu0 %v758
      %955 = vmatprep.subr.bf16.mxu0 0
      %956 = vmatpush1.bf16.msra.mxu0 %v759
      %957 = vmatprep.subr.bf16.mxu0 0
      %958 = vmatpush1.bf16.msra.mxu0 %v760
      %959 = vmatprep.subr.bf16.mxu0 0
      %960 = vmatpush1.bf16.msra.mxu0 %v761
      %961 = vmatprep.subr.bf16.mxu0 0
      %962 = vmatpush1.bf16.msra.mxu0 %v762
      %963 = vmatprep.subr.bf16.mxu0 0
      %964 = vmatpush1.bf16.msra.mxu0 %v763
      %965 = vmatprep.subr.bf16.mxu0 0
      %966 = vmatpush1.bf16.msra.mxu0 %v764
      %967 = vmatprep.subr.bf16.mxu0 0
      %968 = vmatpush1.bf16.msra.mxu0 %v765
      %969 = vmatprep.subr.bf16.mxu0 0
      %970 = vmatpush1.bf16.msra.mxu0 %v766
      %971 = vmatprep.subr.bf16.mxu0 0
      %972 = vmatpush1.bf16.msra.mxu0 %v767
      %973 = vmatprep.subr.bf16.mxu0 0
      %974 = vmatpush1.bf16.msra.mxu0 %v768
      %975 = vmatprep.subr.bf16.mxu0 0
      %976 = vmatpush1.bf16.msra.mxu0 %v769
      %977 = vmatprep.subr.bf16.mxu0 0
      %978 = vmatpush1.bf16.msra.mxu0 %v770
      %979 = vmatprep.mubr.bf16.mxu0 %v409
      %980 = vmatmul.mubr.bf16.gmra.mrb[0].mxu0 %v404
      %v981 = vpop.f32.mrb[0].mxu0
      %v982 = vadd.f32 %v942, %v981
      %v983 = vpop.f32.mrb[0].mxu0
      %v984 = vpop.f32.mrb[0].mxu0
      %v985 = vpop.f32.mrb[0].mxu0
      %986 = vdwg.mxu0
      %987 = vmatprep.subr.bf16.mxu0 0
      %988 = vmatpush1.bf16.msra.mxu0 %v771
      %989 = vmatprep.subr.bf16.mxu0 0
      %990 = vmatpush1.bf16.msra.mxu0 %v772
      %991 = vmatprep.subr.bf16.mxu0 0
      %992 = vmatpush1.bf16.msra.mxu0 %v773
      %993 = vmatprep.subr.bf16.mxu0 0
      %994 = vmatpush1.bf16.msra.mxu0 %v774
      %995 = vmatprep.subr.bf16.mxu0 0
      %996 = vmatpush1.bf16.msra.mxu0 %v775
      %997 = vmatprep.subr.bf16.mxu0 0
      %998 = vmatpush1.bf16.msra.mxu0 %v776
      %999 = vmatprep.subr.bf16.mxu0 0
      %1000 = vmatpush1.bf16.msra.mxu0 %v777
      %1001 = vmatprep.subr.bf16.mxu0 0
      %1002 = vmatpush1.bf16.msra.mxu0 %v778
      %1003 = vmatprep.subr.bf16.mxu0 0
      %1004 = vmatpush1.bf16.msra.mxu0 %v779
      %1005 = vmatprep.subr.bf16.mxu0 0
      %1006 = vmatpush1.bf16.msra.mxu0 %v780
      %1007 = vmatprep.subr.bf16.mxu0 0
      %1008 = vmatpush1.bf16.msra.mxu0 %v781
      %1009 = vmatprep.subr.bf16.mxu0 0
      %1010 = vmatpush1.bf16.msra.mxu0 %v782
      %1011 = vmatprep.subr.bf16.mxu0 0
      %1012 = vmatpush1.bf16.msra.mxu0 %v783
      %1013 = vmatprep.subr.bf16.mxu0 0
      %1014 = vmatpush1.bf16.msra.mxu0 %v784
      %1015 = vmatprep.subr.bf16.mxu0 0
      %1016 = vmatpush1.bf16.msra.mxu0 %v785
      %1017 = vmatprep.subr.bf16.mxu0 0
      %1018 = vmatpush1.bf16.msra.mxu0 %v786
      %1019 = vmatprep.mubr.bf16.mxu0 %v422
      %1020 = vmatmul.mubr.bf16.gmra.mrb[0].mxu0 %v372
      %v1021 = vpop.f32.mrb[0].mxu0
      %v1022 = vadd.f32 %v982, %v1021
      %v1023 = vpop.f32.mrb[0].mxu0
      %v1024 = vpop.f32.mrb[0].mxu0
      %v1025 = vpop.f32.mrb[0].mxu0
      %1026 = vdwg.mxu0
      %1027 = vmatprep.subr.bf16.mxu0 0
      %1028 = vmatpush1.bf16.msra.mxu0 %v787
      %1029 = vmatprep.subr.bf16.mxu0 0
      %1030 = vmatpush1.bf16.msra.mxu0 %v788
      %1031 = vmatprep.subr.bf16.mxu0 0
      %1032 = vmatpush1.bf16.msra.mxu0 %v789
      %1033 = vmatprep.subr.bf16.mxu0 0
      %1034 = vmatpush1.bf16.msra.mxu0 %v790
      %1035 = vmatprep.subr.bf16.mxu0 0
      %1036 = vmatpush1.bf16.msra.mxu0 %v791
      %1037 = vmatprep.subr.bf16.mxu0 0
      %1038 = vmatpush1.bf16.msra.mxu0 %v792
      %1039 = vmatprep.subr.bf16.mxu0 0
      %1040 = vmatpush1.bf16.msra.mxu0 %v793
      %1041 = vmatprep.subr.bf16.mxu0 0
      %1042 = vmatpush1.bf16.msra.mxu0 %v794
      %1043 = vmatprep.subr.bf16.mxu0 0
      %1044 = vmatpush1.bf16.msra.mxu0 0
      %1045 = vmatprep.subr.bf16.mxu0 0
      %1046 = vmatpush1.bf16.msra.mxu0 0
      %1047 = vmatprep.subr.bf16.mxu0 0
      %1048 = vmatpush1.bf16.msra.mxu0 0
      %1049 = vmatprep.subr.bf16.mxu0 0
      %1050 = vmatpush1.bf16.msra.mxu0 0
      %1051 = vmatprep.subr.bf16.mxu0 0
      %1052 = vmatpush1.bf16.msra.mxu0 0
      %1053 = vmatprep.subr.bf16.mxu0 0
      %1054 = vmatpush1.bf16.msra.mxu0 0
      %1055 = vmatprep.subr.bf16.mxu0 0
      %1056 = vmatpush1.bf16.msra.mxu0 0
      %1057 = vmatprep.subr.bf16.mxu0 0
      %1058 = vmatpush1.bf16.msra.mxu0 0
      %1059 = vmatprep.mubr.bf16.mxu0 0
      %1060 = vmatmul.mubr.bf16.gmra.mrb[0].mxu0 %v427
      %v1061 = vpop.f32.mrb[0].mxu0
      %v1062 = vadd.f32 %v1022, %v1061
      %v1063 = vpop.f32.mrb[0].mxu0
      %v1064 = vpop.f32.mrb[0].mxu0
      %v1065 = vpop.f32.mrb[0].mxu0
      %1066 = vdwg.mxu0
      %v1067 = vmin.f32 %v1062, 20.0
      %v1068 = vmul.f32 %v1067, 1.442695
      %v1069 = vpow.pop %v1068
      %v1070 = vadd.f32 %v1069, 2.0
      %v1071 = vmul.f32 %v1069, %v1070
      %v1072 = vadd.f32 %v1071, 2.0
      %v1073 = vrcp.pop %v1072
      %v1074 = vmul.f32 %v1071, %v1073
      %vm1075 = vcmp.gt.f32.partialorder %v1062, 20.0
      %v1076 = vmul.f32 %v1062, %v1074
      %v1077 = vsel %vm1075, %v1062, %v1076
      %v1078 = vld [vmem:[%s212] sm:$0xf]
      %v1079 = vunpack.c.l.bf16 %v1078
      %v1080 = vadd.f32 %v1077, %v1079
      %v1081 = vpack.c.bf16 %v1080, %v1080
      %1082 = vst [vmem:[%s217] sm:$0xf] %v1081
      %v1083 = vld [vmem:[%s367] sm:$0xf]
      %v1084 = vld [vmem:[%s367 + $0x4] sm:$0x1]
      %v1085 = vld [vmem:[%s367] sm:$0xe]
      %v1086 = vld [vmem:[%s371] sm:$0xf]
      %v1087 = vld [vmem:[%s371 + $0x4] sm:$0x1]
      %v1088 = vld [vmem:[%s371] sm:$0xe]
      %s1089 = scalar_lea.vmem %s207, 24
      %v1090 = vld [vmem:[%s1089] sm:$0xf]
      %v1091 = vld [vmem:[%s1089 + $0x4] sm:$0x1]
      %v1092 = vld [vmem:[%s1089] sm:$0xe]
      %v1095 = vunpack.c.l.b16 %v1083
      %v1096 = vunpack.c.l.b16 %v1084
      %v1097 = vpack.c.b16 %v1096, %v1095
      %v1099 = vshrl.u32 %v1097, 16
      %v1101 = vshll.u32 %v1097, 16
      %v1103 = vrot.slane %v1101, 1
      %v1104 = vor.u32 %v1099, %v1103
      %v1107 = vunpack.c.l.b16 %v1085
      %v1108 = vpack.c.b16 %v1096, %v1107
      %v1109 = vrot.slane %v1108, 1
      %v1113 = vunpack.c.l.b16 %v1086
      %v1114 = vunpack.c.l.b16 %v1087
      %v1115 = vpack.c.b16 %v1114, %v1113
      %v1117 = vshrl.u32 %v1115, 16
      %v1119 = vshll.u32 %v1115, 16
      %v1121 = vrot.slane %v1119, 1
      %v1122 = vor.u32 %v1117, %v1121
      %v1125 = vunpack.c.l.b16 %v1088
      %v1126 = vpack.c.b16 %v1114, %v1125
      %v1127 = vrot.slane %v1126, 1
      %v1131 = vunpack.c.l.b16 %v1090
      %v1132 = vunpack.c.l.b16 %v1091
      %v1133 = vpack.c.b16 %v1132, %v1131
      %v1135 = vshrl.u32 %v1133, 16
      %v1137 = vshll.u32 %v1133, 16
      %v1139 = vrot.slane %v1137, 1
      %v1140 = vor.u32 %v1135, %v1139
      %v1143 = vunpack.c.l.b16 %v1092
      %v1144 = vpack.c.b16 %v1132, %v1143
      %v1145 = vrot.slane %v1144, 1
      %1147 = vmatprep.subr.bf16.mxu0 0
      %1148 = vmatpush1.bf16.msra.mxu0 %v723
      %1149 = vmatprep.subr.bf16.mxu0 0
      %1150 = vmatpush1.bf16.msra.mxu0 %v724
      %1151 = vmatprep.subr.bf16.mxu0 0
      %1152 = vmatpush1.bf16.msra.mxu0 %v725
      %1153 = vmatprep.subr.bf16.mxu0 0
      %1154 = vmatpush1.bf16.msra.mxu0 %v726
      %1155 = vmatprep.subr.bf16.mxu0 0
      %1156 = vmatpush1.bf16.msra.mxu0 %v727
      %1157 = vmatprep.subr.bf16.mxu0 0
      %1158 = vmatpush1.bf16.msra.mxu0 %v728
      %1159 = vmatprep.subr.bf16.mxu0 0
      %1160 = vmatpush1.bf16.msra.mxu0 %v729
      %1161 = vmatprep.subr.bf16.mxu0 0
      %1162 = vmatpush1.bf16.msra.mxu0 %v730
      %1163 = vmatprep.subr.bf16.mxu0 0
      %1164 = vmatpush1.bf16.msra.mxu0 %v731
      %1165 = vmatprep.subr.bf16.mxu0 0
      %1166 = vmatpush1.bf16.msra.mxu0 %v732
      %1167 = vmatprep.subr.bf16.mxu0 0
      %1168 = vmatpush1.bf16.msra.mxu0 %v733
      %1169 = vmatprep.subr.bf16.mxu0 0
      %1170 = vmatpush1.bf16.msra.mxu0 %v734
      %1171 = vmatprep.subr.bf16.mxu0 0
      %1172 = vmatpush1.bf16.msra.mxu0 %v735
      %1173 = vmatprep.subr.bf16.mxu0 0
      %1174 = vmatpush1.bf16.msra.mxu0 %v736
      %1175 = vmatprep.subr.bf16.mxu0 0
      %1176 = vmatpush1.bf16.msra.mxu0 %v737
      %1177 = vmatprep.subr.bf16.mxu0 0
      %1178 = vmatpush1.bf16.msra.mxu0 %v738
      %1179 = vmatprep.mubr.bf16.mxu0 %v1104
      %1180 = vmatmul.mubr.bf16.gmra.mrb[0].mxu0 %v1083
      %v1181 = vpop.f32.mrb[0].mxu0
      %v1182 = vadd.f32 %v433, %v1181
      %v1183 = vpop.f32.mrb[0].mxu0
      %v1184 = vpop.f32.mrb[0].mxu0
      %v1185 = vpop.f32.mrb[0].mxu0
      %1186 = vdwg.mxu0
      %1187 = vmatprep.subr.bf16.mxu0 0
      %1188 = vmatpush1.bf16.msra.mxu0 %v739
      %1189 = vmatprep.subr.bf16.mxu0 0
      %1190 = vmatpush1.bf16.msra.mxu0 %v740
      %1191 = vmatprep.subr.bf16.mxu0 0
      %1192 = vmatpush1.bf16.msra.mxu0 %v741
      %1193 = vmatprep.subr.bf16.mxu0 0
      %1194 = vmatpush1.bf16.msra.mxu0 %v742
      %1195 = vmatprep.subr.bf16.mxu0 0
      %1196 = vmatpush1.bf16.msra.mxu0 %v743
      %1197 = vmatprep.subr.bf16.mxu0 0
      %1198 = vmatpush1.bf16.msra.mxu0 %v744
      %1199 = vmatprep.subr.bf16.mxu0 0
      %1200 = vmatpush1.bf16.msra.mxu0 %v745
      %1201 = vmatprep.subr.bf16.mxu0 0
      %1202 = vmatpush1.bf16.msra.mxu0 %v746
      %1203 = vmatprep.subr.bf16.mxu0 0
      %1204 = vmatpush1.bf16.msra.mxu0 %v747
      %1205 = vmatprep.subr.bf16.mxu0 0
      %1206 = vmatpush1.bf16.msra.mxu0 %v748
      %1207 = vmatprep.subr.bf16.mxu0 0
      %1208 = vmatpush1.bf16.msra.mxu0 %v749
      %1209 = vmatprep.subr.bf16.mxu0 0
      %1210 = vmatpush1.bf16.msra.mxu0 %v750
      %1211 = vmatprep.subr.bf16.mxu0 0
      %1212 = vmatpush1.bf16.msra.mxu0 %v751
      %1213 = vmatprep.subr.bf16.mxu0 0
      %1214 = vmatpush1.bf16.msra.mxu0 %v752
      %1215 = vmatprep.subr.bf16.mxu0 0
      %1216 = vmatpush1.bf16.msra.mxu0 %v753
      %1217 = vmatprep.subr.bf16.mxu0 0
      %1218 = vmatpush1.bf16.msra.mxu0 %v754
      %1219 = vmatprep.mubr.bf16.mxu0 %v1086
      %1220 = vmatmul.mubr.bf16.gmra.mrb[0].mxu0 %v1109
      %v1221 = vpop.f32.mrb[0].mxu0
      %v1222 = vadd.f32 %v1182, %v1221
      %v1223 = vpop.f32.mrb[0].mxu0
      %v1224 = vpop.f32.mrb[0].mxu0
      %v1225 = vpop.f32.mrb[0].mxu0
      %1226 = vdwg.mxu0
      %1227 = vmatprep.subr.bf16.mxu0 0
      %1228 = vmatpush1.bf16.msra.mxu0 %v755
      %1229 = vmatprep.subr.bf16.mxu0 0
      %1230 = vmatpush1.bf16.msra.mxu0 %v756
      %1231 = vmatprep.subr.bf16.mxu0 0
      %1232 = vmatpush1.bf16.msra.mxu0 %v757
      %1233 = vmatprep.subr.bf16.mxu0 0
      %1234 = vmatpush1.bf16.msra.mxu0 %v758
      %1235 = vmatprep.subr.bf16.mxu0 0
      %1236 = vmatpush1.bf16.msra.mxu0 %v759
      %1237 = vmatprep.subr.bf16.mxu0 0
      %1238 = vmatpush1.bf16.msra.mxu0 %v760
      %1239 = vmatprep.subr.bf16.mxu0 0
      %1240 = vmatpush1.bf16.msra.mxu0 %v761
      %1241 = vmatprep.subr.bf16.mxu0 0
      %1242 = vmatpush1.bf16.msra.mxu0 %v762
      %1243 = vmatprep.subr.bf16.mxu0 0
      %1244 = vmatpush1.bf16.msra.mxu0 %v763
      %1245 = vmatprep.subr.bf16.mxu0 0
      %1246 = vmatpush1.bf16.msra.mxu0 %v764
      %1247 = vmatprep.subr.bf16.mxu0 0
      %1248 = vmatpush1.bf16.msra.mxu0 %v765
      %1249 = vmatprep.subr.bf16.mxu0 0
      %1250 = vmatpush1.bf16.msra.mxu0 %v766
      %1251 = vmatprep.subr.bf16.mxu0 0
      %1252 = vmatpush1.bf16.msra.mxu0 %v767
      %1253 = vmatprep.subr.bf16.mxu0 0
      %1254 = vmatpush1.bf16.msra.mxu0 %v768
      %1255 = vmatprep.subr.bf16.mxu0 0
      %1256 = vmatpush1.bf16.msra.mxu0 %v769
      %1257 = vmatprep.subr.bf16.mxu0 0
      %1258 = vmatpush1.bf16.msra.mxu0 %v770
      %1259 = vmatprep.mubr.bf16.mxu0 %v1127
      %1260 = vmatmul.mubr.bf16.gmra.mrb[0].mxu0 %v1122
      %v1261 = vpop.f32.mrb[0].mxu0
      %v1262 = vadd.f32 %v1222, %v1261
      %v1263 = vpop.f32.mrb[0].mxu0
      %v1264 = vpop.f32.mrb[0].mxu0
      %v1265 = vpop.f32.mrb[0].mxu0
      %1266 = vdwg.mxu0
      %1267 = vmatprep.subr.bf16.mxu0 0
      %1268 = vmatpush1.bf16.msra.mxu0 %v771
      %1269 = vmatprep.subr.bf16.mxu0 0
      %1270 = vmatpush1.bf16.msra.mxu0 %v772
      %1271 = vmatprep.subr.bf16.mxu0 0
      %1272 = vmatpush1.bf16.msra.mxu0 %v773
      %1273 = vmatprep.subr.bf16.mxu0 0
      %1274 = vmatpush1.bf16.msra.mxu0 %v774
      %1275 = vmatprep.subr.bf16.mxu0 0
      %1276 = vmatpush1.bf16.msra.mxu0 %v775
      %1277 = vmatprep.subr.bf16.mxu0 0
      %1278 = vmatpush1.bf16.msra.mxu0 %v776
      %1279 = vmatprep.subr.bf16.mxu0 0
      %1280 = vmatpush1.bf16.msra.mxu0 %v777
      %1281 = vmatprep.subr.bf16.mxu0 0
      %1282 = vmatpush1.bf16.msra.mxu0 %v778
      %1283 = vmatprep.subr.bf16.mxu0 0
      %1284 = vmatpush1.bf16.msra.mxu0 %v779
      %1285 = vmatprep.subr.bf16.mxu0 0
      %1286 = vmatpush1.bf16.msra.mxu0 %v780
      %1287 = vmatprep.subr.bf16.mxu0 0
      %1288 = vmatpush1.bf16.msra.mxu0 %v781
      %1289 = vmatprep.subr.bf16.mxu0 0
      %1290 = vmatpush1.bf16.msra.mxu0 %v782
      %1291 = vmatprep.subr.bf16.mxu0 0
      %1292 = vmatpush1.bf16.msra.mxu0 %v783
      %1293 = vmatprep.subr.bf16.mxu0 0
      %1294 = vmatpush1.bf16.msra.mxu0 %v784
      %1295 = vmatprep.subr.bf16.mxu0 0
      %1296 = vmatpush1.bf16.msra.mxu0 %v785
      %1297 = vmatprep.subr.bf16.mxu0 0
      %1298 = vmatpush1.bf16.msra.mxu0 %v786
      %1299 = vmatprep.mubr.bf16.mxu0 %v1140
      %1300 = vmatmul.mubr.bf16.gmra.mrb[0].mxu0 %v1090
      %v1301 = vpop.f32.mrb[0].mxu0
      %v1302 = vadd.f32 %v1262, %v1301
      %v1303 = vpop.f32.mrb[0].mxu0
      %v1304 = vpop.f32.mrb[0].mxu0
      %v1305 = vpop.f32.mrb[0].mxu0
      %1306 = vdwg.mxu0
      %1307 = vmatprep.subr.bf16.mxu0 0
      %1308 = vmatpush1.bf16.msra.mxu0 %v787
      %1309 = vmatprep.subr.bf16.mxu0 0
      %1310 = vmatpush1.bf16.msra.mxu0 %v788
      %1311 = vmatprep.subr.bf16.mxu0 0
      %1312 = vmatpush1.bf16.msra.mxu0 %v789
      %1313 = vmatprep.subr.bf16.mxu0 0
      %1314 = vmatpush1.bf16.msra.mxu0 %v790
      %1315 = vmatprep.subr.bf16.mxu0 0
      %1316 = vmatpush1.bf16.msra.mxu0 %v791
      %1317 = vmatprep.subr.bf16.mxu0 0
      %1318 = vmatpush1.bf16.msra.mxu0 %v792
      %1319 = vmatprep.subr.bf16.mxu0 0
      %1320 = vmatpush1.bf16.msra.mxu0 %v793
      %1321 = vmatprep.subr.bf16.mxu0 0
      %1322 = vmatpush1.bf16.msra.mxu0 %v794
      %1323 = vmatprep.subr.bf16.mxu0 0
      %1324 = vmatpush1.bf16.msra.mxu0 0
      %1325 = vmatprep.subr.bf16.mxu0 0
      %1326 = vmatpush1.bf16.msra.mxu0 0
      %1327 = vmatprep.subr.bf16.mxu0 0
      %1328 = vmatpush1.bf16.msra.mxu0 0
      %1329 = vmatprep.subr.bf16.mxu0 0
      %1330 = vmatpush1.bf16.msra.mxu0 0
      %1331 = vmatprep.subr.bf16.mxu0 0
      %1332 = vmatpush1.bf16.msra.mxu0 0
      %1333 = vmatprep.subr.bf16.mxu0 0
      %1334 = vmatpush1.bf16.msra.mxu0 0
      %1335 = vmatprep.subr.bf16.mxu0 0
      %1336 = vmatpush1.bf16.msra.mxu0 0
      %1337 = vmatprep.subr.bf16.mxu0 0
      %1338 = vmatpush1.bf16.msra.mxu0 0
      %1339 = vmatprep.mubr.bf16.mxu0 0
      %1340 = vmatmul.mubr.bf16.gmra.mrb[0].mxu0 %v1145
      %v1341 = vpop.f32.mrb[0].mxu0
      %v1342 = vadd.f32 %v1302, %v1341
      %v1343 = vpop.f32.mrb[0].mxu0
      %v1344 = vpop.f32.mrb[0].mxu0
      %v1345 = vpop.f32.mrb[0].mxu0
      %1346 = vdwg.mxu0
      %v1347 = vmin.f32 %v1342, 20.0
      %v1348 = vmul.f32 %v1347, 1.442695
      %v1349 = vpow.pop %v1348
      %v1350 = vadd.f32 %v1349, 2.0
      %v1351 = vmul.f32 %v1349, %v1350
      %v1352 = vadd.f32 %v1351, 2.0
      %v1353 = vrcp.pop %v1352
      %v1354 = vmul.f32 %v1351, %v1353
      %vm1355 = vcmp.gt.f32.partialorder %v1342, 20.0
      %v1356 = vmul.f32 %v1342, %v1354
      %v1357 = vsel %vm1355, %v1342, %v1356
      %s1358 = scalar_lea.vmem %s212, 4
      %v1359 = vld [vmem:[%s1358] sm:$0xf]
      %v1360 = vunpack.c.l.bf16 %v1359
      %v1361 = vadd.f32 %v1357, %v1360
      %v1362 = vpack.c.bf16 %v1361, %v1361
      %s1363 = scalar_lea.vmem %s217, 4
      %1364 = vst [vmem:[%s1363] sm:$0xf] %v1362
      %v1365 = vld [vmem:[%s371] sm:$0xf]
      %v1366 = vld [vmem:[%s371 + $0x4] sm:$0x1]
      %v1367 = vld [vmem:[%s371] sm:$0xe]
      %v1368 = vld [vmem:[%s1089] sm:$0xf]
      %v1369 = vld [vmem:[%s1089 + $0x4] sm:$0x1]
      %v1370 = vld [vmem:[%s1089] sm:$0xe]
      %s1371 = scalar_lea.vmem %s207, 32
      %v1372 = vld [vmem:[%s1371] sm:$0xf]
      %v1373 = vld [vmem:[%s1371 + $0x4] sm:$0x1]
      %v1374 = vld [vmem:[%s1371] sm:$0xe]
      %v1377 = vunpack.c.l.b16 %v1365
      %v1378 = vunpack.c.l.b16 %v1366
      %v1379 = vpack.c.b16 %v1378, %v1377
      %v1381 = vshrl.u32 %v1379, 16
      %v1383 = vshll.u32 %v1379, 16
      %v1385 = vrot.slane %v1383, 1
      %v1386 = vor.u32 %v1381, %v1385
      %v1389 = vunpack.c.l.b16 %v1367
      %v1390 = vpack.c.b16 %v1378, %v1389
      %v1391 = vrot.slane %v1390, 1
      %v1395 = vunpack.c.l.b16 %v1368
      %v1396 = vunpack.c.l.b16 %v1369
      %v1397 = vpack.c.b16 %v1396, %v1395
      %v1399 = vshrl.u32 %v1397, 16
      %v1401 = vshll.u32 %v1397, 16
      %v1403 = vrot.slane %v1401, 1
      %v1404 = vor.u32 %v1399, %v1403
      %v1407 = vunpack.c.l.b16 %v1370
      %v1408 = vpack.c.b16 %v1396, %v1407
      %v1409 = vrot.slane %v1408, 1
      %v1413 = vunpack.c.l.b16 %v1372
      %v1414 = vunpack.c.l.b16 %v1373
      %v1415 = vpack.c.b16 %v1414, %v1413
      %v1417 = vshrl.u32 %v1415, 16
      %v1419 = vshll.u32 %v1415, 16
      %v1421 = vrot.slane %v1419, 1
      %v1422 = vor.u32 %v1417, %v1421
      %v1425 = vunpack.c.l.b16 %v1374
      %v1426 = vpack.c.b16 %v1414, %v1425
      %v1427 = vrot.slane %v1426, 1
      %1429 = vmatprep.subr.bf16.mxu0 0
      %1430 = vmatpush1.bf16.msra.mxu0 %v723
      %1431 = vmatprep.subr.bf16.mxu0 0
      %1432 = vmatpush1.bf16.msra.mxu0 %v724
      %1433 = vmatprep.subr.bf16.mxu0 0
      %1434 = vmatpush1.bf16.msra.mxu0 %v725
      %1435 = vmatprep.subr.bf16.mxu0 0
      %1436 = vmatpush1.bf16.msra.mxu0 %v726
      %1437 = vmatprep.subr.bf16.mxu0 0
      %1438 = vmatpush1.bf16.msra.mxu0 %v727
      %1439 = vmatprep.subr.bf16.mxu0 0
      %1440 = vmatpush1.bf16.msra.mxu0 %v728
      %1441 = vmatprep.subr.bf16.mxu0 0
      %1442 = vmatpush1.bf16.msra.mxu0 %v729
      %1443 = vmatprep.subr.bf16.mxu0 0
      %1444 = vmatpush1.bf16.msra.mxu0 %v730
      %1445 = vmatprep.subr.bf16.mxu0 0
      %1446 = vmatpush1.bf16.msra.mxu0 %v731
      %1447 = vmatprep.subr.bf16.mxu0 0
      %1448 = vmatpush1.bf16.msra.mxu0 %v732
      %1449 = vmatprep.subr.bf16.mxu0 0
      %1450 = vmatpush1.bf16.msra.mxu0 %v733
      %1451 = vmatprep.subr.bf16.mxu0 0
      %1452 = vmatpush1.bf16.msra.mxu0 %v734
      %1453 = vmatprep.subr.bf16.mxu0 0
      %1454 = vmatpush1.bf16.msra.mxu0 %v735
      %1455 = vmatprep.subr.bf16.mxu0 0
      %1456 = vmatpush1.bf16.msra.mxu0 %v736
      %1457 = vmatprep.subr.bf16.mxu0 0
      %1458 = vmatpush1.bf16.msra.mxu0 %v737
      %1459 = vmatprep.subr.bf16.mxu0 0
      %1460 = vmatpush1.bf16.msra.mxu0 %v738
      %1461 = vmatprep.mubr.bf16.mxu0 %v1386
      %1462 = vmatmul.mubr.bf16.gmra.mrb[0].mxu0 %v1365
      %v1463 = vpop.f32.mrb[0].mxu0
      %v1464 = vadd.f32 %v433, %v1463
      %v1465 = vpop.f32.mrb[0].mxu0
      %v1466 = vpop.f32.mrb[0].mxu0
      %v1467 = vpop.f32.mrb[0].mxu0
      %1468 = vdwg.mxu0
      %1469 = vmatprep.subr.bf16.mxu0 0
      %1470 = vmatpush1.bf16.msra.mxu0 %v739
      %1471 = vmatprep.subr.bf16.mxu0 0
      %1472 = vmatpush1.bf16.msra.mxu0 %v740
      %1473 = vmatprep.subr.bf16.mxu0 0
      %1474 = vmatpush1.bf16.msra.mxu0 %v741
      %1475 = vmatprep.subr.bf16.mxu0 0
      %1476 = vmatpush1.bf16.msra.mxu0 %v742
      %1477 = vmatprep.subr.bf16.mxu0 0
      %1478 = vmatpush1.bf16.msra.mxu0 %v743
      %1479 = vmatprep.subr.bf16.mxu0 0
      %1480 = vmatpush1.bf16.msra.mxu0 %v744
      %1481 = vmatprep.subr.bf16.mxu0 0
      %1482 = vmatpush1.bf16.msra.mxu0 %v745
      %1483 = vmatprep.subr.bf16.mxu0 0
      %1484 = vmatpush1.bf16.msra.mxu0 %v746
      %1485 = vmatprep.subr.bf16.mxu0 0
      %1486 = vmatpush1.bf16.msra.mxu0 %v747
      %1487 = vmatprep.subr.bf16.mxu0 0
      %1488 = vmatpush1.bf16.msra.mxu0 %v748
      %1489 = vmatprep.subr.bf16.mxu0 0
      %1490 = vmatpush1.bf16.msra.mxu0 %v749
      %1491 = vmatprep.subr.bf16.mxu0 0
      %1492 = vmatpush1.bf16.msra.mxu0 %v750
      %1493 = vmatprep.subr.bf16.mxu0 0
      %1494 = vmatpush1.bf16.msra.mxu0 %v751
      %1495 = vmatprep.subr.bf16.mxu0 0
      %1496 = vmatpush1.bf16.msra.mxu0 %v752
      %1497 = vmatprep.subr.bf16.mxu0 0
      %1498 = vmatpush1.bf16.msra.mxu0 %v753
      %1499 = vmatprep.subr.bf16.mxu0 0
      %1500 = vmatpush1.bf16.msra.mxu0 %v754
      %1501 = vmatprep.mubr.bf16.mxu0 %v1368
      %1502 = vmatmul.mubr.bf16.gmra.mrb[0].mxu0 %v1391
      %v1503 = vpop.f32.mrb[0].mxu0
      %v1504 = vadd.f32 %v1464, %v1503
      %v1505 = vpop.f32.mrb[0].mxu0
      %v1506 = vpop.f32.mrb[0].mxu0
      %v1507 = vpop.f32.mrb[0].mxu0
      %1508 = vdwg.mxu0
      %1509 = vmatprep.subr.bf16.mxu0 0
      %1510 = vmatpush1.bf16.msra.mxu0 %v755
      %1511 = vmatprep.subr.bf16.mxu0 0
      %1512 = vmatpush1.bf16.msra.mxu0 %v756
      %1513 = vmatprep.subr.bf16.mxu0 0
      %1514 = vmatpush1.bf16.msra.mxu0 %v757
      %1515 = vmatprep.subr.bf16.mxu0 0
      %1516 = vmatpush1.bf16.msra.mxu0 %v758
      %1517 = vmatprep.subr.bf16.mxu0 0
      %1518 = vmatpush1.bf16.msra.mxu0 %v759
      %1519 = vmatprep.subr.bf16.mxu0 0
      %1520 = vmatpush1.bf16.msra.mxu0 %v760
      %1521 = vmatprep.subr.bf16.mxu0 0
      %1522 = vmatpush1.bf16.msra.mxu0 %v761
      %1523 = vmatprep.subr.bf16.mxu0 0
      %1524 = vmatpush1.bf16.msra.mxu0 %v762
      %1525 = vmatprep.subr.bf16.mxu0 0
      %1526 = vmatpush1.bf16.msra.mxu0 %v763
      %1527 = vmatprep.subr.bf16.mxu0 0
      %1528 = vmatpush1.bf16.msra.mxu0 %v764
      %1529 = vmatprep.subr.bf16.mxu0 0
      %1530 = vmatpush1.bf16.msra.mxu0 %v765
      %1531 = vmatprep.subr.bf16.mxu0 0
      %1532 = vmatpush1.bf16.msra.mxu0 %v766
      %1533 = vmatprep.subr.bf16.mxu0 0
      %1534 = vmatpush1.bf16.msra.mxu0 %v767
      %1535 = vmatprep.subr.bf16.mxu0 0
      %1536 = vmatpush1.bf16.msra.mxu0 %v768
      %1537 = vmatprep.subr.bf16.mxu0 0
      %1538 = vmatpush1.bf16.msra.mxu0 %v769
      %1539 = vmatprep.subr.bf16.mxu0 0
      %1540 = vmatpush1.bf16.msra.mxu0 %v770
      %1541 = vmatprep.mubr.bf16.mxu0 %v1409
      %1542 = vmatmul.mubr.bf16.gmra.mrb[0].mxu0 %v1404
      %v1543 = vpop.f32.mrb[0].mxu0
      %v1544 = vadd.f32 %v1504, %v1543
      %v1545 = vpop.f32.mrb[0].mxu0
      %v1546 = vpop.f32.mrb[0].mxu0
      %v1547 = vpop.f32.mrb[0].mxu0
      %1548 = vdwg.mxu0
      %1549 = vmatprep.subr.bf16.mxu0 0
      %1550 = vmatpush1.bf16.msra.mxu0 %v771
      %1551 = vmatprep.subr.bf16.mxu0 0
      %1552 = vmatpush1.bf16.msra.mxu0 %v772
      %1553 = vmatprep.subr.bf16.mxu0 0
      %1554 = vmatpush1.bf16.msra.mxu0 %v773
      %1555 = vmatprep.subr.bf16.mxu0 0
      %1556 = vmatpush1.bf16.msra.mxu0 %v774
      %1557 = vmatprep.subr.bf16.mxu0 0
      %1558 = vmatpush1.bf16.msra.mxu0 %v775
      %1559 = vmatprep.subr.bf16.mxu0 0
      %1560 = vmatpush1.bf16.msra.mxu0 %v776
      %1561 = vmatprep.subr.bf16.mxu0 0
      %1562 = vmatpush1.bf16.msra.mxu0 %v777
      %1563 = vmatprep.subr.bf16.mxu0 0
      %1564 = vmatpush1.bf16.msra.mxu0 %v778
      %1565 = vmatprep.subr.bf16.mxu0 0
      %1566 = vmatpush1.bf16.msra.mxu0 %v779
      %1567 = vmatprep.subr.bf16.mxu0 0
      %1568 = vmatpush1.bf16.msra.mxu0 %v780
      %1569 = vmatprep.subr.bf16.mxu0 0
      %1570 = vmatpush1.bf16.msra.mxu0 %v781
      %1571 = vmatprep.subr.bf16.mxu0 0
      %1572 = vmatpush1.bf16.msra.mxu0 %v782
      %1573 = vmatprep.subr.bf16.mxu0 0
      %1574 = vmatpush1.bf16.msra.mxu0 %v783
      %1575 = vmatprep.subr.bf16.mxu0 0
      %1576 = vmatpush1.bf16.msra.mxu0 %v784
      %1577 = vmatprep.subr.bf16.mxu0 0
      %1578 = vmatpush1.bf16.msra.mxu0 %v785
      %1579 = vmatprep.subr.bf16.mxu0 0
      %1580 = vmatpush1.bf16.msra.mxu0 %v786
      %1581 = vmatprep.mubr.bf16.mxu0 %v1422
      %1582 = vmatmul.mubr.bf16.gmra.mrb[0].mxu0 %v1372
      %v1583 = vpop.f32.mrb[0].mxu0
      %v1584 = vadd.f32 %v1544, %v1583
      %v1585 = vpop.f32.mrb[0].mxu0
      %v1586 = vpop.f32.mrb[0].mxu0
      %v1587 = vpop.f32.mrb[0].mxu0
      %1588 = vdwg.mxu0
      %1589 = vmatprep.subr.bf16.mxu0 0
      %1590 = vmatpush1.bf16.msra.mxu0 %v787
      %1591 = vmatprep.subr.bf16.mxu0 0
      %1592 = vmatpush1.bf16.msra.mxu0 %v788
      %1593 = vmatprep.subr.bf16.mxu0 0
      %1594 = vmatpush1.bf16.msra.mxu0 %v789
      %1595 = vmatprep.subr.bf16.mxu0 0
      %1596 = vmatpush1.bf16.msra.mxu0 %v790
      %1597 = vmatprep.subr.bf16.mxu0 0
      %1598 = vmatpush1.bf16.msra.mxu0 %v791
      %1599 = vmatprep.subr.bf16.mxu0 0
      %1600 = vmatpush1.bf16.msra.mxu0 %v792
      %1601 = vmatprep.subr.bf16.mxu0 0
      %1602 = vmatpush1.bf16.msra.mxu0 %v793
      %1603 = vmatprep.subr.bf16.mxu0 0
      %1604 = vmatpush1.bf16.msra.mxu0 %v794
      %1605 = vmatprep.subr.bf16.mxu0 0
      %1606 = vmatpush1.bf16.msra.mxu0 0
      %1607 = vmatprep.subr.bf16.mxu0 0
      %1608 = vmatpush1.bf16.msra.mxu0 0
      %1609 = vmatprep.subr.bf16.mxu0 0
      %1610 = vmatpush1.bf16.msra.mxu0 0
      %1611 = vmatprep.subr.bf16.mxu0 0
      %1612 = vmatpush1.bf16.msra.mxu0 0
      %1613 = vmatprep.subr.bf16.mxu0 0
      %1614 = vmatpush1.bf16.msra.mxu0 0
      %1615 = vmatprep.subr.bf16.mxu0 0
      %1616 = vmatpush1.bf16.msra.mxu0 0
      %1617 = vmatprep.subr.bf16.mxu0 0
      %1618 = vmatpush1.bf16.msra.mxu0 0
      %1619 = vmatprep.subr.bf16.mxu0 0
      %1620 = vmatpush1.bf16.msra.mxu0 0
      %1621 = vmatprep.mubr.bf16.mxu0 0
      %1622 = vmatmul.mubr.bf16.gmra.mrb[0].mxu0 %v1427
      %v1623 = vpop.f32.mrb[0].mxu0
      %v1624 = vadd.f32 %v1584, %v1623
      %v1625 = vpop.f32.mrb[0].mxu0
      %v1626 = vpop.f32.mrb[0].mxu0
      %v1627 = vpop.f32.mrb[0].mxu0
      %1628 = vdwg.mxu0
      %v1629 = vmin.f32 %v1624, 20.0
      %v1630 = vmul.f32 %v1629, 1.442695
      %v1631 = vpow.pop %v1630
      %v1632 = vadd.f32 %v1631, 2.0
      %v1633 = vmul.f32 %v1631, %v1632
      %v1634 = vadd.f32 %v1633, 2.0
      %v1635 = vrcp.pop %v1634
      %v1636 = vmul.f32 %v1633, %v1635
      %vm1637 = vcmp.gt.f32.partialorder %v1624, 20.0
      %v1638 = vmul.f32 %v1624, %v1636
      %v1639 = vsel %vm1637, %v1624, %v1638
      %s1640 = scalar_lea.vmem %s212, 8
      %v1641 = vld [vmem:[%s1640] sm:$0xf]
      %v1642 = vunpack.c.l.bf16 %v1641
      %v1643 = vadd.f32 %v1639, %v1642
      %v1644 = vpack.c.bf16 %v1643, %v1643
      %s1645 = scalar_lea.vmem %s217, 8
      %1646 = vst [vmem:[%s1645] sm:$0xf] %v1644
      %v1647 = vld [vmem:[%s1089] sm:$0xf]
      %v1648 = vld [vmem:[%s1089 + $0x4] sm:$0x1]
      %v1649 = vld [vmem:[%s1089] sm:$0xe]
      %v1650 = vld [vmem:[%s1371] sm:$0xf]
      %v1651 = vld [vmem:[%s1371 + $0x4] sm:$0x1]
      %v1652 = vld [vmem:[%s1371] sm:$0xe]
      %s1653 = scalar_lea.vmem %s207, 40
      %v1654 = vld [vmem:[%s1653] sm:$0xf]
      %v1655 = vld [vmem:[%s1653 + $0x4] sm:$0x1]
      %v1656 = vld [vmem:[%s1653] sm:$0xe]
      %v1659 = vunpack.c.l.b16 %v1647
      %v1660 = vunpack.c.l.b16 %v1648
      %v1661 = vpack.c.b16 %v1660, %v1659
      %v1663 = vshrl.u32 %v1661, 16
      %v1665 = vshll.u32 %v1661, 16
      %v1667 = vrot.slane %v1665, 1
      %v1668 = vor.u32 %v1663, %v1667
      %v1671 = vunpack.c.l.b16 %v1649
      %v1672 = vpack.c.b16 %v1660, %v1671
      %v1673 = vrot.slane %v1672, 1
      %v1677 = vunpack.c.l.b16 %v1650
      %v1678 = vunpack.c.l.b16 %v1651
      %v1679 = vpack.c.b16 %v1678, %v1677
      %v1681 = vshrl.u32 %v1679, 16
      %v1683 = vshll.u32 %v1679, 16
      %v1685 = vrot.slane %v1683, 1
      %v1686 = vor.u32 %v1681, %v1685
      %v1689 = vunpack.c.l.b16 %v1652
      %v1690 = vpack.c.b16 %v1678, %v1689
      %v1691 = vrot.slane %v1690, 1
      %v1695 = vunpack.c.l.b16 %v1654
      %v1696 = vunpack.c.l.b16 %v1655
      %v1697 = vpack.c.b16 %v1696, %v1695
      %v1699 = vshrl.u32 %v1697, 16
      %v1701 = vshll.u32 %v1697, 16
      %v1703 = vrot.slane %v1701, 1
      %v1704 = vor.u32 %v1699, %v1703
      %v1707 = vunpack.c.l.b16 %v1656
      %v1708 = vpack.c.b16 %v1696, %v1707
      %v1709 = vrot.slane %v1708, 1
      %1711 = vmatprep.subr.bf16.mxu0 0
      %1712 = vmatpush1.bf16.msra.mxu0 %v723
      %1713 = vmatprep.subr.bf16.mxu0 0
      %1714 = vmatpush1.bf16.msra.mxu0 %v724
      %1715 = vmatprep.subr.bf16.mxu0 0
      %1716 = vmatpush1.bf16.msra.mxu0 %v725
      %1717 = vmatprep.subr.bf16.mxu0 0
      %1718 = vmatpush1.bf16.msra.mxu0 %v726
      %1719 = vmatprep.subr.bf16.mxu0 0
      %1720 = vmatpush1.bf16.msra.mxu0 %v727
      %1721 = vmatprep.subr.bf16.mxu0 0
      %1722 = vmatpush1.bf16.msra.mxu0 %v728
      %1723 = vmatprep.subr.bf16.mxu0 0
      %1724 = vmatpush1.bf16.msra.mxu0 %v729
      %1725 = vmatprep.subr.bf16.mxu0 0
      %1726 = vmatpush1.bf16.msra.mxu0 %v730
      %1727 = vmatprep.subr.bf16.mxu0 0
      %1728 = vmatpush1.bf16.msra.mxu0 %v731
      %1729 = vmatprep.subr.bf16.mxu0 0
      %1730 = vmatpush1.bf16.msra.mxu0 %v732
      %1731 = vmatprep.subr.bf16.mxu0 0
      %1732 = vmatpush1.bf16.msra.mxu0 %v733
      %1733 = vmatprep.subr.bf16.mxu0 0
      %1734 = vmatpush1.bf16.msra.mxu0 %v734
      %1735 = vmatprep.subr.bf16.mxu0 0
      %1736 = vmatpush1.bf16.msra.mxu0 %v735
      %1737 = vmatprep.subr.bf16.mxu0 0
      %1738 = vmatpush1.bf16.msra.mxu0 %v736
      %1739 = vmatprep.subr.bf16.mxu0 0
      %1740 = vmatpush1.bf16.msra.mxu0 %v737
      %1741 = vmatprep.subr.bf16.mxu0 0
      %1742 = vmatpush1.bf16.msra.mxu0 %v738
      %1743 = vmatprep.mubr.bf16.mxu0 %v1668
      %1744 = vmatmul.mubr.bf16.gmra.mrb[0].mxu0 %v1647
      %v1745 = vpop.f32.mrb[0].mxu0
      %v1746 = vadd.f32 %v433, %v1745
      %v1747 = vpop.f32.mrb[0].mxu0
      %v1748 = vpop.f32.mrb[0].mxu0
      %v1749 = vpop.f32.mrb[0].mxu0
      %1750 = vdwg.mxu0
      %1751 = vmatprep.subr.bf16.mxu0 0
      %1752 = vmatpush1.bf16.msra.mxu0 %v739
      %1753 = vmatprep.subr.bf16.mxu0 0
      %1754 = vmatpush1.bf16.msra.mxu0 %v740
      %1755 = vmatprep.subr.bf16.mxu0 0
      %1756 = vmatpush1.bf16.msra.mxu0 %v741
      %1757 = vmatprep.subr.bf16.mxu0 0
      %1758 = vmatpush1.bf16.msra.mxu0 %v742
      %1759 = vmatprep.subr.bf16.mxu0 0
      %1760 = vmatpush1.bf16.msra.mxu0 %v743
      %1761 = vmatprep.subr.bf16.mxu0 0
      %1762 = vmatpush1.bf16.msra.mxu0 %v744
      %1763 = vmatprep.subr.bf16.mxu0 0
      %1764 = vmatpush1.bf16.msra.mxu0 %v745
      %1765 = vmatprep.subr.bf16.mxu0 0
      %1766 = vmatpush1.bf16.msra.mxu0 %v746
      %1767 = vmatprep.subr.bf16.mxu0 0
      %1768 = vmatpush1.bf16.msra.mxu0 %v747
      %1769 = vmatprep.subr.bf16.mxu0 0
      %1770 = vmatpush1.bf16.msra.mxu0 %v748
      %1771 = vmatprep.subr.bf16.mxu0 0
      %1772 = vmatpush1.bf16.msra.mxu0 %v749
      %1773 = vmatprep.subr.bf16.mxu0 0
      %1774 = vmatpush1.bf16.msra.mxu0 %v750
      %1775 = vmatprep.subr.bf16.mxu0 0
      %1776 = vmatpush1.bf16.msra.mxu0 %v751
      %1777 = vmatprep.subr.bf16.mxu0 0
      %1778 = vmatpush1.bf16.msra.mxu0 %v752
      %1779 = vmatprep.subr.bf16.mxu0 0
      %1780 = vmatpush1.bf16.msra.mxu0 %v753
      %1781 = vmatprep.subr.bf16.mxu0 0
      %1782 = vmatpush1.bf16.msra.mxu0 %v754
      %1783 = vmatprep.mubr.bf16.mxu0 %v1650
      %1784 = vmatmul.mubr.bf16.gmra.mrb[0].mxu0 %v1673
      %v1785 = vpop.f32.mrb[0].mxu0
      %v1786 = vadd.f32 %v1746, %v1785
      %v1787 = vpop.f32.mrb[0].mxu0
      %v1788 = vpop.f32.mrb[0].mxu0
      %v1789 = vpop.f32.mrb[0].mxu0
      %1790 = vdwg.mxu0
      %1791 = vmatprep.subr.bf16.mxu0 0
      %1792 = vmatpush1.bf16.msra.mxu0 %v755
      %1793 = vmatprep.subr.bf16.mxu0 0
      %1794 = vmatpush1.bf16.msra.mxu0 %v756
      %1795 = vmatprep.subr.bf16.mxu0 0
      %1796 = vmatpush1.bf16.msra.mxu0 %v757
      %1797 = vmatprep.subr.bf16.mxu0 0
      %1798 = vmatpush1.bf16.msra.mxu0 %v758
      %1799 = vmatprep.subr.bf16.mxu0 0
      %1800 = vmatpush1.bf16.msra.mxu0 %v759
      %1801 = vmatprep.subr.bf16.mxu0 0
      %1802 = vmatpush1.bf16.msra.mxu0 %v760
      %1803 = vmatprep.subr.bf16.mxu0 0
      %1804 = vmatpush1.bf16.msra.mxu0 %v761
      %1805 = vmatprep.subr.bf16.mxu0 0
      %1806 = vmatpush1.bf16.msra.mxu0 %v762
      %1807 = vmatprep.subr.bf16.mxu0 0
      %1808 = vmatpush1.bf16.msra.mxu0 %v763
      %1809 = vmatprep.subr.bf16.mxu0 0
      %1810 = vmatpush1.bf16.msra.mxu0 %v764
      %1811 = vmatprep.subr.bf16.mxu0 0
      %1812 = vmatpush1.bf16.msra.mxu0 %v765
      %1813 = vmatprep.subr.bf16.mxu0 0
      %1814 = vmatpush1.bf16.msra.mxu0 %v766
      %1815 = vmatprep.subr.bf16.mxu0 0
      %1816 = vmatpush1.bf16.msra.mxu0 %v767
      %1817 = vmatprep.subr.bf16.mxu0 0
      %1818 = vmatpush1.bf16.msra.mxu0 %v768
      %1819 = vmatprep.subr.bf16.mxu0 0
      %1820 = vmatpush1.bf16.msra.mxu0 %v769
      %1821 = vmatprep.subr.bf16.mxu0 0
      %1822 = vmatpush1.bf16.msra.mxu0 %v770
      %1823 = vmatprep.mubr.bf16.mxu0 %v1691
      %1824 = vmatmul.mubr.bf16.gmra.mrb[0].mxu0 %v1686
      %v1825 = vpop.f32.mrb[0].mxu0
      %v1826 = vadd.f32 %v1786, %v1825
      %v1827 = vpop.f32.mrb[0].mxu0
      %v1828 = vpop.f32.mrb[0].mxu0
      %v1829 = vpop.f32.mrb[0].mxu0
      %1830 = vdwg.mxu0
      %1831 = vmatprep.subr.bf16.mxu0 0
      %1832 = vmatpush1.bf16.msra.mxu0 %v771
      %1833 = vmatprep.subr.bf16.mxu0 0
      %1834 = vmatpush1.bf16.msra.mxu0 %v772
      %1835 = vmatprep.subr.bf16.mxu0 0
      %1836 = vmatpush1.bf16.msra.mxu0 %v773
      %1837 = vmatprep.subr.bf16.mxu0 0
      %1838 = vmatpush1.bf16.msra.mxu0 %v774
      %1839 = vmatprep.subr.bf16.mxu0 0
      %1840 = vmatpush1.bf16.msra.mxu0 %v775
      %1841 = vmatprep.subr.bf16.mxu0 0
      %1842 = vmatpush1.bf16.msra.mxu0 %v776
      %1843 = vmatprep.subr.bf16.mxu0 0
      %1844 = vmatpush1.bf16.msra.mxu0 %v777
      %1845 = vmatprep.subr.bf16.mxu0 0
      %1846 = vmatpush1.bf16.msra.mxu0 %v778
      %1847 = vmatprep.subr.bf16.mxu0 0
      %1848 = vmatpush1.bf16.msra.mxu0 %v779
      %1849 = vmatprep.subr.bf16.mxu0 0
      %1850 = vmatpush1.bf16.msra.mxu0 %v780
      %1851 = vmatprep.subr.bf16.mxu0 0
      %1852 = vmatpush1.bf16.msra.mxu0 %v781
      %1853 = vmatprep.subr.bf16.mxu0 0
      %1854 = vmatpush1.bf16.msra.mxu0 %v782
      %1855 = vmatprep.subr.bf16.mxu0 0
      %1856 = vmatpush1.bf16.msra.mxu0 %v783
      %1857 = vmatprep.subr.bf16.mxu0 0
      %1858 = vmatpush1.bf16.msra.mxu0 %v784
      %1859 = vmatprep.subr.bf16.mxu0 0
      %1860 = vmatpush1.bf16.msra.mxu0 %v785
      %1861 = vmatprep.subr.bf16.mxu0 0
      %1862 = vmatpush1.bf16.msra.mxu0 %v786
      %1863 = vmatprep.mubr.bf16.mxu0 %v1704
      %1864 = vmatmul.mubr.bf16.gmra.mrb[0].mxu0 %v1654
      %v1865 = vpop.f32.mrb[0].mxu0
      %v1866 = vadd.f32 %v1826, %v1865
      %v1867 = vpop.f32.mrb[0].mxu0
      %v1868 = vpop.f32.mrb[0].mxu0
      %v1869 = vpop.f32.mrb[0].mxu0
      %1870 = vdwg.mxu0
      %1871 = vmatprep.subr.bf16.mxu0 0
      %1872 = vmatpush1.bf16.msra.mxu0 %v787
      %1873 = vmatprep.subr.bf16.mxu0 0
      %1874 = vmatpush1.bf16.msra.mxu0 %v788
      %1875 = vmatprep.subr.bf16.mxu0 0
      %1876 = vmatpush1.bf16.msra.mxu0 %v789
      %1877 = vmatprep.subr.bf16.mxu0 0
      %1878 = vmatpush1.bf16.msra.mxu0 %v790
      %1879 = vmatprep.subr.bf16.mxu0 0
      %1880 = vmatpush1.bf16.msra.mxu0 %v791
      %1881 = vmatprep.subr.bf16.mxu0 0
      %1882 = vmatpush1.bf16.msra.mxu0 %v792
      %1883 = vmatprep.subr.bf16.mxu0 0
      %1884 = vmatpush1.bf16.msra.mxu0 %v793
      %1885 = vmatprep.subr.bf16.mxu0 0
      %1886 = vmatpush1.bf16.msra.mxu0 %v794
      %1887 = vmatprep.subr.bf16.mxu0 0
      %1888 = vmatpush1.bf16.msra.mxu0 0
      %1889 = vmatprep.subr.bf16.mxu0 0
      %1890 = vmatpush1.bf16.msra.mxu0 0
      %1891 = vmatprep.subr.bf16.mxu0 0
      %1892 = vmatpush1.bf16.msra.mxu0 0
      %1893 = vmatprep.subr.bf16.mxu0 0
      %1894 = vmatpush1.bf16.msra.mxu0 0
      %1895 = vmatprep.subr.bf16.mxu0 0
      %1896 = vmatpush1.bf16.msra.mxu0 0
      %1897 = vmatprep.subr.bf16.mxu0 0
      %1898 = vmatpush1.bf16.msra.mxu0 0
      %1899 = vmatprep.subr.bf16.mxu0 0
      %1900 = vmatpush1.bf16.msra.mxu0 0
      %1901 = vmatprep.subr.bf16.mxu0 0
      %1902 = vmatpush1.bf16.msra.mxu0 0
      %1903 = vmatprep.mubr.bf16.mxu0 0
      %1904 = vmatmul.mubr.bf16.gmra.mrb[0].mxu0 %v1709
      %v1905 = vpop.f32.mrb[0].mxu0
      %v1906 = vadd.f32 %v1866, %v1905
      %v1907 = vpop.f32.mrb[0].mxu0
      %v1908 = vpop.f32.mrb[0].mxu0
      %v1909 = vpop.f32.mrb[0].mxu0
      %1910 = vdwg.mxu0
      %v1911 = vmin.f32 %v1906, 20.0
      %v1912 = vmul.f32 %v1911, 1.442695
      %v1913 = vpow.pop %v1912
      %v1914 = vadd.f32 %v1913, 2.0
      %v1915 = vmul.f32 %v1913, %v1914
      %v1916 = vadd.f32 %v1915, 2.0
      %v1917 = vrcp.pop %v1916
      %v1918 = vmul.f32 %v1915, %v1917
      %vm1919 = vcmp.gt.f32.partialorder %v1906, 20.0
      %v1920 = vmul.f32 %v1906, %v1918
      %v1921 = vsel %vm1919, %v1906, %v1920
      %s1922 = scalar_lea.vmem %s212, 12
      %v1923 = vld [vmem:[%s1922] sm:$0xf]
      %v1924 = vunpack.c.l.bf16 %v1923
      %v1925 = vadd.f32 %v1921, %v1924
      %v1926 = vpack.c.bf16 %v1925, %v1925
      %s1927 = scalar_lea.vmem %s217, 12
      %1928 = vst [vmem:[%s1927] sm:$0xf] %v1926
      %v1929 = vld [vmem:[%s1371] sm:$0xf]
      %v1930 = vld [vmem:[%s1371 + $0x4] sm:$0x1]
      %v1931 = vld [vmem:[%s1371] sm:$0xe]
      %v1932 = vld [vmem:[%s1653] sm:$0xf]
      %v1933 = vld [vmem:[%s1653 + $0x4] sm:$0x1]
      %v1934 = vld [vmem:[%s1653] sm:$0xe]
      %s1935 = scalar_lea.vmem %s207, 48
      %v1936 = vld [vmem:[%s1935] sm:$0xf]
      %v1937 = vld [vmem:[%s1935 + $0x4] sm:$0x1]
      %v1938 = vld [vmem:[%s1935] sm:$0xe]
      %v1941 = vunpack.c.l.b16 %v1929
      %v1942 = vunpack.c.l.b16 %v1930
      %v1943 = vpack.c.b16 %v1942, %v1941
      %v1945 = vshrl.u32 %v1943, 16
      %v1947 = vshll.u32 %v1943, 16
      %v1949 = vrot.slane %v1947, 1
      %v1950 = vor.u32 %v1945, %v1949
      %v1953 = vunpack.c.l.b16 %v1931
      %v1954 = vpack.c.b16 %v1942, %v1953
      %v1955 = vrot.slane %v1954, 1
      %v1959 = vunpack.c.l.b16 %v1932
      %v1960 = vunpack.c.l.b16 %v1933
      %v1961 = vpack.c.b16 %v1960, %v1959
      %v1963 = vshrl.u32 %v1961, 16
      %v1965 = vshll.u32 %v1961, 16
      %v1967 = vrot.slane %v1965, 1
      %v1968 = vor.u32 %v1963, %v1967
      %v1971 = vunpack.c.l.b16 %v1934
      %v1972 = vpack.c.b16 %v1960, %v1971
      %v1973 = vrot.slane %v1972, 1
      %v1977 = vunpack.c.l.b16 %v1936
      %v1978 = vunpack.c.l.b16 %v1937
      %v1979 = vpack.c.b16 %v1978, %v1977
      %v1981 = vshrl.u32 %v1979, 16
      %v1983 = vshll.u32 %v1979, 16
      %v1985 = vrot.slane %v1983, 1
      %v1986 = vor.u32 %v1981, %v1985
      %v1989 = vunpack.c.l.b16 %v1938
      %v1990 = vpack.c.b16 %v1978, %v1989
      %v1991 = vrot.slane %v1990, 1
      %1993 = vmatprep.subr.bf16.mxu0 0
      %1994 = vmatpush1.bf16.msra.mxu0 %v723
      %1995 = vmatprep.subr.bf16.mxu0 0
      %1996 = vmatpush1.bf16.msra.mxu0 %v724
      %1997 = vmatprep.subr.bf16.mxu0 0
      %1998 = vmatpush1.bf16.msra.mxu0 %v725
      %1999 = vmatprep.subr.bf16.mxu0 0
      %2000 = vmatpush1.bf16.msra.mxu0 %v726
      %2001 = vmatprep.subr.bf16.mxu0 0
      %2002 = vmatpush1.bf16.msra.mxu0 %v727
      %2003 = vmatprep.subr.bf16.mxu0 0
      %2004 = vmatpush1.bf16.msra.mxu0 %v728
      %2005 = vmatprep.subr.bf16.mxu0 0
      %2006 = vmatpush1.bf16.msra.mxu0 %v729
      %2007 = vmatprep.subr.bf16.mxu0 0
      %2008 = vmatpush1.bf16.msra.mxu0 %v730
      %2009 = vmatprep.subr.bf16.mxu0 0
      %2010 = vmatpush1.bf16.msra.mxu0 %v731
      %2011 = vmatprep.subr.bf16.mxu0 0
      %2012 = vmatpush1.bf16.msra.mxu0 %v732
      %2013 = vmatprep.subr.bf16.mxu0 0
      %2014 = vmatpush1.bf16.msra.mxu0 %v733
      %2015 = vmatprep.subr.bf16.mxu0 0
      %2016 = vmatpush1.bf16.msra.mxu0 %v734
      %2017 = vmatprep.subr.bf16.mxu0 0
      %2018 = vmatpush1.bf16.msra.mxu0 %v735
      %2019 = vmatprep.subr.bf16.mxu0 0
      %2020 = vmatpush1.bf16.msra.mxu0 %v736
      %2021 = vmatprep.subr.bf16.mxu0 0
      %2022 = vmatpush1.bf16.msra.mxu0 %v737
      %2023 = vmatprep.subr.bf16.mxu0 0
      %2024 = vmatpush1.bf16.msra.mxu0 %v738
      %2025 = vmatprep.mubr.bf16.mxu0 %v1950
      %2026 = vmatmul.mubr.bf16.gmra.mrb[0].mxu0 %v1929
      %v2027 = vpop.f32.mrb[0].mxu0
      %v2028 = vadd.f32 %v433, %v2027
      %v2029 = vpop.f32.mrb[0].mxu0
      %v2030 = vpop.f32.mrb[0].mxu0
      %v2031 = vpop.f32.mrb[0].mxu0
      %2032 = vdwg.mxu0
      %2033 = vmatprep.subr.bf16.mxu0 0
      %2034 = vmatpush1.bf16.msra.mxu0 %v739
      %2035 = vmatprep.subr.bf16.mxu0 0
      %2036 = vmatpush1.bf16.msra.mxu0 %v740
      %2037 = vmatprep.subr.bf16.mxu0 0
      %2038 = vmatpush1.bf16.msra.mxu0 %v741
      %2039 = vmatprep.subr.bf16.mxu0 0
      %2040 = vmatpush1.bf16.msra.mxu0 %v742
      %2041 = vmatprep.subr.bf16.mxu0 0
      %2042 = vmatpush1.bf16.msra.mxu0 %v743
      %2043 = vmatprep.subr.bf16.mxu0 0
      %2044 = vmatpush1.bf16.msra.mxu0 %v744
      %2045 = vmatprep.subr.bf16.mxu0 0
      %2046 = vmatpush1.bf16.msra.mxu0 %v745
      %2047 = vmatprep.subr.bf16.mxu0 0
      %2048 = vmatpush1.bf16.msra.mxu0 %v746
      %2049 = vmatprep.subr.bf16.mxu0 0
      %2050 = vmatpush1.bf16.msra.mxu0 %v747
      %2051 = vmatprep.subr.bf16.mxu0 0
      %2052 = vmatpush1.bf16.msra.mxu0 %v748
      %2053 = vmatprep.subr.bf16.mxu0 0
      %2054 = vmatpush1.bf16.msra.mxu0 %v749
      %2055 = vmatprep.subr.bf16.mxu0 0
      %2056 = vmatpush1.bf16.msra.mxu0 %v750
      %2057 = vmatprep.subr.bf16.mxu0 0
      %2058 = vmatpush1.bf16.msra.mxu0 %v751
      %2059 = vmatprep.subr.bf16.mxu0 0
      %2060 = vmatpush1.bf16.msra.mxu0 %v752
      %2061 = vmatprep.subr.bf16.mxu0 0
      %2062 = vmatpush1.bf16.msra.mxu0 %v753
      %2063 = vmatprep.subr.bf16.mxu0 0
      %2064 = vmatpush1.bf16.msra.mxu0 %v754
      %2065 = vmatprep.mubr.bf16.mxu0 %v1932
      %2066 = vmatmul.mubr.bf16.gmra.mrb[0].mxu0 %v1955
      %v2067 = vpop.f32.mrb[0].mxu0
      %v2068 = vadd.f32 %v2028, %v2067
      %v2069 = vpop.f32.mrb[0].mxu0
      %v2070 = vpop.f32.mrb[0].mxu0
      %v2071 = vpop.f32.mrb[0].mxu0
      %2072 = vdwg.mxu0
      %2073 = vmatprep.subr.bf16.mxu0 0
      %2074 = vmatpush1.bf16.msra.mxu0 %v755
      %2075 = vmatprep.subr.bf16.mxu0 0
      %2076 = vmatpush1.bf16.msra.mxu0 %v756
      %2077 = vmatprep.subr.bf16.mxu0 0
      %2078 = vmatpush1.bf16.msra.mxu0 %v757
      %2079 = vmatprep.subr.bf16.mxu0 0
      %2080 = vmatpush1.bf16.msra.mxu0 %v758
      %2081 = vmatprep.subr.bf16.mxu0 0
      %2082 = vmatpush1.bf16.msra.mxu0 %v759
      %2083 = vmatprep.subr.bf16.mxu0 0
      %2084 = vmatpush1.bf16.msra.mxu0 %v760
      %2085 = vmatprep.subr.bf16.mxu0 0
      %2086 = vmatpush1.bf16.msra.mxu0 %v761
      %2087 = vmatprep.subr.bf16.mxu0 0
      %2088 = vmatpush1.bf16.msra.mxu0 %v762
      %2089 = vmatprep.subr.bf16.mxu0 0
      %2090 = vmatpush1.bf16.msra.mxu0 %v763
      %2091 = vmatprep.subr.bf16.mxu0 0
      %2092 = vmatpush1.bf16.msra.mxu0 %v764
      %2093 = vmatprep.subr.bf16.mxu0 0
      %2094 = vmatpush1.bf16.msra.mxu0 %v765
      %2095 = vmatprep.subr.bf16.mxu0 0
      %2096 = vmatpush1.bf16.msra.mxu0 %v766
      %2097 = vmatprep.subr.bf16.mxu0 0
      %2098 = vmatpush1.bf16.msra.mxu0 %v767
      %2099 = vmatprep.subr.bf16.mxu0 0
      %2100 = vmatpush1.bf16.msra.mxu0 %v768
      %2101 = vmatprep.subr.bf16.mxu0 0
      %2102 = vmatpush1.bf16.msra.mxu0 %v769
      %2103 = vmatprep.subr.bf16.mxu0 0
      %2104 = vmatpush1.bf16.msra.mxu0 %v770
      %2105 = vmatprep.mubr.bf16.mxu0 %v1973
      %2106 = vmatmul.mubr.bf16.gmra.mrb[0].mxu0 %v1968
      %v2107 = vpop.f32.mrb[0].mxu0
      %v2108 = vadd.f32 %v2068, %v2107
      %v2109 = vpop.f32.mrb[0].mxu0
      %v2110 = vpop.f32.mrb[0].mxu0
      %v2111 = vpop.f32.mrb[0].mxu0
      %2112 = vdwg.mxu0
      %2113 = vmatprep.subr.bf16.mxu0 0
      %2114 = vmatpush1.bf16.msra.mxu0 %v771
      %2115 = vmatprep.subr.bf16.mxu0 0
      %2116 = vmatpush1.bf16.msra.mxu0 %v772
      %2117 = vmatprep.subr.bf16.mxu0 0
      %2118 = vmatpush1.bf16.msra.mxu0 %v773
      %2119 = vmatprep.subr.bf16.mxu0 0
      %2120 = vmatpush1.bf16.msra.mxu0 %v774
      %2121 = vmatprep.subr.bf16.mxu0 0
      %2122 = vmatpush1.bf16.msra.mxu0 %v775
      %2123 = vmatprep.subr.bf16.mxu0 0
      %2124 = vmatpush1.bf16.msra.mxu0 %v776
      %2125 = vmatprep.subr.bf16.mxu0 0
      %2126 = vmatpush1.bf16.msra.mxu0 %v777
      %2127 = vmatprep.subr.bf16.mxu0 0
      %2128 = vmatpush1.bf16.msra.mxu0 %v778
      %2129 = vmatprep.subr.bf16.mxu0 0
      %2130 = vmatpush1.bf16.msra.mxu0 %v779
      %2131 = vmatprep.subr.bf16.mxu0 0
      %2132 = vmatpush1.bf16.msra.mxu0 %v780
      %2133 = vmatprep.subr.bf16.mxu0 0
      %2134 = vmatpush1.bf16.msra.mxu0 %v781
      %2135 = vmatprep.subr.bf16.mxu0 0
      %2136 = vmatpush1.bf16.msra.mxu0 %v782
      %2137 = vmatprep.subr.bf16.mxu0 0
      %2138 = vmatpush1.bf16.msra.mxu0 %v783
      %2139 = vmatprep.subr.bf16.mxu0 0
      %2140 = vmatpush1.bf16.msra.mxu0 %v784
      %2141 = vmatprep.subr.bf16.mxu0 0
      %2142 = vmatpush1.bf16.msra.mxu0 %v785
      %2143 = vmatprep.subr.bf16.mxu0 0
      %2144 = vmatpush1.bf16.msra.mxu0 %v786
      %2145 = vmatprep.mubr.bf16.mxu0 %v1986
      %2146 = vmatmul.mubr.bf16.gmra.mrb[0].mxu0 %v1936
      %v2147 = vpop.f32.mrb[0].mxu0
      %v2148 = vadd.f32 %v2108, %v2147
      %v2149 = vpop.f32.mrb[0].mxu0
      %v2150 = vpop.f32.mrb[0].mxu0
      %v2151 = vpop.f32.mrb[0].mxu0
      %2152 = vdwg.mxu0
      %2153 = vmatprep.subr.bf16.mxu0 0
      %2154 = vmatpush1.bf16.msra.mxu0 %v787
      %2155 = vmatprep.subr.bf16.mxu0 0
      %2156 = vmatpush1.bf16.msra.mxu0 %v788
      %2157 = vmatprep.subr.bf16.mxu0 0
      %2158 = vmatpush1.bf16.msra.mxu0 %v789
      %2159 = vmatprep.subr.bf16.mxu0 0
      %2160 = vmatpush1.bf16.msra.mxu0 %v790
      %2161 = vmatprep.subr.bf16.mxu0 0
      %2162 = vmatpush1.bf16.msra.mxu0 %v791
      %2163 = vmatprep.subr.bf16.mxu0 0
      %2164 = vmatpush1.bf16.msra.mxu0 %v792
      %2165 = vmatprep.subr.bf16.mxu0 0
      %2166 = vmatpush1.bf16.msra.mxu0 %v793
      %2167 = vmatprep.subr.bf16.mxu0 0
      %2168 = vmatpush1.bf16.msra.mxu0 %v794
      %2169 = vmatprep.subr.bf16.mxu0 0
      %2170 = vmatpush1.bf16.msra.mxu0 0
      %2171 = vmatprep.subr.bf16.mxu0 0
      %2172 = vmatpush1.bf16.msra.mxu0 0
      %2173 = vmatprep.subr.bf16.mxu0 0
      %2174 = vmatpush1.bf16.msra.mxu0 0
      %2175 = vmatprep.subr.bf16.mxu0 0
      %2176 = vmatpush1.bf16.msra.mxu0 0
      %2177 = vmatprep.subr.bf16.mxu0 0
      %2178 = vmatpush1.bf16.msra.mxu0 0
      %2179 = vmatprep.subr.bf16.mxu0 0
      %2180 = vmatpush1.bf16.msra.mxu0 0
      %2181 = vmatprep.subr.bf16.mxu0 0
      %2182 = vmatpush1.bf16.msra.mxu0 0
      %2183 = vmatprep.subr.bf16.mxu0 0
      %2184 = vmatpush1.bf16.msra.mxu0 0
      %2185 = vmatprep.mubr.bf16.mxu0 0
      %2186 = vmatmul.mubr.bf16.gmra.mrb[0].mxu0 %v1991
      %v2187 = vpop.f32.mrb[0].mxu0
      %v2188 = vadd.f32 %v2148, %v2187
      %v2189 = vpop.f32.mrb[0].mxu0
      %v2190 = vpop.f32.mrb[0].mxu0
      %v2191 = vpop.f32.mrb[0].mxu0
      %2192 = vdwg.mxu0
      %v2193 = vmin.f32 %v2188, 20.0
      %v2194 = vmul.f32 %v2193, 1.442695
      %v2195 = vpow.pop %v2194
      %v2196 = vadd.f32 %v2195, 2.0
      %v2197 = vmul.f32 %v2195, %v2196
      %v2198 = vadd.f32 %v2197, 2.0
      %v2199 = vrcp.pop %v2198
      %v2200 = vmul.f32 %v2197, %v2199
      %vm2201 = vcmp.gt.f32.partialorder %v2188, 20.0
      %v2202 = vmul.f32 %v2188, %v2200
      %v2203 = vsel %vm2201, %v2188, %v2202
      %s2204 = scalar_lea.vmem %s212, 16
      %v2205 = vld [vmem:[%s2204] sm:$0xf]
      %v2206 = vunpack.c.l.bf16 %v2205
      %v2207 = vadd.f32 %v2203, %v2206
      %v2208 = vpack.c.bf16 %v2207, %v2207
      %s2209 = scalar_lea.vmem %s217, 16
      %2210 = vst [vmem:[%s2209] sm:$0xf] %v2208
      %v2211 = vld [vmem:[%s1653] sm:$0xf]
      %v2212 = vld [vmem:[%s1653 + $0x4] sm:$0x1]
      %v2213 = vld [vmem:[%s1653] sm:$0xe]
      %v2214 = vld [vmem:[%s1935] sm:$0xf]
      %v2215 = vld [vmem:[%s1935 + $0x4] sm:$0x1]
      %v2216 = vld [vmem:[%s1935] sm:$0xe]
      %s2217 = scalar_lea.vmem %s207, 56
      %v2218 = vld [vmem:[%s2217] sm:$0xf]
      %v2219 = vld [vmem:[%s2217 + $0x4] sm:$0x1]
      %v2220 = vld [vmem:[%s2217] sm:$0xe]
      %v2223 = vunpack.c.l.b16 %v2211
      %v2224 = vunpack.c.l.b16 %v2212
      %v2225 = vpack.c.b16 %v2224, %v2223
      %v2227 = vshrl.u32 %v2225, 16
      %v2229 = vshll.u32 %v2225, 16
      %v2231 = vrot.slane %v2229, 1
      %v2232 = vor.u32 %v2227, %v2231
      %v2235 = vunpack.c.l.b16 %v2213
      %v2236 = vpack.c.b16 %v2224, %v2235
      %v2237 = vrot.slane %v2236, 1
      %v2241 = vunpack.c.l.b16 %v2214
      %v2242 = vunpack.c.l.b16 %v2215
      %v2243 = vpack.c.b16 %v2242, %v2241
      %v2245 = vshrl.u32 %v2243, 16
      %v2247 = vshll.u32 %v2243, 16
      %v2249 = vrot.slane %v2247, 1
      %v2250 = vor.u32 %v2245, %v2249
      %v2253 = vunpack.c.l.b16 %v2216
      %v2254 = vpack.c.b16 %v2242, %v2253
      %v2255 = vrot.slane %v2254, 1
      %v2259 = vunpack.c.l.b16 %v2218
      %v2260 = vunpack.c.l.b16 %v2219
      %v2261 = vpack.c.b16 %v2260, %v2259
      %v2263 = vshrl.u32 %v2261, 16
      %v2265 = vshll.u32 %v2261, 16
      %v2267 = vrot.slane %v2265, 1
      %v2268 = vor.u32 %v2263, %v2267
      %v2271 = vunpack.c.l.b16 %v2220
      %v2272 = vpack.c.b16 %v2260, %v2271
      %v2273 = vrot.slane %v2272, 1
      %2275 = vmatprep.subr.bf16.mxu0 0
      %2276 = vmatpush1.bf16.msra.mxu0 %v723
      %2277 = vmatprep.subr.bf16.mxu0 0
      %2278 = vmatpush1.bf16.msra.mxu0 %v724
      %2279 = vmatprep.subr.bf16.mxu0 0
      %2280 = vmatpush1.bf16.msra.mxu0 %v725
      %2281 = vmatprep.subr.bf16.mxu0 0
      %2282 = vmatpush1.bf16.msra.mxu0 %v726
      %2283 = vmatprep.subr.bf16.mxu0 0
      %2284 = vmatpush1.bf16.msra.mxu0 %v727
      %2285 = vmatprep.subr.bf16.mxu0 0
      %2286 = vmatpush1.bf16.msra.mxu0 %v728
      %2287 = vmatprep.subr.bf16.mxu0 0
      %2288 = vmatpush1.bf16.msra.mxu0 %v729
      %2289 = vmatprep.subr.bf16.mxu0 0
      %2290 = vmatpush1.bf16.msra.mxu0 %v730
      %2291 = vmatprep.subr.bf16.mxu0 0
      %2292 = vmatpush1.bf16.msra.mxu0 %v731
      %2293 = vmatprep.subr.bf16.mxu0 0
      %2294 = vmatpush1.bf16.msra.mxu0 %v732
      %2295 = vmatprep.subr.bf16.mxu0 0
      %2296 = vmatpush1.bf16.msra.mxu0 %v733
      %2297 = vmatprep.subr.bf16.mxu0 0
      %2298 = vmatpush1.bf16.msra.mxu0 %v734
      %2299 = vmatprep.subr.bf16.mxu0 0
      %2300 = vmatpush1.bf16.msra.mxu0 %v735
      %2301 = vmatprep.subr.bf16.mxu0 0
      %2302 = vmatpush1.bf16.msra.mxu0 %v736
      %2303 = vmatprep.subr.bf16.mxu0 0
      %2304 = vmatpush1.bf16.msra.mxu0 %v737
      %2305 = vmatprep.subr.bf16.mxu0 0
      %2306 = vmatpush1.bf16.msra.mxu0 %v738
      %2307 = vmatprep.mubr.bf16.mxu0 %v2232
      %2308 = vmatmul.mubr.bf16.gmra.mrb[0].mxu0 %v2211
      %v2309 = vpop.f32.mrb[0].mxu0
      %v2310 = vadd.f32 %v433, %v2309
      %v2311 = vpop.f32.mrb[0].mxu0
      %v2312 = vpop.f32.mrb[0].mxu0
      %v2313 = vpop.f32.mrb[0].mxu0
      %2314 = vdwg.mxu0
      %2315 = vmatprep.subr.bf16.mxu0 0
      %2316 = vmatpush1.bf16.msra.mxu0 %v739
      %2317 = vmatprep.subr.bf16.mxu0 0
      %2318 = vmatpush1.bf16.msra.mxu0 %v740
      %2319 = vmatprep.subr.bf16.mxu0 0
      %2320 = vmatpush1.bf16.msra.mxu0 %v741
      %2321 = vmatprep.subr.bf16.mxu0 0
      %2322 = vmatpush1.bf16.msra.mxu0 %v742
      %2323 = vmatprep.subr.bf16.mxu0 0
      %2324 = vmatpush1.bf16.msra.mxu0 %v743
      %2325 = vmatprep.subr.bf16.mxu0 0
      %2326 = vmatpush1.bf16.msra.mxu0 %v744
      %2327 = vmatprep.subr.bf16.mxu0 0
      %2328 = vmatpush1.bf16.msra.mxu0 %v745
      %2329 = vmatprep.subr.bf16.mxu0 0
      %2330 = vmatpush1.bf16.msra.mxu0 %v746
      %2331 = vmatprep.subr.bf16.mxu0 0
      %2332 = vmatpush1.bf16.msra.mxu0 %v747
      %2333 = vmatprep.subr.bf16.mxu0 0
      %2334 = vmatpush1.bf16.msra.mxu0 %v748
      %2335 = vmatprep.subr.bf16.mxu0 0
      %2336 = vmatpush1.bf16.msra.mxu0 %v749
      %2337 = vmatprep.subr.bf16.mxu0 0
      %2338 = vmatpush1.bf16.msra.mxu0 %v750
      %2339 = vmatprep.subr.bf16.mxu0 0
      %2340 = vmatpush1.bf16.msra.mxu0 %v751
      %2341 = vmatprep.subr.bf16.mxu0 0
      %2342 = vmatpush1.bf16.msra.mxu0 %v752
      %2343 = vmatprep.subr.bf16.mxu0 0
      %2344 = vmatpush1.bf16.msra.mxu0 %v753
      %2345 = vmatprep.subr.bf16.mxu0 0
      %2346 = vmatpush1.bf16.msra.mxu0 %v754
      %2347 = vmatprep.mubr.bf16.mxu0 %v2214
      %2348 = vmatmul.mubr.bf16.gmra.mrb[0].mxu0 %v2237
      %v2349 = vpop.f32.mrb[0].mxu0
      %v2350 = vadd.f32 %v2310, %v2349
      %v2351 = vpop.f32.mrb[0].mxu0
      %v2352 = vpop.f32.mrb[0].mxu0
      %v2353 = vpop.f32.mrb[0].mxu0
      %2354 = vdwg.mxu0
      %2355 = vmatprep.subr.bf16.mxu0 0
      %2356 = vmatpush1.bf16.msra.mxu0 %v755
      %2357 = vmatprep.subr.bf16.mxu0 0
      %2358 = vmatpush1.bf16.msra.mxu0 %v756
      %2359 = vmatprep.subr.bf16.mxu0 0
      %2360 = vmatpush1.bf16.msra.mxu0 %v757
      %2361 = vmatprep.subr.bf16.mxu0 0
      %2362 = vmatpush1.bf16.msra.mxu0 %v758
      %2363 = vmatprep.subr.bf16.mxu0 0
      %2364 = vmatpush1.bf16.msra.mxu0 %v759
      %2365 = vmatprep.subr.bf16.mxu0 0
      %2366 = vmatpush1.bf16.msra.mxu0 %v760
      %2367 = vmatprep.subr.bf16.mxu0 0
      %2368 = vmatpush1.bf16.msra.mxu0 %v761
      %2369 = vmatprep.subr.bf16.mxu0 0
      %2370 = vmatpush1.bf16.msra.mxu0 %v762
      %2371 = vmatprep.subr.bf16.mxu0 0
      %2372 = vmatpush1.bf16.msra.mxu0 %v763
      %2373 = vmatprep.subr.bf16.mxu0 0
      %2374 = vmatpush1.bf16.msra.mxu0 %v764
      %2375 = vmatprep.subr.bf16.mxu0 0
      %2376 = vmatpush1.bf16.msra.mxu0 %v765
      %2377 = vmatprep.subr.bf16.mxu0 0
      %2378 = vmatpush1.bf16.msra.mxu0 %v766
      %2379 = vmatprep.subr.bf16.mxu0 0
      %2380 = vmatpush1.bf16.msra.mxu0 %v767
      %2381 = vmatprep.subr.bf16.mxu0 0
      %2382 = vmatpush1.bf16.msra.mxu0 %v768
      %2383 = vmatprep.subr.bf16.mxu0 0
      %2384 = vmatpush1.bf16.msra.mxu0 %v769
      %2385 = vmatprep.subr.bf16.mxu0 0
      %2386 = vmatpush1.bf16.msra.mxu0 %v770
      %2387 = vmatprep.mubr.bf16.mxu0 %v2255
      %2388 = vmatmul.mubr.bf16.gmra.mrb[0].mxu0 %v2250
      %v2389 = vpop.f32.mrb[0].mxu0
      %v2390 = vadd.f32 %v2350, %v2389
      %v2391 = vpop.f32.mrb[0].mxu0
      %v2392 = vpop.f32.mrb[0].mxu0
      %v2393 = vpop.f32.mrb[0].mxu0
      %2394 = vdwg.mxu0
      %2395 = vmatprep.subr.bf16.mxu0 0
      %2396 = vmatpush1.bf16.msra.mxu0 %v771
      %2397 = vmatprep.subr.bf16.mxu0 0
      %2398 = vmatpush1.bf16.msra.mxu0 %v772
      %2399 = vmatprep.subr.bf16.mxu0 0
      %2400 = vmatpush1.bf16.msra.mxu0 %v773
      %2401 = vmatprep.subr.bf16.mxu0 0
      %2402 = vmatpush1.bf16.msra.mxu0 %v774
      %2403 = vmatprep.subr.bf16.mxu0 0
      %2404 = vmatpush1.bf16.msra.mxu0 %v775
      %2405 = vmatprep.subr.bf16.mxu0 0
      %2406 = vmatpush1.bf16.msra.mxu0 %v776
      %2407 = vmatprep.subr.bf16.mxu0 0
      %2408 = vmatpush1.bf16.msra.mxu0 %v777
      %2409 = vmatprep.subr.bf16.mxu0 0
      %2410 = vmatpush1.bf16.msra.mxu0 %v778
      %2411 = vmatprep.subr.bf16.mxu0 0
      %2412 = vmatpush1.bf16.msra.mxu0 %v779
      %2413 = vmatprep.subr.bf16.mxu0 0
      %2414 = vmatpush1.bf16.msra.mxu0 %v780
      %2415 = vmatprep.subr.bf16.mxu0 0
      %2416 = vmatpush1.bf16.msra.mxu0 %v781
      %2417 = vmatprep.subr.bf16.mxu0 0
      %2418 = vmatpush1.bf16.msra.mxu0 %v782
      %2419 = vmatprep.subr.bf16.mxu0 0
      %2420 = vmatpush1.bf16.msra.mxu0 %v783
      %2421 = vmatprep.subr.bf16.mxu0 0
      %2422 = vmatpush1.bf16.msra.mxu0 %v784
      %2423 = vmatprep.subr.bf16.mxu0 0
      %2424 = vmatpush1.bf16.msra.mxu0 %v785
      %2425 = vmatprep.subr.bf16.mxu0 0
      %2426 = vmatpush1.bf16.msra.mxu0 %v786
      %2427 = vmatprep.mubr.bf16.mxu0 %v2268
      %2428 = vmatmul.mubr.bf16.gmra.mrb[0].mxu0 %v2218
      %v2429 = vpop.f32.mrb[0].mxu0
      %v2430 = vadd.f32 %v2390, %v2429
      %v2431 = vpop.f32.mrb[0].mxu0
      %v2432 = vpop.f32.mrb[0].mxu0
      %v2433 = vpop.f32.mrb[0].mxu0
      %2434 = vdwg.mxu0
      %2435 = vmatprep.subr.bf16.mxu0 0
      %2436 = vmatpush1.bf16.msra.mxu0 %v787
      %2437 = vmatprep.subr.bf16.mxu0 0
      %2438 = vmatpush1.bf16.msra.mxu0 %v788
      %2439 = vmatprep.subr.bf16.mxu0 0
      %2440 = vmatpush1.bf16.msra.mxu0 %v789
      %2441 = vmatprep.subr.bf16.mxu0 0
      %2442 = vmatpush1.bf16.msra.mxu0 %v790
      %2443 = vmatprep.subr.bf16.mxu0 0
      %2444 = vmatpush1.bf16.msra.mxu0 %v791
      %2445 = vmatprep.subr.bf16.mxu0 0
      %2446 = vmatpush1.bf16.msra.mxu0 %v792
      %2447 = vmatprep.subr.bf16.mxu0 0
      %2448 = vmatpush1.bf16.msra.mxu0 %v793
      %2449 = vmatprep.subr.bf16.mxu0 0
      %2450 = vmatpush1.bf16.msra.mxu0 %v794
      %2451 = vmatprep.subr.bf16.mxu0 0
      %2452 = vmatpush1.bf16.msra.mxu0 0
      %2453 = vmatprep.subr.bf16.mxu0 0
      %2454 = vmatpush1.bf16.msra.mxu0 0
      %2455 = vmatprep.subr.bf16.mxu0 0
      %2456 = vmatpush1.bf16.msra.mxu0 0
      %2457 = vmatprep.subr.bf16.mxu0 0
      %2458 = vmatpush1.bf16.msra.mxu0 0
      %2459 = vmatprep.subr.bf16.mxu0 0
      %2460 = vmatpush1.bf16.msra.mxu0 0
      %2461 = vmatprep.subr.bf16.mxu0 0
      %2462 = vmatpush1.bf16.msra.mxu0 0
      %2463 = vmatprep.subr.bf16.mxu0 0
      %2464 = vmatpush1.bf16.msra.mxu0 0
      %2465 = vmatprep.subr.bf16.mxu0 0
      %2466 = vmatpush1.bf16.msra.mxu0 0
      %2467 = vmatprep.mubr.bf16.mxu0 0
      %2468 = vmatmul.mubr.bf16.gmra.mrb[0].mxu0 %v2273
      %v2469 = vpop.f32.mrb[0].mxu0
      %v2470 = vadd.f32 %v2430, %v2469
      %v2471 = vpop.f32.mrb[0].mxu0
      %v2472 = vpop.f32.mrb[0].mxu0
      %v2473 = vpop.f32.mrb[0].mxu0
      %2474 = vdwg.mxu0
      %v2475 = vmin.f32 %v2470, 20.0
      %v2476 = vmul.f32 %v2475, 1.442695
      %v2477 = vpow.pop %v2476
      %v2478 = vadd.f32 %v2477, 2.0
      %v2479 = vmul.f32 %v2477, %v2478
      %v2480 = vadd.f32 %v2479, 2.0
      %v2481 = vrcp.pop %v2480
      %v2482 = vmul.f32 %v2479, %v2481
      %vm2483 = vcmp.gt.f32.partialorder %v2470, 20.0
      %v2484 = vmul.f32 %v2470, %v2482
      %v2485 = vsel %vm2483, %v2470, %v2484
      %s2486 = scalar_lea.vmem %s212, 20
      %v2487 = vld [vmem:[%s2486] sm:$0xf]
      %v2488 = vunpack.c.l.bf16 %v2487
      %v2489 = vadd.f32 %v2485, %v2488
      %v2490 = vpack.c.bf16 %v2489, %v2489
      %s2491 = scalar_lea.vmem %s217, 20
      %2492 = vst [vmem:[%s2491] sm:$0xf] %v2490
      %v2493 = vld [vmem:[%s1935] sm:$0xf]
      %v2494 = vld [vmem:[%s1935 + $0x4] sm:$0x1]
      %v2495 = vld [vmem:[%s1935] sm:$0xe]
      %v2496 = vld [vmem:[%s2217] sm:$0xf]
      %v2497 = vld [vmem:[%s2217 + $0x4] sm:$0x1]
      %v2498 = vld [vmem:[%s2217] sm:$0xe]
      %s2499 = scalar_lea.vmem %s207, 64
      %v2500 = vld [vmem:[%s2499] sm:$0xf]
      %v2501 = vld [vmem:[%s2499 + $0x4] sm:$0x1]
      %v2502 = vld [vmem:[%s2499] sm:$0xe]
      %v2505 = vunpack.c.l.b16 %v2493
      %v2506 = vunpack.c.l.b16 %v2494
      %v2507 = vpack.c.b16 %v2506, %v2505
      %v2509 = vshrl.u32 %v2507, 16
      %v2511 = vshll.u32 %v2507, 16
      %v2513 = vrot.slane %v2511, 1
      %v2514 = vor.u32 %v2509, %v2513
      %v2517 = vunpack.c.l.b16 %v2495
      %v2518 = vpack.c.b16 %v2506, %v2517
      %v2519 = vrot.slane %v2518, 1
      %v2523 = vunpack.c.l.b16 %v2496
      %v2524 = vunpack.c.l.b16 %v2497
      %v2525 = vpack.c.b16 %v2524, %v2523
      %v2527 = vshrl.u32 %v2525, 16
      %v2529 = vshll.u32 %v2525, 16
      %v2531 = vrot.slane %v2529, 1
      %v2532 = vor.u32 %v2527, %v2531
      %v2535 = vunpack.c.l.b16 %v2498
      %v2536 = vpack.c.b16 %v2524, %v2535
      %v2537 = vrot.slane %v2536, 1
      %v2541 = vunpack.c.l.b16 %v2500
      %v2542 = vunpack.c.l.b16 %v2501
      %v2543 = vpack.c.b16 %v2542, %v2541
      %v2545 = vshrl.u32 %v2543, 16
      %v2547 = vshll.u32 %v2543, 16
      %v2549 = vrot.slane %v2547, 1
      %v2550 = vor.u32 %v2545, %v2549
      %v2553 = vunpack.c.l.b16 %v2502
      %v2554 = vpack.c.b16 %v2542, %v2553
      %v2555 = vrot.slane %v2554, 1
      %2557 = vmatprep.subr.bf16.mxu0 0
      %2558 = vmatpush1.bf16.msra.mxu0 %v723
      %2559 = vmatprep.subr.bf16.mxu0 0
      %2560 = vmatpush1.bf16.msra.mxu0 %v724
      %2561 = vmatprep.subr.bf16.mxu0 0
      %2562 = vmatpush1.bf16.msra.mxu0 %v725
      %2563 = vmatprep.subr.bf16.mxu0 0
      %2564 = vmatpush1.bf16.msra.mxu0 %v726
      %2565 = vmatprep.subr.bf16.mxu0 0
      %2566 = vmatpush1.bf16.msra.mxu0 %v727
      %2567 = vmatprep.subr.bf16.mxu0 0
      %2568 = vmatpush1.bf16.msra.mxu0 %v728
      %2569 = vmatprep.subr.bf16.mxu0 0
      %2570 = vmatpush1.bf16.msra.mxu0 %v729
      %2571 = vmatprep.subr.bf16.mxu0 0
      %2572 = vmatpush1.bf16.msra.mxu0 %v730
      %2573 = vmatprep.subr.bf16.mxu0 0
      %2574 = vmatpush1.bf16.msra.mxu0 %v731
      %2575 = vmatprep.subr.bf16.mxu0 0
      %2576 = vmatpush1.bf16.msra.mxu0 %v732
      %2577 = vmatprep.subr.bf16.mxu0 0
      %2578 = vmatpush1.bf16.msra.mxu0 %v733
      %2579 = vmatprep.subr.bf16.mxu0 0
      %2580 = vmatpush1.bf16.msra.mxu0 %v734
      %2581 = vmatprep.subr.bf16.mxu0 0
      %2582 = vmatpush1.bf16.msra.mxu0 %v735
      %2583 = vmatprep.subr.bf16.mxu0 0
      %2584 = vmatpush1.bf16.msra.mxu0 %v736
      %2585 = vmatprep.subr.bf16.mxu0 0
      %2586 = vmatpush1.bf16.msra.mxu0 %v737
      %2587 = vmatprep.subr.bf16.mxu0 0
      %2588 = vmatpush1.bf16.msra.mxu0 %v738
      %2589 = vmatprep.mubr.bf16.mxu0 %v2514
      %2590 = vmatmul.mubr.bf16.gmra.mrb[0].mxu0 %v2493
      %v2591 = vpop.f32.mrb[0].mxu0
      %v2592 = vadd.f32 %v433, %v2591
      %v2593 = vpop.f32.mrb[0].mxu0
      %v2594 = vpop.f32.mrb[0].mxu0
      %v2595 = vpop.f32.mrb[0].mxu0
      %2596 = vdwg.mxu0
      %2597 = vmatprep.subr.bf16.mxu0 0
      %2598 = vmatpush1.bf16.msra.mxu0 %v739
      %2599 = vmatprep.subr.bf16.mxu0 0
      %2600 = vmatpush1.bf16.msra.mxu0 %v740
      %2601 = vmatprep.subr.bf16.mxu0 0
      %2602 = vmatpush1.bf16.msra.mxu0 %v741
      %2603 = vmatprep.subr.bf16.mxu0 0
      %2604 = vmatpush1.bf16.msra.mxu0 %v742
      %2605 = vmatprep.subr.bf16.mxu0 0
      %2606 = vmatpush1.bf16.msra.mxu0 %v743
      %2607 = vmatprep.subr.bf16.mxu0 0
      %2608 = vmatpush1.bf16.msra.mxu0 %v744
      %2609 = vmatprep.subr.bf16.mxu0 0
      %2610 = vmatpush1.bf16.msra.mxu0 %v745
      %2611 = vmatprep.subr.bf16.mxu0 0
      %2612 = vmatpush1.bf16.msra.mxu0 %v746
      %2613 = vmatprep.subr.bf16.mxu0 0
      %2614 = vmatpush1.bf16.msra.mxu0 %v747
      %2615 = vmatprep.subr.bf16.mxu0 0
      %2616 = vmatpush1.bf16.msra.mxu0 %v748
      %2617 = vmatprep.subr.bf16.mxu0 0
      %2618 = vmatpush1.bf16.msra.mxu0 %v749
      %2619 = vmatprep.subr.bf16.mxu0 0
      %2620 = vmatpush1.bf16.msra.mxu0 %v750
      %2621 = vmatprep.subr.bf16.mxu0 0
      %2622 = vmatpush1.bf16.msra.mxu0 %v751
      %2623 = vmatprep.subr.bf16.mxu0 0
      %2624 = vmatpush1.bf16.msra.mxu0 %v752
      %2625 = vmatprep.subr.bf16.mxu0 0
      %2626 = vmatpush1.bf16.msra.mxu0 %v753
      %2627 = vmatprep.subr.bf16.mxu0 0
      %2628 = vmatpush1.bf16.msra.mxu0 %v754
      %2629 = vmatprep.mubr.bf16.mxu0 %v2496
      %2630 = vmatmul.mubr.bf16.gmra.mrb[0].mxu0 %v2519
      %v2631 = vpop.f32.mrb[0].mxu0
      %v2632 = vadd.f32 %v2592, %v2631
      %v2633 = vpop.f32.mrb[0].mxu0
      %v2634 = vpop.f32.mrb[0].mxu0
      %v2635 = vpop.f32.mrb[0].mxu0
      %2636 = vdwg.mxu0
      %2637 = vmatprep.subr.bf16.mxu0 0
      %2638 = vmatpush1.bf16.msra.mxu0 %v755
      %2639 = vmatprep.subr.bf16.mxu0 0
      %2640 = vmatpush1.bf16.msra.mxu0 %v756
      %2641 = vmatprep.subr.bf16.mxu0 0
      %2642 = vmatpush1.bf16.msra.mxu0 %v757
      %2643 = vmatprep.subr.bf16.mxu0 0
      %2644 = vmatpush1.bf16.msra.mxu0 %v758
      %2645 = vmatprep.subr.bf16.mxu0 0
      %2646 = vmatpush1.bf16.msra.mxu0 %v759
      %2647 = vmatprep.subr.bf16.mxu0 0
      %2648 = vmatpush1.bf16.msra.mxu0 %v760
      %2649 = vmatprep.subr.bf16.mxu0 0
      %2650 = vmatpush1.bf16.msra.mxu0 %v761
      %2651 = vmatprep.subr.bf16.mxu0 0
      %2652 = vmatpush1.bf16.msra.mxu0 %v762
      %2653 = vmatprep.subr.bf16.mxu0 0
      %2654 = vmatpush1.bf16.msra.mxu0 %v763
      %2655 = vmatprep.subr.bf16.mxu0 0
      %2656 = vmatpush1.bf16.msra.mxu0 %v764
      %2657 = vmatprep.subr.bf16.mxu0 0
      %2658 = vmatpush1.bf16.msra.mxu0 %v765
      %2659 = vmatprep.subr.bf16.mxu0 0
      %2660 = vmatpush1.bf16.msra.mxu0 %v766
      %2661 = vmatprep.subr.bf16.mxu0 0
      %2662 = vmatpush1.bf16.msra.mxu0 %v767
      %2663 = vmatprep.subr.bf16.mxu0 0
      %2664 = vmatpush1.bf16.msra.mxu0 %v768
      %2665 = vmatprep.subr.bf16.mxu0 0
      %2666 = vmatpush1.bf16.msra.mxu0 %v769
      %2667 = vmatprep.subr.bf16.mxu0 0
      %2668 = vmatpush1.bf16.msra.mxu0 %v770
      %2669 = vmatprep.mubr.bf16.mxu0 %v2537
      %2670 = vmatmul.mubr.bf16.gmra.mrb[0].mxu0 %v2532
      %v2671 = vpop.f32.mrb[0].mxu0
      %v2672 = vadd.f32 %v2632, %v2671
      %v2673 = vpop.f32.mrb[0].mxu0
      %v2674 = vpop.f32.mrb[0].mxu0
      %v2675 = vpop.f32.mrb[0].mxu0
      %2676 = vdwg.mxu0
      %2677 = vmatprep.subr.bf16.mxu0 0
      %2678 = vmatpush1.bf16.msra.mxu0 %v771
      %2679 = vmatprep.subr.bf16.mxu0 0
      %2680 = vmatpush1.bf16.msra.mxu0 %v772
      %2681 = vmatprep.subr.bf16.mxu0 0
      %2682 = vmatpush1.bf16.msra.mxu0 %v773
      %2683 = vmatprep.subr.bf16.mxu0 0
      %2684 = vmatpush1.bf16.msra.mxu0 %v774
      %2685 = vmatprep.subr.bf16.mxu0 0
      %2686 = vmatpush1.bf16.msra.mxu0 %v775
      %2687 = vmatprep.subr.bf16.mxu0 0
      %2688 = vmatpush1.bf16.msra.mxu0 %v776
      %2689 = vmatprep.subr.bf16.mxu0 0
      %2690 = vmatpush1.bf16.msra.mxu0 %v777
      %2691 = vmatprep.subr.bf16.mxu0 0
      %2692 = vmatpush1.bf16.msra.mxu0 %v778
      %2693 = vmatprep.subr.bf16.mxu0 0
      %2694 = vmatpush1.bf16.msra.mxu0 %v779
      %2695 = vmatprep.subr.bf16.mxu0 0
      %2696 = vmatpush1.bf16.msra.mxu0 %v780
      %2697 = vmatprep.subr.bf16.mxu0 0
      %2698 = vmatpush1.bf16.msra.mxu0 %v781
      %2699 = vmatprep.subr.bf16.mxu0 0
      %2700 = vmatpush1.bf16.msra.mxu0 %v782
      %2701 = vmatprep.subr.bf16.mxu0 0
      %2702 = vmatpush1.bf16.msra.mxu0 %v783
      %2703 = vmatprep.subr.bf16.mxu0 0
      %2704 = vmatpush1.bf16.msra.mxu0 %v784
      %2705 = vmatprep.subr.bf16.mxu0 0
      %2706 = vmatpush1.bf16.msra.mxu0 %v785
      %2707 = vmatprep.subr.bf16.mxu0 0
      %2708 = vmatpush1.bf16.msra.mxu0 %v786
      %2709 = vmatprep.mubr.bf16.mxu0 %v2550
      %2710 = vmatmul.mubr.bf16.gmra.mrb[0].mxu0 %v2500
      %v2711 = vpop.f32.mrb[0].mxu0
      %v2712 = vadd.f32 %v2672, %v2711
      %v2713 = vpop.f32.mrb[0].mxu0
      %v2714 = vpop.f32.mrb[0].mxu0
      %v2715 = vpop.f32.mrb[0].mxu0
      %2716 = vdwg.mxu0
      %2717 = vmatprep.subr.bf16.mxu0 0
      %2718 = vmatpush1.bf16.msra.mxu0 %v787
      %2719 = vmatprep.subr.bf16.mxu0 0
      %2720 = vmatpush1.bf16.msra.mxu0 %v788
      %2721 = vmatprep.subr.bf16.mxu0 0
      %2722 = vmatpush1.bf16.msra.mxu0 %v789
      %2723 = vmatprep.subr.bf16.mxu0 0
      %2724 = vmatpush1.bf16.msra.mxu0 %v790
      %2725 = vmatprep.subr.bf16.mxu0 0
      %2726 = vmatpush1.bf16.msra.mxu0 %v791
      %2727 = vmatprep.subr.bf16.mxu0 0
      %2728 = vmatpush1.bf16.msra.mxu0 %v792
      %2729 = vmatprep.subr.bf16.mxu0 0
      %2730 = vmatpush1.bf16.msra.mxu0 %v793
      %2731 = vmatprep.subr.bf16.mxu0 0
      %2732 = vmatpush1.bf16.msra.mxu0 %v794
      %2733 = vmatprep.subr.bf16.mxu0 0
      %2734 = vmatpush1.bf16.msra.mxu0 0
      %2735 = vmatprep.subr.bf16.mxu0 0
      %2736 = vmatpush1.bf16.msra.mxu0 0
      %2737 = vmatprep.subr.bf16.mxu0 0
      %2738 = vmatpush1.bf16.msra.mxu0 0
      %2739 = vmatprep.subr.bf16.mxu0 0
      %2740 = vmatpush1.bf16.msra.mxu0 0
      %2741 = vmatprep.subr.bf16.mxu0 0
      %2742 = vmatpush1.bf16.msra.mxu0 0
      %2743 = vmatprep.subr.bf16.mxu0 0
      %2744 = vmatpush1.bf16.msra.mxu0 0
      %2745 = vmatprep.subr.bf16.mxu0 0
      %2746 = vmatpush1.bf16.msra.mxu0 0
      %2747 = vmatprep.subr.bf16.mxu0 0
      %2748 = vmatpush1.bf16.msra.mxu0 0
      %2749 = vmatprep.mubr.bf16.mxu0 0
      %2750 = vmatmul.mubr.bf16.gmra.mrb[0].mxu0 %v2555
      %v2751 = vpop.f32.mrb[0].mxu0
      %v2752 = vadd.f32 %v2712, %v2751
      %v2753 = vpop.f32.mrb[0].mxu0
      %v2754 = vpop.f32.mrb[0].mxu0
      %v2755 = vpop.f32.mrb[0].mxu0
      %2756 = vdwg.mxu0
      %v2757 = vmin.f32 %v2752, 20.0
      %v2758 = vmul.f32 %v2757, 1.442695
      %v2759 = vpow.pop %v2758
      %v2760 = vadd.f32 %v2759, 2.0
      %v2761 = vmul.f32 %v2759, %v2760
      %v2762 = vadd.f32 %v2761, 2.0
      %v2763 = vrcp.pop %v2762
      %v2764 = vmul.f32 %v2761, %v2763
      %vm2765 = vcmp.gt.f32.partialorder %v2752, 20.0
      %v2766 = vmul.f32 %v2752, %v2764
      %v2767 = vsel %vm2765, %v2752, %v2766
      %s2768 = scalar_lea.vmem %s212, 24
      %v2769 = vld [vmem:[%s2768] sm:$0xf]
      %v2770 = vunpack.c.l.bf16 %v2769
      %v2771 = vadd.f32 %v2767, %v2770
      %v2772 = vpack.c.bf16 %v2771, %v2771
      %s2773 = scalar_lea.vmem %s217, 24
      %2774 = vst [vmem:[%s2773] sm:$0xf] %v2772
      %v2775 = vld [vmem:[%s2217] sm:$0xf]
      %v2776 = vld [vmem:[%s2217 + $0x4] sm:$0x1]
      %v2777 = vld [vmem:[%s2217] sm:$0xe]
      %v2778 = vld [vmem:[%s2499] sm:$0xf]
      %v2779 = vld [vmem:[%s2499 + $0x4] sm:$0x1]
      %v2780 = vld [vmem:[%s2499] sm:$0xe]
      %s2781 = scalar_lea.vmem %s207, 72
      %v2782 = vld [vmem:[%s2781] sm:$0xf]
      %v2783 = vld [vmem:[%s2781 + $0x4] sm:$0x1]
      %v2784 = vld [vmem:[%s2781] sm:$0xe]
      %v2787 = vunpack.c.l.b16 %v2775
      %v2788 = vunpack.c.l.b16 %v2776
      %v2789 = vpack.c.b16 %v2788, %v2787
      %v2791 = vshrl.u32 %v2789, 16
      %v2793 = vshll.u32 %v2789, 16
      %v2795 = vrot.slane %v2793, 1
      %v2796 = vor.u32 %v2791, %v2795
      %v2799 = vunpack.c.l.b16 %v2777
      %v2800 = vpack.c.b16 %v2788, %v2799
      %v2801 = vrot.slane %v2800, 1
      %v2805 = vunpack.c.l.b16 %v2778
      %v2806 = vunpack.c.l.b16 %v2779
      %v2807 = vpack.c.b16 %v2806, %v2805
      %v2809 = vshrl.u32 %v2807, 16
      %v2811 = vshll.u32 %v2807, 16
      %v2813 = vrot.slane %v2811, 1
      %v2814 = vor.u32 %v2809, %v2813
      %v2817 = vunpack.c.l.b16 %v2780
      %v2818 = vpack.c.b16 %v2806, %v2817
      %v2819 = vrot.slane %v2818, 1
      %v2823 = vunpack.c.l.b16 %v2782
      %v2824 = vunpack.c.l.b16 %v2783
      %v2825 = vpack.c.b16 %v2824, %v2823
      %v2827 = vshrl.u32 %v2825, 16
      %v2829 = vshll.u32 %v2825, 16
      %v2831 = vrot.slane %v2829, 1
      %v2832 = vor.u32 %v2827, %v2831
      %v2835 = vunpack.c.l.b16 %v2784
      %v2836 = vpack.c.b16 %v2824, %v2835
      %v2837 = vrot.slane %v2836, 1
      %2839 = vmatprep.subr.bf16.mxu0 0
      %2840 = vmatpush1.bf16.msra.mxu0 %v723
      %2841 = vmatprep.subr.bf16.mxu0 0
      %2842 = vmatpush1.bf16.msra.mxu0 %v724
      %2843 = vmatprep.subr.bf16.mxu0 0
      %2844 = vmatpush1.bf16.msra.mxu0 %v725
      %2845 = vmatprep.subr.bf16.mxu0 0
      %2846 = vmatpush1.bf16.msra.mxu0 %v726
      %2847 = vmatprep.subr.bf16.mxu0 0
      %2848 = vmatpush1.bf16.msra.mxu0 %v727
      %2849 = vmatprep.subr.bf16.mxu0 0
      %2850 = vmatpush1.bf16.msra.mxu0 %v728
      %2851 = vmatprep.subr.bf16.mxu0 0
      %2852 = vmatpush1.bf16.msra.mxu0 %v729
      %2853 = vmatprep.subr.bf16.mxu0 0
      %2854 = vmatpush1.bf16.msra.mxu0 %v730
      %2855 = vmatprep.subr.bf16.mxu0 0
      %2856 = vmatpush1.bf16.msra.mxu0 %v731
      %2857 = vmatprep.subr.bf16.mxu0 0
      %2858 = vmatpush1.bf16.msra.mxu0 %v732
      %2859 = vmatprep.subr.bf16.mxu0 0
      %2860 = vmatpush1.bf16.msra.mxu0 %v733
      %2861 = vmatprep.subr.bf16.mxu0 0
      %2862 = vmatpush1.bf16.msra.mxu0 %v734
      %2863 = vmatprep.subr.bf16.mxu0 0
      %2864 = vmatpush1.bf16.msra.mxu0 %v735
      %2865 = vmatprep.subr.bf16.mxu0 0
      %2866 = vmatpush1.bf16.msra.mxu0 %v736
      %2867 = vmatprep.subr.bf16.mxu0 0
      %2868 = vmatpush1.bf16.msra.mxu0 %v737
      %2869 = vmatprep.subr.bf16.mxu0 0
      %2870 = vmatpush1.bf16.msra.mxu0 %v738
      %2871 = vmatprep.mubr.bf16.mxu0 %v2796
      %2872 = vmatmul.mubr.bf16.gmra.mrb[0].mxu0 %v2775
      %v2873 = vpop.f32.mrb[0].mxu0
      %v2874 = vadd.f32 %v433, %v2873
      %v2875 = vpop.f32.mrb[0].mxu0
      %v2876 = vpop.f32.mrb[0].mxu0
      %v2877 = vpop.f32.mrb[0].mxu0
      %2878 = vdwg.mxu0
      %2879 = vmatprep.subr.bf16.mxu0 0
      %2880 = vmatpush1.bf16.msra.mxu0 %v739
      %2881 = vmatprep.subr.bf16.mxu0 0
      %2882 = vmatpush1.bf16.msra.mxu0 %v740
      %2883 = vmatprep.subr.bf16.mxu0 0
      %2884 = vmatpush1.bf16.msra.mxu0 %v741
      %2885 = vmatprep.subr.bf16.mxu0 0
      %2886 = vmatpush1.bf16.msra.mxu0 %v742
      %2887 = vmatprep.subr.bf16.mxu0 0
      %2888 = vmatpush1.bf16.msra.mxu0 %v743
      %2889 = vmatprep.subr.bf16.mxu0 0
      %2890 = vmatpush1.bf16.msra.mxu0 %v744
      %2891 = vmatprep.subr.bf16.mxu0 0
      %2892 = vmatpush1.bf16.msra.mxu0 %v745
      %2893 = vmatprep.subr.bf16.mxu0 0
      %2894 = vmatpush1.bf16.msra.mxu0 %v746
      %2895 = vmatprep.subr.bf16.mxu0 0
      %2896 = vmatpush1.bf16.msra.mxu0 %v747
      %2897 = vmatprep.subr.bf16.mxu0 0
      %2898 = vmatpush1.bf16.msra.mxu0 %v748
      %2899 = vmatprep.subr.bf16.mxu0 0
      %2900 = vmatpush1.bf16.msra.mxu0 %v749
      %2901 = vmatprep.subr.bf16.mxu0 0
      %2902 = vmatpush1.bf16.msra.mxu0 %v750
      %2903 = vmatprep.subr.bf16.mxu0 0
      %2904 = vmatpush1.bf16.msra.mxu0 %v751
      %2905 = vmatprep.subr.bf16.mxu0 0
      %2906 = vmatpush1.bf16.msra.mxu0 %v752
      %2907 = vmatprep.subr.bf16.mxu0 0
      %2908 = vmatpush1.bf16.msra.mxu0 %v753
      %2909 = vmatprep.subr.bf16.mxu0 0
      %2910 = vmatpush1.bf16.msra.mxu0 %v754
      %2911 = vmatprep.mubr.bf16.mxu0 %v2778
      %2912 = vmatmul.mubr.bf16.gmra.mrb[0].mxu0 %v2801
      %v2913 = vpop.f32.mrb[0].mxu0
      %v2914 = vadd.f32 %v2874, %v2913
      %v2915 = vpop.f32.mrb[0].mxu0
      %v2916 = vpop.f32.mrb[0].mxu0
      %v2917 = vpop.f32.mrb[0].mxu0
      %2918 = vdwg.mxu0
      %2919 = vmatprep.subr.bf16.mxu0 0
      %2920 = vmatpush1.bf16.msra.mxu0 %v755
      %2921 = vmatprep.subr.bf16.mxu0 0
      %2922 = vmatpush1.bf16.msra.mxu0 %v756
      %2923 = vmatprep.subr.bf16.mxu0 0
      %2924 = vmatpush1.bf16.msra.mxu0 %v757
      %2925 = vmatprep.subr.bf16.mxu0 0
      %2926 = vmatpush1.bf16.msra.mxu0 %v758
      %2927 = vmatprep.subr.bf16.mxu0 0
      %2928 = vmatpush1.bf16.msra.mxu0 %v759
      %2929 = vmatprep.subr.bf16.mxu0 0
      %2930 = vmatpush1.bf16.msra.mxu0 %v760
      %2931 = vmatprep.subr.bf16.mxu0 0
      %2932 = vmatpush1.bf16.msra.mxu0 %v761
      %2933 = vmatprep.subr.bf16.mxu0 0
      %2934 = vmatpush1.bf16.msra.mxu0 %v762
      %2935 = vmatprep.subr.bf16.mxu0 0
      %2936 = vmatpush1.bf16.msra.mxu0 %v763
      %2937 = vmatprep.subr.bf16.mxu0 0
      %2938 = vmatpush1.bf16.msra.mxu0 %v764
      %2939 = vmatprep.subr.bf16.mxu0 0
      %2940 = vmatpush1.bf16.msra.mxu0 %v765
      %2941 = vmatprep.subr.bf16.mxu0 0
      %2942 = vmatpush1.bf16.msra.mxu0 %v766
      %2943 = vmatprep.subr.bf16.mxu0 0
      %2944 = vmatpush1.bf16.msra.mxu0 %v767
      %2945 = vmatprep.subr.bf16.mxu0 0
      %2946 = vmatpush1.bf16.msra.mxu0 %v768
      %2947 = vmatprep.subr.bf16.mxu0 0
      %2948 = vmatpush1.bf16.msra.mxu0 %v769
      %2949 = vmatprep.subr.bf16.mxu0 0
      %2950 = vmatpush1.bf16.msra.mxu0 %v770
      %2951 = vmatprep.mubr.bf16.mxu0 %v2819
      %2952 = vmatmul.mubr.bf16.gmra.mrb[0].mxu0 %v2814
      %v2953 = vpop.f32.mrb[0].mxu0
      %v2954 = vadd.f32 %v2914, %v2953
      %v2955 = vpop.f32.mrb[0].mxu0
      %v2956 = vpop.f32.mrb[0].mxu0
      %v2957 = vpop.f32.mrb[0].mxu0
      %2958 = vdwg.mxu0
      %2959 = vmatprep.subr.bf16.mxu0 0
      %2960 = vmatpush1.bf16.msra.mxu0 %v771
      %2961 = vmatprep.subr.bf16.mxu0 0
      %2962 = vmatpush1.bf16.msra.mxu0 %v772
      %2963 = vmatprep.subr.bf16.mxu0 0
      %2964 = vmatpush1.bf16.msra.mxu0 %v773
      %2965 = vmatprep.subr.bf16.mxu0 0
      %2966 = vmatpush1.bf16.msra.mxu0 %v774
      %2967 = vmatprep.subr.bf16.mxu0 0
      %2968 = vmatpush1.bf16.msra.mxu0 %v775
      %2969 = vmatprep.subr.bf16.mxu0 0
      %2970 = vmatpush1.bf16.msra.mxu0 %v776
      %2971 = vmatprep.subr.bf16.mxu0 0
      %2972 = vmatpush1.bf16.msra.mxu0 %v777
      %2973 = vmatprep.subr.bf16.mxu0 0
      %2974 = vmatpush1.bf16.msra.mxu0 %v778
      %2975 = vmatprep.subr.bf16.mxu0 0
      %2976 = vmatpush1.bf16.msra.mxu0 %v779
      %2977 = vmatprep.subr.bf16.mxu0 0
      %2978 = vmatpush1.bf16.msra.mxu0 %v780
      %2979 = vmatprep.subr.bf16.mxu0 0
      %2980 = vmatpush1.bf16.msra.mxu0 %v781
      %2981 = vmatprep.subr.bf16.mxu0 0
      %2982 = vmatpush1.bf16.msra.mxu0 %v782
      %2983 = vmatprep.subr.bf16.mxu0 0
      %2984 = vmatpush1.bf16.msra.mxu0 %v783
      %2985 = vmatprep.subr.bf16.mxu0 0
      %2986 = vmatpush1.bf16.msra.mxu0 %v784
      %2987 = vmatprep.subr.bf16.mxu0 0
      %2988 = vmatpush1.bf16.msra.mxu0 %v785
      %2989 = vmatprep.subr.bf16.mxu0 0
      %2990 = vmatpush1.bf16.msra.mxu0 %v786
      %2991 = vmatprep.mubr.bf16.mxu0 %v2832
      %2992 = vmatmul.mubr.bf16.gmra.mrb[0].mxu0 %v2782
      %v2993 = vpop.f32.mrb[0].mxu0
      %v2994 = vadd.f32 %v2954, %v2993
      %v2995 = vpop.f32.mrb[0].mxu0
      %v2996 = vpop.f32.mrb[0].mxu0
      %v2997 = vpop.f32.mrb[0].mxu0
      %2998 = vdwg.mxu0
      %2999 = vmatprep.subr.bf16.mxu0 0
      %3000 = vmatpush1.bf16.msra.mxu0 %v787
      %3001 = vmatprep.subr.bf16.mxu0 0
      %3002 = vmatpush1.bf16.msra.mxu0 %v788
      %3003 = vmatprep.subr.bf16.mxu0 0
      %3004 = vmatpush1.bf16.msra.mxu0 %v789
      %3005 = vmatprep.subr.bf16.mxu0 0
      %3006 = vmatpush1.bf16.msra.mxu0 %v790
      %3007 = vmatprep.subr.bf16.mxu0 0
      %3008 = vmatpush1.bf16.msra.mxu0 %v791
      %3009 = vmatprep.subr.bf16.mxu0 0
      %3010 = vmatpush1.bf16.msra.mxu0 %v792
      %3011 = vmatprep.subr.bf16.mxu0 0
      %3012 = vmatpush1.bf16.msra.mxu0 %v793
      %3013 = vmatprep.subr.bf16.mxu0 0
      %3014 = vmatpush1.bf16.msra.mxu0 %v794
      %3015 = vmatprep.subr.bf16.mxu0 0
      %3016 = vmatpush1.bf16.msra.mxu0 0
      %3017 = vmatprep.subr.bf16.mxu0 0
      %3018 = vmatpush1.bf16.msra.mxu0 0
      %3019 = vmatprep.subr.bf16.mxu0 0
      %3020 = vmatpush1.bf16.msra.mxu0 0
      %3021 = vmatprep.subr.bf16.mxu0 0
      %3022 = vmatpush1.bf16.msra.mxu0 0
      %3023 = vmatprep.subr.bf16.mxu0 0
      %3024 = vmatpush1.bf16.msra.mxu0 0
      %3025 = vmatprep.subr.bf16.mxu0 0
      %3026 = vmatpush1.bf16.msra.mxu0 0
      %3027 = vmatprep.subr.bf16.mxu0 0
      %3028 = vmatpush1.bf16.msra.mxu0 0
      %3029 = vmatprep.subr.bf16.mxu0 0
      %3030 = vmatpush1.bf16.msra.mxu0 0
      %3031 = vmatprep.mubr.bf16.mxu0 0
      %3032 = vmatmul.mubr.bf16.gmra.mrb[0].mxu0 %v2837
      %v3033 = vpop.f32.mrb[0].mxu0
      %v3034 = vadd.f32 %v2994, %v3033
      %v3035 = vpop.f32.mrb[0].mxu0
      %v3036 = vpop.f32.mrb[0].mxu0
      %v3037 = vpop.f32.mrb[0].mxu0
      %3038 = vdwg.mxu0
      %v3039 = vmin.f32 %v3034, 20.0
      %v3040 = vmul.f32 %v3039, 1.442695
      %v3041 = vpow.pop %v3040
      %v3042 = vadd.f32 %v3041, 2.0
      %v3043 = vmul.f32 %v3041, %v3042
      %v3044 = vadd.f32 %v3043, 2.0
      %v3045 = vrcp.pop %v3044
      %v3046 = vmul.f32 %v3043, %v3045
      %vm3047 = vcmp.gt.f32.partialorder %v3034, 20.0
      %v3048 = vmul.f32 %v3034, %v3046
      %v3049 = vsel %vm3047, %v3034, %v3048
      %s3050 = scalar_lea.vmem %s212, 28
      %v3051 = vld [vmem:[%s3050] sm:$0xf]
      %v3052 = vunpack.c.l.bf16 %v3051
      %v3053 = vadd.f32 %v3049, %v3052
      %v3054 = vpack.c.bf16 %v3053, %v3053
      %s3055 = scalar_lea.vmem %s217, 28
      %3056 = vst [vmem:[%s3055] sm:$0xf] %v3054
      %p3057 = scmp.lt.s32.totalorder %s15, 1
      %s3058 = scalar_select %p3057, %s15, 1
      %s3059 = smul.addr %s3058, 8
      %s3060 = smul.addr %s3059, 4
      %s3061 = scalar_lea.vmem %s4, %s3060
      // Predicated region
      $region37: #{resblock_body_forward.11} parent=35 // pred_check
        %p3062 = pneg %p127
      $region38: #{resblock_body_forward.11} parent=35 // pred_check_branch
        %3064 = sbr.rel (%p3062) target = $region40
      $region39: #{resblock_body_forward.11} parent=35 // pred_region
        _
      $region40: #{resblock_body_forward.11} parent=35 // pred_fallthru
        _
    $region36: #{resblock_body_forward.11} parent=5 // pred_fallthru
      _
    %p3065 = scmp.le.s32.totalorder 2, %s10
    // Predicated region
    $region41: #{resblock_body_forward.11} parent=5 // pred_check
      %p3066 = pneg %p3065
    $region42: #{resblock_body_forward.11} parent=5 // pred_check_branch
      %3068 = sbr.rel (%p3066) target = $region44
    $region43: #{resblock_body_forward.11} parent=5 // pred_region
      %s3069 = ssub.s32 %s10, 2
      // Predicated region
      $region45: #{resblock_body_forward.11} parent=43 // pred_check
        %p3070 = pneg %p133
      $region46: #{resblock_body_forward.11} parent=43 // pred_check_branch
        %3072 = sbr.rel (%p3070) target = $region48
      $region47: #{resblock_body_forward.11} parent=43 // pred_region
        %p3073 = scmp.lt.s32.totalorder %s16, 1
        %s3074 = scalar_select %p3073, %s16, 1
        %s3075 = smul.addr %s3074, 8
        %s3076 = smul.addr %s3075, 4
        %s3077 = scalar_lea.vmem %s4, %s3076
      $region48: #{resblock_body_forward.11} parent=43 // pred_fallthru
        _
    $region44: #{resblock_body_forward.11} parent=5 // pred_fallthru
      _
  $region6: #{resblock_body_forward.11} parent=0 // loop_footer
    %s14 = sadd.s32 1, %s10
  $region7: #{resblock_body_forward.11} parent=0 // loop_footer_branch
    %9 = sbr.rel target = $region3
  $region8: #{resblock_body_forward.11} parent=0 // loop_exit
    _

</llo_original>
